<compile_context>
chip_gen: v7x
topology: tpu7x:2x2x1
jax: 0.10.0
libtpu: 0.0.40
codegen_flags: <defaults>
</compile_context>

<pallas_src>
import functools

import numpy as np

import jax
import jax.numpy as jnp
from jax import lax
from jax.experimental import pallas as pl
from jax.experimental.pallas import tpu as pltpu

# Sized for v7x's 64 MiB physical VMEM (per review); v5e/v6e have headroom.
_VMEM_LIMIT = 48 * 1024 * 1024


def _round_up(x, m):
    return (x + m - 1) // m * m


# --------------------------------------------------------------------------
# Host-side constant builders (masks, selection matrix, folded weights)
# --------------------------------------------------------------------------

def _spatial_interior_mask(H, W, SP):
    """Per-depth 0/1 mask of length SP: 1 at interior canvas positions."""
    Hc, Wc = H + 2, W + 2
    hh, ww = np.meshgrid(np.arange(Hc), np.arange(Wc), indexing="ij")
    inner = ((hh >= 1) & (hh <= H) & (ww >= 1) & (ww <= W)).astype(np.float32)
    m = np.zeros((SP,), np.float32)
    m[:Hc * Wc] = inner.ravel()
    return m


def _in_conv1_mask(H, W, SP, D):
    """(1, (D+2)*SP) mask: zero at depth-pad slots, spatial ring, lane pad."""
    per = _spatial_interior_mask(H, W, SP)
    zero = np.zeros_like(per)
    return jnp.asarray(np.concatenate([zero] + [per] * D + [zero]).reshape(1, -1))


def _decode_mask(Ho, Wo, SPm, D):
    """(1, D*SPm) mask: zero at spatial ring / lane pad of every depth."""
    per = _spatial_interior_mask(Ho, Wo, SPm)
    return jnp.asarray(np.tile(per, D).reshape(1, -1))


def _make_sel(H, W, SP_in, SP_mid):
    """bf16 0/1 matrix: dense stride-1 canvas -> stride-2 zero-ring canvas.

    Non-selected output lanes (ring / lane pad) come out exactly zero, which
    the following conv relies on as its zero padding.
    """
    Wc = W + 2
    Ho, Wo = (H - 1) // 2 + 1, (W - 1) // 2 + 1
    Hm, Wm = Ho + 2, Wo + 2
    sel = np.zeros((SP_in, SP_mid), np.float32)
    src = ((2 * np.arange(Ho)[:, None] + 1) * Wc
           + (2 * np.arange(Wo)[None, :] + 1)).ravel()
    dst = ((np.arange(Ho)[:, None] + 1) * Wm
           + (np.arange(Wo)[None, :] + 1)).ravel()
    sel[src, dst] = 1.0
    return jnp.asarray(sel, dtype=jnp.bfloat16)


def _prep_conv(p, cin_pad, cout_pad, eps=1e-5):
    """Fold Conv bias + eval BatchNorm into (bf16 weight, f32 scale, shift).

    Channel dims are zero-padded to `cin_pad`/`cout_pad` (multiples of 8) so
    the in-kernel im2col concatenation is sublane-tile aligned.
    """
    w = p["w"]                                   # (taps, cin, cout)
    taps, cin, cout = w.shape
    scale = p["gamma"] / jnp.sqrt(p["var"] + eps)
    shift = p["beta"] - p["mean"] * scale + p["b"] * scale
    w = jnp.pad(w, ((0, 0), (0, cin_pad - cin), (0, cout_pad - cout)))
    scale = jnp.pad(scale, (0, cout_pad - cout))
    shift = jnp.pad(shift, (0, cout_pad - cout))
    w = w.reshape(taps * cin_pad, cout_pad).T.astype(jnp.bfloat16)
    return (w,
            scale.reshape(cout_pad, 1).astype(jnp.float32),
            shift.reshape(cout_pad, 1).astype(jnp.float32))


def _const_spec(a):
    n = a.ndim
    return pl.BlockSpec(tuple(a.shape), lambda b, n=n: (0,) * n)


# --------------------------------------------------------------------------
# Pallas kernels
# --------------------------------------------------------------------------

def _in_conv1_kernel(x_ref, w1_ref, s1_ref, t1_ref, w2_ref, s2_ref, t2_ref,
                     mask_ref, o_ref, *, SP, Wc, D):
    """Fused DoubleConv3d 3x3x3/s1/p1 over the full (C, (D+2)*SP) canvas."""
    L = x_ref.shape[-1]                       # (D + 2) * SP lanes
    mask = mask_ref[...]                      # (1, L) f32
    offs = [(a - 1) * SP + (dh - 1) * Wc + (dw - 1)
            for a in range(3) for dh in range(3) for dw in range(3)]

    def conv_bn_relu(v, w_ref, s_ref, t_ref):
        # 27 lane rolls (XLU) -> one stacked bf16 matmul on the MXU.
        taps = [v if o == 0 else pltpu.roll(v, shift=(-o) % L, axis=1)
                for o in offs]
        im2col = jnp.concatenate(taps, axis=0).astype(jnp.bfloat16)
        h = jnp.dot(w_ref[...], im2col, preferred_element_type=jnp.float32)
        # Mask keeps the zero ring / depth-pad slots exactly zero, which the
        # next conv relies on as its padding.
        return jnp.maximum(h * s_ref[...] + t_ref[...], 0.0) * mask

    x = x_ref[0].astype(jnp.float32)
    h1 = conv_bn_relu(x, w1_ref, s1_ref, t1_ref)
    h2 = conv_bn_relu(h1, w2_ref, s2_ref, t2_ref)
    # Drop the two depth-padding slots; the lane slice is 128-aligned.
    o_ref[0] = h2[:, SP:(D + 1) * SP].astype(jnp.bfloat16)


def _decode_kernel(x_ref, w1_ref, s1_ref, t1_ref, sel_ref, w2_ref, s2_ref,
                   t2_ref, mask_ref, o_ref, *, SP_in, SP_mid, Wc_in, Wm, D,
                   last):
    """Fused decode DoubleConv3d (1x3x3, stride [1,2,2] then 1, pad [0,1,1]).

    When `last` is True the global max-pool over (D,H,W) is fused in.
    """
    L_in = D * SP_in
    L_mid = D * SP_mid

    def conv(v, w_ref, W, L):
        offs = [(dh - 1) * W + (dw - 1) for dh in range(3) for dw in range(3)]
        taps = [v if o == 0 else pltpu.roll(v, shift=(-o) % L, axis=1)
                for o in offs]
        im2col = jnp.concatenate(taps, axis=0).astype(jnp.bfloat16)
        return jnp.dot(w_ref[...], im2col, preferred_element_type=jnp.float32)

    # conv1 (dense, stride 1) + BN + ReLU on the input canvas.
    x = x_ref[0].astype(jnp.float32)                     # (Cin, D*SP_in)
    h1 = conv(x, w1_ref, Wc_in, L_in)
    h1 = jnp.maximum(h1 * s1_ref[...] + t1_ref[...], 0.0).astype(jnp.bfloat16)

    # Stride-[2,2] subsample + zero-ring re-pad: small bf16 0/1 selection
    # matmul, applied per depth (block-diagonal structure, no O((D*S)^2)).
    sel = sel_ref[...]                                   # (SP_in, SP_mid) bf16
    mid = jnp.concatenate(
        [jnp.dot(h1[:, d * SP_in:(d + 1) * SP_in], sel,
                 preferred_element_type=jnp.float32) for d in range(D)],
        axis=1)                                          # (C1, D*SP_mid) f32

    # conv2 (stride 1) + BN + ReLU + interior mask on the mid canvas.
    h2 = conv(mid, w2_ref, Wm, L_mid)
    h2 = jnp.maximum(h2 * s2_ref[...] + t2_ref[...], 0.0) * mask_ref[...]

    if last:
        # Fused global max-pool; valid only because h2 >= 0 (post-ReLU) and
        # the masked ring / pad lanes are exactly zero.
        o_ref[0] = jnp.max(h2, axis=1, keepdims=True)    # (C1, 1)
    else:
        o_ref[0] = h2.astype(jnp.bfloat16)               # lane-dense store


def _canvas_maxpool_kernel(x_ref, o_ref):
    """Fallback global max-pool (decode_layers == 0); relies on ReLU >= 0."""
    o_ref[0] = jnp.max(x_ref[0].astype(jnp.float32), axis=1, keepdims=True)


def _fc_head_kernel(*refs, n_fc):
    """Fused FC head: (Linear -> LayerNorm -> ReLU) x n_fc  +  final Linear."""
    h = refs[0][...]
    idx = 1
    for _ in range(n_fc):
        w, b, g, be = refs[idx], refs[idx + 1], refs[idx + 2], refs[idx + 3]
        idx += 4
        h = jnp.dot(h, w[...], preferred_element_type=jnp.float32) + b[...]
        mu = jnp.mean(h, axis=-1, keepdims=True)
        dlt = h - mu
        var = jnp.mean(dlt * dlt, axis=-1, keepdims=True)
        h = jnp.maximum(dlt * lax.rsqrt(var + 1e-5) * g[...] + be[...], 0.0)
    wo, bo, o_ref = refs[idx], refs[idx + 1], refs[idx + 2]
    o_ref[...] = jnp.dot(h, wo[...], preferred_element_type=jnp.float32) + bo[...]


# --------------------------------------------------------------------------
# Stage wrappers (pallas_call plumbing)
# --------------------------------------------------------------------------

def _in_conv1_stage(xcanvas, p, H, W, D, SP):
    B, Cin_p, _ = xcanvas.shape
    c1 = p["conv1"]["w"].shape[-1]
    C1p = _round_up(c1, 8)
    w1, s1, t1 = _prep_conv(p["conv1"], Cin_p, C1p)
    w2, s2, t2 = _prep_conv(p["conv2"], C1p, C1p)
    mask = _in_conv1_mask(H, W, SP, D)
    kernel = functools.partial(_in_conv1_kernel, SP=SP, Wc=W + 2, D=D)
    consts = (w1, s1, t1, w2, s2, t2, mask)
    return pl.pallas_call(
        kernel,
        out_shape=jax.ShapeDtypeStruct((B, C1p, D * SP), jnp.bfloat16),
        grid=(B,),
        in_specs=[pl.BlockSpec((1, Cin_p, (D + 2) * SP), lambda b: (b, 0, 0))]
                 + [_const_spec(a) for a in consts],
        out_specs=pl.BlockSpec((1, C1p, D * SP), lambda b: (b, 0, 0)),
        compiler_params=pltpu.CompilerParams(
            dimension_semantics=("parallel",),
            vmem_limit_bytes=_VMEM_LIMIT),
    )(xcanvas, *consts)


def _decode_stage(canvas, p, H, W, D, SP_in, last):
    B, Cin_p, L_in = canvas.shape
    Ho, Wo = (H - 1) // 2 + 1, (W - 1) // 2 + 1
    Hm, Wm = Ho + 2, Wo + 2
    SP_mid = _round_up(Hm * Wm, 128)
    c1 = p["conv1"]["w"].shape[-1]
    C1p = _round_up(c1, 8)
    w1, s1, t1 = _prep_conv(p["conv1"], Cin_p, C1p)
    w2, s2, t2 = _prep_conv(p["conv2"], C1p, C1p)
    sel = _make_sel(H, W, SP_in, SP_mid)
    maskm = _decode_mask(Ho, Wo, SP_mid, D)
    kernel = functools.partial(_decode_kernel, SP_in=SP_in, SP_mid=SP_mid,
                               Wc_in=W + 2, Wm=Wm, D=D, last=last)
    if last:
        out_shape = jax.ShapeDtypeStruct((B, C1p, 1), jnp.float32)
        out_spec = pl.BlockSpec((1, C1p, 1), lambda b: (b, 0, 0))
    else:
        out_shape = jax.ShapeDtypeStruct((B, C1p, D * SP_mid), jnp.bfloat16)
        out_spec = pl.BlockSpec((1, C1p, D * SP_mid), lambda b: (b, 0, 0))
    consts = (w1, s1, t1, sel, w2, s2, t2, maskm)
    out = pl.pallas_call(
        kernel,
        out_shape=out_shape,
        grid=(B,),
        in_specs=[pl.BlockSpec((1, Cin_p, L_in), lambda b: (b, 0, 0))]
                 + [_const_spec(a) for a in consts],
        out_specs=out_spec,
        compiler_params=pltpu.CompilerParams(
            dimension_semantics=("parallel",),
            vmem_limit_bytes=_VMEM_LIMIT),
    )(canvas, *consts)
    return out, Ho, Wo, SP_mid


def _canvas_maxpool(canvas):
    B, C, L = canvas.shape
    return pl.pallas_call(
        _canvas_maxpool_kernel,
        out_shape=jax.ShapeDtypeStruct((B, C, 1), jnp.float32),
        grid=(B,),
        in_specs=[pl.BlockSpec((1, C, L), lambda b: (b, 0, 0))],
        out_specs=pl.BlockSpec((1, C, 1), lambda b: (b, 0, 0)),
        compiler_params=pltpu.CompilerParams(
            dimension_semantics=("parallel",),
            vmem_limit_bytes=_VMEM_LIMIT),
    )(canvas)


def _fc_head(x, fcs, fc_out):
    B, F = x.shape
    args = [x]
    for p in fcs:
        args += [p["w"], p["b"].reshape(1, F),
                 p["gamma"].reshape(1, F), p["beta"].reshape(1, F)]
    n_out = fc_out["w"].shape[1]
    args += [fc_out["w"], fc_out["b"].reshape(1, n_out)]
    return pl.pallas_call(
        functools.partial(_fc_head_kernel, n_fc=len(fcs)),
        out_shape=jax.ShapeDtypeStruct((B, n_out), jnp.float32),
        compiler_params=pltpu.CompilerParams(vmem_limit_bytes=_VMEM_LIMIT),
    )(*args)


# --------------------------------------------------------------------------
# Parameter construction (deterministic, synthetic) and forward pass
# --------------------------------------------------------------------------

def _make_conv_block(key, taps, cin, cout):
    kw_, kb_ = jax.random.split(key)
    fan_in = taps * cin
    w = jax.random.normal(kw_, (taps, cin, cout), jnp.float32) / jnp.sqrt(fan_in)
    b = 0.01 * jax.random.normal(kb_, (cout,), jnp.float32)
    return dict(w=w, b=b,
                gamma=jnp.ones((cout,), jnp.float32),
                beta=jnp.zeros((cout,), jnp.float32),
                mean=jnp.zeros((cout,), jnp.float32),
                var=jnp.ones((cout,), jnp.float32))


def init_linet3d_params(key, in_ch, out_ch, first_conv_out_ch=32,
                        decode_layers=3, fc_layers=3):
    keys = iter(jax.random.split(key, 128))
    fco = first_conv_out_ch
    params = {
        "in_conv1": {"conv1": _make_conv_block(next(keys), 27, in_ch, fco),
                     "conv2": _make_conv_block(next(keys), 27, fco, fco)},
        "decode": [],
        "fcs": [],
    }
    for i in range(decode_layers):
        cin = (2 ** i) * fco
        cout = (2 ** (i + 1)) * fco
        params["decode"].append(
            {"conv1": _make_conv_block(next(keys), 9, cin, cout),
             "conv2": _make_conv_block(next(keys), 9, cout, cout)})
    F = (2 ** decode_layers) * fco
    for _ in range(fc_layers - 1):
        k1, k2 = jax.random.split(next(keys))
        params["fcs"].append(dict(
            w=jax.random.normal(k1, (F, F), jnp.float32) / jnp.sqrt(F),
            b=0.01 * jax.random.normal(k2, (F,), jnp.float32),
            gamma=jnp.ones((F,), jnp.float32),
            beta=jnp.zeros((F,), jnp.float32)))
    k1, k2 = jax.random.split(next(keys))
    params["fc_out"] = dict(
        w=jax.random.normal(k1, (F, out_ch), jnp.float32) / jnp.sqrt(F),
        b=0.01 * jax.random.normal(k2, (out_ch,), jnp.float32))
    return params


def linet3d_forward(params, x_ncdhw):
    B, Cin, D, H, W = x_ncdhw.shape
    Hc, Wc = H + 2, W + 2
    S = Hc * Wc
    SP = _round_up(S, 128)
    Cin_p = _round_up(Cin, 8)

    # One-time canvas build: channel-major, zero spatial ring, flattened
    # spatial on lanes (padded to a 128 multiple), one zero depth slot/side.
    x = jnp.pad(x_ncdhw, ((0, 0), (0, Cin_p - Cin), (0, 0), (1, 1), (1, 1)))
    x = x.reshape(B, Cin_p, D, S)
    x = jnp.pad(x, ((0, 0), (0, 0), (1, 1), (0, SP - S)))
    x = x.reshape(B, Cin_p, (D + 2) * SP).astype(jnp.bfloat16)

    canvas = _in_conv1_stage(x, params["in_conv1"], H, W, D, SP)

    feat = None
    n_dec = len(params["decode"])
    for i, sp in enumerate(params["decode"]):
        last = i == n_dec - 1
        out, H, W, SP = _decode_stage(canvas, sp, H, W, D, SP, last)
        if last:
            feat = out                      # (B, C_final_pad, 1) fused max-pool
        else:
            canvas = out
    if feat is None:                        # decode_layers == 0 fallback
        feat = _canvas_maxpool(canvas)

    F = params["fc_out"]["w"].shape[0]
    feat = feat.reshape(B, -1)[:, :F].astype(jnp.float32)
    return _fc_head(feat, params["fcs"], params["fc_out"])


# --------------------------------------------------------------------------

if __name__ == "__main__":
    key = jax.random.PRNGKey(0)
    pkey, xkey = jax.random.split(key)

    in_ch, out_ch = 2, 3
    first_conv_out_ch, decode_layers, fc_layers = 8, 2, 3

    params = init_linet3d_params(pkey, in_ch, out_ch,
                                 first_conv_out_ch=first_conv_out_ch,
                                 decode_layers=decode_layers,
                                 fc_layers=fc_layers)

    # Small NCDHW input: (batch=2, channels=2, D=4, H=16, W=16)
    x = jax.random.normal(xkey, (2, in_ch, 4, 16, 16), jnp.float32)

    fwd = jax.jit(lambda inp: linet3d_forward(params, inp))
    y = jax.block_until_ready(fwd(x))

    assert y.shape == (2, out_ch), y.shape
    assert bool(jnp.all(jnp.isfinite(y)))
    print("KERNEL_OK")
</pallas_src>

<mosaic_0001>
module attributes {stable_mosaic.version = 11 : i64} {
  func.func @_decode_kernel(%arg0: i32, %arg1: memref<1x8x1536xbf16, #tpu.memory_space<vmem>>, %arg2: memref<16x72xbf16, #tpu.memory_space<vmem>>, %arg3: memref<16x1xf32, #tpu.memory_space<vmem>>, %arg4: memref<16x1xf32, #tpu.memory_space<vmem>>, %arg5: memref<384x128xbf16, #tpu.memory_space<vmem>>, %arg6: memref<16x144xbf16, #tpu.memory_space<vmem>>, %arg7: memref<16x1xf32, #tpu.memory_space<vmem>>, %arg8: memref<16x1xf32, #tpu.memory_space<vmem>>, %arg9: memref<1x512xf32, #tpu.memory_space<vmem>>, %arg10: memref<1x16x512xbf16, #tpu.memory_space<vmem>>) attributes {dimension_semantics = [#tpu.dimension_semantics<parallel>], iteration_bounds = array<i64: 2>, scalar_prefetch = 0 : i64, scratch_operands = 0 : i64, tpu.core_type = #tpu.core_type<tc>, window_params = [{transform_indices = @transform_0, window_bounds = array<i64: 1, 8, 1536>}, {pipeline_mode = #tpu.pipeline_mode<synchronous>, transform_indices = @transform_1, window_bounds = array<i64: 16, 72>}, {pipeline_mode = #tpu.pipeline_mode<synchronous>, transform_indices = @transform_2, window_bounds = array<i64: 16, 1>}, {pipeline_mode = #tpu.pipeline_mode<synchronous>, transform_indices = @transform_3, window_bounds = array<i64: 16, 1>}, {pipeline_mode = #tpu.pipeline_mode<synchronous>, transform_indices = @transform_4, window_bounds = array<i64: 384, 128>}, {pipeline_mode = #tpu.pipeline_mode<synchronous>, transform_indices = @transform_5, window_bounds = array<i64: 16, 144>}, {pipeline_mode = #tpu.pipeline_mode<synchronous>, transform_indices = @transform_6, window_bounds = array<i64: 16, 1>}, {pipeline_mode = #tpu.pipeline_mode<synchronous>, transform_indices = @transform_7, window_bounds = array<i64: 16, 1>}, {pipeline_mode = #tpu.pipeline_mode<synchronous>, transform_indices = @transform_8, window_bounds = array<i64: 1, 512>}, {transform_indices = @transform_9, window_bounds = array<i64: 1, 16, 512>}]} {
    %c0 = arith.constant 0 : index
    %c0_0 = arith.constant 0 : index
    %c0_1 = arith.constant 0 : index
    %0 = vector.load %arg1[%c0, %c0_0, %c0_1] : memref<1x8x1536xbf16, #tpu.memory_space<vmem>>, vector<1x8x1536xbf16>
    %1 = vector.shape_cast %0 : vector<1x8x1536xbf16> to vector<8x1536xbf16>
    %2 = arith.extf %1 : vector<8x1536xbf16> to vector<8x1536xf32>
    %c19_i32 = arith.constant 19 : i32
    %3 = tpu.dynamic_rotate %2 by %c19_i32 dim 1 : vector<8x1536xf32>, i32 -> vector<8x1536xf32>
    %c18_i32 = arith.constant 18 : i32
    %4 = tpu.dynamic_rotate %2 by %c18_i32 dim 1 : vector<8x1536xf32>, i32 -> vector<8x1536xf32>
    %c17_i32 = arith.constant 17 : i32
    %5 = tpu.dynamic_rotate %2 by %c17_i32 dim 1 : vector<8x1536xf32>, i32 -> vector<8x1536xf32>
    %c1_i32 = arith.constant 1 : i32
    %6 = tpu.dynamic_rotate %2 by %c1_i32 dim 1 : vector<8x1536xf32>, i32 -> vector<8x1536xf32>
    %c1535_i32 = arith.constant 1535 : i32
    %7 = tpu.dynamic_rotate %2 by %c1535_i32 dim 1 : vector<8x1536xf32>, i32 -> vector<8x1536xf32>
    %c1519_i32 = arith.constant 1519 : i32
    %8 = tpu.dynamic_rotate %2 by %c1519_i32 dim 1 : vector<8x1536xf32>, i32 -> vector<8x1536xf32>
    %c1518_i32 = arith.constant 1518 : i32
    %9 = tpu.dynamic_rotate %2 by %c1518_i32 dim 1 : vector<8x1536xf32>, i32 -> vector<8x1536xf32>
    %c1517_i32 = arith.constant 1517 : i32
    %10 = tpu.dynamic_rotate %2 by %c1517_i32 dim 1 : vector<8x1536xf32>, i32 -> vector<8x1536xf32>
    %11 = tpu.concatenate %3, %4, %5, %6, %2, %7, %8, %9, %10 in 0 : vector<8x1536xf32>, vector<8x1536xf32>, vector<8x1536xf32>, vector<8x1536xf32>, vector<8x1536xf32>, vector<8x1536xf32>, vector<8x1536xf32>, vector<8x1536xf32>, vector<8x1536xf32> -> vector<72x1536xf32>
    %12 = arith.truncf %11 : vector<72x1536xf32> to vector<72x1536xbf16>
    %c0_2 = arith.constant 0 : index
    %c0_3 = arith.constant 0 : index
    %13 = vector.load %arg2[%c0_2, %c0_3] : memref<16x72xbf16, #tpu.memory_space<vmem>>, vector<16x72xbf16>
    %cst = arith.constant dense<0.000000e+00> : vector<16x1536xf32>
    %14 = tpu.matmul %13, %12, %cst {dimension_numbers = #tpu.dot_dimension_numbers<[1], [0], [0], [1], [0, 0, 1, 1], [], []>} : vector<16x72xbf16>, vector<72x1536xbf16>, vector<16x1536xf32> -> vector<16x1536xf32>
    %c0_4 = arith.constant 0 : index
    %c0_5 = arith.constant 0 : index
    %15 = vector.load %arg3[%c0_4, %c0_5] : memref<16x1xf32, #tpu.memory_space<vmem>>, vector<16x1xf32>
    %16 = vector.broadcast %15 : vector<16x1xf32> to vector<16x1536xf32>
    %17 = arith.mulf %14, %16 : vector<16x1536xf32>
    %c0_6 = arith.constant 0 : index
    %c0_7 = arith.constant 0 : index
    %18 = vector.load %arg4[%c0_6, %c0_7] : memref<16x1xf32, #tpu.memory_space<vmem>>, vector<16x1xf32>
    %19 = vector.broadcast %18 : vector<16x1xf32> to vector<16x1536xf32>
    %20 = arith.addf %17, %19 : vector<16x1536xf32>
    %cst_8 = arith.constant 0.000000e+00 : f32
    %21 = vector.broadcast %cst_8 : f32 to vector<16x1536xf32>
    %22 = arith.maximumf %20, %21 : vector<16x1536xf32>
    %23 = arith.truncf %22 : vector<16x1536xf32> to vector<16x1536xbf16>
    %c0_9 = arith.constant 0 : index
    %c0_10 = arith.constant 0 : index
    %24 = vector.load %arg5[%c0_9, %c0_10] : memref<384x128xbf16, #tpu.memory_space<vmem>>, vector<384x128xbf16>
    %25 = vector.extract_strided_slice %23 {offsets = [0, 0], sizes = [16, 384], strides = [1, 1]} : vector<16x1536xbf16> to vector<16x384xbf16>
    %cst_11 = arith.constant dense<0.000000e+00> : vector<16x128xf32>
    %26 = tpu.matmul %25, %24, %cst_11 {dimension_numbers = #tpu.dot_dimension_numbers<[1], [0], [0], [1], [0, 0, 1, 1], [], []>} : vector<16x384xbf16>, vector<384x128xbf16>, vector<16x128xf32> -> vector<16x128xf32>
    %27 = vector.extract_strided_slice %23 {offsets = [0, 384], sizes = [16, 384], strides = [1, 1]} : vector<16x1536xbf16> to vector<16x384xbf16>
    %cst_12 = arith.constant dense<0.000000e+00> : vector<16x128xf32>
    %28 = tpu.matmul %27, %24, %cst_12 {dimension_numbers = #tpu.dot_dimension_numbers<[1], [0], [0], [1], [0, 0, 1, 1], [], []>} : vector<16x384xbf16>, vector<384x128xbf16>, vector<16x128xf32> -> vector<16x128xf32>
    %29 = vector.extract_strided_slice %23 {offsets = [0, 768], sizes = [16, 384], strides = [1, 1]} : vector<16x1536xbf16> to vector<16x384xbf16>
    %cst_13 = arith.constant dense<0.000000e+00> : vector<16x128xf32>
    %30 = tpu.matmul %29, %24, %cst_13 {dimension_numbers = #tpu.dot_dimension_numbers<[1], [0], [0], [1], [0, 0, 1, 1], [], []>} : vector<16x384xbf16>, vector<384x128xbf16>, vector<16x128xf32> -> vector<16x128xf32>
    %31 = vector.extract_strided_slice %23 {offsets = [0, 1152], sizes = [16, 384], strides = [1, 1]} : vector<16x1536xbf16> to vector<16x384xbf16>
    %cst_14 = arith.constant dense<0.000000e+00> : vector<16x128xf32>
    %32 = tpu.matmul %31, %24, %cst_14 {dimension_numbers = #tpu.dot_dimension_numbers<[1], [0], [0], [1], [0, 0, 1, 1], [], []>} : vector<16x384xbf16>, vector<384x128xbf16>, vector<16x128xf32> -> vector<16x128xf32>
    %33 = tpu.concatenate %26, %28, %30, %32 in 1 : vector<16x128xf32>, vector<16x128xf32>, vector<16x128xf32>, vector<16x128xf32> -> vector<16x512xf32>
    %c11_i32 = arith.constant 11 : i32
    %34 = tpu.dynamic_rotate %33 by %c11_i32 dim 1 : vector<16x512xf32>, i32 -> vector<16x512xf32>
    %c10_i32 = arith.constant 10 : i32
    %35 = tpu.dynamic_rotate %33 by %c10_i32 dim 1 : vector<16x512xf32>, i32 -> vector<16x512xf32>
    %c9_i32 = arith.constant 9 : i32
    %36 = tpu.dynamic_rotate %33 by %c9_i32 dim 1 : vector<16x512xf32>, i32 -> vector<16x512xf32>
    %c1_i32_15 = arith.constant 1 : i32
    %37 = tpu.dynamic_rotate %33 by %c1_i32_15 dim 1 : vector<16x512xf32>, i32 -> vector<16x512xf32>
    %c511_i32 = arith.constant 511 : i32
    %38 = tpu.dynamic_rotate %33 by %c511_i32 dim 1 : vector<16x512xf32>, i32 -> vector<16x512xf32>
    %c503_i32 = arith.constant 503 : i32
    %39 = tpu.dynamic_rotate %33 by %c503_i32 dim 1 : vector<16x512xf32>, i32 -> vector<16x512xf32>
    %c502_i32 = arith.constant 502 : i32
    %40 = tpu.dynamic_rotate %33 by %c502_i32 dim 1 : vector<16x512xf32>, i32 -> vector<16x512xf32>
    %c501_i32 = arith.constant 501 : i32
    %41 = tpu.dynamic_rotate %33 by %c501_i32 dim 1 : vector<16x512xf32>, i32 -> vector<16x512xf32>
    %42 = tpu.concatenate %34, %35, %36, %37, %33, %38, %39, %40, %41 in 0 : vector<16x512xf32>, vector<16x512xf32>, vector<16x512xf32>, vector<16x512xf32>, vector<16x512xf32>, vector<16x512xf32>, vector<16x512xf32>, vector<16x512xf32>, vector<16x512xf32> -> vector<144x512xf32>
    %43 = arith.truncf %42 : vector<144x512xf32> to vector<144x512xbf16>
    %c0_16 = arith.constant 0 : index
    %c0_17 = arith.constant 0 : index
    %44 = vector.load %arg6[%c0_16, %c0_17] : memref<16x144xbf16, #tpu.memory_space<vmem>>, vector<16x144xbf16>
    %cst_18 = arith.constant dense<0.000000e+00> : vector<16x512xf32>
    %45 = tpu.matmul %44, %43, %cst_18 {dimension_numbers = #tpu.dot_dimension_numbers<[1], [0], [0], [1], [0, 0, 1, 1], [], []>} : vector<16x144xbf16>, vector<144x512xbf16>, vector<16x512xf32> -> vector<16x512xf32>
    %c0_19 = arith.constant 0 : index
    %c0_20 = arith.constant 0 : index
    %46 = vector.load %arg7[%c0_19, %c0_20] : memref<16x1xf32, #tpu.memory_space<vmem>>, vector<16x1xf32>
    %47 = vector.broadcast %46 : vector<16x1xf32> to vector<16x512xf32>
    %48 = arith.mulf %45, %47 : vector<16x512xf32>
    %c0_21 = arith.constant 0 : index
    %c0_22 = arith.constant 0 : index
    %49 = vector.load %arg8[%c0_21, %c0_22] : memref<16x1xf32, #tpu.memory_space<vmem>>, vector<16x1xf32>
    %50 = vector.broadcast %49 : vector<16x1xf32> to vector<16x512xf32>
    %51 = arith.addf %48, %50 : vector<16x512xf32>
    %cst_23 = arith.constant 0.000000e+00 : f32
    %52 = vector.broadcast %cst_23 : f32 to vector<16x512xf32>
    %53 = arith.maximumf %51, %52 : vector<16x512xf32>
    %c0_24 = arith.constant 0 : index
    %c0_25 = arith.constant 0 : index
    %54 = vector.load %arg9[%c0_24, %c0_25] : memref<1x512xf32, #tpu.memory_space<vmem>>, vector<1x512xf32>
    %55 = vector.broadcast %54 : vector<1x512xf32> to vector<16x512xf32>
    %56 = arith.mulf %53, %55 : vector<16x512xf32>
    %57 = arith.truncf %56 : vector<16x512xf32> to vector<16x512xbf16>
    %c0_26 = arith.constant 0 : index
    %c0_27 = arith.constant 0 : index
    %c0_28 = arith.constant 0 : index
    %58 = vector.load %arg10[%c0_26, %c0_27, %c0_28] : memref<1x16x512xbf16, #tpu.memory_space<vmem>>, vector<1x16x512xbf16>
    %59 = vector.shape_cast %58 : vector<1x16x512xbf16> to vector<16x512xbf16>
    %60 = vector.shape_cast %57 : vector<16x512xbf16> to vector<1x16x512xbf16>
    tpu.vector_store %arg10[%c0_26, %c0_27, %c0_28], %60 {strides = array<i32>} : memref<1x16x512xbf16, #tpu.memory_space<vmem>>, vector<1x16x512xbf16>,
    return
  }
  func.func @transform_0(%arg0: i32) -> (i32, i32, i32) {
    %c0_i32 = arith.constant 0 : i32
    %c0_i32_0 = arith.constant 0 : i32
    %c0_i32_1 = arith.constant 0 : i32
    return %arg0, %c0_i32, %c0_i32_0 : i32, i32, i32
  }
  func.func @transform_1(%arg0: i32) -> (i32, i32) {
    %c0_i32 = arith.constant 0 : i32
    %c0_i32_0 = arith.constant 0 : i32
    %c0_i32_1 = arith.constant 0 : i32
    return %c0_i32, %c0_i32_0 : i32, i32
  }
  func.func @transform_2(%arg0: i32) -> (i32, i32) {
    %c0_i32 = arith.constant 0 : i32
    %c0_i32_0 = arith.constant 0 : i32
    %c0_i32_1 = arith.constant 0 : i32
    return %c0_i32, %c0_i32_0 : i32, i32
  }
  func.func @transform_3(%arg0: i32) -> (i32, i32) {
    %c0_i32 = arith.constant 0 : i32
    %c0_i32_0 = arith.constant 0 : i32
    %c0_i32_1 = arith.constant 0 : i32
    return %c0_i32, %c0_i32_0 : i32, i32
  }
  func.func @transform_4(%arg0: i32) -> (i32, i32) {
    %c0_i32 = arith.constant 0 : i32
    %c0_i32_0 = arith.constant 0 : i32
    %c0_i32_1 = arith.constant 0 : i32
    return %c0_i32, %c0_i32_0 : i32, i32
  }
  func.func @transform_5(%arg0: i32) -> (i32, i32) {
    %c0_i32 = arith.constant 0 : i32
    %c0_i32_0 = arith.constant 0 : i32
    %c0_i32_1 = arith.constant 0 : i32
    return %c0_i32, %c0_i32_0 : i32, i32
  }
  func.func @transform_6(%arg0: i32) -> (i32, i32) {
    %c0_i32 = arith.constant 0 : i32
    %c0_i32_0 = arith.constant 0 : i32
    %c0_i32_1 = arith.constant 0 : i32
    return %c0_i32, %c0_i32_0 : i32, i32
  }
  func.func @transform_7(%arg0: i32) -> (i32, i32) {
    %c0_i32 = arith.constant 0 : i32
    %c0_i32_0 = arith.constant 0 : i32
    %c0_i32_1 = arith.constant 0 : i32
    return %c0_i32, %c0_i32_0 : i32, i32
  }
  func.func @transform_8(%arg0: i32) -> (i32, i32) {
    %c0_i32 = arith.constant 0 : i32
    %c0_i32_0 = arith.constant 0 : i32
    %c0_i32_1 = arith.constant 0 : i32
    return %c0_i32, %c0_i32_0 : i32, i32
  }
  func.func @transform_9(%arg0: i32) -> (i32, i32, i32) {
    %c0_i32 = arith.constant 0 : i32
    %c0_i32_0 = arith.constant 0 : i32
    %c0_i32_1 = arith.constant 0 : i32
    return %arg0, %c0_i32, %c0_i32_0 : i32, i32, i32
  }
}

module attributes {stable_mosaic.version = 11 : i64} {
  func.func @_in_conv1_kernel(%arg0: i32, %arg1: memref<1x8x2304xbf16, #tpu.memory_space<vmem>>, %arg2: memref<8x216xbf16, #tpu.memory_space<vmem>>, %arg3: memref<8x1xf32, #tpu.memory_space<vmem>>, %arg4: memref<8x1xf32, #tpu.memory_space<vmem>>, %arg5: memref<8x216xbf16, #tpu.memory_space<vmem>>, %arg6: memref<8x1xf32, #tpu.memory_space<vmem>>, %arg7: memref<8x1xf32, #tpu.memory_space<vmem>>, %arg8: memref<1x2304xf32, #tpu.memory_space<vmem>>, %arg9: memref<1x8x1536xbf16, #tpu.memory_space<vmem>>) attributes {dimension_semantics = [#tpu.dimension_semantics<parallel>], iteration_bounds = array<i64: 2>, scalar_prefetch = 0 : i64, scratch_operands = 0 : i64, tpu.core_type = #tpu.core_type<tc>, window_params = [{transform_indices = @transform_0, window_bounds = array<i64: 1, 8, 2304>}, {pipeline_mode = #tpu.pipeline_mode<synchronous>, transform_indices = @transform_1, window_bounds = array<i64: 8, 216>}, {pipeline_mode = #tpu.pipeline_mode<synchronous>, transform_indices = @transform_2, window_bounds = array<i64: 8, 1>}, {pipeline_mode = #tpu.pipeline_mode<synchronous>, transform_indices = @transform_3, window_bounds = array<i64: 8, 1>}, {pipeline_mode = #tpu.pipeline_mode<synchronous>, transform_indices = @transform_4, window_bounds = array<i64: 8, 216>}, {pipeline_mode = #tpu.pipeline_mode<synchronous>, transform_indices = @transform_5, window_bounds = array<i64: 8, 1>}, {pipeline_mode = #tpu.pipeline_mode<synchronous>, transform_indices = @transform_6, window_bounds = array<i64: 8, 1>}, {pipeline_mode = #tpu.pipeline_mode<synchronous>, transform_indices = @transform_7, window_bounds = array<i64: 1, 2304>}, {transform_indices = @transform_8, window_bounds = array<i64: 1, 8, 1536>}]} {
    %c0 = arith.constant 0 : index
    %c0_0 = arith.constant 0 : index
    %0 = vector.load %arg8[%c0, %c0_0] : memref<1x2304xf32, #tpu.memory_space<vmem>>, vector<1x2304xf32>
    %c0_1 = arith.constant 0 : index
    %c0_2 = arith.constant 0 : index
    %c0_3 = arith.constant 0 : index
    %1 = vector.load %arg1[%c0_1, %c0_2, %c0_3] : memref<1x8x2304xbf16, #tpu.memory_space<vmem>>, vector<1x8x2304xbf16>
    %2 = vector.shape_cast %1 : vector<1x8x2304xbf16> to vector<8x2304xbf16>
    %3 = arith.extf %2 : vector<8x2304xbf16> to vector<8x2304xf32>
    %c403_i32 = arith.constant 403 : i32
    %4 = tpu.dynamic_rotate %3 by %c403_i32 dim 1 : vector<8x2304xf32>, i32 -> vector<8x2304xf32>
    %c402_i32 = arith.constant 402 : i32
    %5 = tpu.dynamic_rotate %3 by %c402_i32 dim 1 : vector<8x2304xf32>, i32 -> vector<8x2304xf32>
    %c401_i32 = arith.constant 401 : i32
    %6 = tpu.dynamic_rotate %3 by %c401_i32 dim 1 : vector<8x2304xf32>, i32 -> vector<8x2304xf32>
    %c385_i32 = arith.constant 385 : i32
    %7 = tpu.dynamic_rotate %3 by %c385_i32 dim 1 : vector<8x2304xf32>, i32 -> vector<8x2304xf32>
    %c384_i32 = arith.constant 384 : i32
    %8 = tpu.dynamic_rotate %3 by %c384_i32 dim 1 : vector<8x2304xf32>, i32 -> vector<8x2304xf32>
    %c383_i32 = arith.constant 383 : i32
    %9 = tpu.dynamic_rotate %3 by %c383_i32 dim 1 : vector<8x2304xf32>, i32 -> vector<8x2304xf32>
    %c367_i32 = arith.constant 367 : i32
    %10 = tpu.dynamic_rotate %3 by %c367_i32 dim 1 : vector<8x2304xf32>, i32 -> vector<8x2304xf32>
    %c366_i32 = arith.constant 366 : i32
    %11 = tpu.dynamic_rotate %3 by %c366_i32 dim 1 : vector<8x2304xf32>, i32 -> vector<8x2304xf32>
    %c365_i32 = arith.constant 365 : i32
    %12 = tpu.dynamic_rotate %3 by %c365_i32 dim 1 : vector<8x2304xf32>, i32 -> vector<8x2304xf32>
    %c19_i32 = arith.constant 19 : i32
    %13 = tpu.dynamic_rotate %3 by %c19_i32 dim 1 : vector<8x2304xf32>, i32 -> vector<8x2304xf32>
    %c18_i32 = arith.constant 18 : i32
    %14 = tpu.dynamic_rotate %3 by %c18_i32 dim 1 : vector<8x2304xf32>, i32 -> vector<8x2304xf32>
    %c17_i32 = arith.constant 17 : i32
    %15 = tpu.dynamic_rotate %3 by %c17_i32 dim 1 : vector<8x2304xf32>, i32 -> vector<8x2304xf32>
    %c1_i32 = arith.constant 1 : i32
    %16 = tpu.dynamic_rotate %3 by %c1_i32 dim 1 : vector<8x2304xf32>, i32 -> vector<8x2304xf32>
    %c2303_i32 = arith.constant 2303 : i32
    %17 = tpu.dynamic_rotate %3 by %c2303_i32 dim 1 : vector<8x2304xf32>, i32 -> vector<8x2304xf32>
    %c2287_i32 = arith.constant 2287 : i32
    %18 = tpu.dynamic_rotate %3 by %c2287_i32 dim 1 : vector<8x2304xf32>, i32 -> vector<8x2304xf32>
    %c2286_i32 = arith.constant 2286 : i32
    %19 = tpu.dynamic_rotate %3 by %c2286_i32 dim 1 : vector<8x2304xf32>, i32 -> vector<8x2304xf32>
    %c2285_i32 = arith.constant 2285 : i32
    %20 = tpu.dynamic_rotate %3 by %c2285_i32 dim 1 : vector<8x2304xf32>, i32 -> vector<8x2304xf32>
    %c1939_i32 = arith.constant 1939 : i32
    %21 = tpu.dynamic_rotate %3 by %c1939_i32 dim 1 : vector<8x2304xf32>, i32 -> vector<8x2304xf32>
    %c1938_i32 = arith.constant 1938 : i32
    %22 = tpu.dynamic_rotate %3 by %c1938_i32 dim 1 : vector<8x2304xf32>, i32 -> vector<8x2304xf32>
    %c1937_i32 = arith.constant 1937 : i32
    %23 = tpu.dynamic_rotate %3 by %c1937_i32 dim 1 : vector<8x2304xf32>, i32 -> vector<8x2304xf32>
    %c1921_i32 = arith.constant 1921 : i32
    %24 = tpu.dynamic_rotate %3 by %c1921_i32 dim 1 : vector<8x2304xf32>, i32 -> vector<8x2304xf32>
    %c1920_i32 = arith.constant 1920 : i32
    %25 = tpu.dynamic_rotate %3 by %c1920_i32 dim 1 : vector<8x2304xf32>, i32 -> vector<8x2304xf32>
    %c1919_i32 = arith.constant 1919 : i32
    %26 = tpu.dynamic_rotate %3 by %c1919_i32 dim 1 : vector<8x2304xf32>, i32 -> vector<8x2304xf32>
    %c1903_i32 = arith.constant 1903 : i32
    %27 = tpu.dynamic_rotate %3 by %c1903_i32 dim 1 : vector<8x2304xf32>, i32 -> vector<8x2304xf32>
    %c1902_i32 = arith.constant 1902 : i32
    %28 = tpu.dynamic_rotate %3 by %c1902_i32 dim 1 : vector<8x2304xf32>, i32 -> vector<8x2304xf32>
    %c1901_i32 = arith.constant 1901 : i32
    %29 = tpu.dynamic_rotate %3 by %c1901_i32 dim 1 : vector<8x2304xf32>, i32 -> vector<8x2304xf32>
    %30 = tpu.concatenate %4, %5, %6, %7, %8, %9, %10, %11, %12, %13, %14, %15, %16, %3, %17, %18 in 0 : vector<8x2304xf32>, vector<8x2304xf32>, vector<8x2304xf32>, vector<8x2304xf32>, vector<8x2304xf32>, vector<8x2304xf32>, vector<8x2304xf32>, vector<8x2304xf32>, vector<8x2304xf32>, vector<8x2304xf32>, vector<8x2304xf32>, vector<8x2304xf32>, vector<8x2304xf32>, vector<8x2304xf32>, vector<8x2304xf32>, vector<8x2304xf32> -> vector<128x2304xf32>
    %31 = tpu.concatenate %19, %20, %21, %22, %23, %24, %25, %26, %27, %28, %29 in 0 : vector<8x2304xf32>, vector<8x2304xf32>, vector<8x2304xf32>, vector<8x2304xf32>, vector<8x2304xf32>, vector<8x2304xf32>, vector<8x2304xf32>, vector<8x2304xf32>, vector<8x2304xf32>, vector<8x2304xf32>, vector<8x2304xf32> -> vector<88x2304xf32>
    %32 = tpu.concatenate %30, %31 in 0 : vector<128x2304xf32>, vector<88x2304xf32> -> vector<216x2304xf32>
    %33 = arith.truncf %32 : vector<216x2304xf32> to vector<216x2304xbf16>
    %c0_4 = arith.constant 0 : index
    %c0_5 = arith.constant 0 : index
    %34 = vector.load %arg2[%c0_4, %c0_5] : memref<8x216xbf16, #tpu.memory_space<vmem>>, vector<8x216xbf16>
    %cst = arith.constant dense<0.000000e+00> : vector<8x2304xf32>
    %35 = tpu.matmul %34, %33, %cst {dimension_numbers = #tpu.dot_dimension_numbers<[1], [0], [0], [1], [0, 0, 1, 1], [], []>} : vector<8x216xbf16>, vector<216x2304xbf16>, vector<8x2304xf32> -> vector<8x2304xf32>
    %c0_6 = arith.constant 0 : index
    %c0_7 = arith.constant 0 : index
    %36 = vector.load %arg3[%c0_6, %c0_7] : memref<8x1xf32, #tpu.memory_space<vmem>>, vector<8x1xf32>
    %37 = vector.broadcast %36 : vector<8x1xf32> to vector<8x2304xf32>
    %38 = arith.mulf %35, %37 : vector<8x2304xf32>
    %c0_8 = arith.constant 0 : index
    %c0_9 = arith.constant 0 : index
    %39 = vector.load %arg4[%c0_8, %c0_9] : memref<8x1xf32, #tpu.memory_space<vmem>>, vector<8x1xf32>
    %40 = vector.broadcast %39 : vector<8x1xf32> to vector<8x2304xf32>
    %41 = arith.addf %38, %40 : vector<8x2304xf32>
    %cst_10 = arith.constant 0.000000e+00 : f32
    %42 = vector.broadcast %cst_10 : f32 to vector<8x2304xf32>
    %43 = arith.maximumf %41, %42 : vector<8x2304xf32>
    %44 = vector.broadcast %0 : vector<1x2304xf32> to vector<8x2304xf32>
    %45 = arith.mulf %43, %44 : vector<8x2304xf32>
    %c403_i32_11 = arith.constant 403 : i32
    %46 = tpu.dynamic_rotate %45 by %c403_i32_11 dim 1 : vector<8x2304xf32>, i32 -> vector<8x2304xf32>
    %c402_i32_12 = arith.constant 402 : i32
    %47 = tpu.dynamic_rotate %45 by %c402_i32_12 dim 1 : vector<8x2304xf32>, i32 -> vector<8x2304xf32>
    %c401_i32_13 = arith.constant 401 : i32
    %48 = tpu.dynamic_rotate %45 by %c401_i32_13 dim 1 : vector<8x2304xf32>, i32 -> vector<8x2304xf32>
    %c385_i32_14 = arith.constant 385 : i32
    %49 = tpu.dynamic_rotate %45 by %c385_i32_14 dim 1 : vector<8x2304xf32>, i32 -> vector<8x2304xf32>
    %c384_i32_15 = arith.constant 384 : i32
    %50 = tpu.dynamic_rotate %45 by %c384_i32_15 dim 1 : vector<8x2304xf32>, i32 -> vector<8x2304xf32>
    %c383_i32_16 = arith.constant 383 : i32
    %51 = tpu.dynamic_rotate %45 by %c383_i32_16 dim 1 : vector<8x2304xf32>, i32 -> vector<8x2304xf32>
    %c367_i32_17 = arith.constant 367 : i32
    %52 = tpu.dynamic_rotate %45 by %c367_i32_17 dim 1 : vector<8x2304xf32>, i32 -> vector<8x2304xf32>
    %c366_i32_18 = arith.constant 366 : i32
    %53 = tpu.dynamic_rotate %45 by %c366_i32_18 dim 1 : vector<8x2304xf32>, i32 -> vector<8x2304xf32>
    %c365_i32_19 = arith.constant 365 : i32
    %54 = tpu.dynamic_rotate %45 by %c365_i32_19 dim 1 : vector<8x2304xf32>, i32 -> vector<8x2304xf32>
    %c19_i32_20 = arith.constant 19 : i32
    %55 = tpu.dynamic_rotate %45 by %c19_i32_20 dim 1 : vector<8x2304xf32>, i32 -> vector<8x2304xf32>
    %c18_i32_21 = arith.constant 18 : i32
    %56 = tpu.dynamic_rotate %45 by %c18_i32_21 dim 1 : vector<8x2304xf32>, i32 -> vector<8x2304xf32>
    %c17_i32_22 = arith.constant 17 : i32
    %57 = tpu.dynamic_rotate %45 by %c17_i32_22 dim 1 : vector<8x2304xf32>, i32 -> vector<8x2304xf32>
    %c1_i32_23 = arith.constant 1 : i32
    %58 = tpu.dynamic_rotate %45 by %c1_i32_23 dim 1 : vector<8x2304xf32>, i32 -> vector<8x2304xf32>
    %c2303_i32_24 = arith.constant 2303 : i32
    %59 = tpu.dynamic_rotate %45 by %c2303_i32_24 dim 1 : vector<8x2304xf32>, i32 -> vector<8x2304xf32>
    %c2287_i32_25 = arith.constant 2287 : i32
    %60 = tpu.dynamic_rotate %45 by %c2287_i32_25 dim 1 : vector<8x2304xf32>, i32 -> vector<8x2304xf32>
    %c2286_i32_26 = arith.constant 2286 : i32
    %61 = tpu.dynamic_rotate %45 by %c2286_i32_26 dim 1 : vector<8x2304xf32>, i32 -> vector<8x2304xf32>
    %c2285_i32_27 = arith.constant 2285 : i32
    %62 = tpu.dynamic_rotate %45 by %c2285_i32_27 dim 1 : vector<8x2304xf32>, i32 -> vector<8x2304xf32>
    %c1939_i32_28 = arith.constant 1939 : i32
    %63 = tpu.dynamic_rotate %45 by %c1939_i32_28 dim 1 : vector<8x2304xf32>, i32 -> vector<8x2304xf32>
    %c1938_i32_29 = arith.constant 1938 : i32
    %64 = tpu.dynamic_rotate %45 by %c1938_i32_29 dim 1 : vector<8x2304xf32>, i32 -> vector<8x2304xf32>
    %c1937_i32_30 = arith.constant 1937 : i32
    %65 = tpu.dynamic_rotate %45 by %c1937_i32_30 dim 1 : vector<8x2304xf32>, i32 -> vector<8x2304xf32>
    %c1921_i32_31 = arith.constant 1921 : i32
    %66 = tpu.dynamic_rotate %45 by %c1921_i32_31 dim 1 : vector<8x2304xf32>, i32 -> vector<8x2304xf32>
    %c1920_i32_32 = arith.constant 1920 : i32
    %67 = tpu.dynamic_rotate %45 by %c1920_i32_32 dim 1 : vector<8x2304xf32>, i32 -> vector<8x2304xf32>
    %c1919_i32_33 = arith.constant 1919 : i32
    %68 = tpu.dynamic_rotate %45 by %c1919_i32_33 dim 1 : vector<8x2304xf32>, i32 -> vector<8x2304xf32>
    %c1903_i32_34 = arith.constant 1903 : i32
    %69 = tpu.dynamic_rotate %45 by %c1903_i32_34 dim 1 : vector<8x2304xf32>, i32 -> vector<8x2304xf32>
    %c1902_i32_35 = arith.constant 1902 : i32
    %70 = tpu.dynamic_rotate %45 by %c1902_i32_35 dim 1 : vector<8x2304xf32>, i32 -> vector<8x2304xf32>
    %c1901_i32_36 = arith.constant 1901 : i32
    %71 = tpu.dynamic_rotate %45 by %c1901_i32_36 dim 1 : vector<8x2304xf32>, i32 -> vector<8x2304xf32>
    %72 = tpu.concatenate %46, %47, %48, %49, %50, %51, %52, %53, %54, %55, %56, %57, %58, %45, %59, %60 in 0 : vector<8x2304xf32>, vector<8x2304xf32>, vector<8x2304xf32>, vector<8x2304xf32>, vector<8x2304xf32>, vector<8x2304xf32>, vector<8x2304xf32>, vector<8x2304xf32>, vector<8x2304xf32>, vector<8x2304xf32>, vector<8x2304xf32>, vector<8x2304xf32>, vector<8x2304xf32>, vector<8x2304xf32>, vector<8x2304xf32>, vector<8x2304xf32> -> vector<128x2304xf32>
    %73 = tpu.concatenate %61, %62, %63, %64, %65, %66, %67, %68, %69, %70, %71 in 0 : vector<8x2304xf32>, vector<8x2304xf32>, vector<8x2304xf32>, vector<8x2304xf32>, vector<8x2304xf32>, vector<8x2304xf32>, vector<8x2304xf32>, vector<8x2304xf32>, vector<8x2304xf32>, vector<8x2304xf32>, vector<8x2304xf32> -> vector<88x2304xf32>
    %74 = tpu.concatenate %72, %73 in 0 : vector<128x2304xf32>, vector<88x2304xf32> -> vector<216x2304xf32>
    %75 = arith.truncf %74 : vector<216x2304xf32> to vector<216x2304xbf16>
    %c0_37 = arith.constant 0 : index
    %c0_38 = arith.constant 0 : index
    %76 = vector.load %arg5[%c0_37, %c0_38] : memref<8x216xbf16, #tpu.memory_space<vmem>>, vector<8x216xbf16>
    %cst_39 = arith.constant dense<0.000000e+00> : vector<8x2304xf32>
    %77 = tpu.matmul %76, %75, %cst_39 {dimension_numbers = #tpu.dot_dimension_numbers<[1], [0], [0], [1], [0, 0, 1, 1], [], []>} : vector<8x216xbf16>, vector<216x2304xbf16>, vector<8x2304xf32> -> vector<8x2304xf32>
    %c0_40 = arith.constant 0 : index
    %c0_41 = arith.constant 0 : index
    %78 = vector.load %arg6[%c0_40, %c0_41] : memref<8x1xf32, #tpu.memory_space<vmem>>, vector<8x1xf32>
    %79 = vector.broadcast %78 : vector<8x1xf32> to vector<8x2304xf32>
    %80 = arith.mulf %77, %79 : vector<8x2304xf32>
    %c0_42 = arith.constant 0 : index
    %c0_43 = arith.constant 0 : index
    %81 = vector.load %arg7[%c0_42, %c0_43] : memref<8x1xf32, #tpu.memory_space<vmem>>, vector<8x1xf32>
    %82 = vector.broadcast %81 : vector<8x1xf32> to vector<8x2304xf32>
    %83 = arith.addf %80, %82 : vector<8x2304xf32>
    %cst_44 = arith.constant 0.000000e+00 : f32
    %84 = vector.broadcast %cst_44 : f32 to vector<8x2304xf32>
    %85 = arith.maximumf %83, %84 : vector<8x2304xf32>
    %86 = vector.broadcast %0 : vector<1x2304xf32> to vector<8x2304xf32>
    %87 = arith.mulf %85, %86 : vector<8x2304xf32>
    %88 = vector.extract_strided_slice %87 {offsets = [0, 384], sizes = [8, 1536], strides = [1, 1]} : vector<8x2304xf32> to vector<8x1536xf32>
    %89 = arith.truncf %88 : vector<8x1536xf32> to vector<8x1536xbf16>
    %c0_45 = arith.constant 0 : index
    %c0_46 = arith.constant 0 : index
    %c0_47 = arith.constant 0 : index
    %90 = vector.load %arg9[%c0_45, %c0_46, %c0_47] : memref<1x8x1536xbf16, #tpu.memory_space<vmem>>, vector<1x8x1536xbf16>
    %91 = vector.shape_cast %90 : vector<1x8x1536xbf16> to vector<8x1536xbf16>
    %92 = vector.shape_cast %89 : vector<8x1536xbf16> to vector<1x8x1536xbf16>
    tpu.vector_store %arg9[%c0_45, %c0_46, %c0_47], %92 {strides = array<i32>} : memref<1x8x1536xbf16, #tpu.memory_space<vmem>>, vector<1x8x1536xbf16>,
    return
  }
  func.func @transform_0(%arg0: i32) -> (i32, i32, i32) {
    %c0_i32 = arith.constant 0 : i32
    %c0_i32_0 = arith.constant 0 : i32
    %c0_i32_1 = arith.constant 0 : i32
    return %arg0, %c0_i32, %c0_i32_0 : i32, i32, i32
  }
  func.func @transform_1(%arg0: i32) -> (i32, i32) {
    %c0_i32 = arith.constant 0 : i32
    %c0_i32_0 = arith.constant 0 : i32
    %c0_i32_1 = arith.constant 0 : i32
    return %c0_i32, %c0_i32_0 : i32, i32
  }
  func.func @transform_2(%arg0: i32) -> (i32, i32) {
    %c0_i32 = arith.constant 0 : i32
    %c0_i32_0 = arith.constant 0 : i32
    %c0_i32_1 = arith.constant 0 : i32
    return %c0_i32, %c0_i32_0 : i32, i32
  }
  func.func @transform_3(%arg0: i32) -> (i32, i32) {
    %c0_i32 = arith.constant 0 : i32
    %c0_i32_0 = arith.constant 0 : i32
    %c0_i32_1 = arith.constant 0 : i32
    return %c0_i32, %c0_i32_0 : i32, i32
  }
  func.func @transform_4(%arg0: i32) -> (i32, i32) {
    %c0_i32 = arith.constant 0 : i32
    %c0_i32_0 = arith.constant 0 : i32
    %c0_i32_1 = arith.constant 0 : i32
    return %c0_i32, %c0_i32_0 : i32, i32
  }
  func.func @transform_5(%arg0: i32) -> (i32, i32) {
    %c0_i32 = arith.constant 0 : i32
    %c0_i32_0 = arith.constant 0 : i32
    %c0_i32_1 = arith.constant 0 : i32
    return %c0_i32, %c0_i32_0 : i32, i32
  }
  func.func @transform_6(%arg0: i32) -> (i32, i32) {
    %c0_i32 = arith.constant 0 : i32
    %c0_i32_0 = arith.constant 0 : i32
    %c0_i32_1 = arith.constant 0 : i32
    return %c0_i32, %c0_i32_0 : i32, i32
  }
  func.func @transform_7(%arg0: i32) -> (i32, i32) {
    %c0_i32 = arith.constant 0 : i32
    %c0_i32_0 = arith.constant 0 : i32
    %c0_i32_1 = arith.constant 0 : i32
    return %c0_i32, %c0_i32_0 : i32, i32
  }
  func.func @transform_8(%arg0: i32) -> (i32, i32, i32) {
    %c0_i32 = arith.constant 0 : i32
    %c0_i32_0 = arith.constant 0 : i32
    %c0_i32_1 = arith.constant 0 : i32
    return %arg0, %c0_i32, %c0_i32_0 : i32, i32, i32
  }
}

module attributes {stable_mosaic.version = 11 : i64} {
  func.func @_decode_kernel(%arg0: i32, %arg1: memref<1x16x512xbf16, #tpu.memory_space<vmem>>, %arg2: memref<32x144xbf16, #tpu.memory_space<vmem>>, %arg3: memref<32x1xf32, #tpu.memory_space<vmem>>, %arg4: memref<32x1xf32, #tpu.memory_space<vmem>>, %arg5: memref<128x128xbf16, #tpu.memory_space<vmem>>, %arg6: memref<32x288xbf16, #tpu.memory_space<vmem>>, %arg7: memref<32x1xf32, #tpu.memory_space<vmem>>, %arg8: memref<32x1xf32, #tpu.memory_space<vmem>>, %arg9: memref<1x512xf32, #tpu.memory_space<vmem>>, %arg10: memref<1x32x1xf32, #tpu.memory_space<vmem>>) attributes {dimension_semantics = [#tpu.dimension_semantics<parallel>], iteration_bounds = array<i64: 2>, scalar_prefetch = 0 : i64, scratch_operands = 0 : i64, tpu.core_type = #tpu.core_type<tc>, window_params = [{transform_indices = @transform_0, window_bounds = array<i64: 1, 16, 512>}, {pipeline_mode = #tpu.pipeline_mode<synchronous>, transform_indices = @transform_1, window_bounds = array<i64: 32, 144>}, {pipeline_mode = #tpu.pipeline_mode<synchronous>, transform_indices = @transform_2, window_bounds = array<i64: 32, 1>}, {pipeline_mode = #tpu.pipeline_mode<synchronous>, transform_indices = @transform_3, window_bounds = array<i64: 32, 1>}, {pipeline_mode = #tpu.pipeline_mode<synchronous>, transform_indices = @transform_4, window_bounds = array<i64: 128, 128>}, {pipeline_mode = #tpu.pipeline_mode<synchronous>, transform_indices = @transform_5, window_bounds = array<i64: 32, 288>}, {pipeline_mode = #tpu.pipeline_mode<synchronous>, transform_indices = @transform_6, window_bounds = array<i64: 32, 1>}, {pipeline_mode = #tpu.pipeline_mode<synchronous>, transform_indices = @transform_7, window_bounds = array<i64: 32, 1>}, {pipeline_mode = #tpu.pipeline_mode<synchronous>, transform_indices = @transform_8, window_bounds = array<i64: 1, 512>}, {transform_indices = @transform_9, window_bounds = array<i64: 1, 32, 1>}]} {
    %c0 = arith.constant 0 : index
    %c0_0 = arith.constant 0 : index
    %c0_1 = arith.constant 0 : index
    %0 = vector.load %arg1[%c0, %c0_0, %c0_1] : memref<1x16x512xbf16, #tpu.memory_space<vmem>>, vector<1x16x512xbf16>
    %1 = vector.shape_cast %0 : vector<1x16x512xbf16> to vector<16x512xbf16>
    %2 = arith.extf %1 : vector<16x512xbf16> to vector<16x512xf32>
    %c11_i32 = arith.constant 11 : i32
    %3 = tpu.dynamic_rotate %2 by %c11_i32 dim 1 : vector<16x512xf32>, i32 -> vector<16x512xf32>
    %c10_i32 = arith.constant 10 : i32
    %4 = tpu.dynamic_rotate %2 by %c10_i32 dim 1 : vector<16x512xf32>, i32 -> vector<16x512xf32>
    %c9_i32 = arith.constant 9 : i32
    %5 = tpu.dynamic_rotate %2 by %c9_i32 dim 1 : vector<16x512xf32>, i32 -> vector<16x512xf32>
    %c1_i32 = arith.constant 1 : i32
    %6 = tpu.dynamic_rotate %2 by %c1_i32 dim 1 : vector<16x512xf32>, i32 -> vector<16x512xf32>
    %c511_i32 = arith.constant 511 : i32
    %7 = tpu.dynamic_rotate %2 by %c511_i32 dim 1 : vector<16x512xf32>, i32 -> vector<16x512xf32>
    %c503_i32 = arith.constant 503 : i32
    %8 = tpu.dynamic_rotate %2 by %c503_i32 dim 1 : vector<16x512xf32>, i32 -> vector<16x512xf32>
    %c502_i32 = arith.constant 502 : i32
    %9 = tpu.dynamic_rotate %2 by %c502_i32 dim 1 : vector<16x512xf32>, i32 -> vector<16x512xf32>
    %c501_i32 = arith.constant 501 : i32
    %10 = tpu.dynamic_rotate %2 by %c501_i32 dim 1 : vector<16x512xf32>, i32 -> vector<16x512xf32>
    %11 = tpu.concatenate %3, %4, %5, %6, %2, %7, %8, %9, %10 in 0 : vector<16x512xf32>, vector<16x512xf32>, vector<16x512xf32>, vector<16x512xf32>, vector<16x512xf32>, vector<16x512xf32>, vector<16x512xf32>, vector<16x512xf32>, vector<16x512xf32> -> vector<144x512xf32>
    %12 = arith.truncf %11 : vector<144x512xf32> to vector<144x512xbf16>
    %c0_2 = arith.constant 0 : index
    %c0_3 = arith.constant 0 : index
    %13 = vector.load %arg2[%c0_2, %c0_3] : memref<32x144xbf16, #tpu.memory_space<vmem>>, vector<32x144xbf16>
    %cst = arith.constant dense<0.000000e+00> : vector<32x512xf32>
    %14 = tpu.matmul %13, %12, %cst {dimension_numbers = #tpu.dot_dimension_numbers<[1], [0], [0], [1], [0, 0, 1, 1], [], []>} : vector<32x144xbf16>, vector<144x512xbf16>, vector<32x512xf32> -> vector<32x512xf32>
    %c0_4 = arith.constant 0 : index
    %c0_5 = arith.constant 0 : index
    %15 = vector.load %arg3[%c0_4, %c0_5] : memref<32x1xf32, #tpu.memory_space<vmem>>, vector<32x1xf32>
    %16 = vector.broadcast %15 : vector<32x1xf32> to vector<32x512xf32>
    %17 = arith.mulf %14, %16 : vector<32x512xf32>
    %c0_6 = arith.constant 0 : index
    %c0_7 = arith.constant 0 : index
    %18 = vector.load %arg4[%c0_6, %c0_7] : memref<32x1xf32, #tpu.memory_space<vmem>>, vector<32x1xf32>
    %19 = vector.broadcast %18 : vector<32x1xf32> to vector<32x512xf32>
    %20 = arith.addf %17, %19 : vector<32x512xf32>
    %cst_8 = arith.constant 0.000000e+00 : f32
    %21 = vector.broadcast %cst_8 : f32 to vector<32x512xf32>
    %22 = arith.maximumf %20, %21 : vector<32x512xf32>
    %23 = arith.truncf %22 : vector<32x512xf32> to vector<32x512xbf16>
    %c0_9 = arith.constant 0 : index
    %c0_10 = arith.constant 0 : index
    %24 = vector.load %arg5[%c0_9, %c0_10] : memref<128x128xbf16, #tpu.memory_space<vmem>>, vector<128x128xbf16>
    %25 = vector.extract_strided_slice %23 {offsets = [0, 0], sizes = [32, 128], strides = [1, 1]} : vector<32x512xbf16> to vector<32x128xbf16>
    %cst_11 = arith.constant dense<0.000000e+00> : vector<32x128xf32>
    %26 = tpu.matmul %25, %24, %cst_11 {dimension_numbers = #tpu.dot_dimension_numbers<[1], [0], [0], [1], [0, 0, 1, 1], [], []>} : vector<32x128xbf16>, vector<128x128xbf16>, vector<32x128xf32> -> vector<32x128xf32>
    %27 = vector.extract_strided_slice %23 {offsets = [0, 128], sizes = [32, 128], strides = [1, 1]} : vector<32x512xbf16> to vector<32x128xbf16>
    %cst_12 = arith.constant dense<0.000000e+00> : vector<32x128xf32>
    %28 = tpu.matmul %27, %24, %cst_12 {dimension_numbers = #tpu.dot_dimension_numbers<[1], [0], [0], [1], [0, 0, 1, 1], [], []>} : vector<32x128xbf16>, vector<128x128xbf16>, vector<32x128xf32> -> vector<32x128xf32>
    %29 = vector.extract_strided_slice %23 {offsets = [0, 256], sizes = [32, 128], strides = [1, 1]} : vector<32x512xbf16> to vector<32x128xbf16>
    %cst_13 = arith.constant dense<0.000000e+00> : vector<32x128xf32>
    %30 = tpu.matmul %29, %24, %cst_13 {dimension_numbers = #tpu.dot_dimension_numbers<[1], [0], [0], [1], [0, 0, 1, 1], [], []>} : vector<32x128xbf16>, vector<128x128xbf16>, vector<32x128xf32> -> vector<32x128xf32>
    %31 = vector.extract_strided_slice %23 {offsets = [0, 384], sizes = [32, 128], strides = [1, 1]} : vector<32x512xbf16> to vector<32x128xbf16>
    %cst_14 = arith.constant dense<0.000000e+00> : vector<32x128xf32>
    %32 = tpu.matmul %31, %24, %cst_14 {dimension_numbers = #tpu.dot_dimension_numbers<[1], [0], [0], [1], [0, 0, 1, 1], [], []>} : vector<32x128xbf16>, vector<128x128xbf16>, vector<32x128xf32> -> vector<32x128xf32>
    %33 = tpu.concatenate %26, %28, %30, %32 in 1 : vector<32x128xf32>, vector<32x128xf32>, vector<32x128xf32>, vector<32x128xf32> -> vector<32x512xf32>
    %c7_i32 = arith.constant 7 : i32
    %34 = tpu.dynamic_rotate %33 by %c7_i32 dim 1 : vector<32x512xf32>, i32 -> vector<32x512xf32>
    %c6_i32 = arith.constant 6 : i32
    %35 = tpu.dynamic_rotate %33 by %c6_i32 dim 1 : vector<32x512xf32>, i32 -> vector<32x512xf32>
    %c5_i32 = arith.constant 5 : i32
    %36 = tpu.dynamic_rotate %33 by %c5_i32 dim 1 : vector<32x512xf32>, i32 -> vector<32x512xf32>
    %c1_i32_15 = arith.constant 1 : i32
    %37 = tpu.dynamic_rotate %33 by %c1_i32_15 dim 1 : vector<32x512xf32>, i32 -> vector<32x512xf32>
    %c511_i32_16 = arith.constant 511 : i32
    %38 = tpu.dynamic_rotate %33 by %c511_i32_16 dim 1 : vector<32x512xf32>, i32 -> vector<32x512xf32>
    %c507_i32 = arith.constant 507 : i32
    %39 = tpu.dynamic_rotate %33 by %c507_i32 dim 1 : vector<32x512xf32>, i32 -> vector<32x512xf32>
    %c506_i32 = arith.constant 506 : i32
    %40 = tpu.dynamic_rotate %33 by %c506_i32 dim 1 : vector<32x512xf32>, i32 -> vector<32x512xf32>
    %c505_i32 = arith.constant 505 : i32
    %41 = tpu.dynamic_rotate %33 by %c505_i32 dim 1 : vector<32x512xf32>, i32 -> vector<32x512xf32>
    %42 = tpu.concatenate %34, %35, %36, %37, %33, %38, %39, %40, %41 in 0 : vector<32x512xf32>, vector<32x512xf32>, vector<32x512xf32>, vector<32x512xf32>, vector<32x512xf32>, vector<32x512xf32>, vector<32x512xf32>, vector<32x512xf32>, vector<32x512xf32> -> vector<288x512xf32>
    %43 = arith.truncf %42 : vector<288x512xf32> to vector<288x512xbf16>
    %c0_17 = arith.constant 0 : index
    %c0_18 = arith.constant 0 : index
    %44 = vector.load %arg6[%c0_17, %c0_18] : memref<32x288xbf16, #tpu.memory_space<vmem>>, vector<32x288xbf16>
    %cst_19 = arith.constant dense<0.000000e+00> : vector<32x512xf32>
    %45 = tpu.matmul %44, %43, %cst_19 {dimension_numbers = #tpu.dot_dimension_numbers<[1], [0], [0], [1], [0, 0, 1, 1], [], []>} : vector<32x288xbf16>, vector<288x512xbf16>, vector<32x512xf32> -> vector<32x512xf32>
    %c0_20 = arith.constant 0 : index
    %c0_21 = arith.constant 0 : index
    %46 = vector.load %arg7[%c0_20, %c0_21] : memref<32x1xf32, #tpu.memory_space<vmem>>, vector<32x1xf32>
    %47 = vector.broadcast %46 : vector<32x1xf32> to vector<32x512xf32>
    %48 = arith.mulf %45, %47 : vector<32x512xf32>
    %c0_22 = arith.constant 0 : index
    %c0_23 = arith.constant 0 : index
    %49 = vector.load %arg8[%c0_22, %c0_23] : memref<32x1xf32, #tpu.memory_space<vmem>>, vector<32x1xf32>
    %50 = vector.broadcast %49 : vector<32x1xf32> to vector<32x512xf32>
    %51 = arith.addf %48, %50 : vector<32x512xf32>
    %cst_24 = arith.constant 0.000000e+00 : f32
    %52 = vector.broadcast %cst_24 : f32 to vector<32x512xf32>
    %53 = arith.maximumf %51, %52 : vector<32x512xf32>
    %c0_25 = arith.constant 0 : index
    %c0_26 = arith.constant 0 : index
    %54 = vector.load %arg9[%c0_25, %c0_26] : memref<1x512xf32, #tpu.memory_space<vmem>>, vector<1x512xf32>
    %55 = vector.broadcast %54 : vector<1x512xf32> to vector<32x512xf32>
    %56 = arith.mulf %53, %55 : vector<32x512xf32>
    %cst_27 = arith.constant dense<0xFF800000> : vector<32xf32>
    %57 = vector.multi_reduction <maximumf>, %56, %cst_27 [1] : vector<32x512xf32> to vector<32xf32>
    %58 = vector.shape_cast %57 : vector<32xf32> to vector<32x1xf32>
    %c0_28 = arith.constant 0 : index
    %c0_29 = arith.constant 0 : index
    %c0_30 = arith.constant 0 : index
    %59 = vector.load %arg10[%c0_28, %c0_29, %c0_30] : memref<1x32x1xf32, #tpu.memory_space<vmem>>, vector<1x32x1xf32>
    %60 = vector.shape_cast %59 : vector<1x32x1xf32> to vector<32x1xf32>
    %61 = vector.shape_cast %58 : vector<32x1xf32> to vector<1x32x1xf32>
    tpu.vector_store %arg10[%c0_28, %c0_29, %c0_30], %61 {strides = array<i32>} : memref<1x32x1xf32, #tpu.memory_space<vmem>>, vector<1x32x1xf32>,
    return
  }
  func.func @transform_0(%arg0: i32) -> (i32, i32, i32) {
    %c0_i32 = arith.constant 0 : i32
    %c0_i32_0 = arith.constant 0 : i32
    %c0_i32_1 = arith.constant 0 : i32
    return %arg0, %c0_i32, %c0_i32_0 : i32, i32, i32
  }
  func.func @transform_1(%arg0: i32) -> (i32, i32) {
    %c0_i32 = arith.constant 0 : i32
    %c0_i32_0 = arith.constant 0 : i32
    %c0_i32_1 = arith.constant 0 : i32
    return %c0_i32, %c0_i32_0 : i32, i32
  }
  func.func @transform_2(%arg0: i32) -> (i32, i32) {
    %c0_i32 = arith.constant 0 : i32
    %c0_i32_0 = arith.constant 0 : i32
    %c0_i32_1 = arith.constant 0 : i32
    return %c0_i32, %c0_i32_0 : i32, i32
  }
  func.func @transform_3(%arg0: i32) -> (i32, i32) {
    %c0_i32 = arith.constant 0 : i32
    %c0_i32_0 = arith.constant 0 : i32
    %c0_i32_1 = arith.constant 0 : i32
    return %c0_i32, %c0_i32_0 : i32, i32
  }
  func.func @transform_4(%arg0: i32) -> (i32, i32) {
    %c0_i32 = arith.constant 0 : i32
    %c0_i32_0 = arith.constant 0 : i32
    %c0_i32_1 = arith.constant 0 : i32
    return %c0_i32, %c0_i32_0 : i32, i32
  }
  func.func @transform_5(%arg0: i32) -> (i32, i32) {
    %c0_i32 = arith.constant 0 : i32
    %c0_i32_0 = arith.constant 0 : i32
    %c0_i32_1 = arith.constant 0 : i32
    return %c0_i32, %c0_i32_0 : i32, i32
  }
  func.func @transform_6(%arg0: i32) -> (i32, i32) {
    %c0_i32 = arith.constant 0 : i32
    %c0_i32_0 = arith.constant 0 : i32
    %c0_i32_1 = arith.constant 0 : i32
    return %c0_i32, %c0_i32_0 : i32, i32
  }
  func.func @transform_7(%arg0: i32) -> (i32, i32) {
    %c0_i32 = arith.constant 0 : i32
    %c0_i32_0 = arith.constant 0 : i32
    %c0_i32_1 = arith.constant 0 : i32
    return %c0_i32, %c0_i32_0 : i32, i32
  }
  func.func @transform_8(%arg0: i32) -> (i32, i32) {
    %c0_i32 = arith.constant 0 : i32
    %c0_i32_0 = arith.constant 0 : i32
    %c0_i32_1 = arith.constant 0 : i32
    return %c0_i32, %c0_i32_0 : i32, i32
  }
  func.func @transform_9(%arg0: i32) -> (i32, i32, i32) {
    %c0_i32 = arith.constant 0 : i32
    %c0_i32_0 = arith.constant 0 : i32
    %c0_i32_1 = arith.constant 0 : i32
    return %arg0, %c0_i32, %c0_i32_0 : i32, i32, i32
  }
}

module attributes {stable_mosaic.version = 11 : i64} {
  func.func @_fc_head_kernel(%arg0: memref<2x32xf32, #tpu.memory_space<vmem>>, %arg1: memref<32x32xf32, #tpu.memory_space<vmem>>, %arg2: memref<1x32xf32, #tpu.memory_space<vmem>>, %arg3: memref<1x32xf32, #tpu.memory_space<vmem>>, %arg4: memref<1x32xf32, #tpu.memory_space<vmem>>, %arg5: memref<32x32xf32, #tpu.memory_space<vmem>>, %arg6: memref<1x32xf32, #tpu.memory_space<vmem>>, %arg7: memref<1x32xf32, #tpu.memory_space<vmem>>, %arg8: memref<1x32xf32, #tpu.memory_space<vmem>>, %arg9: memref<32x3xf32, #tpu.memory_space<vmem>>, %arg10: memref<1x3xf32, #tpu.memory_space<vmem>>, %arg11: memref<2x3xf32, #tpu.memory_space<vmem>>) attributes {dimension_semantics = [], scalar_prefetch = 0 : i64, scratch_operands = 0 : i64, tpu.core_type = #tpu.core_type<tc>} {
    %c0 = arith.constant 0 : index
    %c0_0 = arith.constant 0 : index
    %0 = vector.load %arg0[%c0, %c0_0] : memref<2x32xf32, #tpu.memory_space<vmem>>, vector<2x32xf32>
    %c0_1 = arith.constant 0 : index
    %c0_2 = arith.constant 0 : index
    %1 = vector.load %arg1[%c0_1, %c0_2] : memref<32x32xf32, #tpu.memory_space<vmem>>, vector<32x32xf32>
    %cst = arith.constant dense<0.000000e+00> : vector<2x32xf32>
    %2 = tpu.matmul %0, %1, %cst {dimension_numbers = #tpu.dot_dimension_numbers<[1], [0], [0], [1], [0, 0, 1, 1], [], []>} : vector<2x32xf32>, vector<32x32xf32>, vector<2x32xf32> -> vector<2x32xf32>
    %c0_3 = arith.constant 0 : index
    %c0_4 = arith.constant 0 : index
    %3 = vector.load %arg2[%c0_3, %c0_4] : memref<1x32xf32, #tpu.memory_space<vmem>>, vector<1x32xf32>
    %4 = vector.broadcast %3 : vector<1x32xf32> to vector<2x32xf32>
    %5 = arith.addf %2, %4 : vector<2x32xf32>
    %cst_5 = arith.constant dense<0.000000e+00> : vector<2xf32>
    %6 = vector.multi_reduction <add>, %5, %cst_5 [1] : vector<2x32xf32> to vector<2xf32>
    %7 = vector.shape_cast %6 : vector<2xf32> to vector<2x1xf32>
    %cst_6 = arith.constant 3.200000e+01 : f32
    %8 = vector.broadcast %cst_6 : f32 to vector<2x1xf32>
    %9 = arith.divf %7, %8 : vector<2x1xf32>
    %10 = vector.broadcast %9 : vector<2x1xf32> to vector<2x32xf32>
    %11 = arith.subf %5, %10 : vector<2x32xf32>
    %12 = arith.mulf %11, %11 : vector<2x32xf32>
    %cst_7 = arith.constant dense<0.000000e+00> : vector<2xf32>
    %13 = vector.multi_reduction <add>, %12, %cst_7 [1] : vector<2x32xf32> to vector<2xf32>
    %14 = vector.shape_cast %13 : vector<2xf32> to vector<2x1xf32>
    %cst_8 = arith.constant 3.200000e+01 : f32
    %15 = vector.broadcast %cst_8 : f32 to vector<2x1xf32>
    %16 = arith.divf %14, %15 : vector<2x1xf32>
    %cst_9 = arith.constant 9.99999974E-6 : f32
    %17 = vector.broadcast %cst_9 : f32 to vector<2x1xf32>
    %18 = arith.addf %16, %17 : vector<2x1xf32>
    %19 = math.rsqrt %18 : vector<2x1xf32>
    %20 = vector.broadcast %19 : vector<2x1xf32> to vector<2x32xf32>
    %21 = arith.mulf %11, %20 : vector<2x32xf32>
    %c0_10 = arith.constant 0 : index
    %c0_11 = arith.constant 0 : index
    %22 = vector.load %arg3[%c0_10, %c0_11] : memref<1x32xf32, #tpu.memory_space<vmem>>, vector<1x32xf32>
    %23 = vector.broadcast %22 : vector<1x32xf32> to vector<2x32xf32>
    %24 = arith.mulf %21, %23 : vector<2x32xf32>
    %c0_12 = arith.constant 0 : index
    %c0_13 = arith.constant 0 : index
    %25 = vector.load %arg4[%c0_12, %c0_13] : memref<1x32xf32, #tpu.memory_space<vmem>>, vector<1x32xf32>
    %26 = vector.broadcast %25 : vector<1x32xf32> to vector<2x32xf32>
    %27 = arith.addf %24, %26 : vector<2x32xf32>
    %cst_14 = arith.constant 0.000000e+00 : f32
    %28 = vector.broadcast %cst_14 : f32 to vector<2x32xf32>
    %29 = arith.maximumf %27, %28 : vector<2x32xf32>
    %c0_15 = arith.constant 0 : index
    %c0_16 = arith.constant 0 : index
    %30 = vector.load %arg5[%c0_15, %c0_16] : memref<32x32xf32, #tpu.memory_space<vmem>>, vector<32x32xf32>
    %cst_17 = arith.constant dense<0.000000e+00> : vector<2x32xf32>
    %31 = tpu.matmul %29, %30, %cst_17 {dimension_numbers = #tpu.dot_dimension_numbers<[1], [0], [0], [1], [0, 0, 1, 1], [], []>} : vector<2x32xf32>, vector<32x32xf32>, vector<2x32xf32> -> vector<2x32xf32>
    %c0_18 = arith.constant 0 : index
    %c0_19 = arith.constant 0 : index
    %32 = vector.load %arg6[%c0_18, %c0_19] : memref<1x32xf32, #tpu.memory_space<vmem>>, vector<1x32xf32>
    %33 = vector.broadcast %32 : vector<1x32xf32> to vector<2x32xf32>
    %34 = arith.addf %31, %33 : vector<2x32xf32>
    %cst_20 = arith.constant dense<0.000000e+00> : vector<2xf32>
    %35 = vector.multi_reduction <add>, %34, %cst_20 [1] : vector<2x32xf32> to vector<2xf32>
    %36 = vector.shape_cast %35 : vector<2xf32> to vector<2x1xf32>
    %cst_21 = arith.constant 3.200000e+01 : f32
    %37 = vector.broadcast %cst_21 : f32 to vector<2x1xf32>
    %38 = arith.divf %36, %37 : vector<2x1xf32>
    %39 = vector.broadcast %38 : vector<2x1xf32> to vector<2x32xf32>
    %40 = arith.subf %34, %39 : vector<2x32xf32>
    %41 = arith.mulf %40, %40 : vector<2x32xf32>
    %cst_22 = arith.constant dense<0.000000e+00> : vector<2xf32>
    %42 = vector.multi_reduction <add>, %41, %cst_22 [1] : vector<2x32xf32> to vector<2xf32>
    %43 = vector.shape_cast %42 : vector<2xf32> to vector<2x1xf32>
    %cst_23 = arith.constant 3.200000e+01 : f32
    %44 = vector.broadcast %cst_23 : f32 to vector<2x1xf32>
    %45 = arith.divf %43, %44 : vector<2x1xf32>
    %cst_24 = arith.constant 9.99999974E-6 : f32
    %46 = vector.broadcast %cst_24 : f32 to vector<2x1xf32>
    %47 = arith.addf %45, %46 : vector<2x1xf32>
    %48 = math.rsqrt %47 : vector<2x1xf32>
    %49 = vector.broadcast %48 : vector<2x1xf32> to vector<2x32xf32>
    %50 = arith.mulf %40, %49 : vector<2x32xf32>
    %c0_25 = arith.constant 0 : index
    %c0_26 = arith.constant 0 : index
    %51 = vector.load %arg7[%c0_25, %c0_26] : memref<1x32xf32, #tpu.memory_space<vmem>>, vector<1x32xf32>
    %52 = vector.broadcast %51 : vector<1x32xf32> to vector<2x32xf32>
    %53 = arith.mulf %50, %52 : vector<2x32xf32>
    %c0_27 = arith.constant 0 : index
    %c0_28 = arith.constant 0 : index
    %54 = vector.load %arg8[%c0_27, %c0_28] : memref<1x32xf32, #tpu.memory_space<vmem>>, vector<1x32xf32>
    %55 = vector.broadcast %54 : vector<1x32xf32> to vector<2x32xf32>
    %56 = arith.addf %53, %55 : vector<2x32xf32>
    %cst_29 = arith.constant 0.000000e+00 : f32
    %57 = vector.broadcast %cst_29 : f32 to vector<2x32xf32>
    %58 = arith.maximumf %56, %57 : vector<2x32xf32>
    %c0_30 = arith.constant 0 : index
    %c0_31 = arith.constant 0 : index
    %59 = vector.load %arg9[%c0_30, %c0_31] : memref<32x3xf32, #tpu.memory_space<vmem>>, vector<32x3xf32>
    %cst_32 = arith.constant dense<0.000000e+00> : vector<2x3xf32>
    %60 = tpu.matmul %58, %59, %cst_32 {dimension_numbers = #tpu.dot_dimension_numbers<[1], [0], [0], [1], [0, 0, 1, 1], [], []>} : vector<2x32xf32>, vector<32x3xf32>, vector<2x3xf32> -> vector<2x3xf32>
    %c0_33 = arith.constant 0 : index
    %c0_34 = arith.constant 0 : index
    %61 = vector.load %arg10[%c0_33, %c0_34] : memref<1x3xf32, #tpu.memory_space<vmem>>, vector<1x3xf32>
    %62 = vector.broadcast %61 : vector<1x3xf32> to vector<2x3xf32>
    %63 = arith.addf %60, %62 : vector<2x3xf32>
    %c0_35 = arith.constant 0 : index
    %c0_36 = arith.constant 0 : index
    %64 = vector.load %arg11[%c0_35, %c0_36] : memref<2x3xf32, #tpu.memory_space<vmem>>, vector<2x3xf32>
    tpu.vector_store %arg11[%c0_35, %c0_36], %63 {strides = array<i32>} : memref<2x3xf32, #tpu.memory_space<vmem>>, vector<2x3xf32>,
    return
  }
}

</mosaic_0001>

<llo_original>
// kernel: _lambda_.7
$region0: #{_lambda_.7}
  #allocation0 [shape = 'u32[]', space=smem, size = 0x4, offset = 0x4, fixed_abs, tag = 'smem constant byte address 0x4 - core index']
  #allocation1 [shape = 'u32[144,128]{1,0:T(1,128)}', space=vmem, size = 0x12000, scoped, tag = 'internal scratch']
  %s0 = inlined_call_operand.vmem [shape: f32[2,32], index: 0, kind: input, shape index: {}]
  %s1 = inlined_call_operand.vmem [shape: f32[32,32], index: 1, kind: input, shape index: {}]
  %s2 = inlined_call_operand.vmem [shape: f32[1,32], index: 2, kind: input, shape index: {}]
  %s3 = inlined_call_operand.vmem [shape: f32[1,32], index: 3, kind: input, shape index: {}, may-alias: {3,7}]
  %s4 = inlined_call_operand.vmem [shape: f32[1,32], index: 4, kind: input, shape index: {}, may-alias: {4,8}]
  %s5 = inlined_call_operand.vmem [shape: f32[32,32], index: 5, kind: input, shape index: {}]
  %s6 = inlined_call_operand.vmem [shape: f32[1,32], index: 6, kind: input, shape index: {}]
  %s7 = inlined_call_operand.vmem [shape: f32[1,32], index: 7, kind: input, shape index: {}, may-alias: {3,7}]
  %s8 = inlined_call_operand.vmem [shape: f32[1,32], index: 8, kind: input, shape index: {}, may-alias: {4,8}]
  %s9 = inlined_call_operand.vmem [shape: f32[32,3], index: 9, kind: input, shape index: {}]
  %s10 = inlined_call_operand.vmem [shape: f32[1,3], index: 10, kind: input, shape index: {}]
  %s11 = inlined_call_operand.hbm [shape: f32[2,3], index: 11, kind: output, shape index: {}]
  %s12 = sld [smem:[#allocation0]]
  $region54: #{_lambda_.7} parent=0
    _
  %s14 = ssub.s32 1, %s12
  %s15 = scalar_select 0, %s14, %s12
  $region1: #{_lambda_.7} parent=0
    #allocation2 [shape = 'u8[1024]{0}', space=vmem, size = 0x400, scoped, tag = 'output window, operand 0, single buffered']
    #allocation3 [shape = 's32[1]{0}', space=sflag, size = 0x4, scoped, tag = 'scoped memory for _lambda_.7']
    %16 = vsyncpa [#allocation3], 0
    // Predicated region
    $region2: #{_lambda_.7} parent=1 // pred_check
      _
    $region3: #{_lambda_.7} parent=1 // pred_check_branch
      %18 = sbr.rel (0) target = $region5
    $region4: #{_lambda_.7} parent=1 // pred_region
      _
    $region5: #{_lambda_.7} parent=1 // pred_fallthru
      _
    // Predicated region
    $region6: #{_lambda_.7} parent=1 // pred_check
      _
    $region7: #{_lambda_.7} parent=1 // pred_check_branch
      %20 = sbr.rel (0) target = $region9
    $region8: #{_lambda_.7} parent=1 // pred_region
      _
    $region9: #{_lambda_.7} parent=1 // pred_fallthru
      _
    // Predicated region
    $region10: #{_lambda_.7} parent=1 // pred_check
      _
    $region11: #{_lambda_.7} parent=1 // pred_check_branch
      %22 = sbr.rel (0) target = $region13
    $region12: #{_lambda_.7} parent=1 // pred_region
      _
    $region13: #{_lambda_.7} parent=1 // pred_fallthru
      _
    // Predicated region
    $region14: #{_lambda_.7} parent=1 // pred_check
      _
    $region15: #{_lambda_.7} parent=1 // pred_check_branch
      %24 = sbr.rel (0) target = $region17
    $region16: #{_lambda_.7} parent=1 // pred_region
      _
    $region17: #{_lambda_.7} parent=1 // pred_fallthru
      _
    // Predicated region
    $region18: #{_lambda_.7} parent=1 // pred_check
      _
    $region19: #{_lambda_.7} parent=1 // pred_check_branch
      %26 = sbr.rel (0) target = $region21
    $region20: #{_lambda_.7} parent=1 // pred_region
      _
    $region21: #{_lambda_.7} parent=1 // pred_fallthru
      _
    // Predicated region
    $region22: #{_lambda_.7} parent=1 // pred_check
      _
    $region23: #{_lambda_.7} parent=1 // pred_check_branch
      %28 = sbr.rel (0) target = $region25
    $region24: #{_lambda_.7} parent=1 // pred_region
      _
    $region25: #{_lambda_.7} parent=1 // pred_fallthru
      _
    // Predicated region
    $region26: #{_lambda_.7} parent=1 // pred_check
      _
    $region27: #{_lambda_.7} parent=1 // pred_check_branch
      %30 = sbr.rel (0) target = $region29
    $region28: #{_lambda_.7} parent=1 // pred_region
      _
    $region29: #{_lambda_.7} parent=1 // pred_fallthru
      _
    // Predicated region
    $region30: #{_lambda_.7} parent=1 // pred_check
      _
    $region31: #{_lambda_.7} parent=1 // pred_check_branch
      %32 = sbr.rel (0) target = $region33
    $region32: #{_lambda_.7} parent=1 // pred_region
      _
    $region33: #{_lambda_.7} parent=1 // pred_fallthru
      _
    // Predicated region
    $region34: #{_lambda_.7} parent=1 // pred_check
      _
    $region35: #{_lambda_.7} parent=1 // pred_check_branch
      %34 = sbr.rel (0) target = $region37
    $region36: #{_lambda_.7} parent=1 // pred_region
      _
    $region37: #{_lambda_.7} parent=1 // pred_fallthru
      _
    // Predicated region
    $region38: #{_lambda_.7} parent=1 // pred_check
      _
    $region39: #{_lambda_.7} parent=1 // pred_check_branch
      %36 = sbr.rel (0) target = $region41
    $region40: #{_lambda_.7} parent=1 // pred_region
      _
    $region41: #{_lambda_.7} parent=1 // pred_fallthru
      _
    // Predicated region
    $region42: #{_lambda_.7} parent=1 // pred_check
      _
    $region43: #{_lambda_.7} parent=1 // pred_check_branch
      %38 = sbr.rel (0) target = $region45
    $region44: #{_lambda_.7} parent=1 // pred_region
      _
    $region45: #{_lambda_.7} parent=1 // pred_fallthru
      _
    %v39 = vld [vmem:[%s0] sm:$0x3]
    %v40 = vld [vmem:[%s1] sm:$0xff]
    %v41 = vld [vmem:[%s1 + $0x8] sm:$0xff]
    %v42 = vld [vmem:[%s1 + $0x10] sm:$0xff]
    %v43 = vld [vmem:[%s1 + $0x18] sm:$0xff]
    %v44 = vld [vmem:[%s2] sm:$0x1]
    %v46 = vlaneseq
    %v47 = vshrl.u32 %v46, 7
    %v48 = vsub.s32 0, %v47
    %v49 = vrot.slane %v44, %v48
    %vm51 = vcmask 261120
    %v53 = vsel %vm51, %v39, 0
    %55 = vmatprep.subr.mxu0 0.0
    %56 = vmatpush1.msra.mxu0 %v40
    %57 = vmatprep.subr.mxu0 0.0
    %58 = vmatpush1.msra.mxu0 %v41
    %59 = vmatprep.subr.mxu0 0.0
    %60 = vmatpush1.msra.mxu0 %v42
    %61 = vmatprep.subr.mxu0 0.0
    %62 = vmatpush1.msra.mxu0 %v43
    %63 = vmatprep.subr.mxu0 0.0
    %64 = vmatpush1.msra.mxu0 0.0
    %65 = vmatprep.subr.mxu0 0.0
    %66 = vmatpush1.msra.mxu0 0.0
    %67 = vmatprep.subr.mxu0 0.0
    %68 = vmatpush1.msra.mxu0 0.0
    %69 = vmatprep.subr.mxu0 0.0
    %70 = vmatpush1.msra.mxu0 0.0
    %71 = vmatprep.subr.mxu0 0.0
    %72 = vmatpush1.msra.mxu0 0.0
    %73 = vmatprep.subr.mxu0 0.0
    %74 = vmatpush1.msra.mxu0 0.0
    %75 = vmatprep.subr.mxu0 0.0
    %76 = vmatpush1.msra.mxu0 0.0
    %77 = vmatprep.subr.mxu0 0.0
    %78 = vmatpush1.msra.mxu0 0.0
    %79 = vmatprep.subr.mxu0 0.0
    %80 = vmatpush1.msra.mxu0 0.0
    %81 = vmatprep.subr.mxu0 0.0
    %82 = vmatpush1.msra.mxu0 0.0
    %83 = vmatprep.subr.mxu0 0.0
    %84 = vmatpush1.msra.mxu0 0.0
    %85 = vmatprep.subr.mxu0 0.0
    %86 = vmatpush1.msra.mxu0 0.0
    %87 = vmatprep.subr.mxu0 0.0
    %88 = vmatpush1.msra.mxu0 0.0
    %89 = vmatprep.subr.mxu0 0.0
    %90 = vmatpush1.msra.mxu0 0.0
    %91 = vmatprep.subr.mxu0 0.0
    %92 = vmatpush1.msra.mxu0 0.0
    %93 = vmatprep.subr.mxu0 0.0
    %94 = vmatpush1.msra.mxu0 0.0
    %95 = vmatprep.subr.mxu0 0.0
    %96 = vmatpush1.msra.mxu0 0.0
    %97 = vmatprep.subr.mxu0 0.0
    %98 = vmatpush1.msra.mxu0 0.0
    %99 = vmatprep.subr.mxu0 0.0
    %100 = vmatpush1.msra.mxu0 0.0
    %101 = vmatprep.subr.mxu0 0.0
    %102 = vmatpush1.msra.mxu0 0.0
    %103 = vmatprep.subr.mxu0 0.0
    %104 = vmatpush1.msra.mxu0 0.0
    %105 = vmatprep.subr.mxu0 0.0
    %106 = vmatpush1.msra.mxu0 0.0
    %107 = vmatprep.subr.mxu0 0.0
    %108 = vmatpush1.msra.mxu0 0.0
    %109 = vmatprep.subr.mxu0 0.0
    %110 = vmatpush1.msra.mxu0 0.0
    %111 = vmatprep.subr.mxu0 0.0
    %112 = vmatpush1.msra.mxu0 0.0
    %113 = vmatprep.subr.mxu0 0.0
    %114 = vmatpush1.msra.mxu0 0.0
    %115 = vmatprep.subr.mxu0 0.0
    %116 = vmatpush1.msra.mxu0 0.0
    %117 = vmatprep.subr.mxu0 0.0
    %118 = vmatpush1.msra.mxu0 0.0
    %119 = vmatprep.mubr.f32.mxu0 0.0
    %120 = vmatmul.mubr.f32.gmra.mrb[0].mxu0 %v53
    %v121 = vpop.f32.mrb[0].mxu0
    %v122 = vadd.f32 %v49, %v121
    %v123 = vpop.f32.mrb[0].mxu0
    %124 = vdwg.mxu0
    %vm125 = vcmask 254976
    %v126 = vsel %vm125, %v122, 0.0
    %127 = vadd.xlane.f32.xlu0 %v126
    %v128 = vpop.xlane.xlu0 %127
    %v129 = vrcp.pop 32.0
    %v130 = vmul.f32 %v128, %v129
    %v131 = vsub.f32 %v122, %v130
    %v132 = vmul.f32 %v131, %v131
    %v133 = vsel %vm125, %v132, 0.0
    %134 = vadd.xlane.f32.xlu0 %v133
    %v135 = vpop.xlane.xlu0 %134
    %v136 = vmul.f32 %v135, %v129
    %v137 = vadd.f32 %v136, 1e-05
    %v138 = vrsqrt.pop %v137
    %v139 = vmul.f32 %v131, %v138
    %v140 = vld [vmem:[%s3] sm:$0x1]
    %v142 = vlaneseq
    %v143 = vshrl.u32 %v142, 7
    %v144 = vsub.s32 0, %v143
    %v145 = vrot.slane %v140, %v144
    %v147 = vmul.f32 %v139, %v145
    %v148 = vld [vmem:[%s4] sm:$0x1]
    %v150 = vlaneseq
    %v151 = vshrl.u32 %v150, 7
    %v152 = vsub.s32 0, %v151
    %v153 = vrot.slane %v148, %v152
    %v155 = vadd.f32 %v147, %v153
    %v156 = vmax.f32 %v155, 0.0
    %v157 = vld [vmem:[%s5] sm:$0xff]
    %v158 = vld [vmem:[%s5 + $0x8] sm:$0xff]
    %v159 = vld [vmem:[%s5 + $0x10] sm:$0xff]
    %v160 = vld [vmem:[%s5 + $0x18] sm:$0xff]
    %v161 = vld [vmem:[%s6] sm:$0x1]
    %v163 = vlaneseq
    %v164 = vshrl.u32 %v163, 7
    %v165 = vsub.s32 0, %v164
    %v166 = vrot.slane %v161, %v165
    %v169 = vsel %vm51, %v156, 0
    %171 = vmatprep.subr.mxu0 0.0
    %172 = vmatpush1.msra.mxu0 %v157
    %173 = vmatprep.subr.mxu0 0.0
    %174 = vmatpush1.msra.mxu0 %v158
    %175 = vmatprep.subr.mxu0 0.0
    %176 = vmatpush1.msra.mxu0 %v159
    %177 = vmatprep.subr.mxu0 0.0
    %178 = vmatpush1.msra.mxu0 %v160
    %179 = vmatprep.subr.mxu0 0.0
    %180 = vmatpush1.msra.mxu0 0.0
    %181 = vmatprep.subr.mxu0 0.0
    %182 = vmatpush1.msra.mxu0 0.0
    %183 = vmatprep.subr.mxu0 0.0
    %184 = vmatpush1.msra.mxu0 0.0
    %185 = vmatprep.subr.mxu0 0.0
    %186 = vmatpush1.msra.mxu0 0.0
    %187 = vmatprep.subr.mxu0 0.0
    %188 = vmatpush1.msra.mxu0 0.0
    %189 = vmatprep.subr.mxu0 0.0
    %190 = vmatpush1.msra.mxu0 0.0
    %191 = vmatprep.subr.mxu0 0.0
    %192 = vmatpush1.msra.mxu0 0.0
    %193 = vmatprep.subr.mxu0 0.0
    %194 = vmatpush1.msra.mxu0 0.0
    %195 = vmatprep.subr.mxu0 0.0
    %196 = vmatpush1.msra.mxu0 0.0
    %197 = vmatprep.subr.mxu0 0.0
    %198 = vmatpush1.msra.mxu0 0.0
    %199 = vmatprep.subr.mxu0 0.0
    %200 = vmatpush1.msra.mxu0 0.0
    %201 = vmatprep.subr.mxu0 0.0
    %202 = vmatpush1.msra.mxu0 0.0
    %203 = vmatprep.subr.mxu0 0.0
    %204 = vmatpush1.msra.mxu0 0.0
    %205 = vmatprep.subr.mxu0 0.0
    %206 = vmatpush1.msra.mxu0 0.0
    %207 = vmatprep.subr.mxu0 0.0
    %208 = vmatpush1.msra.mxu0 0.0
    %209 = vmatprep.subr.mxu0 0.0
    %210 = vmatpush1.msra.mxu0 0.0
    %211 = vmatprep.subr.mxu0 0.0
    %212 = vmatpush1.msra.mxu0 0.0
    %213 = vmatprep.subr.mxu0 0.0
    %214 = vmatpush1.msra.mxu0 0.0
    %215 = vmatprep.subr.mxu0 0.0
    %216 = vmatpush1.msra.mxu0 0.0
    %217 = vmatprep.subr.mxu0 0.0
    %218 = vmatpush1.msra.mxu0 0.0
    %219 = vmatprep.subr.mxu0 0.0
    %220 = vmatpush1.msra.mxu0 0.0
    %221 = vmatprep.subr.mxu0 0.0
    %222 = vmatpush1.msra.mxu0 0.0
    %223 = vmatprep.subr.mxu0 0.0
    %224 = vmatpush1.msra.mxu0 0.0
    %225 = vmatprep.subr.mxu0 0.0
    %226 = vmatpush1.msra.mxu0 0.0
    %227 = vmatprep.subr.mxu0 0.0
    %228 = vmatpush1.msra.mxu0 0.0
    %229 = vmatprep.subr.mxu0 0.0
    %230 = vmatpush1.msra.mxu0 0.0
    %231 = vmatprep.subr.mxu0 0.0
    %232 = vmatpush1.msra.mxu0 0.0
    %233 = vmatprep.subr.mxu0 0.0
    %234 = vmatpush1.msra.mxu0 0.0
    %235 = vmatprep.mubr.f32.mxu0 0.0
    %236 = vmatmul.mubr.f32.gmra.mrb[0].mxu0 %v169
    %v237 = vpop.f32.mrb[0].mxu0
    %v238 = vadd.f32 %v166, %v237
    %v239 = vpop.f32.mrb[0].mxu0
    %240 = vdwg.mxu0
    %v241 = vsel %vm125, %v238, 0.0
    %242 = vadd.xlane.f32.xlu0 %v241
    %v243 = vpop.xlane.xlu0 %242
    %v244 = vmul.f32 %v243, %v129
    %v245 = vsub.f32 %v238, %v244
    %v246 = vmul.f32 %v245, %v245
    %v247 = vsel %vm125, %v246, 0.0
    %248 = vadd.xlane.f32.xlu0 %v247
    %v249 = vpop.xlane.xlu0 %248
    %v250 = vmul.f32 %v249, %v129
    %v251 = vadd.f32 %v250, 1e-05
    %v252 = vrsqrt.pop %v251
    %v253 = vmul.f32 %v245, %v252
    %v254 = vld [vmem:[%s7] sm:$0x1]
    %v256 = vlaneseq
    %v257 = vshrl.u32 %v256, 7
    %v258 = vsub.s32 0, %v257
    %v259 = vrot.slane %v254, %v258
    %v261 = vmul.f32 %v253, %v259
    %v262 = vld [vmem:[%s8] sm:$0x1]
    %v264 = vlaneseq
    %v265 = vshrl.u32 %v264, 7
    %v266 = vsub.s32 0, %v265
    %v267 = vrot.slane %v262, %v266
    %v269 = vadd.f32 %v261, %v267
    %v270 = vmax.f32 %v269, 0.0
    %v271 = vld [vmem:[%s9] sm:$0xff]
    %v272 = vld [vmem:[%s9 + $0x8] sm:$0xff]
    %v273 = vld [vmem:[%s9 + $0x10] sm:$0xff]
    %v274 = vld [vmem:[%s9 + $0x18] sm:$0xff]
    %v275 = vld [vmem:[%s10] sm:$0x1]
    %v277 = vlaneseq
    %v278 = vshrl.u32 %v277, 7
    %v279 = vsub.s32 0, %v278
    %v280 = vrot.slane %v275, %v279
    %v283 = vsel %vm51, %v270, 0
    %285 = vmatprep.subr.mxu0 0.0
    %286 = vmatpush1.msra.mxu0 %v271
    %287 = vmatprep.subr.mxu0 0.0
    %288 = vmatpush1.msra.mxu0 %v272
    %289 = vmatprep.subr.mxu0 0.0
    %290 = vmatpush1.msra.mxu0 %v273
    %291 = vmatprep.subr.mxu0 0.0
    %292 = vmatpush1.msra.mxu0 %v274
    %293 = vmatprep.subr.mxu0 0.0
    %294 = vmatpush1.msra.mxu0 0.0
    %295 = vmatprep.subr.mxu0 0.0
    %296 = vmatpush1.msra.mxu0 0.0
    %297 = vmatprep.subr.mxu0 0.0
    %298 = vmatpush1.msra.mxu0 0.0
    %299 = vmatprep.subr.mxu0 0.0
    %300 = vmatpush1.msra.mxu0 0.0
    %301 = vmatprep.subr.mxu0 0.0
    %302 = vmatpush1.msra.mxu0 0.0
    %303 = vmatprep.subr.mxu0 0.0
    %304 = vmatpush1.msra.mxu0 0.0
    %305 = vmatprep.subr.mxu0 0.0
    %306 = vmatpush1.msra.mxu0 0.0
    %307 = vmatprep.subr.mxu0 0.0
    %308 = vmatpush1.msra.mxu0 0.0
    %309 = vmatprep.subr.mxu0 0.0
    %310 = vmatpush1.msra.mxu0 0.0
    %311 = vmatprep.subr.mxu0 0.0
    %312 = vmatpush1.msra.mxu0 0.0
    %313 = vmatprep.subr.mxu0 0.0
    %314 = vmatpush1.msra.mxu0 0.0
    %315 = vmatprep.subr.mxu0 0.0
    %316 = vmatpush1.msra.mxu0 0.0
    %317 = vmatprep.subr.mxu0 0.0
    %318 = vmatpush1.msra.mxu0 0.0
    %319 = vmatprep.subr.mxu0 0.0
    %320 = vmatpush1.msra.mxu0 0.0
    %321 = vmatprep.subr.mxu0 0.0
    %322 = vmatpush1.msra.mxu0 0.0
    %323 = vmatprep.subr.mxu0 0.0
    %324 = vmatpush1.msra.mxu0 0.0
    %325 = vmatprep.subr.mxu0 0.0
    %326 = vmatpush1.msra.mxu0 0.0
    %327 = vmatprep.subr.mxu0 0.0
    %328 = vmatpush1.msra.mxu0 0.0
    %329 = vmatprep.subr.mxu0 0.0
    %330 = vmatpush1.msra.mxu0 0.0
    %331 = vmatprep.subr.mxu0 0.0
    %332 = vmatpush1.msra.mxu0 0.0
    %333 = vmatprep.subr.mxu0 0.0
    %334 = vmatpush1.msra.mxu0 0.0
    %335 = vmatprep.subr.mxu0 0.0
    %336 = vmatpush1.msra.mxu0 0.0
    %337 = vmatprep.subr.mxu0 0.0
    %338 = vmatpush1.msra.mxu0 0.0
    %339 = vmatprep.subr.mxu0 0.0
    %340 = vmatpush1.msra.mxu0 0.0
    %341 = vmatprep.subr.mxu0 0.0
    %342 = vmatpush1.msra.mxu0 0.0
    %343 = vmatprep.subr.mxu0 0.0
    %344 = vmatpush1.msra.mxu0 0.0
    %345 = vmatprep.subr.mxu0 0.0
    %346 = vmatpush1.msra.mxu0 0.0
    %347 = vmatprep.subr.mxu0 0.0
    %348 = vmatpush1.msra.mxu0 0.0
    %349 = vmatprep.mubr.f32.mxu0 0.0
    %350 = vmatmul.mubr.f32.gmra.mrb[0].mxu0 %v283
    %v351 = vpop.f32.mrb[0].mxu0
    %v352 = vadd.f32 %v280, %v351
    %v353 = vpop.f32.mrb[0].mxu0
    %354 = vdwg.mxu0
    %vm355 = vcmask 17408
    %356 = vst.msk [vmem:[#allocation2] sm:$0x3] %vm355, %v352
    // Predicated region
    $region46: #{_lambda_.7} parent=1 // pred_check
      _
    $region47: #{_lambda_.7} parent=1 // pred_check_branch
      %358 = sbr.rel (0) target = $region49
    $region48: #{_lambda_.7} parent=1 // pred_region
      %s360 = ssub.s32 32, 32
      %361 = vsyncadd [#allocation3], %s360
      %s363 = sshll.u32 [#allocation2], 4
      %s364 = int_to_ptr.vmem [resolvable:$true] %s363
      %366 = dma.vmem_to_hbm [thread:$0]  %s364, 32, %s11, [#allocation3]
    $region49: #{_lambda_.7} parent=1 // pred_fallthru
      _
    // Predicated region
    $region50: #{_lambda_.7} parent=1 // pred_check
      _
    $region51: #{_lambda_.7} parent=1 // pred_check_branch
      %368 = sbr.rel (0) target = $region53
    $region52: #{_lambda_.7} parent=1 // pred_region
      %369 = dma.done [#allocation3], 32
    $region53: #{_lambda_.7} parent=1 // pred_fallthru
      _
    %370 = vsyncpa [#allocation3], 1

// kernel: _lambda_.6
$region0: #{_lambda_.6}
  #allocation0 [shape = 'u32[]', space=smem, size = 0x4, offset = 0x4, fixed_abs, tag = 'smem constant byte address 0x4 - core index']
  #allocation1 [shape = 'u32[144,128]{1,0:T(1,128)}', space=vmem, size = 0x12000, scoped, tag = 'internal scratch']
  %s0 = inlined_call_operand.vmem [shape: bf16[2,16,512], index: 0, kind: input, shape index: {}]
  %s1 = inlined_call_operand.vmem [shape: bf16[32,144], index: 1, kind: input, shape index: {}]
  %s2 = inlined_call_operand.vmem [shape: f32[32,1], index: 2, kind: input, shape index: {}, may-alias: {2,6}]
  %s3 = inlined_call_operand.vmem [shape: f32[32,1], index: 3, kind: input, shape index: {}]
  %s4 = inlined_call_operand.vmem [shape: bf16[128,128], index: 4, kind: input, shape index: {}]
  %s5 = inlined_call_operand.vmem [shape: bf16[32,288], index: 5, kind: input, shape index: {}]
  %s6 = inlined_call_operand.vmem [shape: f32[32,1], index: 6, kind: input, shape index: {}, may-alias: {2,6}]
  %s7 = inlined_call_operand.vmem [shape: f32[32,1], index: 7, kind: input, shape index: {}]
  %s8 = inlined_call_operand.vmem [shape: f32[1,512], index: 8, kind: input, shape index: {}]
  %s9 = inlined_call_operand.vmem [shape: f32[2,32,1], index: 9, kind: output, shape index: {}]
  %s10 = sld [smem:[#allocation0]]
  $region69: #{_lambda_.6} parent=0
    _
  %s12 = ssub.s32 1, %s10
  %s13 = scalar_select 0, %s12, %s10
  loop: start=0, step=1, limit=4
  $region2: #{_lambda_.6} parent=0 // loop_pre_header
    _
  $region3: #{_lambda_.6} parent=0 // loop_header
    %s15 = sphi 0, %s19
    %p16 = scmp.ge.s32.totalorder %s15, 4
    %s25 = sphi 0, %s27
    %s28 = sphi 0, %s25
    %s29 = sphi 0, %s28
    %s45 = sphi 0, %s29
    %s49 = sphi 0, %s49
    %s51 = sphi 0, %s49
    %s52 = sphi 0, %s51
    %s66 = sphi 0, %s52
    %s70 = sphi 0, %s70
    %s72 = sphi 0, %s70
    %s73 = sphi 0, %s72
    %s87 = sphi 0, %s73
    %s91 = sphi 0, %s91
    %s93 = sphi 0, %s91
    %s94 = sphi 0, %s93
    %s108 = sphi 0, %s94
    %s112 = sphi 0, %s112
    %s114 = sphi 0, %s112
    %s115 = sphi 0, %s114
    %s129 = sphi 0, %s115
    %s133 = sphi 0, %s133
    %s135 = sphi 0, %s133
    %s136 = sphi 0, %s135
    %s150 = sphi 0, %s136
    %s154 = sphi 0, %s154
    %s156 = sphi 0, %s154
    %s157 = sphi 0, %s156
    %s171 = sphi 0, %s157
    %s175 = sphi 0, %s175
    %s177 = sphi 0, %s175
    %s178 = sphi 0, %s177
    %s192 = sphi 0, %s178
    %s196 = sphi 0, %s196
    %s198 = sphi 0, %s196
    %s199 = sphi 0, %s198
    %s213 = sphi 0, %s199
    %s219 = sphi 0, %s221
    %s222 = sphi 0, %s219
    %s223 = sphi 0, %s222
    %s239 = sphi 0, %s223
  $region4: #{_lambda_.6} parent=0 // loop_header_branch
    %18 = sbr.rel (%p16) target = $region8
  $region5: #{_lambda_.6} parent=0 // loop_body
    %s20 = ssub.s32 %s15, 1
    %s21 = ssub.s32 %s15, 2
    %s22 = sadd.s32 %s15, 1
    %s23 = ssub.s32 %s15, %s22
    %p24 = scmp.eq.s32.totalorder %s23, 0
    %s26 = sadd.s32 %s25, 1
    %s27 = scalar_select %p24, %s25, %s26
    %p30 = pneg %p24
    %p31 = scmp.eq.s32.totalorder %s15, 1
    %p32 = por %p30, %p31
    %p33 = scmp.ne.s32.totalorder %s25, %s28
    %p34 = scmp.eq.s32.totalorder %s15, 0
    %p35 = por %p33, %p34
    %p36 = scmp.ne.s32.totalorder %s25, %s28
    %p37 = scmp.eq.s32.totalorder %s20, 1
    %p38 = por %p36, %p37
    %p39 = scmp.ne.s32.totalorder %s28, %s29
    %p40 = scmp.eq.s32.totalorder %s20, 0
    %p41 = por %p39, %p40
    %p42 = scmp.ne.s32.totalorder %s28, %s29
    %p43 = scmp.eq.s32.totalorder %s21, 1
    %p44 = por %p42, %p43
    %p46 = scmp.ne.s32.totalorder %s29, %s45
    %p47 = scmp.eq.s32.totalorder %s21, 0
    %p48 = por %p46, %p47
    %s50 = sadd.s32 %s49, 1
    %p53 = scmp.eq.s32.totalorder %s15, 1
    %p54 = scmp.ne.s32.totalorder %s49, %s51
    %p55 = scmp.eq.s32.totalorder %s15, 0
    %p56 = por %p54, %p55
    %p57 = scmp.ne.s32.totalorder %s49, %s51
    %p58 = scmp.eq.s32.totalorder %s20, 1
    %p59 = por %p57, %p58
    %p60 = scmp.ne.s32.totalorder %s51, %s52
    %p61 = scmp.eq.s32.totalorder %s20, 0
    %p62 = por %p60, %p61
    %p63 = scmp.ne.s32.totalorder %s51, %s52
    %p64 = scmp.eq.s32.totalorder %s21, 1
    %p65 = por %p63, %p64
    %p67 = scmp.ne.s32.totalorder %s52, %s66
    %p68 = scmp.eq.s32.totalorder %s21, 0
    %p69 = por %p67, %p68
    %s71 = sadd.s32 %s70, 1
    %p74 = scmp.eq.s32.totalorder %s15, 1
    %p75 = scmp.ne.s32.totalorder %s70, %s72
    %p76 = scmp.eq.s32.totalorder %s15, 0
    %p77 = por %p75, %p76
    %p78 = scmp.ne.s32.totalorder %s70, %s72
    %p79 = scmp.eq.s32.totalorder %s20, 1
    %p80 = por %p78, %p79
    %p81 = scmp.ne.s32.totalorder %s72, %s73
    %p82 = scmp.eq.s32.totalorder %s20, 0
    %p83 = por %p81, %p82
    %p84 = scmp.ne.s32.totalorder %s72, %s73
    %p85 = scmp.eq.s32.totalorder %s21, 1
    %p86 = por %p84, %p85
    %p88 = scmp.ne.s32.totalorder %s73, %s87
    %p89 = scmp.eq.s32.totalorder %s21, 0
    %p90 = por %p88, %p89
    %s92 = sadd.s32 %s91, 1
    %p95 = scmp.eq.s32.totalorder %s15, 1
    %p96 = scmp.ne.s32.totalorder %s91, %s93
    %p97 = scmp.eq.s32.totalorder %s15, 0
    %p98 = por %p96, %p97
    %p99 = scmp.ne.s32.totalorder %s91, %s93
    %p100 = scmp.eq.s32.totalorder %s20, 1
    %p101 = por %p99, %p100
    %p102 = scmp.ne.s32.totalorder %s93, %s94
    %p103 = scmp.eq.s32.totalorder %s20, 0
    %p104 = por %p102, %p103
    %p105 = scmp.ne.s32.totalorder %s93, %s94
    %p106 = scmp.eq.s32.totalorder %s21, 1
    %p107 = por %p105, %p106
    %p109 = scmp.ne.s32.totalorder %s94, %s108
    %p110 = scmp.eq.s32.totalorder %s21, 0
    %p111 = por %p109, %p110
    %s113 = sadd.s32 %s112, 1
    %p116 = scmp.eq.s32.totalorder %s15, 1
    %p117 = scmp.ne.s32.totalorder %s112, %s114
    %p118 = scmp.eq.s32.totalorder %s15, 0
    %p119 = por %p117, %p118
    %p120 = scmp.ne.s32.totalorder %s112, %s114
    %p121 = scmp.eq.s32.totalorder %s20, 1
    %p122 = por %p120, %p121
    %p123 = scmp.ne.s32.totalorder %s114, %s115
    %p124 = scmp.eq.s32.totalorder %s20, 0
    %p125 = por %p123, %p124
    %p126 = scmp.ne.s32.totalorder %s114, %s115
    %p127 = scmp.eq.s32.totalorder %s21, 1
    %p128 = por %p126, %p127
    %p130 = scmp.ne.s32.totalorder %s115, %s129
    %p131 = scmp.eq.s32.totalorder %s21, 0
    %p132 = por %p130, %p131
    %s134 = sadd.s32 %s133, 1
    %p137 = scmp.eq.s32.totalorder %s15, 1
    %p138 = scmp.ne.s32.totalorder %s133, %s135
    %p139 = scmp.eq.s32.totalorder %s15, 0
    %p140 = por %p138, %p139
    %p141 = scmp.ne.s32.totalorder %s133, %s135
    %p142 = scmp.eq.s32.totalorder %s20, 1
    %p143 = por %p141, %p142
    %p144 = scmp.ne.s32.totalorder %s135, %s136
    %p145 = scmp.eq.s32.totalorder %s20, 0
    %p146 = por %p144, %p145
    %p147 = scmp.ne.s32.totalorder %s135, %s136
    %p148 = scmp.eq.s32.totalorder %s21, 1
    %p149 = por %p147, %p148
    %p151 = scmp.ne.s32.totalorder %s136, %s150
    %p152 = scmp.eq.s32.totalorder %s21, 0
    %p153 = por %p151, %p152
    %s155 = sadd.s32 %s154, 1
    %p158 = scmp.eq.s32.totalorder %s15, 1
    %p159 = scmp.ne.s32.totalorder %s154, %s156
    %p160 = scmp.eq.s32.totalorder %s15, 0
    %p161 = por %p159, %p160
    %p162 = scmp.ne.s32.totalorder %s154, %s156
    %p163 = scmp.eq.s32.totalorder %s20, 1
    %p164 = por %p162, %p163
    %p165 = scmp.ne.s32.totalorder %s156, %s157
    %p166 = scmp.eq.s32.totalorder %s20, 0
    %p167 = por %p165, %p166
    %p168 = scmp.ne.s32.totalorder %s156, %s157
    %p169 = scmp.eq.s32.totalorder %s21, 1
    %p170 = por %p168, %p169
    %p172 = scmp.ne.s32.totalorder %s157, %s171
    %p173 = scmp.eq.s32.totalorder %s21, 0
    %p174 = por %p172, %p173
    %s176 = sadd.s32 %s175, 1
    %p179 = scmp.eq.s32.totalorder %s15, 1
    %p180 = scmp.ne.s32.totalorder %s175, %s177
    %p181 = scmp.eq.s32.totalorder %s15, 0
    %p182 = por %p180, %p181
    %p183 = scmp.ne.s32.totalorder %s175, %s177
    %p184 = scmp.eq.s32.totalorder %s20, 1
    %p185 = por %p183, %p184
    %p186 = scmp.ne.s32.totalorder %s177, %s178
    %p187 = scmp.eq.s32.totalorder %s20, 0
    %p188 = por %p186, %p187
    %p189 = scmp.ne.s32.totalorder %s177, %s178
    %p190 = scmp.eq.s32.totalorder %s21, 1
    %p191 = por %p189, %p190
    %p193 = scmp.ne.s32.totalorder %s178, %s192
    %p194 = scmp.eq.s32.totalorder %s21, 0
    %p195 = por %p193, %p194
    %s197 = sadd.s32 %s196, 1
    %p200 = scmp.eq.s32.totalorder %s15, 1
    %p201 = scmp.ne.s32.totalorder %s196, %s198
    %p202 = scmp.eq.s32.totalorder %s15, 0
    %p203 = por %p201, %p202
    %p204 = scmp.ne.s32.totalorder %s196, %s198
    %p205 = scmp.eq.s32.totalorder %s20, 1
    %p206 = por %p204, %p205
    %p207 = scmp.ne.s32.totalorder %s198, %s199
    %p208 = scmp.eq.s32.totalorder %s20, 0
    %p209 = por %p207, %p208
    %p210 = scmp.ne.s32.totalorder %s198, %s199
    %p211 = scmp.eq.s32.totalorder %s21, 1
    %p212 = por %p210, %p211
    %p214 = scmp.ne.s32.totalorder %s199, %s213
    %p215 = scmp.eq.s32.totalorder %s21, 0
    %p216 = por %p214, %p215
    %s217 = ssub.s32 %s15, %s22
    %p218 = scmp.eq.s32.totalorder %s217, 0
    %s220 = sadd.s32 %s219, 1
    %s221 = scalar_select %p218, %s219, %s220
    %p224 = pneg %p218
    %p225 = scmp.eq.s32.totalorder %s15, 1
    %p226 = por %p224, %p225
    %p227 = scmp.ne.s32.totalorder %s219, %s222
    %p228 = scmp.eq.s32.totalorder %s15, 0
    %p229 = por %p227, %p228
    %p230 = scmp.ne.s32.totalorder %s219, %s222
    %p231 = scmp.eq.s32.totalorder %s20, 1
    %p232 = por %p230, %p231
    %p233 = scmp.ne.s32.totalorder %s222, %s223
    %p234 = scmp.eq.s32.totalorder %s20, 0
    %p235 = por %p233, %p234
    %p236 = scmp.ne.s32.totalorder %s222, %s223
    %p237 = scmp.eq.s32.totalorder %s21, 1
    %p238 = por %p236, %p237
    %p240 = scmp.ne.s32.totalorder %s223, %s239
    %p241 = scmp.eq.s32.totalorder %s21, 0
    %p242 = por %p240, %p241
    %p243 = scmp.le.s32.totalorder 1, %s15
    %p244 = scmp.lt.s32.totalorder %s15, 3
    %p245 = pnand %p243, %p244
    %p246 = pneg %p245
    // Predicated region
    $region9: #{_lambda_.6} parent=5 // pred_check
      _
    $region10: #{_lambda_.6} parent=5 // pred_check_branch
      %248 = sbr.rel (%p245) target = $region12
    $region11: #{_lambda_.6} parent=5 // pred_region
      %s249 = ssub.s32 %s15, 1
      // Predicated region
      $region13: #{_lambda_.6} parent=11 // pred_check
        %p250 = pneg %p62
      $region14: #{_lambda_.6} parent=11 // pred_check_branch
        %252 = sbr.rel (%p250) target = $region16
      $region15: #{_lambda_.6} parent=11 // pred_region
        _
      $region16: #{_lambda_.6} parent=11 // pred_fallthru
        _
      // Predicated region
      $region17: #{_lambda_.6} parent=11 // pred_check
        %p253 = pneg %p83
      $region18: #{_lambda_.6} parent=11 // pred_check_branch
        %255 = sbr.rel (%p253) target = $region20
      $region19: #{_lambda_.6} parent=11 // pred_region
        _
      $region20: #{_lambda_.6} parent=11 // pred_fallthru
        _
      // Predicated region
      $region21: #{_lambda_.6} parent=11 // pred_check
        %p256 = pneg %p104
      $region22: #{_lambda_.6} parent=11 // pred_check_branch
        %258 = sbr.rel (%p256) target = $region24
      $region23: #{_lambda_.6} parent=11 // pred_region
        _
      $region24: #{_lambda_.6} parent=11 // pred_fallthru
        _
      // Predicated region
      $region25: #{_lambda_.6} parent=11 // pred_check
        %p259 = pneg %p125
      $region26: #{_lambda_.6} parent=11 // pred_check_branch
        %261 = sbr.rel (%p259) target = $region28
      $region27: #{_lambda_.6} parent=11 // pred_region
        _
      $region28: #{_lambda_.6} parent=11 // pred_fallthru
        _
      // Predicated region
      $region29: #{_lambda_.6} parent=11 // pred_check
        %p262 = pneg %p146
      $region30: #{_lambda_.6} parent=11 // pred_check_branch
        %264 = sbr.rel (%p262) target = $region32
      $region31: #{_lambda_.6} parent=11 // pred_region
        _
      $region32: #{_lambda_.6} parent=11 // pred_fallthru
        _
      // Predicated region
      $region33: #{_lambda_.6} parent=11 // pred_check
        %p265 = pneg %p167
      $region34: #{_lambda_.6} parent=11 // pred_check_branch
        %267 = sbr.rel (%p265) target = $region36
      $region35: #{_lambda_.6} parent=11 // pred_region
        _
      $region36: #{_lambda_.6} parent=11 // pred_fallthru
        _
      // Predicated region
      $region37: #{_lambda_.6} parent=11 // pred_check
        %p268 = pneg %p188
      $region38: #{_lambda_.6} parent=11 // pred_check_branch
        %270 = sbr.rel (%p268) target = $region40
      $region39: #{_lambda_.6} parent=11 // pred_region
        _
      $region40: #{_lambda_.6} parent=11 // pred_fallthru
        _
      // Predicated region
      $region41: #{_lambda_.6} parent=11 // pred_check
        %p271 = pneg %p209
      $region42: #{_lambda_.6} parent=11 // pred_check_branch
        %273 = sbr.rel (%p271) target = $region44
      $region43: #{_lambda_.6} parent=11 // pred_region
        _
      $region44: #{_lambda_.6} parent=11 // pred_fallthru
        _
    $region12: #{_lambda_.6} parent=5 // pred_fallthru
      _
    %p274 = scmp.lt.s32.totalorder %s15, 2
    // Predicated region
    $region45: #{_lambda_.6} parent=5 // pred_check
      %p275 = pneg %p274
    $region46: #{_lambda_.6} parent=5 // pred_check_branch
      %277 = sbr.rel (%p275) target = $region48
    $region47: #{_lambda_.6} parent=5 // pred_region
      // Predicated region
      $region49: #{_lambda_.6} parent=47 // pred_check
        %p278 = pneg %p35
      $region50: #{_lambda_.6} parent=47 // pred_check_branch
        %280 = sbr.rel (%p278) target = $region52
      $region51: #{_lambda_.6} parent=47 // pred_region
        %p281 = scmp.lt.s32.totalorder %s15, 1
        %s282 = scalar_select %p281, %s15, 1
        %s283 = smul.addr %s282, 8
        %s284 = smul.addr %s283, 4
        %s285 = scalar_lea.vmem %s0, %s284
      $region52: #{_lambda_.6} parent=47 // pred_fallthru
        _
    $region48: #{_lambda_.6} parent=5 // pred_fallthru
      _
    %p286 = scmp.le.s32.totalorder 1, %s15
    %p287 = scmp.lt.s32.totalorder %s15, 3
    %p288 = pnand %p286, %p287
    %p289 = pneg %p288
    // Predicated region
    $region53: #{_lambda_.6} parent=5 // pred_check
      _
    $region54: #{_lambda_.6} parent=5 // pred_check_branch
      %291 = sbr.rel (%p288) target = $region56
    $region55: #{_lambda_.6} parent=5 // pred_region
      %s292 = ssub.s32 %s15, 1
      %p293 = scmp.lt.s32.totalorder %s20, 1
      %s294 = scalar_select %p293, %s20, 1
      %s295 = smul.addr %s294, 8
      %s296 = smul.addr %s295, 4
      %s297 = scalar_lea.vmem %s0, %s296
      %p298 = pneg %p41
      %p299 = pneg %p38
      %p300 = pneg %p62
      %p301 = pneg %p59
      %p302 = pneg %p83
      %p303 = pneg %p80
      %p304 = pneg %p104
      %p305 = pneg %p101
      %p306 = pneg %p125
      %p307 = pneg %p122
      %p308 = pneg %p146
      %p309 = pneg %p143
      %p310 = pneg %p167
      %p311 = pneg %p164
      %p312 = pneg %p188
      %p313 = pneg %p185
      %p314 = pneg %p209
      %p315 = pneg %p206
      %p316 = pneg %p235
      %p317 = pneg %p232
      %p318 = scmp.lt.s32.totalorder %s20, 1
      %s319 = scalar_select %p318, %s20, 1
      %s320 = smul.addr %s319, 4
      %s321 = smul.addr %s320, 8
      %s322 = scalar_lea.vmem %s9, %s321
      %p323 = scmp.lt.s32.totalorder %s20, 1
      %s324 = scalar_select %p323, %s20, 1
      %s325 = smul.addr %s324, 8
      %s326 = smul.addr %s325, 4
      %s327 = scalar_lea.vmem %s0, %s326
      %p328 = scmp.lt.s32.totalorder %s20, 1
      %s329 = scalar_select %p328, %s20, 1
      %s330 = smul.addr %s329, 4
      %s331 = smul.addr %s330, 8
      %s332 = scalar_lea.vmem %s9, %s331
      %v334 = vld [vmem:[%s327] sm:$0xff]
      %v335 = vld [vmem:[%s327 + $0x8] sm:$0xff]
      %v336 = vld [vmem:[%s327 + $0x10] sm:$0xff]
      %v337 = vld [vmem:[%s327 + $0x18] sm:$0xff]
      %v338 = vunpack.c.l.bf16 %v334
      %v339 = vunpack.c.h.bf16 %v334
      %v340 = vunpack.c.l.bf16 %v335
      %v341 = vunpack.c.h.bf16 %v335
      %v342 = vunpack.c.l.bf16 %v336
      %v343 = vunpack.c.h.bf16 %v336
      %v344 = vunpack.c.l.bf16 %v337
      %v345 = vunpack.c.h.bf16 %v337
      %346 = vrot.lane.b32.xlu0 %v338, 11
      %v347 = vpop.permute.xlu0 %346
      %348 = vrot.lane.b32.xlu0 %v342, 11
      %v349 = vpop.permute.xlu0 %348
      %350 = vrot.lane.b32.xlu0 %v339, 11
      %v351 = vpop.permute.xlu0 %350
      %352 = vrot.lane.b32.xlu0 %v343, 11
      %v353 = vpop.permute.xlu0 %352
      %354 = vrot.lane.b32.xlu0 %v340, 11
      %v355 = vpop.permute.xlu0 %354
      %356 = vrot.lane.b32.xlu0 %v344, 11
      %v357 = vpop.permute.xlu0 %356
      %358 = vrot.lane.b32.xlu0 %v341, 11
      %v359 = vpop.permute.xlu0 %358
      %360 = vrot.lane.b32.xlu0 %v345, 11
      %v361 = vpop.permute.xlu0 %360
      %v362 = vlaneseq
      %v363 = vand.u32 %v362, 127
      %vm364 = vcmp.lt.s32.totalorder %v363, 11
      %v365 = vsel %vm364, %v355, %v359
      %v366 = vsel %vm364, %v357, %v361
      %v367 = vsel %vm364, %v351, %v355
      %v368 = vsel %vm364, %v353, %v357
      %v369 = vsel %vm364, %v347, %v351
      %v370 = vsel %vm364, %v349, %v353
      %v371 = vsel %vm364, %v359, %v347
      %v372 = vsel %vm364, %v361, %v349
      %373 = vrot.lane.b32.xlu0 %v338, 10
      %v374 = vpop.permute.xlu0 %373
      %375 = vrot.lane.b32.xlu0 %v342, 10
      %v376 = vpop.permute.xlu0 %375
      %377 = vrot.lane.b32.xlu0 %v339, 10
      %v378 = vpop.permute.xlu0 %377
      %379 = vrot.lane.b32.xlu0 %v343, 10
      %v380 = vpop.permute.xlu0 %379
      %381 = vrot.lane.b32.xlu0 %v340, 10
      %v382 = vpop.permute.xlu0 %381
      %383 = vrot.lane.b32.xlu0 %v344, 10
      %v384 = vpop.permute.xlu0 %383
      %385 = vrot.lane.b32.xlu0 %v341, 10
      %v386 = vpop.permute.xlu0 %385
      %387 = vrot.lane.b32.xlu0 %v345, 10
      %v388 = vpop.permute.xlu0 %387
      %vm389 = vcmp.lt.s32.totalorder %v363, 10
      %v390 = vsel %vm389, %v382, %v386
      %v391 = vsel %vm389, %v384, %v388
      %v392 = vsel %vm389, %v378, %v382
      %v393 = vsel %vm389, %v380, %v384
      %v394 = vsel %vm389, %v374, %v378
      %v395 = vsel %vm389, %v376, %v380
      %v396 = vsel %vm389, %v386, %v374
      %v397 = vsel %vm389, %v388, %v376
      %398 = vrot.lane.b32.xlu0 %v338, 9
      %v399 = vpop.permute.xlu0 %398
      %400 = vrot.lane.b32.xlu0 %v342, 9
      %v401 = vpop.permute.xlu0 %400
      %402 = vrot.lane.b32.xlu0 %v339, 9
      %v403 = vpop.permute.xlu0 %402
      %404 = vrot.lane.b32.xlu0 %v343, 9
      %v405 = vpop.permute.xlu0 %404
      %406 = vrot.lane.b32.xlu0 %v340, 9
      %v407 = vpop.permute.xlu0 %406
      %408 = vrot.lane.b32.xlu0 %v344, 9
      %v409 = vpop.permute.xlu0 %408
      %410 = vrot.lane.b32.xlu0 %v341, 9
      %v411 = vpop.permute.xlu0 %410
      %412 = vrot.lane.b32.xlu0 %v345, 9
      %v413 = vpop.permute.xlu0 %412
      %vm414 = vcmp.lt.s32.totalorder %v363, 9
      %v415 = vsel %vm414, %v407, %v411
      %v416 = vsel %vm414, %v409, %v413
      %v417 = vsel %vm414, %v403, %v407
      %v418 = vsel %vm414, %v405, %v409
      %v419 = vsel %vm414, %v399, %v403
      %v420 = vsel %vm414, %v401, %v405
      %v421 = vsel %vm414, %v411, %v399
      %v422 = vsel %vm414, %v413, %v401
      %423 = vrot.lane.b32.xlu0 %v338, 1
      %v424 = vpop.permute.xlu0 %423
      %425 = vrot.lane.b32.xlu0 %v342, 1
      %v426 = vpop.permute.xlu0 %425
      %427 = vrot.lane.b32.xlu0 %v339, 1
      %v428 = vpop.permute.xlu0 %427
      %429 = vrot.lane.b32.xlu0 %v343, 1
      %v430 = vpop.permute.xlu0 %429
      %431 = vrot.lane.b32.xlu0 %v340, 1
      %v432 = vpop.permute.xlu0 %431
      %433 = vrot.lane.b32.xlu0 %v344, 1
      %v434 = vpop.permute.xlu0 %433
      %435 = vrot.lane.b32.xlu0 %v341, 1
      %v436 = vpop.permute.xlu0 %435
      %437 = vrot.lane.b32.xlu0 %v345, 1
      %v438 = vpop.permute.xlu0 %437
      %vm439 = vcmp.lt.s32.totalorder %v363, 1
      %v440 = vsel %vm439, %v432, %v436
      %v441 = vsel %vm439, %v434, %v438
      %v442 = vsel %vm439, %v428, %v432
      %v443 = vsel %vm439, %v430, %v434
      %v444 = vsel %vm439, %v424, %v428
      %v445 = vsel %vm439, %v426, %v430
      %v446 = vsel %vm439, %v436, %v424
      %v447 = vsel %vm439, %v438, %v426
      %448 = vrot.lane.b32.xlu0 %v338, 127
      %v449 = vpop.permute.xlu0 %448
      %450 = vrot.lane.b32.xlu0 %v342, 127
      %v451 = vpop.permute.xlu0 %450
      %452 = vrot.lane.b32.xlu0 %v339, 127
      %v453 = vpop.permute.xlu0 %452
      %454 = vrot.lane.b32.xlu0 %v343, 127
      %v455 = vpop.permute.xlu0 %454
      %456 = vrot.lane.b32.xlu0 %v340, 127
      %v457 = vpop.permute.xlu0 %456
      %458 = vrot.lane.b32.xlu0 %v344, 127
      %v459 = vpop.permute.xlu0 %458
      %460 = vrot.lane.b32.xlu0 %v341, 127
      %v461 = vpop.permute.xlu0 %460
      %462 = vrot.lane.b32.xlu0 %v345, 127
      %v463 = vpop.permute.xlu0 %462
      %vm464 = vcmp.lt.s32.totalorder %v363, 127
      %v465 = vsel %vm464, %v457, %v461
      %v466 = vsel %vm464, %v459, %v463
      %v467 = vsel %vm464, %v453, %v457
      %v468 = vsel %vm464, %v455, %v459
      %v469 = vsel %vm464, %v449, %v453
      %v470 = vsel %vm464, %v451, %v455
      %v471 = vsel %vm464, %v461, %v449
      %v472 = vsel %vm464, %v463, %v451
      %473 = vrot.lane.b32.xlu0 %v338, 119
      %v474 = vpop.permute.xlu0 %473
      %475 = vrot.lane.b32.xlu0 %v342, 119
      %v476 = vpop.permute.xlu0 %475
      %477 = vrot.lane.b32.xlu0 %v339, 119
      %v478 = vpop.permute.xlu0 %477
      %479 = vrot.lane.b32.xlu0 %v343, 119
      %v480 = vpop.permute.xlu0 %479
      %481 = vrot.lane.b32.xlu0 %v340, 119
      %v482 = vpop.permute.xlu0 %481
      %483 = vrot.lane.b32.xlu0 %v344, 119
      %v484 = vpop.permute.xlu0 %483
      %485 = vrot.lane.b32.xlu0 %v341, 119
      %v486 = vpop.permute.xlu0 %485
      %487 = vrot.lane.b32.xlu0 %v345, 119
      %v488 = vpop.permute.xlu0 %487
      %vm489 = vcmp.lt.s32.totalorder %v363, 119
      %v490 = vsel %vm489, %v482, %v486
      %v491 = vsel %vm489, %v484, %v488
      %v492 = vsel %vm489, %v478, %v482
      %v493 = vsel %vm489, %v480, %v484
      %v494 = vsel %vm489, %v474, %v478
      %v495 = vsel %vm489, %v476, %v480
      %v496 = vsel %vm489, %v486, %v474
      %v497 = vsel %vm489, %v488, %v476
      %498 = vrot.lane.b32.xlu0 %v338, 118
      %v499 = vpop.permute.xlu0 %498
      %500 = vrot.lane.b32.xlu0 %v342, 118
      %v501 = vpop.permute.xlu0 %500
      %502 = vrot.lane.b32.xlu0 %v339, 118
      %v503 = vpop.permute.xlu0 %502
      %504 = vrot.lane.b32.xlu0 %v343, 118
      %v505 = vpop.permute.xlu0 %504
      %506 = vrot.lane.b32.xlu0 %v340, 118
      %v507 = vpop.permute.xlu0 %506
      %508 = vrot.lane.b32.xlu0 %v344, 118
      %v509 = vpop.permute.xlu0 %508
      %510 = vrot.lane.b32.xlu0 %v341, 118
      %v511 = vpop.permute.xlu0 %510
      %512 = vrot.lane.b32.xlu0 %v345, 118
      %v513 = vpop.permute.xlu0 %512
      %vm514 = vcmp.lt.s32.totalorder %v363, 118
      %v515 = vsel %vm514, %v507, %v511
      %v516 = vsel %vm514, %v509, %v513
      %v517 = vsel %vm514, %v503, %v507
      %v518 = vsel %vm514, %v505, %v509
      %v519 = vsel %vm514, %v499, %v503
      %v520 = vsel %vm514, %v501, %v505
      %v521 = vsel %vm514, %v511, %v499
      %v522 = vsel %vm514, %v513, %v501
      %523 = vrot.lane.b32.xlu0 %v338, 117
      %v524 = vpop.permute.xlu0 %523
      %525 = vrot.lane.b32.xlu0 %v342, 117
      %v526 = vpop.permute.xlu0 %525
      %527 = vrot.lane.b32.xlu0 %v339, 117
      %v528 = vpop.permute.xlu0 %527
      %529 = vrot.lane.b32.xlu0 %v343, 117
      %v530 = vpop.permute.xlu0 %529
      %531 = vrot.lane.b32.xlu0 %v340, 117
      %v532 = vpop.permute.xlu0 %531
      %533 = vrot.lane.b32.xlu0 %v344, 117
      %v534 = vpop.permute.xlu0 %533
      %535 = vrot.lane.b32.xlu0 %v341, 117
      %v536 = vpop.permute.xlu0 %535
      %537 = vrot.lane.b32.xlu0 %v345, 117
      %v538 = vpop.permute.xlu0 %537
      %vm539 = vcmp.lt.s32.totalorder %v363, 117
      %v540 = vsel %vm539, %v532, %v536
      %v541 = vsel %vm539, %v534, %v538
      %v542 = vsel %vm539, %v528, %v532
      %v543 = vsel %vm539, %v530, %v534
      %v544 = vsel %vm539, %v524, %v528
      %v545 = vsel %vm539, %v526, %v530
      %v546 = vsel %vm539, %v536, %v524
      %v547 = vsel %vm539, %v538, %v526
      %v548 = vpack.c.bf16 %v372, %v371
      %v549 = vpack.c.bf16 %v370, %v369
      %v550 = vpack.c.bf16 %v368, %v367
      %v551 = vpack.c.bf16 %v366, %v365
      %v552 = vpack.c.bf16 %v397, %v396
      %v553 = vpack.c.bf16 %v395, %v394
      %v554 = vpack.c.bf16 %v393, %v392
      %v555 = vpack.c.bf16 %v391, %v390
      %v556 = vpack.c.bf16 %v422, %v421
      %v557 = vpack.c.bf16 %v420, %v419
      %v558 = vpack.c.bf16 %v418, %v417
      %v559 = vpack.c.bf16 %v416, %v415
      %v560 = vpack.c.bf16 %v447, %v446
      %v561 = vpack.c.bf16 %v445, %v444
      %v562 = vpack.c.bf16 %v443, %v442
      %v563 = vpack.c.bf16 %v441, %v440
      %v564 = vpack.c.bf16 %v342, %v338
      %v565 = vpack.c.bf16 %v343, %v339
      %v566 = vpack.c.bf16 %v344, %v340
      %v567 = vpack.c.bf16 %v345, %v341
      %v568 = vpack.c.bf16 %v470, %v469
      %v569 = vpack.c.bf16 %v468, %v467
      %v570 = vpack.c.bf16 %v466, %v465
      %v571 = vpack.c.bf16 %v472, %v471
      %v572 = vpack.c.bf16 %v495, %v494
      %v573 = vpack.c.bf16 %v493, %v492
      %v574 = vpack.c.bf16 %v491, %v490
      %v575 = vpack.c.bf16 %v497, %v496
      %v576 = vpack.c.bf16 %v520, %v519
      %v577 = vpack.c.bf16 %v518, %v517
      %v578 = vpack.c.bf16 %v516, %v515
      %v579 = vpack.c.bf16 %v522, %v521
      %v580 = vpack.c.bf16 %v545, %v544
      %v581 = vpack.c.bf16 %v543, %v542
      %v582 = vpack.c.bf16 %v541, %v540
      %v583 = vpack.c.bf16 %v547, %v546
      %v584 = vld [vmem:[%s1] sm:$0xff]
      %v585 = vld [vmem:[%s1 + $0x8] sm:$0xff]
      %v586 = vld [vmem:[%s1 + $0x10] sm:$0xff]
      %v587 = vld [vmem:[%s1 + $0x18] sm:$0xff]
      %v592 = vunpack.c.l.b16 %v584
      %v593 = vunpack.c.h.b16 %v584
      %v594 = vunpack.c.l.b16 %v585
      %v595 = vunpack.c.h.b16 %v585
      %v596 = vunpack.c.l.b16 %v586
      %v597 = vunpack.c.h.b16 %v586
      %v598 = vunpack.c.l.b16 %v587
      %v599 = vunpack.c.h.b16 %v587
      %v600 = vpack.c.b16 %v594, %v592
      %v601 = vpack.c.b16 %v595, %v593
      %v602 = vpack.c.b16 %v598, %v596
      %v603 = vpack.c.b16 %v599, %v597
      %vm606 = vcmask 130048
      %v608 = vsel %vm606, %v601, 0
      %v611 = vsel %vm606, %v603, 0
      %613 = vmatprep.subr.bf16.mxu0 %v549
      %614 = vmatpush1.bf16.msra.mxu0 %v548
      %615 = vmatprep.subr.bf16.mxu0 %v553
      %616 = vmatpush1.bf16.msra.mxu0 %v552
      %617 = vmatprep.subr.bf16.mxu0 %v557
      %618 = vmatpush1.bf16.msra.mxu0 %v556
      %619 = vmatprep.subr.bf16.mxu0 %v561
      %620 = vmatpush1.bf16.msra.mxu0 %v560
      %621 = vmatprep.subr.bf16.mxu0 %v565
      %622 = vmatpush1.bf16.msra.mxu0 %v564
      %623 = vmatprep.subr.bf16.mxu0 %v569
      %624 = vmatpush1.bf16.msra.mxu0 %v568
      %625 = vmatprep.subr.bf16.mxu0 %v573
      %626 = vmatpush1.bf16.msra.mxu0 %v572
      %627 = vmatprep.subr.bf16.mxu0 %v577
      %628 = vmatpush1.bf16.msra.mxu0 %v576
      %629 = vmatprep.subr.bf16.mxu0 %v581
      %630 = vmatpush1.bf16.msra.mxu0 %v580
      %631 = vmatprep.subr.bf16.mxu0 0
      %632 = vmatpush1.bf16.msra.mxu0 0
      %633 = vmatprep.subr.bf16.mxu0 0
      %634 = vmatpush1.bf16.msra.mxu0 0
      %635 = vmatprep.subr.bf16.mxu0 0
      %636 = vmatpush1.bf16.msra.mxu0 0
      %637 = vmatprep.subr.bf16.mxu0 0
      %638 = vmatpush1.bf16.msra.mxu0 0
      %639 = vmatprep.subr.bf16.mxu0 0
      %640 = vmatpush1.bf16.msra.mxu0 0
      %641 = vmatprep.subr.bf16.mxu0 0
      %642 = vmatpush1.bf16.msra.mxu0 0
      %643 = vmatprep.subr.bf16.mxu0 0
      %644 = vmatpush1.bf16.msra.mxu0 0
      %645 = vmatprep.mubr.bf16.mxu0 %v608
      %646 = vmatmul.mubr.bf16.gmra.mrb[0].mxu0 %v600
      %v647 = vpop.f32.mrb[0].mxu0
      %v648 = vadd.f32 0.0, %v647
      %v649 = vpop.f32.mrb[0].mxu0
      %v650 = vadd.f32 0.0, %v649
      %v651 = vpop.f32.mrb[0].mxu0
      %v652 = vadd.f32 0.0, %v651
      %v653 = vpop.f32.mrb[0].mxu0
      %v654 = vadd.f32 0.0, %v653
      %655 = vmatprep.mubr.bf16.mxu0 %v611
      %656 = vmatmul.mubr.bf16.gmra.mrb[0].mxu0 %v602
      %v657 = vpop.f32.mrb[0].mxu0
      %v658 = vadd.f32 0.0, %v657
      %v659 = vpop.f32.mrb[0].mxu0
      %v660 = vadd.f32 0.0, %v659
      %v661 = vpop.f32.mrb[0].mxu0
      %v662 = vadd.f32 0.0, %v661
      %v663 = vpop.f32.mrb[0].mxu0
      %v664 = vadd.f32 0.0, %v663
      %665 = vdwg.mxu0
      %666 = vmatprep.subr.bf16.mxu0 %v551
      %667 = vmatpush1.bf16.msra.mxu0 %v550
      %668 = vmatprep.subr.bf16.mxu0 %v555
      %669 = vmatpush1.bf16.msra.mxu0 %v554
      %670 = vmatprep.subr.bf16.mxu0 %v559
      %671 = vmatpush1.bf16.msra.mxu0 %v558
      %672 = vmatprep.subr.bf16.mxu0 %v563
      %673 = vmatpush1.bf16.msra.mxu0 %v562
      %674 = vmatprep.subr.bf16.mxu0 %v567
      %675 = vmatpush1.bf16.msra.mxu0 %v566
      %676 = vmatprep.subr.bf16.mxu0 %v571
      %677 = vmatpush1.bf16.msra.mxu0 %v570
      %678 = vmatprep.subr.bf16.mxu0 %v575
      %679 = vmatpush1.bf16.msra.mxu0 %v574
      %680 = vmatprep.subr.bf16.mxu0 %v579
      %681 = vmatpush1.bf16.msra.mxu0 %v578
      %682 = vmatprep.subr.bf16.mxu0 %v583
      %683 = vmatpush1.bf16.msra.mxu0 %v582
      %684 = vmatprep.subr.bf16.mxu0 0
      %685 = vmatpush1.bf16.msra.mxu0 0
      %686 = vmatprep.subr.bf16.mxu0 0
      %687 = vmatpush1.bf16.msra.mxu0 0
      %688 = vmatprep.subr.bf16.mxu0 0
      %689 = vmatpush1.bf16.msra.mxu0 0
      %690 = vmatprep.subr.bf16.mxu0 0
      %691 = vmatpush1.bf16.msra.mxu0 0
      %692 = vmatprep.subr.bf16.mxu0 0
      %693 = vmatpush1.bf16.msra.mxu0 0
      %694 = vmatprep.subr.bf16.mxu0 0
      %695 = vmatpush1.bf16.msra.mxu0 0
      %696 = vmatprep.subr.bf16.mxu0 0
      %697 = vmatpush1.bf16.msra.mxu0 0
      %698 = vmatprep.mubr.bf16.mxu0 %v608
      %699 = vmatmul.mubr.bf16.gmra.mrb[0].mxu0 %v600
      %v700 = vpop.f32.mrb[0].mxu0
      %v701 = vadd.f32 0.0, %v700
      %v702 = vpop.f32.mrb[0].mxu0
      %v703 = vadd.f32 0.0, %v702
      %v704 = vpop.f32.mrb[0].mxu0
      %v705 = vadd.f32 0.0, %v704
      %v706 = vpop.f32.mrb[0].mxu0
      %v707 = vadd.f32 0.0, %v706
      %708 = vmatprep.mubr.bf16.mxu0 %v611
      %709 = vmatmul.mubr.bf16.gmra.mrb[0].mxu0 %v602
      %v710 = vpop.f32.mrb[0].mxu0
      %v711 = vadd.f32 0.0, %v710
      %v712 = vpop.f32.mrb[0].mxu0
      %v713 = vadd.f32 0.0, %v712
      %v714 = vpop.f32.mrb[0].mxu0
      %v715 = vadd.f32 0.0, %v714
      %v716 = vpop.f32.mrb[0].mxu0
      %v717 = vadd.f32 0.0, %v716
      %718 = vdwg.mxu0
      %v719 = vld [vmem:[%s2] sm:$0xff]
      %v720 = vld [vmem:[%s2 + $0x8] sm:$0xff]
      %v721 = vld [vmem:[%s2 + $0x10] sm:$0xff]
      %v722 = vld [vmem:[%s2 + $0x18] sm:$0xff]
      %724 = vset.pattern.permute.xlu0 0
      %725 = vperm.xlu0 %724, %v719
      %v726 = vpop.permute.xlu0 %725
      %729 = vset.pattern.permute.xlu0 0
      %730 = vperm.xlu0 %729, %v720
      %v731 = vpop.permute.xlu0 %730
      %734 = vset.pattern.permute.xlu0 0
      %735 = vperm.xlu0 %734, %v721
      %v736 = vpop.permute.xlu0 %735
      %739 = vset.pattern.permute.xlu0 0
      %740 = vperm.xlu0 %739, %v722
      %v741 = vpop.permute.xlu0 %740
      %v743 = vmul.f32 %v648, %v726
      %v744 = vmul.f32 %v650, %v726
      %v745 = vmul.f32 %v701, %v726
      %v746 = vmul.f32 %v703, %v726
      %v747 = vmul.f32 %v652, %v731
      %v748 = vmul.f32 %v654, %v731
      %v749 = vmul.f32 %v705, %v731
      %v750 = vmul.f32 %v707, %v731
      %v751 = vmul.f32 %v658, %v736
      %v752 = vmul.f32 %v660, %v736
      %v753 = vmul.f32 %v711, %v736
      %v754 = vmul.f32 %v713, %v736
      %v755 = vmul.f32 %v662, %v741
      %v756 = vmul.f32 %v664, %v741
      %v757 = vmul.f32 %v715, %v741
      %v758 = vmul.f32 %v717, %v741
      %v759 = vld [vmem:[%s3] sm:$0xff]
      %v760 = vld [vmem:[%s3 + $0x8] sm:$0xff]
      %v761 = vld [vmem:[%s3 + $0x10] sm:$0xff]
      %v762 = vld [vmem:[%s3 + $0x18] sm:$0xff]
      %764 = vset.pattern.permute.xlu0 0
      %765 = vperm.xlu0 %764, %v759
      %v766 = vpop.permute.xlu0 %765
      %769 = vset.pattern.permute.xlu0 0
      %770 = vperm.xlu0 %769, %v760
      %v771 = vpop.permute.xlu0 %770
      %774 = vset.pattern.permute.xlu0 0
      %775 = vperm.xlu0 %774, %v761
      %v776 = vpop.permute.xlu0 %775
      %779 = vset.pattern.permute.xlu0 0
      %780 = vperm.xlu0 %779, %v762
      %v781 = vpop.permute.xlu0 %780
      %v783 = vadd.f32 %v743, %v766
      %v784 = vadd.f32 %v744, %v766
      %v785 = vadd.f32 %v745, %v766
      %v786 = vadd.f32 %v746, %v766
      %v787 = vadd.f32 %v747, %v771
      %v788 = vadd.f32 %v748, %v771
      %v789 = vadd.f32 %v749, %v771
      %v790 = vadd.f32 %v750, %v771
      %v791 = vadd.f32 %v751, %v776
      %v792 = vadd.f32 %v752, %v776
      %v793 = vadd.f32 %v753, %v776
      %v794 = vadd.f32 %v754, %v776
      %v795 = vadd.f32 %v755, %v781
      %v796 = vadd.f32 %v756, %v781
      %v797 = vadd.f32 %v757, %v781
      %v798 = vadd.f32 %v758, %v781
      %v799 = vmax.f32 %v783, 0.0
      %v800 = vmax.f32 %v784, 0.0
      %v801 = vmax.f32 %v785, 0.0
      %v802 = vmax.f32 %v786, 0.0
      %v803 = vmax.f32 %v787, 0.0
      %v804 = vmax.f32 %v788, 0.0
      %v805 = vmax.f32 %v789, 0.0
      %v806 = vmax.f32 %v790, 0.0
      %v807 = vmax.f32 %v791, 0.0
      %v808 = vmax.f32 %v792, 0.0
      %v809 = vmax.f32 %v793, 0.0
      %v810 = vmax.f32 %v794, 0.0
      %v811 = vmax.f32 %v795, 0.0
      %v812 = vmax.f32 %v796, 0.0
      %v813 = vmax.f32 %v797, 0.0
      %v814 = vmax.f32 %v798, 0.0
      %v815 = vpack.c.bf16 %v803, %v799
      %v816 = vpack.c.bf16 %v804, %v800
      %v817 = vpack.c.bf16 %v805, %v801
      %v818 = vpack.c.bf16 %v806, %v802
      %v819 = vpack.c.bf16 %v811, %v807
      %v820 = vpack.c.bf16 %v812, %v808
      %v821 = vpack.c.bf16 %v813, %v809
      %v822 = vpack.c.bf16 %v814, %v810
      %v823 = vld [vmem:[%s4] sm:$0xf]
      %v824 = vld [vmem:[%s4 + $0x4] sm:$0xf]
      %v825 = vld [vmem:[%s4 + $0x8] sm:$0xf]
      %v826 = vld [vmem:[%s4 + $0xc] sm:$0xf]
      %v827 = vld [vmem:[%s4 + $0x10] sm:$0xf]
      %v828 = vld [vmem:[%s4 + $0x14] sm:$0xf]
      %v829 = vld [vmem:[%s4 + $0x18] sm:$0xf]
      %v830 = vld [vmem:[%s4 + $0x1c] sm:$0xf]
      %v831 = vld [vmem:[%s4 + $0x20] sm:$0xf]
      %v832 = vld [vmem:[%s4 + $0x24] sm:$0xf]
      %v833 = vld [vmem:[%s4 + $0x28] sm:$0xf]
      %v834 = vld [vmem:[%s4 + $0x2c] sm:$0xf]
      %v835 = vld [vmem:[%s4 + $0x30] sm:$0xf]
      %v836 = vld [vmem:[%s4 + $0x34] sm:$0xf]
      %v837 = vld [vmem:[%s4 + $0x38] sm:$0xf]
      %v838 = vld [vmem:[%s4 + $0x3c] sm:$0xf]
      %v855 = vunpack.c.l.b16 %v823
      %v856 = vunpack.c.l.b16 %v824
      %v857 = vunpack.c.l.b16 %v825
      %v858 = vunpack.c.l.b16 %v826
      %v859 = vunpack.c.l.b16 %v827
      %v860 = vunpack.c.l.b16 %v828
      %v861 = vunpack.c.l.b16 %v829
      %v862 = vunpack.c.l.b16 %v830
      %v863 = vunpack.c.l.b16 %v831
      %v864 = vunpack.c.l.b16 %v832
      %v865 = vunpack.c.l.b16 %v833
      %v866 = vunpack.c.l.b16 %v834
      %v867 = vunpack.c.l.b16 %v835
      %v868 = vunpack.c.l.b16 %v836
      %v869 = vunpack.c.l.b16 %v837
      %v870 = vunpack.c.l.b16 %v838
      %v871 = vpack.c.b16 %v856, %v855
      %v872 = vpack.c.b16 %v858, %v857
      %v873 = vpack.c.b16 %v860, %v859
      %v874 = vpack.c.b16 %v862, %v861
      %v875 = vpack.c.b16 %v864, %v863
      %v876 = vpack.c.b16 %v866, %v865
      %v877 = vpack.c.b16 %v868, %v867
      %v878 = vpack.c.b16 %v870, %v869
      %887 = vmatprep.subr.bf16.mxu0 0
      %888 = vmatpush1.bf16.msra.mxu0 %v871
      %889 = vmatprep.subr.bf16.mxu0 0
      %890 = vmatpush1.bf16.msra.mxu0 %v872
      %891 = vmatprep.subr.bf16.mxu0 0
      %892 = vmatpush1.bf16.msra.mxu0 %v873
      %893 = vmatprep.subr.bf16.mxu0 0
      %894 = vmatpush1.bf16.msra.mxu0 %v874
      %895 = vmatprep.subr.bf16.mxu0 0
      %896 = vmatpush1.bf16.msra.mxu0 %v875
      %897 = vmatprep.subr.bf16.mxu0 0
      %898 = vmatpush1.bf16.msra.mxu0 %v876
      %899 = vmatprep.subr.bf16.mxu0 0
      %900 = vmatpush1.bf16.msra.mxu0 %v877
      %901 = vmatprep.subr.bf16.mxu0 0
      %902 = vmatpush1.bf16.msra.mxu0 %v878
      %903 = vmatprep.subr.bf16.mxu0 0
      %904 = vmatpush1.bf16.msra.mxu0 0
      %905 = vmatprep.subr.bf16.mxu0 0
      %906 = vmatpush1.bf16.msra.mxu0 0
      %907 = vmatprep.subr.bf16.mxu0 0
      %908 = vmatpush1.bf16.msra.mxu0 0
      %909 = vmatprep.subr.bf16.mxu0 0
      %910 = vmatpush1.bf16.msra.mxu0 0
      %911 = vmatprep.subr.bf16.mxu0 0
      %912 = vmatpush1.bf16.msra.mxu0 0
      %913 = vmatprep.subr.bf16.mxu0 0
      %914 = vmatpush1.bf16.msra.mxu0 0
      %915 = vmatprep.subr.bf16.mxu0 0
      %916 = vmatpush1.bf16.msra.mxu0 0
      %917 = vmatprep.subr.bf16.mxu0 0
      %918 = vmatpush1.bf16.msra.mxu0 0
      %919 = vmatprep.mubr.bf16.mxu0 0
      %920 = vmatmul.mubr.bf16.gmra.mrb[0].mxu0 %v815
      %v921 = vpop.f32.mrb[0].mxu0
      %v922 = vadd.f32 0.0, %v921
      %v923 = vpop.f32.mrb[0].mxu0
      %v924 = vpop.f32.mrb[0].mxu0
      %v925 = vadd.f32 0.0, %v924
      %v926 = vpop.f32.mrb[0].mxu0
      %927 = vmatprep.mubr.bf16.mxu0 0
      %928 = vmatmul.mubr.bf16.gmra.mrb[0].mxu0 %v819
      %v929 = vpop.f32.mrb[0].mxu0
      %v930 = vadd.f32 0.0, %v929
      %v931 = vpop.f32.mrb[0].mxu0
      %v932 = vpop.f32.mrb[0].mxu0
      %v933 = vadd.f32 0.0, %v932
      %v934 = vpop.f32.mrb[0].mxu0
      %935 = vdwg.mxu0
      %936 = vmatprep.subr.bf16.mxu0 0
      %937 = vmatpush1.bf16.msra.mxu0 %v871
      %938 = vmatprep.subr.bf16.mxu0 0
      %939 = vmatpush1.bf16.msra.mxu0 %v872
      %940 = vmatprep.subr.bf16.mxu0 0
      %941 = vmatpush1.bf16.msra.mxu0 %v873
      %942 = vmatprep.subr.bf16.mxu0 0
      %943 = vmatpush1.bf16.msra.mxu0 %v874
      %944 = vmatprep.subr.bf16.mxu0 0
      %945 = vmatpush1.bf16.msra.mxu0 %v875
      %946 = vmatprep.subr.bf16.mxu0 0
      %947 = vmatpush1.bf16.msra.mxu0 %v876
      %948 = vmatprep.subr.bf16.mxu0 0
      %949 = vmatpush1.bf16.msra.mxu0 %v877
      %950 = vmatprep.subr.bf16.mxu0 0
      %951 = vmatpush1.bf16.msra.mxu0 %v878
      %952 = vmatprep.subr.bf16.mxu0 0
      %953 = vmatpush1.bf16.msra.mxu0 0
      %954 = vmatprep.subr.bf16.mxu0 0
      %955 = vmatpush1.bf16.msra.mxu0 0
      %956 = vmatprep.subr.bf16.mxu0 0
      %957 = vmatpush1.bf16.msra.mxu0 0
      %958 = vmatprep.subr.bf16.mxu0 0
      %959 = vmatpush1.bf16.msra.mxu0 0
      %960 = vmatprep.subr.bf16.mxu0 0
      %961 = vmatpush1.bf16.msra.mxu0 0
      %962 = vmatprep.subr.bf16.mxu0 0
      %963 = vmatpush1.bf16.msra.mxu0 0
      %964 = vmatprep.subr.bf16.mxu0 0
      %965 = vmatpush1.bf16.msra.mxu0 0
      %966 = vmatprep.subr.bf16.mxu0 0
      %967 = vmatpush1.bf16.msra.mxu0 0
      %968 = vmatprep.mubr.bf16.mxu0 0
      %969 = vmatmul.mubr.bf16.gmra.mrb[0].mxu0 %v816
      %v970 = vpop.f32.mrb[0].mxu0
      %v971 = vadd.f32 0.0, %v970
      %v972 = vpop.f32.mrb[0].mxu0
      %v973 = vpop.f32.mrb[0].mxu0
      %v974 = vadd.f32 0.0, %v973
      %v975 = vpop.f32.mrb[0].mxu0
      %976 = vmatprep.mubr.bf16.mxu0 0
      %977 = vmatmul.mubr.bf16.gmra.mrb[0].mxu0 %v820
      %v978 = vpop.f32.mrb[0].mxu0
      %v979 = vadd.f32 0.0, %v978
      %v980 = vpop.f32.mrb[0].mxu0
      %v981 = vpop.f32.mrb[0].mxu0
      %v982 = vadd.f32 0.0, %v981
      %v983 = vpop.f32.mrb[0].mxu0
      %984 = vdwg.mxu0
      %985 = vmatprep.subr.bf16.mxu0 0
      %986 = vmatpush1.bf16.msra.mxu0 %v871
      %987 = vmatprep.subr.bf16.mxu0 0
      %988 = vmatpush1.bf16.msra.mxu0 %v872
      %989 = vmatprep.subr.bf16.mxu0 0
      %990 = vmatpush1.bf16.msra.mxu0 %v873
      %991 = vmatprep.subr.bf16.mxu0 0
      %992 = vmatpush1.bf16.msra.mxu0 %v874
      %993 = vmatprep.subr.bf16.mxu0 0
      %994 = vmatpush1.bf16.msra.mxu0 %v875
      %995 = vmatprep.subr.bf16.mxu0 0
      %996 = vmatpush1.bf16.msra.mxu0 %v876
      %997 = vmatprep.subr.bf16.mxu0 0
      %998 = vmatpush1.bf16.msra.mxu0 %v877
      %999 = vmatprep.subr.bf16.mxu0 0
      %1000 = vmatpush1.bf16.msra.mxu0 %v878
      %1001 = vmatprep.subr.bf16.mxu0 0
      %1002 = vmatpush1.bf16.msra.mxu0 0
      %1003 = vmatprep.subr.bf16.mxu0 0
      %1004 = vmatpush1.bf16.msra.mxu0 0
      %1005 = vmatprep.subr.bf16.mxu0 0
      %1006 = vmatpush1.bf16.msra.mxu0 0
      %1007 = vmatprep.subr.bf16.mxu0 0
      %1008 = vmatpush1.bf16.msra.mxu0 0
      %1009 = vmatprep.subr.bf16.mxu0 0
      %1010 = vmatpush1.bf16.msra.mxu0 0
      %1011 = vmatprep.subr.bf16.mxu0 0
      %1012 = vmatpush1.bf16.msra.mxu0 0
      %1013 = vmatprep.subr.bf16.mxu0 0
      %1014 = vmatpush1.bf16.msra.mxu0 0
      %1015 = vmatprep.subr.bf16.mxu0 0
      %1016 = vmatpush1.bf16.msra.mxu0 0
      %1017 = vmatprep.mubr.bf16.mxu0 0
      %1018 = vmatmul.mubr.bf16.gmra.mrb[0].mxu0 %v817
      %v1019 = vpop.f32.mrb[0].mxu0
      %v1020 = vadd.f32 0.0, %v1019
      %v1021 = vpop.f32.mrb[0].mxu0
      %v1022 = vpop.f32.mrb[0].mxu0
      %v1023 = vadd.f32 0.0, %v1022
      %v1024 = vpop.f32.mrb[0].mxu0
      %1025 = vmatprep.mubr.bf16.mxu0 0
      %1026 = vmatmul.mubr.bf16.gmra.mrb[0].mxu0 %v821
      %v1027 = vpop.f32.mrb[0].mxu0
      %v1028 = vadd.f32 0.0, %v1027
      %v1029 = vpop.f32.mrb[0].mxu0
      %v1030 = vpop.f32.mrb[0].mxu0
      %v1031 = vadd.f32 0.0, %v1030
      %v1032 = vpop.f32.mrb[0].mxu0
      %1033 = vdwg.mxu0
      %1034 = vmatprep.subr.bf16.mxu0 0
      %1035 = vmatpush1.bf16.msra.mxu0 %v871
      %1036 = vmatprep.subr.bf16.mxu0 0
      %1037 = vmatpush1.bf16.msra.mxu0 %v872
      %1038 = vmatprep.subr.bf16.mxu0 0
      %1039 = vmatpush1.bf16.msra.mxu0 %v873
      %1040 = vmatprep.subr.bf16.mxu0 0
      %1041 = vmatpush1.bf16.msra.mxu0 %v874
      %1042 = vmatprep.subr.bf16.mxu0 0
      %1043 = vmatpush1.bf16.msra.mxu0 %v875
      %1044 = vmatprep.subr.bf16.mxu0 0
      %1045 = vmatpush1.bf16.msra.mxu0 %v876
      %1046 = vmatprep.subr.bf16.mxu0 0
      %1047 = vmatpush1.bf16.msra.mxu0 %v877
      %1048 = vmatprep.subr.bf16.mxu0 0
      %1049 = vmatpush1.bf16.msra.mxu0 %v878
      %1050 = vmatprep.subr.bf16.mxu0 0
      %1051 = vmatpush1.bf16.msra.mxu0 0
      %1052 = vmatprep.subr.bf16.mxu0 0
      %1053 = vmatpush1.bf16.msra.mxu0 0
      %1054 = vmatprep.subr.bf16.mxu0 0
      %1055 = vmatpush1.bf16.msra.mxu0 0
      %1056 = vmatprep.subr.bf16.mxu0 0
      %1057 = vmatpush1.bf16.msra.mxu0 0
      %1058 = vmatprep.subr.bf16.mxu0 0
      %1059 = vmatpush1.bf16.msra.mxu0 0
      %1060 = vmatprep.subr.bf16.mxu0 0
      %1061 = vmatpush1.bf16.msra.mxu0 0
      %1062 = vmatprep.subr.bf16.mxu0 0
      %1063 = vmatpush1.bf16.msra.mxu0 0
      %1064 = vmatprep.subr.bf16.mxu0 0
      %1065 = vmatpush1.bf16.msra.mxu0 0
      %1066 = vmatprep.mubr.bf16.mxu0 0
      %1067 = vmatmul.mubr.bf16.gmra.mrb[0].mxu0 %v818
      %v1068 = vpop.f32.mrb[0].mxu0
      %v1069 = vadd.f32 0.0, %v1068
      %v1070 = vpop.f32.mrb[0].mxu0
      %v1071 = vpop.f32.mrb[0].mxu0
      %v1072 = vadd.f32 0.0, %v1071
      %v1073 = vpop.f32.mrb[0].mxu0
      %1074 = vmatprep.mubr.bf16.mxu0 0
      %1075 = vmatmul.mubr.bf16.gmra.mrb[0].mxu0 %v822
      %v1076 = vpop.f32.mrb[0].mxu0
      %v1077 = vadd.f32 0.0, %v1076
      %v1078 = vpop.f32.mrb[0].mxu0
      %v1079 = vpop.f32.mrb[0].mxu0
      %v1080 = vadd.f32 0.0, %v1079
      %v1081 = vpop.f32.mrb[0].mxu0
      %1082 = vdwg.mxu0
      %1083 = vrot.lane.b32.xlu0 %v922, 7
      %v1084 = vpop.permute.xlu0 %1083
      %1085 = vrot.lane.b32.xlu0 %v925, 7
      %v1086 = vpop.permute.xlu0 %1085
      %1087 = vrot.lane.b32.xlu0 %v930, 7
      %v1088 = vpop.permute.xlu0 %1087
      %1089 = vrot.lane.b32.xlu0 %v933, 7
      %v1090 = vpop.permute.xlu0 %1089
      %1091 = vrot.lane.b32.xlu0 %v971, 7
      %v1092 = vpop.permute.xlu0 %1091
      %1093 = vrot.lane.b32.xlu0 %v974, 7
      %v1094 = vpop.permute.xlu0 %1093
      %1095 = vrot.lane.b32.xlu0 %v979, 7
      %v1096 = vpop.permute.xlu0 %1095
      %1097 = vrot.lane.b32.xlu0 %v982, 7
      %v1098 = vpop.permute.xlu0 %1097
      %1099 = vrot.lane.b32.xlu0 %v1020, 7
      %v1100 = vpop.permute.xlu0 %1099
      %1101 = vrot.lane.b32.xlu0 %v1023, 7
      %v1102 = vpop.permute.xlu0 %1101
      %1103 = vrot.lane.b32.xlu0 %v1028, 7
      %v1104 = vpop.permute.xlu0 %1103
      %1105 = vrot.lane.b32.xlu0 %v1031, 7
      %v1106 = vpop.permute.xlu0 %1105
      %1107 = vrot.lane.b32.xlu0 %v1069, 7
      %v1108 = vpop.permute.xlu0 %1107
      %1109 = vrot.lane.b32.xlu0 %v1072, 7
      %v1110 = vpop.permute.xlu0 %1109
      %1111 = vrot.lane.b32.xlu0 %v1077, 7
      %v1112 = vpop.permute.xlu0 %1111
      %1113 = vrot.lane.b32.xlu0 %v1080, 7
      %v1114 = vpop.permute.xlu0 %1113
      %vm1115 = vcmp.lt.s32.totalorder %v363, 7
      %v1116 = vsel %vm1115, %v1100, %v1108
      %v1117 = vsel %vm1115, %v1102, %v1110
      %v1118 = vsel %vm1115, %v1104, %v1112
      %v1119 = vsel %vm1115, %v1106, %v1114
      %v1120 = vsel %vm1115, %v1092, %v1100
      %v1121 = vsel %vm1115, %v1094, %v1102
      %v1122 = vsel %vm1115, %v1096, %v1104
      %v1123 = vsel %vm1115, %v1098, %v1106
      %v1124 = vsel %vm1115, %v1084, %v1092
      %v1125 = vsel %vm1115, %v1086, %v1094
      %v1126 = vsel %vm1115, %v1088, %v1096
      %v1127 = vsel %vm1115, %v1090, %v1098
      %v1128 = vsel %vm1115, %v1108, %v1084
      %v1129 = vsel %vm1115, %v1110, %v1086
      %v1130 = vsel %vm1115, %v1112, %v1088
      %v1131 = vsel %vm1115, %v1114, %v1090
      %1132 = vrot.lane.b32.xlu0 %v922, 6
      %v1133 = vpop.permute.xlu0 %1132
      %1134 = vrot.lane.b32.xlu0 %v925, 6
      %v1135 = vpop.permute.xlu0 %1134
      %1136 = vrot.lane.b32.xlu0 %v930, 6
      %v1137 = vpop.permute.xlu0 %1136
      %1138 = vrot.lane.b32.xlu0 %v933, 6
      %v1139 = vpop.permute.xlu0 %1138
      %1140 = vrot.lane.b32.xlu0 %v971, 6
      %v1141 = vpop.permute.xlu0 %1140
      %1142 = vrot.lane.b32.xlu0 %v974, 6
      %v1143 = vpop.permute.xlu0 %1142
      %1144 = vrot.lane.b32.xlu0 %v979, 6
      %v1145 = vpop.permute.xlu0 %1144
      %1146 = vrot.lane.b32.xlu0 %v982, 6
      %v1147 = vpop.permute.xlu0 %1146
      %1148 = vrot.lane.b32.xlu0 %v1020, 6
      %v1149 = vpop.permute.xlu0 %1148
      %1150 = vrot.lane.b32.xlu0 %v1023, 6
      %v1151 = vpop.permute.xlu0 %1150
      %1152 = vrot.lane.b32.xlu0 %v1028, 6
      %v1153 = vpop.permute.xlu0 %1152
      %1154 = vrot.lane.b32.xlu0 %v1031, 6
      %v1155 = vpop.permute.xlu0 %1154
      %1156 = vrot.lane.b32.xlu0 %v1069, 6
      %v1157 = vpop.permute.xlu0 %1156
      %1158 = vrot.lane.b32.xlu0 %v1072, 6
      %v1159 = vpop.permute.xlu0 %1158
      %1160 = vrot.lane.b32.xlu0 %v1077, 6
      %v1161 = vpop.permute.xlu0 %1160
      %1162 = vrot.lane.b32.xlu0 %v1080, 6
      %v1163 = vpop.permute.xlu0 %1162
      %vm1164 = vcmp.lt.s32.totalorder %v363, 6
      %v1165 = vsel %vm1164, %v1149, %v1157
      %v1166 = vsel %vm1164, %v1151, %v1159
      %v1167 = vsel %vm1164, %v1153, %v1161
      %v1168 = vsel %vm1164, %v1155, %v1163
      %v1169 = vsel %vm1164, %v1141, %v1149
      %v1170 = vsel %vm1164, %v1143, %v1151
      %v1171 = vsel %vm1164, %v1145, %v1153
      %v1172 = vsel %vm1164, %v1147, %v1155
      %v1173 = vsel %vm1164, %v1133, %v1141
      %v1174 = vsel %vm1164, %v1135, %v1143
      %v1175 = vsel %vm1164, %v1137, %v1145
      %v1176 = vsel %vm1164, %v1139, %v1147
      %v1177 = vsel %vm1164, %v1157, %v1133
      %v1178 = vsel %vm1164, %v1159, %v1135
      %v1179 = vsel %vm1164, %v1161, %v1137
      %v1180 = vsel %vm1164, %v1163, %v1139
      %1181 = vrot.lane.b32.xlu0 %v922, 5
      %v1182 = vpop.permute.xlu0 %1181
      %1183 = vrot.lane.b32.xlu0 %v925, 5
      %v1184 = vpop.permute.xlu0 %1183
      %1185 = vrot.lane.b32.xlu0 %v930, 5
      %v1186 = vpop.permute.xlu0 %1185
      %1187 = vrot.lane.b32.xlu0 %v933, 5
      %v1188 = vpop.permute.xlu0 %1187
      %1189 = vrot.lane.b32.xlu0 %v971, 5
      %v1190 = vpop.permute.xlu0 %1189
      %1191 = vrot.lane.b32.xlu0 %v974, 5
      %v1192 = vpop.permute.xlu0 %1191
      %1193 = vrot.lane.b32.xlu0 %v979, 5
      %v1194 = vpop.permute.xlu0 %1193
      %1195 = vrot.lane.b32.xlu0 %v982, 5
      %v1196 = vpop.permute.xlu0 %1195
      %1197 = vrot.lane.b32.xlu0 %v1020, 5
      %v1198 = vpop.permute.xlu0 %1197
      %1199 = vrot.lane.b32.xlu0 %v1023, 5
      %v1200 = vpop.permute.xlu0 %1199
      %1201 = vrot.lane.b32.xlu0 %v1028, 5
      %v1202 = vpop.permute.xlu0 %1201
      %1203 = vrot.lane.b32.xlu0 %v1031, 5
      %v1204 = vpop.permute.xlu0 %1203
      %1205 = vrot.lane.b32.xlu0 %v1069, 5
      %v1206 = vpop.permute.xlu0 %1205
      %1207 = vrot.lane.b32.xlu0 %v1072, 5
      %v1208 = vpop.permute.xlu0 %1207
      %1209 = vrot.lane.b32.xlu0 %v1077, 5
      %v1210 = vpop.permute.xlu0 %1209
      %1211 = vrot.lane.b32.xlu0 %v1080, 5
      %v1212 = vpop.permute.xlu0 %1211
      %vm1213 = vcmp.lt.s32.totalorder %v363, 5
      %v1214 = vsel %vm1213, %v1198, %v1206
      %v1215 = vsel %vm1213, %v1200, %v1208
      %v1216 = vsel %vm1213, %v1202, %v1210
      %v1217 = vsel %vm1213, %v1204, %v1212
      %v1218 = vsel %vm1213, %v1190, %v1198
      %v1219 = vsel %vm1213, %v1192, %v1200
      %v1220 = vsel %vm1213, %v1194, %v1202
      %v1221 = vsel %vm1213, %v1196, %v1204
      %v1222 = vsel %vm1213, %v1182, %v1190
      %v1223 = vsel %vm1213, %v1184, %v1192
      %v1224 = vsel %vm1213, %v1186, %v1194
      %v1225 = vsel %vm1213, %v1188, %v1196
      %v1226 = vsel %vm1213, %v1206, %v1182
      %v1227 = vsel %vm1213, %v1208, %v1184
      %v1228 = vsel %vm1213, %v1210, %v1186
      %v1229 = vsel %vm1213, %v1212, %v1188
      %1230 = vrot.lane.b32.xlu0 %v922, 1
      %v1231 = vpop.permute.xlu0 %1230
      %1232 = vrot.lane.b32.xlu0 %v925, 1
      %v1233 = vpop.permute.xlu0 %1232
      %1234 = vrot.lane.b32.xlu0 %v930, 1
      %v1235 = vpop.permute.xlu0 %1234
      %1236 = vrot.lane.b32.xlu0 %v933, 1
      %v1237 = vpop.permute.xlu0 %1236
      %1238 = vrot.lane.b32.xlu0 %v971, 1
      %v1239 = vpop.permute.xlu0 %1238
      %1240 = vrot.lane.b32.xlu0 %v974, 1
      %v1241 = vpop.permute.xlu0 %1240
      %1242 = vrot.lane.b32.xlu0 %v979, 1
      %v1243 = vpop.permute.xlu0 %1242
      %1244 = vrot.lane.b32.xlu0 %v982, 1
      %v1245 = vpop.permute.xlu0 %1244
      %1246 = vrot.lane.b32.xlu0 %v1020, 1
      %v1247 = vpop.permute.xlu0 %1246
      %1248 = vrot.lane.b32.xlu0 %v1023, 1
      %v1249 = vpop.permute.xlu0 %1248
      %1250 = vrot.lane.b32.xlu0 %v1028, 1
      %v1251 = vpop.permute.xlu0 %1250
      %1252 = vrot.lane.b32.xlu0 %v1031, 1
      %v1253 = vpop.permute.xlu0 %1252
      %1254 = vrot.lane.b32.xlu0 %v1069, 1
      %v1255 = vpop.permute.xlu0 %1254
      %1256 = vrot.lane.b32.xlu0 %v1072, 1
      %v1257 = vpop.permute.xlu0 %1256
      %1258 = vrot.lane.b32.xlu0 %v1077, 1
      %v1259 = vpop.permute.xlu0 %1258
      %1260 = vrot.lane.b32.xlu0 %v1080, 1
      %v1261 = vpop.permute.xlu0 %1260
      %v1262 = vsel %vm439, %v1247, %v1255
      %v1263 = vsel %vm439, %v1249, %v1257
      %v1264 = vsel %vm439, %v1251, %v1259
      %v1265 = vsel %vm439, %v1253, %v1261
      %v1266 = vsel %vm439, %v1239, %v1247
      %v1267 = vsel %vm439, %v1241, %v1249
      %v1268 = vsel %vm439, %v1243, %v1251
      %v1269 = vsel %vm439, %v1245, %v1253
      %v1270 = vsel %vm439, %v1231, %v1239
      %v1271 = vsel %vm439, %v1233, %v1241
      %v1272 = vsel %vm439, %v1235, %v1243
      %v1273 = vsel %vm439, %v1237, %v1245
      %v1274 = vsel %vm439, %v1255, %v1231
      %v1275 = vsel %vm439, %v1257, %v1233
      %v1276 = vsel %vm439, %v1259, %v1235
      %v1277 = vsel %vm439, %v1261, %v1237
      %1278 = vrot.lane.b32.xlu0 %v922, 127
      %v1279 = vpop.permute.xlu0 %1278
      %1280 = vrot.lane.b32.xlu0 %v925, 127
      %v1281 = vpop.permute.xlu0 %1280
      %1282 = vrot.lane.b32.xlu0 %v930, 127
      %v1283 = vpop.permute.xlu0 %1282
      %1284 = vrot.lane.b32.xlu0 %v933, 127
      %v1285 = vpop.permute.xlu0 %1284
      %1286 = vrot.lane.b32.xlu0 %v971, 127
      %v1287 = vpop.permute.xlu0 %1286
      %1288 = vrot.lane.b32.xlu0 %v974, 127
      %v1289 = vpop.permute.xlu0 %1288
      %1290 = vrot.lane.b32.xlu0 %v979, 127
      %v1291 = vpop.permute.xlu0 %1290
      %1292 = vrot.lane.b32.xlu0 %v982, 127
      %v1293 = vpop.permute.xlu0 %1292
      %1294 = vrot.lane.b32.xlu0 %v1020, 127
      %v1295 = vpop.permute.xlu0 %1294
      %1296 = vrot.lane.b32.xlu0 %v1023, 127
      %v1297 = vpop.permute.xlu0 %1296
      %1298 = vrot.lane.b32.xlu0 %v1028, 127
      %v1299 = vpop.permute.xlu0 %1298
      %1300 = vrot.lane.b32.xlu0 %v1031, 127
      %v1301 = vpop.permute.xlu0 %1300
      %1302 = vrot.lane.b32.xlu0 %v1069, 127
      %v1303 = vpop.permute.xlu0 %1302
      %1304 = vrot.lane.b32.xlu0 %v1072, 127
      %v1305 = vpop.permute.xlu0 %1304
      %1306 = vrot.lane.b32.xlu0 %v1077, 127
      %v1307 = vpop.permute.xlu0 %1306
      %1308 = vrot.lane.b32.xlu0 %v1080, 127
      %v1309 = vpop.permute.xlu0 %1308
      %v1310 = vsel %vm464, %v1295, %v1303
      %v1311 = vsel %vm464, %v1297, %v1305
      %v1312 = vsel %vm464, %v1299, %v1307
      %v1313 = vsel %vm464, %v1301, %v1309
      %v1314 = vsel %vm464, %v1287, %v1295
      %v1315 = vsel %vm464, %v1289, %v1297
      %v1316 = vsel %vm464, %v1291, %v1299
      %v1317 = vsel %vm464, %v1293, %v1301
      %v1318 = vsel %vm464, %v1279, %v1287
      %v1319 = vsel %vm464, %v1281, %v1289
      %v1320 = vsel %vm464, %v1283, %v1291
      %v1321 = vsel %vm464, %v1285, %v1293
      %v1322 = vsel %vm464, %v1303, %v1279
      %v1323 = vsel %vm464, %v1305, %v1281
      %v1324 = vsel %vm464, %v1307, %v1283
      %v1325 = vsel %vm464, %v1309, %v1285
      %1326 = vrot.lane.b32.xlu0 %v922, 123
      %v1327 = vpop.permute.xlu0 %1326
      %1328 = vrot.lane.b32.xlu0 %v925, 123
      %v1329 = vpop.permute.xlu0 %1328
      %1330 = vrot.lane.b32.xlu0 %v930, 123
      %v1331 = vpop.permute.xlu0 %1330
      %1332 = vrot.lane.b32.xlu0 %v933, 123
      %v1333 = vpop.permute.xlu0 %1332
      %1334 = vrot.lane.b32.xlu0 %v971, 123
      %v1335 = vpop.permute.xlu0 %1334
      %1336 = vrot.lane.b32.xlu0 %v974, 123
      %v1337 = vpop.permute.xlu0 %1336
      %1338 = vrot.lane.b32.xlu0 %v979, 123
      %v1339 = vpop.permute.xlu0 %1338
      %1340 = vrot.lane.b32.xlu0 %v982, 123
      %v1341 = vpop.permute.xlu0 %1340
      %1342 = vrot.lane.b32.xlu0 %v1020, 123
      %v1343 = vpop.permute.xlu0 %1342
      %1344 = vrot.lane.b32.xlu0 %v1023, 123
      %v1345 = vpop.permute.xlu0 %1344
      %1346 = vrot.lane.b32.xlu0 %v1028, 123
      %v1347 = vpop.permute.xlu0 %1346
      %1348 = vrot.lane.b32.xlu0 %v1031, 123
      %v1349 = vpop.permute.xlu0 %1348
      %1350 = vrot.lane.b32.xlu0 %v1069, 123
      %v1351 = vpop.permute.xlu0 %1350
      %1352 = vrot.lane.b32.xlu0 %v1072, 123
      %v1353 = vpop.permute.xlu0 %1352
      %1354 = vrot.lane.b32.xlu0 %v1077, 123
      %v1355 = vpop.permute.xlu0 %1354
      %1356 = vrot.lane.b32.xlu0 %v1080, 123
      %v1357 = vpop.permute.xlu0 %1356
      %vm1358 = vcmp.lt.s32.totalorder %v363, 123
      %v1359 = vsel %vm1358, %v1343, %v1351
      %v1360 = vsel %vm1358, %v1345, %v1353
      %v1361 = vsel %vm1358, %v1347, %v1355
      %v1362 = vsel %vm1358, %v1349, %v1357
      %v1363 = vsel %vm1358, %v1335, %v1343
      %v1364 = vsel %vm1358, %v1337, %v1345
      %v1365 = vsel %vm1358, %v1339, %v1347
      %v1366 = vsel %vm1358, %v1341, %v1349
      %v1367 = vsel %vm1358, %v1327, %v1335
      %v1368 = vsel %vm1358, %v1329, %v1337
      %v1369 = vsel %vm1358, %v1331, %v1339
      %v1370 = vsel %vm1358, %v1333, %v1341
      %v1371 = vsel %vm1358, %v1351, %v1327
      %v1372 = vsel %vm1358, %v1353, %v1329
      %v1373 = vsel %vm1358, %v1355, %v1331
      %v1374 = vsel %vm1358, %v1357, %v1333
      %1375 = vrot.lane.b32.xlu0 %v922, 122
      %v1376 = vpop.permute.xlu0 %1375
      %1377 = vrot.lane.b32.xlu0 %v925, 122
      %v1378 = vpop.permute.xlu0 %1377
      %1379 = vrot.lane.b32.xlu0 %v930, 122
      %v1380 = vpop.permute.xlu0 %1379
      %1381 = vrot.lane.b32.xlu0 %v933, 122
      %v1382 = vpop.permute.xlu0 %1381
      %1383 = vrot.lane.b32.xlu0 %v971, 122
      %v1384 = vpop.permute.xlu0 %1383
      %1385 = vrot.lane.b32.xlu0 %v974, 122
      %v1386 = vpop.permute.xlu0 %1385
      %1387 = vrot.lane.b32.xlu0 %v979, 122
      %v1388 = vpop.permute.xlu0 %1387
      %1389 = vrot.lane.b32.xlu0 %v982, 122
      %v1390 = vpop.permute.xlu0 %1389
      %1391 = vrot.lane.b32.xlu0 %v1020, 122
      %v1392 = vpop.permute.xlu0 %1391
      %1393 = vrot.lane.b32.xlu0 %v1023, 122
      %v1394 = vpop.permute.xlu0 %1393
      %1395 = vrot.lane.b32.xlu0 %v1028, 122
      %v1396 = vpop.permute.xlu0 %1395
      %1397 = vrot.lane.b32.xlu0 %v1031, 122
      %v1398 = vpop.permute.xlu0 %1397
      %1399 = vrot.lane.b32.xlu0 %v1069, 122
      %v1400 = vpop.permute.xlu0 %1399
      %1401 = vrot.lane.b32.xlu0 %v1072, 122
      %v1402 = vpop.permute.xlu0 %1401
      %1403 = vrot.lane.b32.xlu0 %v1077, 122
      %v1404 = vpop.permute.xlu0 %1403
      %1405 = vrot.lane.b32.xlu0 %v1080, 122
      %v1406 = vpop.permute.xlu0 %1405
      %vm1407 = vcmp.lt.s32.totalorder %v363, 122
      %v1408 = vsel %vm1407, %v1392, %v1400
      %v1409 = vsel %vm1407, %v1394, %v1402
      %v1410 = vsel %vm1407, %v1396, %v1404
      %v1411 = vsel %vm1407, %v1398, %v1406
      %v1412 = vsel %vm1407, %v1384, %v1392
      %v1413 = vsel %vm1407, %v1386, %v1394
      %v1414 = vsel %vm1407, %v1388, %v1396
      %v1415 = vsel %vm1407, %v1390, %v1398
      %v1416 = vsel %vm1407, %v1376, %v1384
      %v1417 = vsel %vm1407, %v1378, %v1386
      %v1418 = vsel %vm1407, %v1380, %v1388
      %v1419 = vsel %vm1407, %v1382, %v1390
      %v1420 = vsel %vm1407, %v1400, %v1376
      %v1421 = vsel %vm1407, %v1402, %v1378
      %v1422 = vsel %vm1407, %v1404, %v1380
      %v1423 = vsel %vm1407, %v1406, %v1382
      %1424 = vrot.lane.b32.xlu0 %v922, 121
      %v1425 = vpop.permute.xlu0 %1424
      %1426 = vrot.lane.b32.xlu0 %v925, 121
      %v1427 = vpop.permute.xlu0 %1426
      %1428 = vrot.lane.b32.xlu0 %v930, 121
      %v1429 = vpop.permute.xlu0 %1428
      %1430 = vrot.lane.b32.xlu0 %v933, 121
      %v1431 = vpop.permute.xlu0 %1430
      %1432 = vrot.lane.b32.xlu0 %v971, 121
      %v1433 = vpop.permute.xlu0 %1432
      %1434 = vrot.lane.b32.xlu0 %v974, 121
      %v1435 = vpop.permute.xlu0 %1434
      %1436 = vrot.lane.b32.xlu0 %v979, 121
      %v1437 = vpop.permute.xlu0 %1436
      %1438 = vrot.lane.b32.xlu0 %v982, 121
      %v1439 = vpop.permute.xlu0 %1438
      %1440 = vrot.lane.b32.xlu0 %v1020, 121
      %v1441 = vpop.permute.xlu0 %1440
      %1442 = vrot.lane.b32.xlu0 %v1023, 121
      %v1443 = vpop.permute.xlu0 %1442
      %1444 = vrot.lane.b32.xlu0 %v1028, 121
      %v1445 = vpop.permute.xlu0 %1444
      %1446 = vrot.lane.b32.xlu0 %v1031, 121
      %v1447 = vpop.permute.xlu0 %1446
      %1448 = vrot.lane.b32.xlu0 %v1069, 121
      %v1449 = vpop.permute.xlu0 %1448
      %1450 = vrot.lane.b32.xlu0 %v1072, 121
      %v1451 = vpop.permute.xlu0 %1450
      %1452 = vrot.lane.b32.xlu0 %v1077, 121
      %v1453 = vpop.permute.xlu0 %1452
      %1454 = vrot.lane.b32.xlu0 %v1080, 121
      %v1455 = vpop.permute.xlu0 %1454
      %vm1456 = vcmp.lt.s32.totalorder %v363, 121
      %v1457 = vsel %vm1456, %v1441, %v1449
      %v1458 = vsel %vm1456, %v1443, %v1451
      %v1459 = vsel %vm1456, %v1445, %v1453
      %v1460 = vsel %vm1456, %v1447, %v1455
      %v1461 = vsel %vm1456, %v1433, %v1441
      %v1462 = vsel %vm1456, %v1435, %v1443
      %v1463 = vsel %vm1456, %v1437, %v1445
      %v1464 = vsel %vm1456, %v1439, %v1447
      %v1465 = vsel %vm1456, %v1425, %v1433
      %v1466 = vsel %vm1456, %v1427, %v1435
      %v1467 = vsel %vm1456, %v1429, %v1437
      %v1468 = vsel %vm1456, %v1431, %v1439
      %v1469 = vsel %vm1456, %v1449, %v1425
      %v1470 = vsel %vm1456, %v1451, %v1427
      %v1471 = vsel %vm1456, %v1453, %v1429
      %v1472 = vsel %vm1456, %v1455, %v1431
      %v1473 = vpack.c.bf16 %v1129, %v1128
      %v1474 = vpack.c.bf16 %v1125, %v1124
      %v1475 = vpack.c.bf16 %v1121, %v1120
      %v1476 = vpack.c.bf16 %v1117, %v1116
      %v1477 = vpack.c.bf16 %v1131, %v1130
      %v1478 = vpack.c.bf16 %v1127, %v1126
      %v1479 = vpack.c.bf16 %v1123, %v1122
      %v1480 = vpack.c.bf16 %v1119, %v1118
      %v1481 = vpack.c.bf16 %v1178, %v1177
      %v1482 = vpack.c.bf16 %v1174, %v1173
      %v1483 = vpack.c.bf16 %v1170, %v1169
      %v1484 = vpack.c.bf16 %v1166, %v1165
      %v1485 = vpack.c.bf16 %v1180, %v1179
      %v1486 = vpack.c.bf16 %v1176, %v1175
      %v1487 = vpack.c.bf16 %v1172, %v1171
      %v1488 = vpack.c.bf16 %v1168, %v1167
      %v1489 = vpack.c.bf16 %v1227, %v1226
      %v1490 = vpack.c.bf16 %v1223, %v1222
      %v1491 = vpack.c.bf16 %v1219, %v1218
      %v1492 = vpack.c.bf16 %v1215, %v1214
      %v1493 = vpack.c.bf16 %v1229, %v1228
      %v1494 = vpack.c.bf16 %v1225, %v1224
      %v1495 = vpack.c.bf16 %v1221, %v1220
      %v1496 = vpack.c.bf16 %v1217, %v1216
      %v1497 = vpack.c.bf16 %v1275, %v1274
      %v1498 = vpack.c.bf16 %v1271, %v1270
      %v1499 = vpack.c.bf16 %v1267, %v1266
      %v1500 = vpack.c.bf16 %v1263, %v1262
      %v1501 = vpack.c.bf16 %v1277, %v1276
      %v1502 = vpack.c.bf16 %v1273, %v1272
      %v1503 = vpack.c.bf16 %v1269, %v1268
      %v1504 = vpack.c.bf16 %v1265, %v1264
      %v1505 = vpack.c.bf16 %v925, %v922
      %v1506 = vpack.c.bf16 %v974, %v971
      %v1507 = vpack.c.bf16 %v1023, %v1020
      %v1508 = vpack.c.bf16 %v1072, %v1069
      %v1509 = vpack.c.bf16 %v933, %v930
      %v1510 = vpack.c.bf16 %v982, %v979
      %v1511 = vpack.c.bf16 %v1031, %v1028
      %v1512 = vpack.c.bf16 %v1080, %v1077
      %v1513 = vpack.c.bf16 %v1319, %v1318
      %v1514 = vpack.c.bf16 %v1315, %v1314
      %v1515 = vpack.c.bf16 %v1311, %v1310
      %v1516 = vpack.c.bf16 %v1323, %v1322
      %v1517 = vpack.c.bf16 %v1321, %v1320
      %v1518 = vpack.c.bf16 %v1317, %v1316
      %v1519 = vpack.c.bf16 %v1313, %v1312
      %v1520 = vpack.c.bf16 %v1325, %v1324
      %v1521 = vpack.c.bf16 %v1368, %v1367
      %v1522 = vpack.c.bf16 %v1364, %v1363
      %v1523 = vpack.c.bf16 %v1360, %v1359
      %v1524 = vpack.c.bf16 %v1372, %v1371
      %v1525 = vpack.c.bf16 %v1370, %v1369
      %v1526 = vpack.c.bf16 %v1366, %v1365
      %v1527 = vpack.c.bf16 %v1362, %v1361
      %v1528 = vpack.c.bf16 %v1374, %v1373
      %v1529 = vpack.c.bf16 %v1417, %v1416
      %v1530 = vpack.c.bf16 %v1413, %v1412
      %v1531 = vpack.c.bf16 %v1409, %v1408
      %v1532 = vpack.c.bf16 %v1421, %v1420
      %v1533 = vpack.c.bf16 %v1419, %v1418
      %v1534 = vpack.c.bf16 %v1415, %v1414
      %v1535 = vpack.c.bf16 %v1411, %v1410
      %v1536 = vpack.c.bf16 %v1423, %v1422
      %v1537 = vpack.c.bf16 %v1466, %v1465
      %v1538 = vpack.c.bf16 %v1462, %v1461
      %v1539 = vpack.c.bf16 %v1458, %v1457
      %v1540 = vpack.c.bf16 %v1470, %v1469
      %v1541 = vpack.c.bf16 %v1468, %v1467
      %v1542 = vpack.c.bf16 %v1464, %v1463
      %v1543 = vpack.c.bf16 %v1460, %v1459
      %v1544 = vpack.c.bf16 %v1472, %v1471
      %v1545 = vld [vmem:[%s5] sm:$0xff]
      %v1546 = vld [vmem:[%s5 + $0x8] sm:$0xf]
      %v1547 = vld [vmem:[%s5 + $0xc] sm:$0xff]
      %v1548 = vld [vmem:[%s5 + $0x14] sm:$0xf]
      %v1549 = vld [vmem:[%s5 + $0x18] sm:$0xff]
      %v1550 = vld [vmem:[%s5 + $0x20] sm:$0xf]
      %v1551 = vld [vmem:[%s5 + $0x24] sm:$0xff]
      %v1552 = vld [vmem:[%s5 + $0x2c] sm:$0xf]
      %v1561 = vunpack.c.l.b16 %v1545
      %v1562 = vunpack.c.h.b16 %v1545
      %v1563 = vunpack.c.l.b16 %v1546
      %v1564 = vunpack.c.l.b16 %v1547
      %v1565 = vunpack.c.h.b16 %v1547
      %v1566 = vunpack.c.l.b16 %v1548
      %v1567 = vunpack.c.l.b16 %v1549
      %v1568 = vunpack.c.h.b16 %v1549
      %v1569 = vunpack.c.l.b16 %v1550
      %v1570 = vunpack.c.l.b16 %v1551
      %v1571 = vunpack.c.h.b16 %v1551
      %v1572 = vunpack.c.l.b16 %v1552
      %v1573 = vpack.c.b16 %v1564, %v1561
      %v1574 = vpack.c.b16 %v1565, %v1562
      %v1575 = vpack.c.b16 %v1566, %v1563
      %v1576 = vpack.c.b16 %v1570, %v1567
      %v1577 = vpack.c.b16 %v1571, %v1568
      %v1578 = vpack.c.b16 %v1572, %v1569
      %vm1583 = vcmask 261120
      %v1585 = vsel %vm1583, %v1575, 0
      %v1588 = vsel %vm1583, %v1578, 0
      %1590 = vmatprep.subr.bf16.mxu0 %v1474
      %1591 = vmatpush1.bf16.msra.mxu0 %v1473
      %1592 = vmatprep.subr.bf16.mxu0 %v1478
      %1593 = vmatpush1.bf16.msra.mxu0 %v1477
      %1594 = vmatprep.subr.bf16.mxu0 %v1482
      %1595 = vmatpush1.bf16.msra.mxu0 %v1481
      %1596 = vmatprep.subr.bf16.mxu0 %v1486
      %1597 = vmatpush1.bf16.msra.mxu0 %v1485
      %1598 = vmatprep.subr.bf16.mxu0 %v1490
      %1599 = vmatpush1.bf16.msra.mxu0 %v1489
      %1600 = vmatprep.subr.bf16.mxu0 %v1494
      %1601 = vmatpush1.bf16.msra.mxu0 %v1493
      %1602 = vmatprep.subr.bf16.mxu0 %v1498
      %1603 = vmatpush1.bf16.msra.mxu0 %v1497
      %1604 = vmatprep.subr.bf16.mxu0 %v1502
      %1605 = vmatpush1.bf16.msra.mxu0 %v1501
      %1606 = vmatprep.subr.bf16.mxu0 %v1506
      %1607 = vmatpush1.bf16.msra.mxu0 %v1505
      %1608 = vmatprep.subr.bf16.mxu0 %v1510
      %1609 = vmatpush1.bf16.msra.mxu0 %v1509
      %1610 = vmatprep.subr.bf16.mxu0 %v1514
      %1611 = vmatpush1.bf16.msra.mxu0 %v1513
      %1612 = vmatprep.subr.bf16.mxu0 %v1518
      %1613 = vmatpush1.bf16.msra.mxu0 %v1517
      %1614 = vmatprep.subr.bf16.mxu0 %v1522
      %1615 = vmatpush1.bf16.msra.mxu0 %v1521
      %1616 = vmatprep.subr.bf16.mxu0 %v1526
      %1617 = vmatpush1.bf16.msra.mxu0 %v1525
      %1618 = vmatprep.subr.bf16.mxu0 %v1530
      %1619 = vmatpush1.bf16.msra.mxu0 %v1529
      %1620 = vmatprep.subr.bf16.mxu0 %v1534
      %1621 = vmatpush1.bf16.msra.mxu0 %v1533
      %1622 = vmatprep.mubr.bf16.mxu0 %v1574
      %1623 = vmatmul.mubr.bf16.gmra.mrb[0].mxu0 %v1573
      %v1624 = vpop.f32.mrb[0].mxu0
      %v1625 = vadd.f32 0.0, %v1624
      %v1626 = vpop.f32.mrb[0].mxu0
      %v1627 = vadd.f32 0.0, %v1626
      %v1628 = vpop.f32.mrb[0].mxu0
      %v1629 = vadd.f32 0.0, %v1628
      %v1630 = vpop.f32.mrb[0].mxu0
      %v1631 = vadd.f32 0.0, %v1630
      %1632 = vmatprep.mubr.bf16.mxu0 %v1577
      %1633 = vmatmul.mubr.bf16.gmra.mrb[0].mxu0 %v1576
      %v1634 = vpop.f32.mrb[0].mxu0
      %v1635 = vadd.f32 0.0, %v1634
      %v1636 = vpop.f32.mrb[0].mxu0
      %v1637 = vadd.f32 0.0, %v1636
      %v1638 = vpop.f32.mrb[0].mxu0
      %v1639 = vadd.f32 0.0, %v1638
      %v1640 = vpop.f32.mrb[0].mxu0
      %v1641 = vadd.f32 0.0, %v1640
      %1642 = vdwg.mxu0
      %1643 = vmatprep.subr.bf16.mxu0 %v1538
      %1644 = vmatpush1.bf16.msra.mxu0 %v1537
      %1645 = vmatprep.subr.bf16.mxu0 %v1542
      %1646 = vmatpush1.bf16.msra.mxu0 %v1541
      %1647 = vmatprep.subr.bf16.mxu0 0
      %1648 = vmatpush1.bf16.msra.mxu0 0
      %1649 = vmatprep.subr.bf16.mxu0 0
      %1650 = vmatpush1.bf16.msra.mxu0 0
      %1651 = vmatprep.subr.bf16.mxu0 0
      %1652 = vmatpush1.bf16.msra.mxu0 0
      %1653 = vmatprep.subr.bf16.mxu0 0
      %1654 = vmatpush1.bf16.msra.mxu0 0
      %1655 = vmatprep.subr.bf16.mxu0 0
      %1656 = vmatpush1.bf16.msra.mxu0 0
      %1657 = vmatprep.subr.bf16.mxu0 0
      %1658 = vmatpush1.bf16.msra.mxu0 0
      %1659 = vmatprep.subr.bf16.mxu0 0
      %1660 = vmatpush1.bf16.msra.mxu0 0
      %1661 = vmatprep.subr.bf16.mxu0 0
      %1662 = vmatpush1.bf16.msra.mxu0 0
      %1663 = vmatprep.subr.bf16.mxu0 0
      %1664 = vmatpush1.bf16.msra.mxu0 0
      %1665 = vmatprep.subr.bf16.mxu0 0
      %1666 = vmatpush1.bf16.msra.mxu0 0
      %1667 = vmatprep.subr.bf16.mxu0 0
      %1668 = vmatpush1.bf16.msra.mxu0 0
      %1669 = vmatprep.subr.bf16.mxu0 0
      %1670 = vmatpush1.bf16.msra.mxu0 0
      %1671 = vmatprep.subr.bf16.mxu0 0
      %1672 = vmatpush1.bf16.msra.mxu0 0
      %1673 = vmatprep.subr.bf16.mxu0 0
      %1674 = vmatpush1.bf16.msra.mxu0 0
      %1675 = vmatprep.mubr.bf16.mxu0 0
      %1676 = vmatmul.mubr.bf16.gmra.mrb[0].mxu0 %v1585
      %v1677 = vpop.f32.mrb[0].mxu0
      %v1678 = vadd.f32 %v1625, %v1677
      %v1679 = vpop.f32.mrb[0].mxu0
      %v1680 = vadd.f32 %v1627, %v1679
      %v1681 = vpop.f32.mrb[0].mxu0
      %v1682 = vadd.f32 %v1629, %v1681
      %v1683 = vpop.f32.mrb[0].mxu0
      %v1684 = vadd.f32 %v1631, %v1683
      %1685 = vmatprep.mubr.bf16.mxu0 0
      %1686 = vmatmul.mubr.bf16.gmra.mrb[0].mxu0 %v1588
      %v1687 = vpop.f32.mrb[0].mxu0
      %v1688 = vadd.f32 %v1635, %v1687
      %v1689 = vpop.f32.mrb[0].mxu0
      %v1690 = vadd.f32 %v1637, %v1689
      %v1691 = vpop.f32.mrb[0].mxu0
      %v1692 = vadd.f32 %v1639, %v1691
      %v1693 = vpop.f32.mrb[0].mxu0
      %v1694 = vadd.f32 %v1641, %v1693
      %1695 = vdwg.mxu0
      %1696 = vmatprep.subr.bf16.mxu0 %v1476
      %1697 = vmatpush1.bf16.msra.mxu0 %v1475
      %1698 = vmatprep.subr.bf16.mxu0 %v1480
      %1699 = vmatpush1.bf16.msra.mxu0 %v1479
      %1700 = vmatprep.subr.bf16.mxu0 %v1484
      %1701 = vmatpush1.bf16.msra.mxu0 %v1483
      %1702 = vmatprep.subr.bf16.mxu0 %v1488
      %1703 = vmatpush1.bf16.msra.mxu0 %v1487
      %1704 = vmatprep.subr.bf16.mxu0 %v1492
      %1705 = vmatpush1.bf16.msra.mxu0 %v1491
      %1706 = vmatprep.subr.bf16.mxu0 %v1496
      %1707 = vmatpush1.bf16.msra.mxu0 %v1495
      %1708 = vmatprep.subr.bf16.mxu0 %v1500
      %1709 = vmatpush1.bf16.msra.mxu0 %v1499
      %1710 = vmatprep.subr.bf16.mxu0 %v1504
      %1711 = vmatpush1.bf16.msra.mxu0 %v1503
      %1712 = vmatprep.subr.bf16.mxu0 %v1508
      %1713 = vmatpush1.bf16.msra.mxu0 %v1507
      %1714 = vmatprep.subr.bf16.mxu0 %v1512
      %1715 = vmatpush1.bf16.msra.mxu0 %v1511
      %1716 = vmatprep.subr.bf16.mxu0 %v1516
      %1717 = vmatpush1.bf16.msra.mxu0 %v1515
      %1718 = vmatprep.subr.bf16.mxu0 %v1520
      %1719 = vmatpush1.bf16.msra.mxu0 %v1519
      %1720 = vmatprep.subr.bf16.mxu0 %v1524
      %1721 = vmatpush1.bf16.msra.mxu0 %v1523
      %1722 = vmatprep.subr.bf16.mxu0 %v1528
      %1723 = vmatpush1.bf16.msra.mxu0 %v1527
      %1724 = vmatprep.subr.bf16.mxu0 %v1532
      %1725 = vmatpush1.bf16.msra.mxu0 %v1531
      %1726 = vmatprep.subr.bf16.mxu0 %v1536
      %1727 = vmatpush1.bf16.msra.mxu0 %v1535
      %1728 = vmatprep.mubr.bf16.mxu0 %v1574
      %1729 = vmatmul.mubr.bf16.gmra.mrb[0].mxu0 %v1573
      %v1730 = vpop.f32.mrb[0].mxu0
      %v1731 = vadd.f32 0.0, %v1730
      %v1732 = vpop.f32.mrb[0].mxu0
      %v1733 = vadd.f32 0.0, %v1732
      %v1734 = vpop.f32.mrb[0].mxu0
      %v1735 = vadd.f32 0.0, %v1734
      %v1736 = vpop.f32.mrb[0].mxu0
      %v1737 = vadd.f32 0.0, %v1736
      %1738 = vmatprep.mubr.bf16.mxu0 %v1577
      %1739 = vmatmul.mubr.bf16.gmra.mrb[0].mxu0 %v1576
      %v1740 = vpop.f32.mrb[0].mxu0
      %v1741 = vadd.f32 0.0, %v1740
      %v1742 = vpop.f32.mrb[0].mxu0
      %v1743 = vadd.f32 0.0, %v1742
      %v1744 = vpop.f32.mrb[0].mxu0
      %v1745 = vadd.f32 0.0, %v1744
      %v1746 = vpop.f32.mrb[0].mxu0
      %v1747 = vadd.f32 0.0, %v1746
      %1748 = vdwg.mxu0
      %1749 = vmatprep.subr.bf16.mxu0 %v1540
      %1750 = vmatpush1.bf16.msra.mxu0 %v1539
      %1751 = vmatprep.subr.bf16.mxu0 %v1544
      %1752 = vmatpush1.bf16.msra.mxu0 %v1543
      %1753 = vmatprep.subr.bf16.mxu0 0
      %1754 = vmatpush1.bf16.msra.mxu0 0
      %1755 = vmatprep.subr.bf16.mxu0 0
      %1756 = vmatpush1.bf16.msra.mxu0 0
      %1757 = vmatprep.subr.bf16.mxu0 0
      %1758 = vmatpush1.bf16.msra.mxu0 0
      %1759 = vmatprep.subr.bf16.mxu0 0
      %1760 = vmatpush1.bf16.msra.mxu0 0
      %1761 = vmatprep.subr.bf16.mxu0 0
      %1762 = vmatpush1.bf16.msra.mxu0 0
      %1763 = vmatprep.subr.bf16.mxu0 0
      %1764 = vmatpush1.bf16.msra.mxu0 0
      %1765 = vmatprep.subr.bf16.mxu0 0
      %1766 = vmatpush1.bf16.msra.mxu0 0
      %1767 = vmatprep.subr.bf16.mxu0 0
      %1768 = vmatpush1.bf16.msra.mxu0 0
      %1769 = vmatprep.subr.bf16.mxu0 0
      %1770 = vmatpush1.bf16.msra.mxu0 0
      %1771 = vmatprep.subr.bf16.mxu0 0
      %1772 = vmatpush1.bf16.msra.mxu0 0
      %1773 = vmatprep.subr.bf16.mxu0 0
      %1774 = vmatpush1.bf16.msra.mxu0 0
      %1775 = vmatprep.subr.bf16.mxu0 0
      %1776 = vmatpush1.bf16.msra.mxu0 0
      %1777 = vmatprep.subr.bf16.mxu0 0
      %1778 = vmatpush1.bf16.msra.mxu0 0
      %1779 = vmatprep.subr.bf16.mxu0 0
      %1780 = vmatpush1.bf16.msra.mxu0 0
      %1781 = vmatprep.mubr.bf16.mxu0 0
      %1782 = vmatmul.mubr.bf16.gmra.mrb[0].mxu0 %v1585
      %v1783 = vpop.f32.mrb[0].mxu0
      %v1784 = vadd.f32 %v1731, %v1783
      %v1785 = vpop.f32.mrb[0].mxu0
      %v1786 = vadd.f32 %v1733, %v1785
      %v1787 = vpop.f32.mrb[0].mxu0
      %v1788 = vadd.f32 %v1735, %v1787
      %v1789 = vpop.f32.mrb[0].mxu0
      %v1790 = vadd.f32 %v1737, %v1789
      %1791 = vmatprep.mubr.bf16.mxu0 0
      %1792 = vmatmul.mubr.bf16.gmra.mrb[0].mxu0 %v1588
      %v1793 = vpop.f32.mrb[0].mxu0
      %v1794 = vadd.f32 %v1741, %v1793
      %v1795 = vpop.f32.mrb[0].mxu0
      %v1796 = vadd.f32 %v1743, %v1795
      %v1797 = vpop.f32.mrb[0].mxu0
      %v1798 = vadd.f32 %v1745, %v1797
      %v1799 = vpop.f32.mrb[0].mxu0
      %v1800 = vadd.f32 %v1747, %v1799
      %1801 = vdwg.mxu0
      %v1802 = vld [vmem:[%s6] sm:$0xff]
      %v1803 = vld [vmem:[%s6 + $0x8] sm:$0xff]
      %v1804 = vld [vmem:[%s6 + $0x10] sm:$0xff]
      %v1805 = vld [vmem:[%s6 + $0x18] sm:$0xff]
      %1807 = vset.pattern.permute.xlu0 0
      %1808 = vperm.xlu0 %1807, %v1802
      %v1809 = vpop.permute.xlu0 %1808
      %1812 = vset.pattern.permute.xlu0 0
      %1813 = vperm.xlu0 %1812, %v1803
      %v1814 = vpop.permute.xlu0 %1813
      %1817 = vset.pattern.permute.xlu0 0
      %1818 = vperm.xlu0 %1817, %v1804
      %v1819 = vpop.permute.xlu0 %1818
      %1822 = vset.pattern.permute.xlu0 0
      %1823 = vperm.xlu0 %1822, %v1805
      %v1824 = vpop.permute.xlu0 %1823
      %v1826 = vmul.f32 %v1678, %v1809
      %v1827 = vmul.f32 %v1680, %v1809
      %v1828 = vmul.f32 %v1784, %v1809
      %v1829 = vmul.f32 %v1786, %v1809
      %v1830 = vmul.f32 %v1682, %v1814
      %v1831 = vmul.f32 %v1684, %v1814
      %v1832 = vmul.f32 %v1788, %v1814
      %v1833 = vmul.f32 %v1790, %v1814
      %v1834 = vmul.f32 %v1688, %v1819
      %v1835 = vmul.f32 %v1690, %v1819
      %v1836 = vmul.f32 %v1794, %v1819
      %v1837 = vmul.f32 %v1796, %v1819
      %v1838 = vmul.f32 %v1692, %v1824
      %v1839 = vmul.f32 %v1694, %v1824
      %v1840 = vmul.f32 %v1798, %v1824
      %v1841 = vmul.f32 %v1800, %v1824
      %v1842 = vld [vmem:[%s7] sm:$0xff]
      %v1843 = vld [vmem:[%s7 + $0x8] sm:$0xff]
      %v1844 = vld [vmem:[%s7 + $0x10] sm:$0xff]
      %v1845 = vld [vmem:[%s7 + $0x18] sm:$0xff]
      %1847 = vset.pattern.permute.xlu0 0
      %1848 = vperm.xlu0 %1847, %v1842
      %v1849 = vpop.permute.xlu0 %1848
      %1852 = vset.pattern.permute.xlu0 0
      %1853 = vperm.xlu0 %1852, %v1843
      %v1854 = vpop.permute.xlu0 %1853
      %1857 = vset.pattern.permute.xlu0 0
      %1858 = vperm.xlu0 %1857, %v1844
      %v1859 = vpop.permute.xlu0 %1858
      %1862 = vset.pattern.permute.xlu0 0
      %1863 = vperm.xlu0 %1862, %v1845
      %v1864 = vpop.permute.xlu0 %1863
      %v1866 = vadd.f32 %v1826, %v1849
      %v1867 = vadd.f32 %v1827, %v1849
      %v1868 = vadd.f32 %v1828, %v1849
      %v1869 = vadd.f32 %v1829, %v1849
      %v1870 = vadd.f32 %v1830, %v1854
      %v1871 = vadd.f32 %v1831, %v1854
      %v1872 = vadd.f32 %v1832, %v1854
      %v1873 = vadd.f32 %v1833, %v1854
      %v1874 = vadd.f32 %v1834, %v1859
      %v1875 = vadd.f32 %v1835, %v1859
      %v1876 = vadd.f32 %v1836, %v1859
      %v1877 = vadd.f32 %v1837, %v1859
      %v1878 = vadd.f32 %v1838, %v1864
      %v1879 = vadd.f32 %v1839, %v1864
      %v1880 = vadd.f32 %v1840, %v1864
      %v1881 = vadd.f32 %v1841, %v1864
      %v1882 = vmax.f32 %v1866, 0.0
      %v1883 = vmax.f32 %v1867, 0.0
      %v1884 = vmax.f32 %v1868, 0.0
      %v1885 = vmax.f32 %v1869, 0.0
      %v1886 = vmax.f32 %v1870, 0.0
      %v1887 = vmax.f32 %v1871, 0.0
      %v1888 = vmax.f32 %v1872, 0.0
      %v1889 = vmax.f32 %v1873, 0.0
      %v1890 = vmax.f32 %v1874, 0.0
      %v1891 = vmax.f32 %v1875, 0.0
      %v1892 = vmax.f32 %v1876, 0.0
      %v1893 = vmax.f32 %v1877, 0.0
      %v1894 = vmax.f32 %v1878, 0.0
      %v1895 = vmax.f32 %v1879, 0.0
      %v1896 = vmax.f32 %v1880, 0.0
      %v1897 = vmax.f32 %v1881, 0.0
      %v1898 = vld [vmem:[%s8] sm:$0xf]
      %v1900 = vlaneseq
      %v1901 = vshrl.u32 %v1900, 7
      %v1902 = vsub.s32 0, %v1901
      %v1903 = vrot.slane %v1898, %v1902
      %v1904 = vlaneseq
      %v1905 = vshrl.u32 %v1904, 7
      %v1906 = vsub.s32 1, %v1905
      %v1907 = vrot.slane %v1898, %v1906
      %v1908 = vlaneseq
      %v1909 = vshrl.u32 %v1908, 7
      %v1910 = vsub.s32 2, %v1909
      %v1911 = vrot.slane %v1898, %v1910
      %v1912 = vlaneseq
      %v1913 = vshrl.u32 %v1912, 7
      %v1914 = vsub.s32 3, %v1913
      %v1915 = vrot.slane %v1898, %v1914
      %v1920 = vmul.f32 %v1882, %v1903
      %v1921 = vmul.f32 %v1883, %v1907
      %v1922 = vmul.f32 %v1884, %v1911
      %v1923 = vmul.f32 %v1885, %v1915
      %v1924 = vmul.f32 %v1886, %v1903
      %v1925 = vmul.f32 %v1887, %v1907
      %v1926 = vmul.f32 %v1888, %v1911
      %v1927 = vmul.f32 %v1889, %v1915
      %v1928 = vmul.f32 %v1890, %v1903
      %v1929 = vmul.f32 %v1891, %v1907
      %v1930 = vmul.f32 %v1892, %v1911
      %v1931 = vmul.f32 %v1893, %v1915
      %v1932 = vmul.f32 %v1894, %v1903
      %v1933 = vmul.f32 %v1895, %v1907
      %v1934 = vmul.f32 %v1896, %v1911
      %v1935 = vmul.f32 %v1897, %v1915
      %v1936 = vmax.f32 %v1920, %v1921
      %v1937 = vmax.f32 %v1936, %v1922
      %v1938 = vmax.f32 %v1937, %v1923
      %1939 = vmax.xlane.f32.xlu0 %v1938
      %v1940 = vpop.xlane.xlu0 %1939
      %v1941 = vmax.f32 %v1924, %v1925
      %v1942 = vmax.f32 %v1941, %v1926
      %v1943 = vmax.f32 %v1942, %v1927
      %1944 = vmax.xlane.f32.xlu0 %v1943
      %v1945 = vpop.xlane.xlu0 %1944
      %v1946 = vmax.f32 %v1928, %v1929
      %v1947 = vmax.f32 %v1946, %v1930
      %v1948 = vmax.f32 %v1947, %v1931
      %1949 = vmax.xlane.f32.xlu0 %v1948
      %v1950 = vpop.xlane.xlu0 %1949
      %v1951 = vmax.f32 %v1932, %v1933
      %v1952 = vmax.f32 %v1951, %v1934
      %v1953 = vmax.f32 %v1952, %v1935
      %1954 = vmax.xlane.f32.xlu0 %v1953
      %v1955 = vpop.xlane.xlu0 %1954
      %vm1956 = vcmask 7168
      %1957 = vst.msk [vmem:[%s332] sm:$0xff] %vm1956, %v1940
      %1958 = vst.msk [vmem:[%s332 + $0x8] sm:$0xff] %vm1956, %v1945
      %1959 = vst.msk [vmem:[%s332 + $0x10] sm:$0xff] %vm1956, %v1950
      %1960 = vst.msk [vmem:[%s332 + $0x18] sm:$0xff] %vm1956, %v1955
      %p1961 = scmp.lt.s32.totalorder %s20, 1
      %s1962 = scalar_select %p1961, %s20, 1
      %s1963 = smul.addr %s1962, 4
      %s1964 = smul.addr %s1963, 8
      %s1965 = scalar_lea.vmem %s9, %s1964
      // Predicated region
      $region57: #{_lambda_.6} parent=55 // pred_check
        %p1966 = pneg %p232
      $region58: #{_lambda_.6} parent=55 // pred_check_branch
        %1968 = sbr.rel (%p1966) target = $region60
      $region59: #{_lambda_.6} parent=55 // pred_region
        _
      $region60: #{_lambda_.6} parent=55 // pred_fallthru
        _
    $region56: #{_lambda_.6} parent=5 // pred_fallthru
      _
    %p1969 = scmp.le.s32.totalorder 2, %s15
    // Predicated region
    $region61: #{_lambda_.6} parent=5 // pred_check
      %p1970 = pneg %p1969
    $region62: #{_lambda_.6} parent=5 // pred_check_branch
      %1972 = sbr.rel (%p1970) target = $region64
    $region63: #{_lambda_.6} parent=5 // pred_region
      %s1973 = ssub.s32 %s15, 2
      // Predicated region
      $region65: #{_lambda_.6} parent=63 // pred_check
        %p1974 = pneg %p238
      $region66: #{_lambda_.6} parent=63 // pred_check_branch
        %1976 = sbr.rel (%p1974) target = $region68
      $region67: #{_lambda_.6} parent=63 // pred_region
        %p1977 = scmp.lt.s32.totalorder %s21, 1
        %s1978 = scalar_select %p1977, %s21, 1
        %s1979 = smul.addr %s1978, 4
        %s1980 = smul.addr %s1979, 8
        %s1981 = scalar_lea.vmem %s9, %s1980
      $region68: #{_lambda_.6} parent=63 // pred_fallthru
        _
    $region64: #{_lambda_.6} parent=5 // pred_fallthru
      _
  $region6: #{_lambda_.6} parent=0 // loop_footer
    %s19 = sadd.s32 1, %s15
  $region7: #{_lambda_.6} parent=0 // loop_footer_branch
    %14 = sbr.rel target = $region3
  $region8: #{_lambda_.6} parent=0 // loop_exit
    _

// kernel: _lambda_.5
$region0: #{_lambda_.5}
  #allocation0 [shape = 'u32[]', space=smem, size = 0x4, offset = 0x4, fixed_abs, tag = 'smem constant byte address 0x4 - core index']
  #allocation1 [shape = 'u32[144,128]{1,0:T(1,128)}', space=vmem, size = 0x12000, scoped, tag = 'internal scratch']
  %s0 = inlined_call_operand.vmem [shape: bf16[2,8,1536], index: 0, kind: input, shape index: {}]
  %s1 = inlined_call_operand.vmem [shape: bf16[16,72], index: 1, kind: input, shape index: {}]
  %s2 = inlined_call_operand.vmem [shape: f32[16,1], index: 2, kind: input, shape index: {}, may-alias: {2,6}]
  %s3 = inlined_call_operand.vmem [shape: f32[16,1], index: 3, kind: input, shape index: {}]
  %s4 = inlined_call_operand.vmem [shape: bf16[384,128], index: 4, kind: input, shape index: {}]
  %s5 = inlined_call_operand.vmem [shape: bf16[16,144], index: 5, kind: input, shape index: {}]
  %s6 = inlined_call_operand.vmem [shape: f32[16,1], index: 6, kind: input, shape index: {}, may-alias: {2,6}]
  %s7 = inlined_call_operand.vmem [shape: f32[16,1], index: 7, kind: input, shape index: {}]
  %s8 = inlined_call_operand.vmem [shape: f32[1,512], index: 8, kind: input, shape index: {}]
  %s9 = inlined_call_operand.vmem [shape: bf16[2,16,512], index: 9, kind: output, shape index: {}]
  %s10 = sld [smem:[#allocation0]]
  $region69: #{_lambda_.5} parent=0
    _
  %s12 = ssub.s32 1, %s10
  %s13 = scalar_select 0, %s12, %s10
  loop: start=0, step=1, limit=4
  $region2: #{_lambda_.5} parent=0 // loop_pre_header
    _
  $region3: #{_lambda_.5} parent=0 // loop_header
    %s15 = sphi 0, %s19
    %p16 = scmp.ge.s32.totalorder %s15, 4
    %s25 = sphi 0, %s27
    %s28 = sphi 0, %s25
    %s29 = sphi 0, %s28
    %s45 = sphi 0, %s29
    %s49 = sphi 0, %s49
    %s51 = sphi 0, %s49
    %s52 = sphi 0, %s51
    %s66 = sphi 0, %s52
    %s70 = sphi 0, %s70
    %s72 = sphi 0, %s70
    %s73 = sphi 0, %s72
    %s87 = sphi 0, %s73
    %s91 = sphi 0, %s91
    %s93 = sphi 0, %s91
    %s94 = sphi 0, %s93
    %s108 = sphi 0, %s94
    %s112 = sphi 0, %s112
    %s114 = sphi 0, %s112
    %s115 = sphi 0, %s114
    %s129 = sphi 0, %s115
    %s133 = sphi 0, %s133
    %s135 = sphi 0, %s133
    %s136 = sphi 0, %s135
    %s150 = sphi 0, %s136
    %s154 = sphi 0, %s154
    %s156 = sphi 0, %s154
    %s157 = sphi 0, %s156
    %s171 = sphi 0, %s157
    %s175 = sphi 0, %s175
    %s177 = sphi 0, %s175
    %s178 = sphi 0, %s177
    %s192 = sphi 0, %s178
    %s196 = sphi 0, %s196
    %s198 = sphi 0, %s196
    %s199 = sphi 0, %s198
    %s213 = sphi 0, %s199
    %s219 = sphi 0, %s221
    %s222 = sphi 0, %s219
    %s223 = sphi 0, %s222
    %s239 = sphi 0, %s223
  $region4: #{_lambda_.5} parent=0 // loop_header_branch
    %18 = sbr.rel (%p16) target = $region8
  $region5: #{_lambda_.5} parent=0 // loop_body
    %s20 = ssub.s32 %s15, 1
    %s21 = ssub.s32 %s15, 2
    %s22 = sadd.s32 %s15, 1
    %s23 = ssub.s32 %s15, %s22
    %p24 = scmp.eq.s32.totalorder %s23, 0
    %s26 = sadd.s32 %s25, 1
    %s27 = scalar_select %p24, %s25, %s26
    %p30 = pneg %p24
    %p31 = scmp.eq.s32.totalorder %s15, 1
    %p32 = por %p30, %p31
    %p33 = scmp.ne.s32.totalorder %s25, %s28
    %p34 = scmp.eq.s32.totalorder %s15, 0
    %p35 = por %p33, %p34
    %p36 = scmp.ne.s32.totalorder %s25, %s28
    %p37 = scmp.eq.s32.totalorder %s20, 1
    %p38 = por %p36, %p37
    %p39 = scmp.ne.s32.totalorder %s28, %s29
    %p40 = scmp.eq.s32.totalorder %s20, 0
    %p41 = por %p39, %p40
    %p42 = scmp.ne.s32.totalorder %s28, %s29
    %p43 = scmp.eq.s32.totalorder %s21, 1
    %p44 = por %p42, %p43
    %p46 = scmp.ne.s32.totalorder %s29, %s45
    %p47 = scmp.eq.s32.totalorder %s21, 0
    %p48 = por %p46, %p47
    %s50 = sadd.s32 %s49, 1
    %p53 = scmp.eq.s32.totalorder %s15, 1
    %p54 = scmp.ne.s32.totalorder %s49, %s51
    %p55 = scmp.eq.s32.totalorder %s15, 0
    %p56 = por %p54, %p55
    %p57 = scmp.ne.s32.totalorder %s49, %s51
    %p58 = scmp.eq.s32.totalorder %s20, 1
    %p59 = por %p57, %p58
    %p60 = scmp.ne.s32.totalorder %s51, %s52
    %p61 = scmp.eq.s32.totalorder %s20, 0
    %p62 = por %p60, %p61
    %p63 = scmp.ne.s32.totalorder %s51, %s52
    %p64 = scmp.eq.s32.totalorder %s21, 1
    %p65 = por %p63, %p64
    %p67 = scmp.ne.s32.totalorder %s52, %s66
    %p68 = scmp.eq.s32.totalorder %s21, 0
    %p69 = por %p67, %p68
    %s71 = sadd.s32 %s70, 1
    %p74 = scmp.eq.s32.totalorder %s15, 1
    %p75 = scmp.ne.s32.totalorder %s70, %s72
    %p76 = scmp.eq.s32.totalorder %s15, 0
    %p77 = por %p75, %p76
    %p78 = scmp.ne.s32.totalorder %s70, %s72
    %p79 = scmp.eq.s32.totalorder %s20, 1
    %p80 = por %p78, %p79
    %p81 = scmp.ne.s32.totalorder %s72, %s73
    %p82 = scmp.eq.s32.totalorder %s20, 0
    %p83 = por %p81, %p82
    %p84 = scmp.ne.s32.totalorder %s72, %s73
    %p85 = scmp.eq.s32.totalorder %s21, 1
    %p86 = por %p84, %p85
    %p88 = scmp.ne.s32.totalorder %s73, %s87
    %p89 = scmp.eq.s32.totalorder %s21, 0
    %p90 = por %p88, %p89
    %s92 = sadd.s32 %s91, 1
    %p95 = scmp.eq.s32.totalorder %s15, 1
    %p96 = scmp.ne.s32.totalorder %s91, %s93
    %p97 = scmp.eq.s32.totalorder %s15, 0
    %p98 = por %p96, %p97
    %p99 = scmp.ne.s32.totalorder %s91, %s93
    %p100 = scmp.eq.s32.totalorder %s20, 1
    %p101 = por %p99, %p100
    %p102 = scmp.ne.s32.totalorder %s93, %s94
    %p103 = scmp.eq.s32.totalorder %s20, 0
    %p104 = por %p102, %p103
    %p105 = scmp.ne.s32.totalorder %s93, %s94
    %p106 = scmp.eq.s32.totalorder %s21, 1
    %p107 = por %p105, %p106
    %p109 = scmp.ne.s32.totalorder %s94, %s108
    %p110 = scmp.eq.s32.totalorder %s21, 0
    %p111 = por %p109, %p110
    %s113 = sadd.s32 %s112, 1
    %p116 = scmp.eq.s32.totalorder %s15, 1
    %p117 = scmp.ne.s32.totalorder %s112, %s114
    %p118 = scmp.eq.s32.totalorder %s15, 0
    %p119 = por %p117, %p118
    %p120 = scmp.ne.s32.totalorder %s112, %s114
    %p121 = scmp.eq.s32.totalorder %s20, 1
    %p122 = por %p120, %p121
    %p123 = scmp.ne.s32.totalorder %s114, %s115
    %p124 = scmp.eq.s32.totalorder %s20, 0
    %p125 = por %p123, %p124
    %p126 = scmp.ne.s32.totalorder %s114, %s115
    %p127 = scmp.eq.s32.totalorder %s21, 1
    %p128 = por %p126, %p127
    %p130 = scmp.ne.s32.totalorder %s115, %s129
    %p131 = scmp.eq.s32.totalorder %s21, 0
    %p132 = por %p130, %p131
    %s134 = sadd.s32 %s133, 1
    %p137 = scmp.eq.s32.totalorder %s15, 1
    %p138 = scmp.ne.s32.totalorder %s133, %s135
    %p139 = scmp.eq.s32.totalorder %s15, 0
    %p140 = por %p138, %p139
    %p141 = scmp.ne.s32.totalorder %s133, %s135
    %p142 = scmp.eq.s32.totalorder %s20, 1
    %p143 = por %p141, %p142
    %p144 = scmp.ne.s32.totalorder %s135, %s136
    %p145 = scmp.eq.s32.totalorder %s20, 0
    %p146 = por %p144, %p145
    %p147 = scmp.ne.s32.totalorder %s135, %s136
    %p148 = scmp.eq.s32.totalorder %s21, 1
    %p149 = por %p147, %p148
    %p151 = scmp.ne.s32.totalorder %s136, %s150
    %p152 = scmp.eq.s32.totalorder %s21, 0
    %p153 = por %p151, %p152
    %s155 = sadd.s32 %s154, 1
    %p158 = scmp.eq.s32.totalorder %s15, 1
    %p159 = scmp.ne.s32.totalorder %s154, %s156
    %p160 = scmp.eq.s32.totalorder %s15, 0
    %p161 = por %p159, %p160
    %p162 = scmp.ne.s32.totalorder %s154, %s156
    %p163 = scmp.eq.s32.totalorder %s20, 1
    %p164 = por %p162, %p163
    %p165 = scmp.ne.s32.totalorder %s156, %s157
    %p166 = scmp.eq.s32.totalorder %s20, 0
    %p167 = por %p165, %p166
    %p168 = scmp.ne.s32.totalorder %s156, %s157
    %p169 = scmp.eq.s32.totalorder %s21, 1
    %p170 = por %p168, %p169
    %p172 = scmp.ne.s32.totalorder %s157, %s171
    %p173 = scmp.eq.s32.totalorder %s21, 0
    %p174 = por %p172, %p173
    %s176 = sadd.s32 %s175, 1
    %p179 = scmp.eq.s32.totalorder %s15, 1
    %p180 = scmp.ne.s32.totalorder %s175, %s177
    %p181 = scmp.eq.s32.totalorder %s15, 0
    %p182 = por %p180, %p181
    %p183 = scmp.ne.s32.totalorder %s175, %s177
    %p184 = scmp.eq.s32.totalorder %s20, 1
    %p185 = por %p183, %p184
    %p186 = scmp.ne.s32.totalorder %s177, %s178
    %p187 = scmp.eq.s32.totalorder %s20, 0
    %p188 = por %p186, %p187
    %p189 = scmp.ne.s32.totalorder %s177, %s178
    %p190 = scmp.eq.s32.totalorder %s21, 1
    %p191 = por %p189, %p190
    %p193 = scmp.ne.s32.totalorder %s178, %s192
    %p194 = scmp.eq.s32.totalorder %s21, 0
    %p195 = por %p193, %p194
    %s197 = sadd.s32 %s196, 1
    %p200 = scmp.eq.s32.totalorder %s15, 1
    %p201 = scmp.ne.s32.totalorder %s196, %s198
    %p202 = scmp.eq.s32.totalorder %s15, 0
    %p203 = por %p201, %p202
    %p204 = scmp.ne.s32.totalorder %s196, %s198
    %p205 = scmp.eq.s32.totalorder %s20, 1
    %p206 = por %p204, %p205
    %p207 = scmp.ne.s32.totalorder %s198, %s199
    %p208 = scmp.eq.s32.totalorder %s20, 0
    %p209 = por %p207, %p208
    %p210 = scmp.ne.s32.totalorder %s198, %s199
    %p211 = scmp.eq.s32.totalorder %s21, 1
    %p212 = por %p210, %p211
    %p214 = scmp.ne.s32.totalorder %s199, %s213
    %p215 = scmp.eq.s32.totalorder %s21, 0
    %p216 = por %p214, %p215
    %s217 = ssub.s32 %s15, %s22
    %p218 = scmp.eq.s32.totalorder %s217, 0
    %s220 = sadd.s32 %s219, 1
    %s221 = scalar_select %p218, %s219, %s220
    %p224 = pneg %p218
    %p225 = scmp.eq.s32.totalorder %s15, 1
    %p226 = por %p224, %p225
    %p227 = scmp.ne.s32.totalorder %s219, %s222
    %p228 = scmp.eq.s32.totalorder %s15, 0
    %p229 = por %p227, %p228
    %p230 = scmp.ne.s32.totalorder %s219, %s222
    %p231 = scmp.eq.s32.totalorder %s20, 1
    %p232 = por %p230, %p231
    %p233 = scmp.ne.s32.totalorder %s222, %s223
    %p234 = scmp.eq.s32.totalorder %s20, 0
    %p235 = por %p233, %p234
    %p236 = scmp.ne.s32.totalorder %s222, %s223
    %p237 = scmp.eq.s32.totalorder %s21, 1
    %p238 = por %p236, %p237
    %p240 = scmp.ne.s32.totalorder %s223, %s239
    %p241 = scmp.eq.s32.totalorder %s21, 0
    %p242 = por %p240, %p241
    %p243 = scmp.le.s32.totalorder 1, %s15
    %p244 = scmp.lt.s32.totalorder %s15, 3
    %p245 = pnand %p243, %p244
    %p246 = pneg %p245
    // Predicated region
    $region9: #{_lambda_.5} parent=5 // pred_check
      _
    $region10: #{_lambda_.5} parent=5 // pred_check_branch
      %248 = sbr.rel (%p245) target = $region12
    $region11: #{_lambda_.5} parent=5 // pred_region
      %s249 = ssub.s32 %s15, 1
      // Predicated region
      $region13: #{_lambda_.5} parent=11 // pred_check
        %p250 = pneg %p62
      $region14: #{_lambda_.5} parent=11 // pred_check_branch
        %252 = sbr.rel (%p250) target = $region16
      $region15: #{_lambda_.5} parent=11 // pred_region
        _
      $region16: #{_lambda_.5} parent=11 // pred_fallthru
        _
      // Predicated region
      $region17: #{_lambda_.5} parent=11 // pred_check
        %p253 = pneg %p83
      $region18: #{_lambda_.5} parent=11 // pred_check_branch
        %255 = sbr.rel (%p253) target = $region20
      $region19: #{_lambda_.5} parent=11 // pred_region
        _
      $region20: #{_lambda_.5} parent=11 // pred_fallthru
        _
      // Predicated region
      $region21: #{_lambda_.5} parent=11 // pred_check
        %p256 = pneg %p104
      $region22: #{_lambda_.5} parent=11 // pred_check_branch
        %258 = sbr.rel (%p256) target = $region24
      $region23: #{_lambda_.5} parent=11 // pred_region
        _
      $region24: #{_lambda_.5} parent=11 // pred_fallthru
        _
      // Predicated region
      $region25: #{_lambda_.5} parent=11 // pred_check
        %p259 = pneg %p125
      $region26: #{_lambda_.5} parent=11 // pred_check_branch
        %261 = sbr.rel (%p259) target = $region28
      $region27: #{_lambda_.5} parent=11 // pred_region
        _
      $region28: #{_lambda_.5} parent=11 // pred_fallthru
        _
      // Predicated region
      $region29: #{_lambda_.5} parent=11 // pred_check
        %p262 = pneg %p146
      $region30: #{_lambda_.5} parent=11 // pred_check_branch
        %264 = sbr.rel (%p262) target = $region32
      $region31: #{_lambda_.5} parent=11 // pred_region
        _
      $region32: #{_lambda_.5} parent=11 // pred_fallthru
        _
      // Predicated region
      $region33: #{_lambda_.5} parent=11 // pred_check
        %p265 = pneg %p167
      $region34: #{_lambda_.5} parent=11 // pred_check_branch
        %267 = sbr.rel (%p265) target = $region36
      $region35: #{_lambda_.5} parent=11 // pred_region
        _
      $region36: #{_lambda_.5} parent=11 // pred_fallthru
        _
      // Predicated region
      $region37: #{_lambda_.5} parent=11 // pred_check
        %p268 = pneg %p188
      $region38: #{_lambda_.5} parent=11 // pred_check_branch
        %270 = sbr.rel (%p268) target = $region40
      $region39: #{_lambda_.5} parent=11 // pred_region
        _
      $region40: #{_lambda_.5} parent=11 // pred_fallthru
        _
      // Predicated region
      $region41: #{_lambda_.5} parent=11 // pred_check
        %p271 = pneg %p209
      $region42: #{_lambda_.5} parent=11 // pred_check_branch
        %273 = sbr.rel (%p271) target = $region44
      $region43: #{_lambda_.5} parent=11 // pred_region
        _
      $region44: #{_lambda_.5} parent=11 // pred_fallthru
        _
    $region12: #{_lambda_.5} parent=5 // pred_fallthru
      _
    %p274 = scmp.lt.s32.totalorder %s15, 2
    // Predicated region
    $region45: #{_lambda_.5} parent=5 // pred_check
      %p275 = pneg %p274
    $region46: #{_lambda_.5} parent=5 // pred_check_branch
      %277 = sbr.rel (%p275) target = $region48
    $region47: #{_lambda_.5} parent=5 // pred_region
      // Predicated region
      $region49: #{_lambda_.5} parent=47 // pred_check
        %p278 = pneg %p35
      $region50: #{_lambda_.5} parent=47 // pred_check_branch
        %280 = sbr.rel (%p278) target = $region52
      $region51: #{_lambda_.5} parent=47 // pred_region
        %p281 = scmp.lt.s32.totalorder %s15, 1
        %s282 = scalar_select %p281, %s15, 1
        %s283 = smul.addr %s282, 12
        %s284 = smul.addr %s283, 4
        %s285 = scalar_lea.vmem %s0, %s284
      $region52: #{_lambda_.5} parent=47 // pred_fallthru
        _
    $region48: #{_lambda_.5} parent=5 // pred_fallthru
      _
    %p286 = scmp.le.s32.totalorder 1, %s15
    %p287 = scmp.lt.s32.totalorder %s15, 3
    %p288 = pnand %p286, %p287
    %p289 = pneg %p288
    // Predicated region
    $region53: #{_lambda_.5} parent=5 // pred_check
      _
    $region54: #{_lambda_.5} parent=5 // pred_check_branch
      %291 = sbr.rel (%p288) target = $region56
    $region55: #{_lambda_.5} parent=5 // pred_region
      %s292 = ssub.s32 %s15, 1
      %p293 = scmp.lt.s32.totalorder %s20, 1
      %s294 = scalar_select %p293, %s20, 1
      %s295 = smul.addr %s294, 12
      %s296 = smul.addr %s295, 4
      %s297 = scalar_lea.vmem %s0, %s296
      %p298 = pneg %p41
      %p299 = pneg %p38
      %p300 = pneg %p62
      %p301 = pneg %p59
      %p302 = pneg %p83
      %p303 = pneg %p80
      %p304 = pneg %p104
      %p305 = pneg %p101
      %p306 = pneg %p125
      %p307 = pneg %p122
      %p308 = pneg %p146
      %p309 = pneg %p143
      %p310 = pneg %p167
      %p311 = pneg %p164
      %p312 = pneg %p188
      %p313 = pneg %p185
      %p314 = pneg %p209
      %p315 = pneg %p206
      %p316 = pneg %p235
      %p317 = pneg %p232
      %p318 = scmp.lt.s32.totalorder %s20, 1
      %s319 = scalar_select %p318, %s20, 1
      %s320 = smul.addr %s319, 8
      %s321 = smul.addr %s320, 4
      %s322 = scalar_lea.vmem %s9, %s321
      %p323 = scmp.lt.s32.totalorder %s20, 1
      %s324 = scalar_select %p323, %s20, 1
      %s325 = smul.addr %s324, 12
      %s326 = smul.addr %s325, 4
      %s327 = scalar_lea.vmem %s0, %s326
      %p328 = scmp.lt.s32.totalorder %s20, 1
      %s329 = scalar_select %p328, %s20, 1
      %s330 = smul.addr %s329, 8
      %s331 = smul.addr %s330, 4
      %s332 = scalar_lea.vmem %s9, %s331
      %v334 = vld [vmem:[%s327] sm:$0xff]
      %v335 = vld [vmem:[%s327 + $0x8] sm:$0xff]
      %v336 = vld [vmem:[%s327 + $0x10] sm:$0xff]
      %v337 = vld [vmem:[%s327 + $0x18] sm:$0xff]
      %v338 = vld [vmem:[%s327 + $0x20] sm:$0xff]
      %v339 = vld [vmem:[%s327 + $0x28] sm:$0xff]
      %v340 = vunpack.c.l.bf16 %v334
      %v341 = vunpack.c.h.bf16 %v334
      %v342 = vunpack.c.l.bf16 %v335
      %v343 = vunpack.c.h.bf16 %v335
      %v344 = vunpack.c.l.bf16 %v336
      %v345 = vunpack.c.h.bf16 %v336
      %v346 = vunpack.c.l.bf16 %v337
      %v347 = vunpack.c.h.bf16 %v337
      %v348 = vunpack.c.l.bf16 %v338
      %v349 = vunpack.c.h.bf16 %v338
      %v350 = vunpack.c.l.bf16 %v339
      %v351 = vunpack.c.h.bf16 %v339
      %352 = vrot.lane.b32.xlu0 %v340, 19
      %v353 = vpop.permute.xlu0 %352
      %354 = vrot.lane.b32.xlu0 %v341, 19
      %v355 = vpop.permute.xlu0 %354
      %356 = vrot.lane.b32.xlu0 %v342, 19
      %v357 = vpop.permute.xlu0 %356
      %358 = vrot.lane.b32.xlu0 %v343, 19
      %v359 = vpop.permute.xlu0 %358
      %360 = vrot.lane.b32.xlu0 %v344, 19
      %v361 = vpop.permute.xlu0 %360
      %362 = vrot.lane.b32.xlu0 %v345, 19
      %v363 = vpop.permute.xlu0 %362
      %364 = vrot.lane.b32.xlu0 %v346, 19
      %v365 = vpop.permute.xlu0 %364
      %366 = vrot.lane.b32.xlu0 %v347, 19
      %v367 = vpop.permute.xlu0 %366
      %368 = vrot.lane.b32.xlu0 %v348, 19
      %v369 = vpop.permute.xlu0 %368
      %370 = vrot.lane.b32.xlu0 %v349, 19
      %v371 = vpop.permute.xlu0 %370
      %372 = vrot.lane.b32.xlu0 %v350, 19
      %v373 = vpop.permute.xlu0 %372
      %374 = vrot.lane.b32.xlu0 %v351, 19
      %v375 = vpop.permute.xlu0 %374
      %v376 = vlaneseq
      %v377 = vand.u32 %v376, 127
      %vm378 = vcmp.lt.s32.totalorder %v377, 19
      %v379 = vsel %vm378, %v373, %v375
      %v380 = vsel %vm378, %v371, %v373
      %v381 = vsel %vm378, %v369, %v371
      %v382 = vsel %vm378, %v367, %v369
      %v383 = vsel %vm378, %v365, %v367
      %v384 = vsel %vm378, %v363, %v365
      %v385 = vsel %vm378, %v361, %v363
      %v386 = vsel %vm378, %v359, %v361
      %v387 = vsel %vm378, %v357, %v359
      %v388 = vsel %vm378, %v355, %v357
      %v389 = vsel %vm378, %v353, %v355
      %v390 = vsel %vm378, %v375, %v353
      %391 = vrot.lane.b32.xlu0 %v340, 18
      %v392 = vpop.permute.xlu0 %391
      %393 = vrot.lane.b32.xlu0 %v341, 18
      %v394 = vpop.permute.xlu0 %393
      %395 = vrot.lane.b32.xlu0 %v342, 18
      %v396 = vpop.permute.xlu0 %395
      %397 = vrot.lane.b32.xlu0 %v343, 18
      %v398 = vpop.permute.xlu0 %397
      %399 = vrot.lane.b32.xlu0 %v344, 18
      %v400 = vpop.permute.xlu0 %399
      %401 = vrot.lane.b32.xlu0 %v345, 18
      %v402 = vpop.permute.xlu0 %401
      %403 = vrot.lane.b32.xlu0 %v346, 18
      %v404 = vpop.permute.xlu0 %403
      %405 = vrot.lane.b32.xlu0 %v347, 18
      %v406 = vpop.permute.xlu0 %405
      %407 = vrot.lane.b32.xlu0 %v348, 18
      %v408 = vpop.permute.xlu0 %407
      %409 = vrot.lane.b32.xlu0 %v349, 18
      %v410 = vpop.permute.xlu0 %409
      %411 = vrot.lane.b32.xlu0 %v350, 18
      %v412 = vpop.permute.xlu0 %411
      %413 = vrot.lane.b32.xlu0 %v351, 18
      %v414 = vpop.permute.xlu0 %413
      %vm415 = vcmp.lt.s32.totalorder %v377, 18
      %v416 = vsel %vm415, %v412, %v414
      %v417 = vsel %vm415, %v410, %v412
      %v418 = vsel %vm415, %v408, %v410
      %v419 = vsel %vm415, %v406, %v408
      %v420 = vsel %vm415, %v404, %v406
      %v421 = vsel %vm415, %v402, %v404
      %v422 = vsel %vm415, %v400, %v402
      %v423 = vsel %vm415, %v398, %v400
      %v424 = vsel %vm415, %v396, %v398
      %v425 = vsel %vm415, %v394, %v396
      %v426 = vsel %vm415, %v392, %v394
      %v427 = vsel %vm415, %v414, %v392
      %428 = vrot.lane.b32.xlu0 %v340, 17
      %v429 = vpop.permute.xlu0 %428
      %430 = vrot.lane.b32.xlu0 %v341, 17
      %v431 = vpop.permute.xlu0 %430
      %432 = vrot.lane.b32.xlu0 %v342, 17
      %v433 = vpop.permute.xlu0 %432
      %434 = vrot.lane.b32.xlu0 %v343, 17
      %v435 = vpop.permute.xlu0 %434
      %436 = vrot.lane.b32.xlu0 %v344, 17
      %v437 = vpop.permute.xlu0 %436
      %438 = vrot.lane.b32.xlu0 %v345, 17
      %v439 = vpop.permute.xlu0 %438
      %440 = vrot.lane.b32.xlu0 %v346, 17
      %v441 = vpop.permute.xlu0 %440
      %442 = vrot.lane.b32.xlu0 %v347, 17
      %v443 = vpop.permute.xlu0 %442
      %444 = vrot.lane.b32.xlu0 %v348, 17
      %v445 = vpop.permute.xlu0 %444
      %446 = vrot.lane.b32.xlu0 %v349, 17
      %v447 = vpop.permute.xlu0 %446
      %448 = vrot.lane.b32.xlu0 %v350, 17
      %v449 = vpop.permute.xlu0 %448
      %450 = vrot.lane.b32.xlu0 %v351, 17
      %v451 = vpop.permute.xlu0 %450
      %vm452 = vcmp.lt.s32.totalorder %v377, 17
      %v453 = vsel %vm452, %v449, %v451
      %v454 = vsel %vm452, %v447, %v449
      %v455 = vsel %vm452, %v445, %v447
      %v456 = vsel %vm452, %v443, %v445
      %v457 = vsel %vm452, %v441, %v443
      %v458 = vsel %vm452, %v439, %v441
      %v459 = vsel %vm452, %v437, %v439
      %v460 = vsel %vm452, %v435, %v437
      %v461 = vsel %vm452, %v433, %v435
      %v462 = vsel %vm452, %v431, %v433
      %v463 = vsel %vm452, %v429, %v431
      %v464 = vsel %vm452, %v451, %v429
      %465 = vrot.lane.b32.xlu0 %v340, 1
      %v466 = vpop.permute.xlu0 %465
      %467 = vrot.lane.b32.xlu0 %v341, 1
      %v468 = vpop.permute.xlu0 %467
      %469 = vrot.lane.b32.xlu0 %v342, 1
      %v470 = vpop.permute.xlu0 %469
      %471 = vrot.lane.b32.xlu0 %v343, 1
      %v472 = vpop.permute.xlu0 %471
      %473 = vrot.lane.b32.xlu0 %v344, 1
      %v474 = vpop.permute.xlu0 %473
      %475 = vrot.lane.b32.xlu0 %v345, 1
      %v476 = vpop.permute.xlu0 %475
      %477 = vrot.lane.b32.xlu0 %v346, 1
      %v478 = vpop.permute.xlu0 %477
      %479 = vrot.lane.b32.xlu0 %v347, 1
      %v480 = vpop.permute.xlu0 %479
      %481 = vrot.lane.b32.xlu0 %v348, 1
      %v482 = vpop.permute.xlu0 %481
      %483 = vrot.lane.b32.xlu0 %v349, 1
      %v484 = vpop.permute.xlu0 %483
      %485 = vrot.lane.b32.xlu0 %v350, 1
      %v486 = vpop.permute.xlu0 %485
      %487 = vrot.lane.b32.xlu0 %v351, 1
      %v488 = vpop.permute.xlu0 %487
      %vm489 = vcmp.lt.s32.totalorder %v377, 1
      %v490 = vsel %vm489, %v486, %v488
      %v491 = vsel %vm489, %v484, %v486
      %v492 = vsel %vm489, %v482, %v484
      %v493 = vsel %vm489, %v480, %v482
      %v494 = vsel %vm489, %v478, %v480
      %v495 = vsel %vm489, %v476, %v478
      %v496 = vsel %vm489, %v474, %v476
      %v497 = vsel %vm489, %v472, %v474
      %v498 = vsel %vm489, %v470, %v472
      %v499 = vsel %vm489, %v468, %v470
      %v500 = vsel %vm489, %v466, %v468
      %v501 = vsel %vm489, %v488, %v466
      %502 = vrot.lane.b32.xlu0 %v340, 127
      %v503 = vpop.permute.xlu0 %502
      %504 = vrot.lane.b32.xlu0 %v341, 127
      %v505 = vpop.permute.xlu0 %504
      %506 = vrot.lane.b32.xlu0 %v342, 127
      %v507 = vpop.permute.xlu0 %506
      %508 = vrot.lane.b32.xlu0 %v343, 127
      %v509 = vpop.permute.xlu0 %508
      %510 = vrot.lane.b32.xlu0 %v344, 127
      %v511 = vpop.permute.xlu0 %510
      %512 = vrot.lane.b32.xlu0 %v345, 127
      %v513 = vpop.permute.xlu0 %512
      %514 = vrot.lane.b32.xlu0 %v346, 127
      %v515 = vpop.permute.xlu0 %514
      %516 = vrot.lane.b32.xlu0 %v347, 127
      %v517 = vpop.permute.xlu0 %516
      %518 = vrot.lane.b32.xlu0 %v348, 127
      %v519 = vpop.permute.xlu0 %518
      %520 = vrot.lane.b32.xlu0 %v349, 127
      %v521 = vpop.permute.xlu0 %520
      %522 = vrot.lane.b32.xlu0 %v350, 127
      %v523 = vpop.permute.xlu0 %522
      %524 = vrot.lane.b32.xlu0 %v351, 127
      %v525 = vpop.permute.xlu0 %524
      %vm526 = vcmp.lt.s32.totalorder %v377, 127
      %v527 = vsel %vm526, %v523, %v525
      %v528 = vsel %vm526, %v521, %v523
      %v529 = vsel %vm526, %v519, %v521
      %v530 = vsel %vm526, %v517, %v519
      %v531 = vsel %vm526, %v515, %v517
      %v532 = vsel %vm526, %v513, %v515
      %v533 = vsel %vm526, %v511, %v513
      %v534 = vsel %vm526, %v509, %v511
      %v535 = vsel %vm526, %v507, %v509
      %v536 = vsel %vm526, %v505, %v507
      %v537 = vsel %vm526, %v503, %v505
      %v538 = vsel %vm526, %v525, %v503
      %539 = vrot.lane.b32.xlu0 %v340, 111
      %v540 = vpop.permute.xlu0 %539
      %541 = vrot.lane.b32.xlu0 %v341, 111
      %v542 = vpop.permute.xlu0 %541
      %543 = vrot.lane.b32.xlu0 %v342, 111
      %v544 = vpop.permute.xlu0 %543
      %545 = vrot.lane.b32.xlu0 %v343, 111
      %v546 = vpop.permute.xlu0 %545
      %547 = vrot.lane.b32.xlu0 %v344, 111
      %v548 = vpop.permute.xlu0 %547
      %549 = vrot.lane.b32.xlu0 %v345, 111
      %v550 = vpop.permute.xlu0 %549
      %551 = vrot.lane.b32.xlu0 %v346, 111
      %v552 = vpop.permute.xlu0 %551
      %553 = vrot.lane.b32.xlu0 %v347, 111
      %v554 = vpop.permute.xlu0 %553
      %555 = vrot.lane.b32.xlu0 %v348, 111
      %v556 = vpop.permute.xlu0 %555
      %557 = vrot.lane.b32.xlu0 %v349, 111
      %v558 = vpop.permute.xlu0 %557
      %559 = vrot.lane.b32.xlu0 %v350, 111
      %v560 = vpop.permute.xlu0 %559
      %561 = vrot.lane.b32.xlu0 %v351, 111
      %v562 = vpop.permute.xlu0 %561
      %vm563 = vcmp.lt.s32.totalorder %v377, 111
      %v564 = vsel %vm563, %v560, %v562
      %v565 = vsel %vm563, %v558, %v560
      %v566 = vsel %vm563, %v556, %v558
      %v567 = vsel %vm563, %v554, %v556
      %v568 = vsel %vm563, %v552, %v554
      %v569 = vsel %vm563, %v550, %v552
      %v570 = vsel %vm563, %v548, %v550
      %v571 = vsel %vm563, %v546, %v548
      %v572 = vsel %vm563, %v544, %v546
      %v573 = vsel %vm563, %v542, %v544
      %v574 = vsel %vm563, %v540, %v542
      %v575 = vsel %vm563, %v562, %v540
      %576 = vrot.lane.b32.xlu0 %v340, 110
      %v577 = vpop.permute.xlu0 %576
      %578 = vrot.lane.b32.xlu0 %v341, 110
      %v579 = vpop.permute.xlu0 %578
      %580 = vrot.lane.b32.xlu0 %v342, 110
      %v581 = vpop.permute.xlu0 %580
      %582 = vrot.lane.b32.xlu0 %v343, 110
      %v583 = vpop.permute.xlu0 %582
      %584 = vrot.lane.b32.xlu0 %v344, 110
      %v585 = vpop.permute.xlu0 %584
      %586 = vrot.lane.b32.xlu0 %v345, 110
      %v587 = vpop.permute.xlu0 %586
      %588 = vrot.lane.b32.xlu0 %v346, 110
      %v589 = vpop.permute.xlu0 %588
      %590 = vrot.lane.b32.xlu0 %v347, 110
      %v591 = vpop.permute.xlu0 %590
      %592 = vrot.lane.b32.xlu0 %v348, 110
      %v593 = vpop.permute.xlu0 %592
      %594 = vrot.lane.b32.xlu0 %v349, 110
      %v595 = vpop.permute.xlu0 %594
      %596 = vrot.lane.b32.xlu0 %v350, 110
      %v597 = vpop.permute.xlu0 %596
      %598 = vrot.lane.b32.xlu0 %v351, 110
      %v599 = vpop.permute.xlu0 %598
      %vm600 = vcmp.lt.s32.totalorder %v377, 110
      %v601 = vsel %vm600, %v597, %v599
      %v602 = vsel %vm600, %v595, %v597
      %v603 = vsel %vm600, %v593, %v595
      %v604 = vsel %vm600, %v591, %v593
      %v605 = vsel %vm600, %v589, %v591
      %v606 = vsel %vm600, %v587, %v589
      %v607 = vsel %vm600, %v585, %v587
      %v608 = vsel %vm600, %v583, %v585
      %v609 = vsel %vm600, %v581, %v583
      %v610 = vsel %vm600, %v579, %v581
      %v611 = vsel %vm600, %v577, %v579
      %v612 = vsel %vm600, %v599, %v577
      %613 = vrot.lane.b32.xlu0 %v340, 109
      %v614 = vpop.permute.xlu0 %613
      %615 = vrot.lane.b32.xlu0 %v341, 109
      %v616 = vpop.permute.xlu0 %615
      %617 = vrot.lane.b32.xlu0 %v342, 109
      %v618 = vpop.permute.xlu0 %617
      %619 = vrot.lane.b32.xlu0 %v343, 109
      %v620 = vpop.permute.xlu0 %619
      %621 = vrot.lane.b32.xlu0 %v344, 109
      %v622 = vpop.permute.xlu0 %621
      %623 = vrot.lane.b32.xlu0 %v345, 109
      %v624 = vpop.permute.xlu0 %623
      %625 = vrot.lane.b32.xlu0 %v346, 109
      %v626 = vpop.permute.xlu0 %625
      %627 = vrot.lane.b32.xlu0 %v347, 109
      %v628 = vpop.permute.xlu0 %627
      %629 = vrot.lane.b32.xlu0 %v348, 109
      %v630 = vpop.permute.xlu0 %629
      %631 = vrot.lane.b32.xlu0 %v349, 109
      %v632 = vpop.permute.xlu0 %631
      %633 = vrot.lane.b32.xlu0 %v350, 109
      %v634 = vpop.permute.xlu0 %633
      %635 = vrot.lane.b32.xlu0 %v351, 109
      %v636 = vpop.permute.xlu0 %635
      %vm637 = vcmp.lt.s32.totalorder %v377, 109
      %v638 = vsel %vm637, %v634, %v636
      %v639 = vsel %vm637, %v632, %v634
      %v640 = vsel %vm637, %v630, %v632
      %v641 = vsel %vm637, %v628, %v630
      %v642 = vsel %vm637, %v626, %v628
      %v643 = vsel %vm637, %v624, %v626
      %v644 = vsel %vm637, %v622, %v624
      %v645 = vsel %vm637, %v620, %v622
      %v646 = vsel %vm637, %v618, %v620
      %v647 = vsel %vm637, %v616, %v618
      %v648 = vsel %vm637, %v614, %v616
      %v649 = vsel %vm637, %v636, %v614
      %v650 = vpack.c.bf16 %v427, %v390
      %v651 = vpack.c.bf16 %v426, %v389
      %v652 = vpack.c.bf16 %v425, %v388
      %v653 = vpack.c.bf16 %v424, %v387
      %v654 = vpack.c.bf16 %v423, %v386
      %v655 = vpack.c.bf16 %v422, %v385
      %v656 = vpack.c.bf16 %v421, %v384
      %v657 = vpack.c.bf16 %v420, %v383
      %v658 = vpack.c.bf16 %v419, %v382
      %v659 = vpack.c.bf16 %v418, %v381
      %v660 = vpack.c.bf16 %v417, %v380
      %v661 = vpack.c.bf16 %v416, %v379
      %v662 = vpack.c.bf16 %v501, %v464
      %v663 = vpack.c.bf16 %v500, %v463
      %v664 = vpack.c.bf16 %v499, %v462
      %v665 = vpack.c.bf16 %v498, %v461
      %v666 = vpack.c.bf16 %v497, %v460
      %v667 = vpack.c.bf16 %v496, %v459
      %v668 = vpack.c.bf16 %v495, %v458
      %v669 = vpack.c.bf16 %v494, %v457
      %v670 = vpack.c.bf16 %v493, %v456
      %v671 = vpack.c.bf16 %v492, %v455
      %v672 = vpack.c.bf16 %v491, %v454
      %v673 = vpack.c.bf16 %v490, %v453
      %v674 = vpack.c.bf16 %v537, %v340
      %v675 = vpack.c.bf16 %v536, %v341
      %v676 = vpack.c.bf16 %v535, %v342
      %v677 = vpack.c.bf16 %v534, %v343
      %v678 = vpack.c.bf16 %v533, %v344
      %v679 = vpack.c.bf16 %v532, %v345
      %v680 = vpack.c.bf16 %v531, %v346
      %v681 = vpack.c.bf16 %v530, %v347
      %v682 = vpack.c.bf16 %v529, %v348
      %v683 = vpack.c.bf16 %v528, %v349
      %v684 = vpack.c.bf16 %v527, %v350
      %v685 = vpack.c.bf16 %v538, %v351
      %v686 = vpack.c.bf16 %v611, %v574
      %v687 = vpack.c.bf16 %v610, %v573
      %v688 = vpack.c.bf16 %v609, %v572
      %v689 = vpack.c.bf16 %v608, %v571
      %v690 = vpack.c.bf16 %v607, %v570
      %v691 = vpack.c.bf16 %v606, %v569
      %v692 = vpack.c.bf16 %v605, %v568
      %v693 = vpack.c.bf16 %v604, %v567
      %v694 = vpack.c.bf16 %v603, %v566
      %v695 = vpack.c.bf16 %v602, %v565
      %v696 = vpack.c.bf16 %v601, %v564
      %v697 = vpack.c.bf16 %v612, %v575
      %v698 = vpack.c.bf16 %v648, %v648
      %v699 = vpack.c.bf16 %v647, %v647
      %v700 = vpack.c.bf16 %v646, %v646
      %v701 = vpack.c.bf16 %v645, %v645
      %v702 = vpack.c.bf16 %v644, %v644
      %v703 = vpack.c.bf16 %v643, %v643
      %v704 = vpack.c.bf16 %v642, %v642
      %v705 = vpack.c.bf16 %v641, %v641
      %v706 = vpack.c.bf16 %v640, %v640
      %v707 = vpack.c.bf16 %v639, %v639
      %v708 = vpack.c.bf16 %v638, %v638
      %v709 = vpack.c.bf16 %v649, %v649
      %v710 = vld [vmem:[%s1] sm:$0xf]
      %v711 = vld [vmem:[%s1 + $0x4] sm:$0xf]
      %v714 = vunpack.c.l.b16 %v710
      %v715 = vunpack.c.l.b16 %v711
      %v716 = vpack.c.b16 %v715, %v714
      %vm717 = vcmask 588800
      %v719 = vsel %vm717, %v716, 0
      %vm721 = vcmask 1043456
      %v723 = vsel %vm721, %v698, 0
      %v726 = vsel %vm721, %v699, 0
      %v729 = vsel %vm721, %v700, 0
      %v732 = vsel %vm721, %v701, 0
      %v735 = vsel %vm721, %v702, 0
      %v738 = vsel %vm721, %v703, 0
      %v741 = vsel %vm721, %v704, 0
      %v744 = vsel %vm721, %v705, 0
      %v747 = vsel %vm721, %v706, 0
      %v750 = vsel %vm721, %v707, 0
      %v753 = vsel %vm721, %v708, 0
      %v756 = vsel %vm721, %v709, 0
      %758 = vmatprep.subr.bf16.mxu0 %v651
      %759 = vmatpush1.bf16.msra.mxu0 %v650
      %760 = vmatprep.subr.bf16.mxu0 %v663
      %761 = vmatpush1.bf16.msra.mxu0 %v662
      %762 = vmatprep.subr.bf16.mxu0 %v675
      %763 = vmatpush1.bf16.msra.mxu0 %v674
      %764 = vmatprep.subr.bf16.mxu0 %v687
      %765 = vmatpush1.bf16.msra.mxu0 %v686
      %766 = vmatprep.subr.bf16.mxu0 %v726
      %767 = vmatpush1.bf16.msra.mxu0 %v723
      %768 = vmatprep.subr.bf16.mxu0 0
      %769 = vmatpush1.bf16.msra.mxu0 0
      %770 = vmatprep.subr.bf16.mxu0 0
      %771 = vmatpush1.bf16.msra.mxu0 0
      %772 = vmatprep.subr.bf16.mxu0 0
      %773 = vmatpush1.bf16.msra.mxu0 0
      %774 = vmatprep.subr.bf16.mxu0 0
      %775 = vmatpush1.bf16.msra.mxu0 0
      %776 = vmatprep.subr.bf16.mxu0 0
      %777 = vmatpush1.bf16.msra.mxu0 0
      %778 = vmatprep.subr.bf16.mxu0 0
      %779 = vmatpush1.bf16.msra.mxu0 0
      %780 = vmatprep.subr.bf16.mxu0 0
      %781 = vmatpush1.bf16.msra.mxu0 0
      %782 = vmatprep.subr.bf16.mxu0 0
      %783 = vmatpush1.bf16.msra.mxu0 0
      %784 = vmatprep.subr.bf16.mxu0 0
      %785 = vmatpush1.bf16.msra.mxu0 0
      %786 = vmatprep.subr.bf16.mxu0 0
      %787 = vmatpush1.bf16.msra.mxu0 0
      %788 = vmatprep.subr.bf16.mxu0 0
      %789 = vmatpush1.bf16.msra.mxu0 0
      %790 = vmatprep.mubr.bf16.mxu0 0
      %791 = vmatmul.mubr.bf16.gmra.mrb[0].mxu0 %v719
      %v792 = vpop.f32.mrb[0].mxu0
      %v793 = vadd.f32 0.0, %v792
      %v794 = vpop.f32.mrb[0].mxu0
      %v795 = vadd.f32 0.0, %v794
      %v796 = vpop.f32.mrb[0].mxu0
      %v797 = vadd.f32 0.0, %v796
      %v798 = vpop.f32.mrb[0].mxu0
      %v799 = vadd.f32 0.0, %v798
      %800 = vdwg.mxu0
      %801 = vmatprep.subr.bf16.mxu0 %v653
      %802 = vmatpush1.bf16.msra.mxu0 %v652
      %803 = vmatprep.subr.bf16.mxu0 %v665
      %804 = vmatpush1.bf16.msra.mxu0 %v664
      %805 = vmatprep.subr.bf16.mxu0 %v677
      %806 = vmatpush1.bf16.msra.mxu0 %v676
      %807 = vmatprep.subr.bf16.mxu0 %v689
      %808 = vmatpush1.bf16.msra.mxu0 %v688
      %809 = vmatprep.subr.bf16.mxu0 %v732
      %810 = vmatpush1.bf16.msra.mxu0 %v729
      %811 = vmatprep.subr.bf16.mxu0 0
      %812 = vmatpush1.bf16.msra.mxu0 0
      %813 = vmatprep.subr.bf16.mxu0 0
      %814 = vmatpush1.bf16.msra.mxu0 0
      %815 = vmatprep.subr.bf16.mxu0 0
      %816 = vmatpush1.bf16.msra.mxu0 0
      %817 = vmatprep.subr.bf16.mxu0 0
      %818 = vmatpush1.bf16.msra.mxu0 0
      %819 = vmatprep.subr.bf16.mxu0 0
      %820 = vmatpush1.bf16.msra.mxu0 0
      %821 = vmatprep.subr.bf16.mxu0 0
      %822 = vmatpush1.bf16.msra.mxu0 0
      %823 = vmatprep.subr.bf16.mxu0 0
      %824 = vmatpush1.bf16.msra.mxu0 0
      %825 = vmatprep.subr.bf16.mxu0 0
      %826 = vmatpush1.bf16.msra.mxu0 0
      %827 = vmatprep.subr.bf16.mxu0 0
      %828 = vmatpush1.bf16.msra.mxu0 0
      %829 = vmatprep.subr.bf16.mxu0 0
      %830 = vmatpush1.bf16.msra.mxu0 0
      %831 = vmatprep.subr.bf16.mxu0 0
      %832 = vmatpush1.bf16.msra.mxu0 0
      %833 = vmatprep.mubr.bf16.mxu0 0
      %834 = vmatmul.mubr.bf16.gmra.mrb[0].mxu0 %v719
      %v835 = vpop.f32.mrb[0].mxu0
      %v836 = vadd.f32 0.0, %v835
      %v837 = vpop.f32.mrb[0].mxu0
      %v838 = vadd.f32 0.0, %v837
      %v839 = vpop.f32.mrb[0].mxu0
      %v840 = vadd.f32 0.0, %v839
      %v841 = vpop.f32.mrb[0].mxu0
      %v842 = vadd.f32 0.0, %v841
      %843 = vdwg.mxu0
      %844 = vmatprep.subr.bf16.mxu0 %v655
      %845 = vmatpush1.bf16.msra.mxu0 %v654
      %846 = vmatprep.subr.bf16.mxu0 %v667
      %847 = vmatpush1.bf16.msra.mxu0 %v666
      %848 = vmatprep.subr.bf16.mxu0 %v679
      %849 = vmatpush1.bf16.msra.mxu0 %v678
      %850 = vmatprep.subr.bf16.mxu0 %v691
      %851 = vmatpush1.bf16.msra.mxu0 %v690
      %852 = vmatprep.subr.bf16.mxu0 %v738
      %853 = vmatpush1.bf16.msra.mxu0 %v735
      %854 = vmatprep.subr.bf16.mxu0 0
      %855 = vmatpush1.bf16.msra.mxu0 0
      %856 = vmatprep.subr.bf16.mxu0 0
      %857 = vmatpush1.bf16.msra.mxu0 0
      %858 = vmatprep.subr.bf16.mxu0 0
      %859 = vmatpush1.bf16.msra.mxu0 0
      %860 = vmatprep.subr.bf16.mxu0 0
      %861 = vmatpush1.bf16.msra.mxu0 0
      %862 = vmatprep.subr.bf16.mxu0 0
      %863 = vmatpush1.bf16.msra.mxu0 0
      %864 = vmatprep.subr.bf16.mxu0 0
      %865 = vmatpush1.bf16.msra.mxu0 0
      %866 = vmatprep.subr.bf16.mxu0 0
      %867 = vmatpush1.bf16.msra.mxu0 0
      %868 = vmatprep.subr.bf16.mxu0 0
      %869 = vmatpush1.bf16.msra.mxu0 0
      %870 = vmatprep.subr.bf16.mxu0 0
      %871 = vmatpush1.bf16.msra.mxu0 0
      %872 = vmatprep.subr.bf16.mxu0 0
      %873 = vmatpush1.bf16.msra.mxu0 0
      %874 = vmatprep.subr.bf16.mxu0 0
      %875 = vmatpush1.bf16.msra.mxu0 0
      %876 = vmatprep.mubr.bf16.mxu0 0
      %877 = vmatmul.mubr.bf16.gmra.mrb[0].mxu0 %v719
      %v878 = vpop.f32.mrb[0].mxu0
      %v879 = vadd.f32 0.0, %v878
      %v880 = vpop.f32.mrb[0].mxu0
      %v881 = vadd.f32 0.0, %v880
      %v882 = vpop.f32.mrb[0].mxu0
      %v883 = vadd.f32 0.0, %v882
      %v884 = vpop.f32.mrb[0].mxu0
      %v885 = vadd.f32 0.0, %v884
      %886 = vdwg.mxu0
      %887 = vmatprep.subr.bf16.mxu0 %v657
      %888 = vmatpush1.bf16.msra.mxu0 %v656
      %889 = vmatprep.subr.bf16.mxu0 %v669
      %890 = vmatpush1.bf16.msra.mxu0 %v668
      %891 = vmatprep.subr.bf16.mxu0 %v681
      %892 = vmatpush1.bf16.msra.mxu0 %v680
      %893 = vmatprep.subr.bf16.mxu0 %v693
      %894 = vmatpush1.bf16.msra.mxu0 %v692
      %895 = vmatprep.subr.bf16.mxu0 %v744
      %896 = vmatpush1.bf16.msra.mxu0 %v741
      %897 = vmatprep.subr.bf16.mxu0 0
      %898 = vmatpush1.bf16.msra.mxu0 0
      %899 = vmatprep.subr.bf16.mxu0 0
      %900 = vmatpush1.bf16.msra.mxu0 0
      %901 = vmatprep.subr.bf16.mxu0 0
      %902 = vmatpush1.bf16.msra.mxu0 0
      %903 = vmatprep.subr.bf16.mxu0 0
      %904 = vmatpush1.bf16.msra.mxu0 0
      %905 = vmatprep.subr.bf16.mxu0 0
      %906 = vmatpush1.bf16.msra.mxu0 0
      %907 = vmatprep.subr.bf16.mxu0 0
      %908 = vmatpush1.bf16.msra.mxu0 0
      %909 = vmatprep.subr.bf16.mxu0 0
      %910 = vmatpush1.bf16.msra.mxu0 0
      %911 = vmatprep.subr.bf16.mxu0 0
      %912 = vmatpush1.bf16.msra.mxu0 0
      %913 = vmatprep.subr.bf16.mxu0 0
      %914 = vmatpush1.bf16.msra.mxu0 0
      %915 = vmatprep.subr.bf16.mxu0 0
      %916 = vmatpush1.bf16.msra.mxu0 0
      %917 = vmatprep.subr.bf16.mxu0 0
      %918 = vmatpush1.bf16.msra.mxu0 0
      %919 = vmatprep.mubr.bf16.mxu0 0
      %920 = vmatmul.mubr.bf16.gmra.mrb[0].mxu0 %v719
      %v921 = vpop.f32.mrb[0].mxu0
      %v922 = vadd.f32 0.0, %v921
      %v923 = vpop.f32.mrb[0].mxu0
      %v924 = vadd.f32 0.0, %v923
      %v925 = vpop.f32.mrb[0].mxu0
      %v926 = vadd.f32 0.0, %v925
      %v927 = vpop.f32.mrb[0].mxu0
      %v928 = vadd.f32 0.0, %v927
      %929 = vdwg.mxu0
      %930 = vmatprep.subr.bf16.mxu0 %v659
      %931 = vmatpush1.bf16.msra.mxu0 %v658
      %932 = vmatprep.subr.bf16.mxu0 %v671
      %933 = vmatpush1.bf16.msra.mxu0 %v670
      %934 = vmatprep.subr.bf16.mxu0 %v683
      %935 = vmatpush1.bf16.msra.mxu0 %v682
      %936 = vmatprep.subr.bf16.mxu0 %v695
      %937 = vmatpush1.bf16.msra.mxu0 %v694
      %938 = vmatprep.subr.bf16.mxu0 %v750
      %939 = vmatpush1.bf16.msra.mxu0 %v747
      %940 = vmatprep.subr.bf16.mxu0 0
      %941 = vmatpush1.bf16.msra.mxu0 0
      %942 = vmatprep.subr.bf16.mxu0 0
      %943 = vmatpush1.bf16.msra.mxu0 0
      %944 = vmatprep.subr.bf16.mxu0 0
      %945 = vmatpush1.bf16.msra.mxu0 0
      %946 = vmatprep.subr.bf16.mxu0 0
      %947 = vmatpush1.bf16.msra.mxu0 0
      %948 = vmatprep.subr.bf16.mxu0 0
      %949 = vmatpush1.bf16.msra.mxu0 0
      %950 = vmatprep.subr.bf16.mxu0 0
      %951 = vmatpush1.bf16.msra.mxu0 0
      %952 = vmatprep.subr.bf16.mxu0 0
      %953 = vmatpush1.bf16.msra.mxu0 0
      %954 = vmatprep.subr.bf16.mxu0 0
      %955 = vmatpush1.bf16.msra.mxu0 0
      %956 = vmatprep.subr.bf16.mxu0 0
      %957 = vmatpush1.bf16.msra.mxu0 0
      %958 = vmatprep.subr.bf16.mxu0 0
      %959 = vmatpush1.bf16.msra.mxu0 0
      %960 = vmatprep.subr.bf16.mxu0 0
      %961 = vmatpush1.bf16.msra.mxu0 0
      %962 = vmatprep.mubr.bf16.mxu0 0
      %963 = vmatmul.mubr.bf16.gmra.mrb[0].mxu0 %v719
      %v964 = vpop.f32.mrb[0].mxu0
      %v965 = vadd.f32 0.0, %v964
      %v966 = vpop.f32.mrb[0].mxu0
      %v967 = vadd.f32 0.0, %v966
      %v968 = vpop.f32.mrb[0].mxu0
      %v969 = vadd.f32 0.0, %v968
      %v970 = vpop.f32.mrb[0].mxu0
      %v971 = vadd.f32 0.0, %v970
      %972 = vdwg.mxu0
      %973 = vmatprep.subr.bf16.mxu0 %v661
      %974 = vmatpush1.bf16.msra.mxu0 %v660
      %975 = vmatprep.subr.bf16.mxu0 %v673
      %976 = vmatpush1.bf16.msra.mxu0 %v672
      %977 = vmatprep.subr.bf16.mxu0 %v685
      %978 = vmatpush1.bf16.msra.mxu0 %v684
      %979 = vmatprep.subr.bf16.mxu0 %v697
      %980 = vmatpush1.bf16.msra.mxu0 %v696
      %981 = vmatprep.subr.bf16.mxu0 %v756
      %982 = vmatpush1.bf16.msra.mxu0 %v753
      %983 = vmatprep.subr.bf16.mxu0 0
      %984 = vmatpush1.bf16.msra.mxu0 0
      %985 = vmatprep.subr.bf16.mxu0 0
      %986 = vmatpush1.bf16.msra.mxu0 0
      %987 = vmatprep.subr.bf16.mxu0 0
      %988 = vmatpush1.bf16.msra.mxu0 0
      %989 = vmatprep.subr.bf16.mxu0 0
      %990 = vmatpush1.bf16.msra.mxu0 0
      %991 = vmatprep.subr.bf16.mxu0 0
      %992 = vmatpush1.bf16.msra.mxu0 0
      %993 = vmatprep.subr.bf16.mxu0 0
      %994 = vmatpush1.bf16.msra.mxu0 0
      %995 = vmatprep.subr.bf16.mxu0 0
      %996 = vmatpush1.bf16.msra.mxu0 0
      %997 = vmatprep.subr.bf16.mxu0 0
      %998 = vmatpush1.bf16.msra.mxu0 0
      %999 = vmatprep.subr.bf16.mxu0 0
      %1000 = vmatpush1.bf16.msra.mxu0 0
      %1001 = vmatprep.subr.bf16.mxu0 0
      %1002 = vmatpush1.bf16.msra.mxu0 0
      %1003 = vmatprep.subr.bf16.mxu0 0
      %1004 = vmatpush1.bf16.msra.mxu0 0
      %1005 = vmatprep.mubr.bf16.mxu0 0
      %1006 = vmatmul.mubr.bf16.gmra.mrb[0].mxu0 %v719
      %v1007 = vpop.f32.mrb[0].mxu0
      %v1008 = vadd.f32 0.0, %v1007
      %v1009 = vpop.f32.mrb[0].mxu0
      %v1010 = vadd.f32 0.0, %v1009
      %v1011 = vpop.f32.mrb[0].mxu0
      %v1012 = vadd.f32 0.0, %v1011
      %v1013 = vpop.f32.mrb[0].mxu0
      %v1014 = vadd.f32 0.0, %v1013
      %1015 = vdwg.mxu0
      %v1016 = vld [vmem:[%s2] sm:$0xff]
      %v1017 = vld [vmem:[%s2 + $0x8] sm:$0xff]
      %1019 = vset.pattern.permute.xlu0 0
      %1020 = vperm.xlu0 %1019, %v1016
      %v1021 = vpop.permute.xlu0 %1020
      %1024 = vset.pattern.permute.xlu0 0
      %1025 = vperm.xlu0 %1024, %v1017
      %v1026 = vpop.permute.xlu0 %1025
      %v1028 = vmul.f32 %v793, %v1021
      %v1029 = vmul.f32 %v795, %v1021
      %v1030 = vmul.f32 %v836, %v1021
      %v1031 = vmul.f32 %v838, %v1021
      %v1032 = vmul.f32 %v879, %v1021
      %v1033 = vmul.f32 %v881, %v1021
      %v1034 = vmul.f32 %v922, %v1021
      %v1035 = vmul.f32 %v924, %v1021
      %v1036 = vmul.f32 %v965, %v1021
      %v1037 = vmul.f32 %v967, %v1021
      %v1038 = vmul.f32 %v1008, %v1021
      %v1039 = vmul.f32 %v1010, %v1021
      %v1040 = vmul.f32 %v797, %v1026
      %v1041 = vmul.f32 %v799, %v1026
      %v1042 = vmul.f32 %v840, %v1026
      %v1043 = vmul.f32 %v842, %v1026
      %v1044 = vmul.f32 %v883, %v1026
      %v1045 = vmul.f32 %v885, %v1026
      %v1046 = vmul.f32 %v926, %v1026
      %v1047 = vmul.f32 %v928, %v1026
      %v1048 = vmul.f32 %v969, %v1026
      %v1049 = vmul.f32 %v971, %v1026
      %v1050 = vmul.f32 %v1012, %v1026
      %v1051 = vmul.f32 %v1014, %v1026
      %v1052 = vld [vmem:[%s3] sm:$0xff]
      %v1053 = vld [vmem:[%s3 + $0x8] sm:$0xff]
      %1055 = vset.pattern.permute.xlu0 0
      %1056 = vperm.xlu0 %1055, %v1052
      %v1057 = vpop.permute.xlu0 %1056
      %1060 = vset.pattern.permute.xlu0 0
      %1061 = vperm.xlu0 %1060, %v1053
      %v1062 = vpop.permute.xlu0 %1061
      %v1064 = vadd.f32 %v1028, %v1057
      %v1065 = vadd.f32 %v1029, %v1057
      %v1066 = vadd.f32 %v1030, %v1057
      %v1067 = vadd.f32 %v1031, %v1057
      %v1068 = vadd.f32 %v1032, %v1057
      %v1069 = vadd.f32 %v1033, %v1057
      %v1070 = vadd.f32 %v1034, %v1057
      %v1071 = vadd.f32 %v1035, %v1057
      %v1072 = vadd.f32 %v1036, %v1057
      %v1073 = vadd.f32 %v1037, %v1057
      %v1074 = vadd.f32 %v1038, %v1057
      %v1075 = vadd.f32 %v1039, %v1057
      %v1076 = vadd.f32 %v1040, %v1062
      %v1077 = vadd.f32 %v1041, %v1062
      %v1078 = vadd.f32 %v1042, %v1062
      %v1079 = vadd.f32 %v1043, %v1062
      %v1080 = vadd.f32 %v1044, %v1062
      %v1081 = vadd.f32 %v1045, %v1062
      %v1082 = vadd.f32 %v1046, %v1062
      %v1083 = vadd.f32 %v1047, %v1062
      %v1084 = vadd.f32 %v1048, %v1062
      %v1085 = vadd.f32 %v1049, %v1062
      %v1086 = vadd.f32 %v1050, %v1062
      %v1087 = vadd.f32 %v1051, %v1062
      %v1088 = vmax.f32 %v1064, 0.0
      %v1089 = vmax.f32 %v1065, 0.0
      %v1090 = vmax.f32 %v1066, 0.0
      %v1091 = vmax.f32 %v1067, 0.0
      %v1092 = vmax.f32 %v1068, 0.0
      %v1093 = vmax.f32 %v1069, 0.0
      %v1094 = vmax.f32 %v1070, 0.0
      %v1095 = vmax.f32 %v1071, 0.0
      %v1096 = vmax.f32 %v1072, 0.0
      %v1097 = vmax.f32 %v1073, 0.0
      %v1098 = vmax.f32 %v1074, 0.0
      %v1099 = vmax.f32 %v1075, 0.0
      %v1100 = vmax.f32 %v1076, 0.0
      %v1101 = vmax.f32 %v1077, 0.0
      %v1102 = vmax.f32 %v1078, 0.0
      %v1103 = vmax.f32 %v1079, 0.0
      %v1104 = vmax.f32 %v1080, 0.0
      %v1105 = vmax.f32 %v1081, 0.0
      %v1106 = vmax.f32 %v1082, 0.0
      %v1107 = vmax.f32 %v1083, 0.0
      %v1108 = vmax.f32 %v1084, 0.0
      %v1109 = vmax.f32 %v1085, 0.0
      %v1110 = vmax.f32 %v1086, 0.0
      %v1111 = vmax.f32 %v1087, 0.0
      %v1112 = vpack.c.bf16 %v1100, %v1088
      %v1113 = vpack.c.bf16 %v1101, %v1089
      %v1114 = vpack.c.bf16 %v1102, %v1090
      %v1115 = vpack.c.bf16 %v1103, %v1091
      %v1116 = vpack.c.bf16 %v1104, %v1092
      %v1117 = vpack.c.bf16 %v1105, %v1093
      %v1118 = vpack.c.bf16 %v1106, %v1094
      %v1119 = vpack.c.bf16 %v1107, %v1095
      %v1120 = vpack.c.bf16 %v1108, %v1096
      %v1121 = vpack.c.bf16 %v1109, %v1097
      %v1122 = vpack.c.bf16 %v1110, %v1098
      %v1123 = vpack.c.bf16 %v1111, %v1099
      %v1124 = vld [vmem:[%s4] sm:$0xf]
      %v1125 = vld [vmem:[%s4 + $0x4] sm:$0xf]
      %v1126 = vld [vmem:[%s4 + $0x8] sm:$0xf]
      %v1127 = vld [vmem:[%s4 + $0xc] sm:$0xf]
      %v1128 = vld [vmem:[%s4 + $0x10] sm:$0xf]
      %v1129 = vld [vmem:[%s4 + $0x14] sm:$0xf]
      %v1130 = vld [vmem:[%s4 + $0x18] sm:$0xf]
      %v1131 = vld [vmem:[%s4 + $0x1c] sm:$0xf]
      %v1132 = vld [vmem:[%s4 + $0x20] sm:$0xf]
      %v1133 = vld [vmem:[%s4 + $0x24] sm:$0xf]
      %v1134 = vld [vmem:[%s4 + $0x28] sm:$0xf]
      %v1135 = vld [vmem:[%s4 + $0x2c] sm:$0xf]
      %v1136 = vld [vmem:[%s4 + $0x30] sm:$0xf]
      %v1137 = vld [vmem:[%s4 + $0x34] sm:$0xf]
      %v1138 = vld [vmem:[%s4 + $0x38] sm:$0xf]
      %v1139 = vld [vmem:[%s4 + $0x3c] sm:$0xf]
      %v1140 = vld [vmem:[%s4 + $0x40] sm:$0xf]
      %v1141 = vld [vmem:[%s4 + $0x44] sm:$0xf]
      %v1142 = vld [vmem:[%s4 + $0x48] sm:$0xf]
      %v1143 = vld [vmem:[%s4 + $0x4c] sm:$0xf]
      %v1144 = vld [vmem:[%s4 + $0x50] sm:$0xf]
      %v1145 = vld [vmem:[%s4 + $0x54] sm:$0xf]
      %v1146 = vld [vmem:[%s4 + $0x58] sm:$0xf]
      %v1147 = vld [vmem:[%s4 + $0x5c] sm:$0xf]
      %v1148 = vld [vmem:[%s4 + $0x60] sm:$0xf]
      %v1149 = vld [vmem:[%s4 + $0x64] sm:$0xf]
      %v1150 = vld [vmem:[%s4 + $0x68] sm:$0xf]
      %v1151 = vld [vmem:[%s4 + $0x6c] sm:$0xf]
      %v1152 = vld [vmem:[%s4 + $0x70] sm:$0xf]
      %v1153 = vld [vmem:[%s4 + $0x74] sm:$0xf]
      %v1154 = vld [vmem:[%s4 + $0x78] sm:$0xf]
      %v1155 = vld [vmem:[%s4 + $0x7c] sm:$0xf]
      %v1156 = vld [vmem:[%s4 + $0x80] sm:$0xf]
      %v1157 = vld [vmem:[%s4 + $0x84] sm:$0xf]
      %v1158 = vld [vmem:[%s4 + $0x88] sm:$0xf]
      %v1159 = vld [vmem:[%s4 + $0x8c] sm:$0xf]
      %v1160 = vld [vmem:[%s4 + $0x90] sm:$0xf]
      %v1161 = vld [vmem:[%s4 + $0x94] sm:$0xf]
      %v1162 = vld [vmem:[%s4 + $0x98] sm:$0xf]
      %v1163 = vld [vmem:[%s4 + $0x9c] sm:$0xf]
      %v1164 = vld [vmem:[%s4 + $0xa0] sm:$0xf]
      %v1165 = vld [vmem:[%s4 + $0xa4] sm:$0xf]
      %v1166 = vld [vmem:[%s4 + $0xa8] sm:$0xf]
      %v1167 = vld [vmem:[%s4 + $0xac] sm:$0xf]
      %v1168 = vld [vmem:[%s4 + $0xb0] sm:$0xf]
      %v1169 = vld [vmem:[%s4 + $0xb4] sm:$0xf]
      %v1170 = vld [vmem:[%s4 + $0xb8] sm:$0xf]
      %v1171 = vld [vmem:[%s4 + $0xbc] sm:$0xf]
      %v1220 = vunpack.c.l.b16 %v1124
      %v1221 = vunpack.c.l.b16 %v1125
      %v1222 = vunpack.c.l.b16 %v1126
      %v1223 = vunpack.c.l.b16 %v1127
      %v1224 = vunpack.c.l.b16 %v1128
      %v1225 = vunpack.c.l.b16 %v1129
      %v1226 = vunpack.c.l.b16 %v1130
      %v1227 = vunpack.c.l.b16 %v1131
      %v1228 = vunpack.c.l.b16 %v1132
      %v1229 = vunpack.c.l.b16 %v1133
      %v1230 = vunpack.c.l.b16 %v1134
      %v1231 = vunpack.c.l.b16 %v1135
      %v1232 = vunpack.c.l.b16 %v1136
      %v1233 = vunpack.c.l.b16 %v1137
      %v1234 = vunpack.c.l.b16 %v1138
      %v1235 = vunpack.c.l.b16 %v1139
      %v1236 = vunpack.c.l.b16 %v1140
      %v1237 = vunpack.c.l.b16 %v1141
      %v1238 = vunpack.c.l.b16 %v1142
      %v1239 = vunpack.c.l.b16 %v1143
      %v1240 = vunpack.c.l.b16 %v1144
      %v1241 = vunpack.c.l.b16 %v1145
      %v1242 = vunpack.c.l.b16 %v1146
      %v1243 = vunpack.c.l.b16 %v1147
      %v1244 = vunpack.c.l.b16 %v1148
      %v1245 = vunpack.c.l.b16 %v1149
      %v1246 = vunpack.c.l.b16 %v1150
      %v1247 = vunpack.c.l.b16 %v1151
      %v1248 = vunpack.c.l.b16 %v1152
      %v1249 = vunpack.c.l.b16 %v1153
      %v1250 = vunpack.c.l.b16 %v1154
      %v1251 = vunpack.c.l.b16 %v1155
      %v1252 = vunpack.c.l.b16 %v1156
      %v1253 = vunpack.c.l.b16 %v1157
      %v1254 = vunpack.c.l.b16 %v1158
      %v1255 = vunpack.c.l.b16 %v1159
      %v1256 = vunpack.c.l.b16 %v1160
      %v1257 = vunpack.c.l.b16 %v1161
      %v1258 = vunpack.c.l.b16 %v1162
      %v1259 = vunpack.c.l.b16 %v1163
      %v1260 = vunpack.c.l.b16 %v1164
      %v1261 = vunpack.c.l.b16 %v1165
      %v1262 = vunpack.c.l.b16 %v1166
      %v1263 = vunpack.c.l.b16 %v1167
      %v1264 = vunpack.c.l.b16 %v1168
      %v1265 = vunpack.c.l.b16 %v1169
      %v1266 = vunpack.c.l.b16 %v1170
      %v1267 = vunpack.c.l.b16 %v1171
      %v1268 = vpack.c.b16 %v1221, %v1220
      %v1269 = vpack.c.b16 %v1223, %v1222
      %v1270 = vpack.c.b16 %v1225, %v1224
      %v1271 = vpack.c.b16 %v1227, %v1226
      %v1272 = vpack.c.b16 %v1229, %v1228
      %v1273 = vpack.c.b16 %v1231, %v1230
      %v1274 = vpack.c.b16 %v1233, %v1232
      %v1275 = vpack.c.b16 %v1235, %v1234
      %v1276 = vpack.c.b16 %v1237, %v1236
      %v1277 = vpack.c.b16 %v1239, %v1238
      %v1278 = vpack.c.b16 %v1241, %v1240
      %v1279 = vpack.c.b16 %v1243, %v1242
      %v1280 = vpack.c.b16 %v1245, %v1244
      %v1281 = vpack.c.b16 %v1247, %v1246
      %v1282 = vpack.c.b16 %v1249, %v1248
      %v1283 = vpack.c.b16 %v1251, %v1250
      %v1284 = vpack.c.b16 %v1253, %v1252
      %v1285 = vpack.c.b16 %v1255, %v1254
      %v1286 = vpack.c.b16 %v1257, %v1256
      %v1287 = vpack.c.b16 %v1259, %v1258
      %v1288 = vpack.c.b16 %v1261, %v1260
      %v1289 = vpack.c.b16 %v1263, %v1262
      %v1290 = vpack.c.b16 %v1265, %v1264
      %v1291 = vpack.c.b16 %v1267, %v1266
      %1316 = vmatprep.subr.bf16.mxu0 0
      %1317 = vmatpush1.bf16.msra.mxu0 %v1268
      %1318 = vmatprep.subr.bf16.mxu0 0
      %1319 = vmatpush1.bf16.msra.mxu0 %v1269
      %1320 = vmatprep.subr.bf16.mxu0 0
      %1321 = vmatpush1.bf16.msra.mxu0 %v1270
      %1322 = vmatprep.subr.bf16.mxu0 0
      %1323 = vmatpush1.bf16.msra.mxu0 %v1271
      %1324 = vmatprep.subr.bf16.mxu0 0
      %1325 = vmatpush1.bf16.msra.mxu0 %v1272
      %1326 = vmatprep.subr.bf16.mxu0 0
      %1327 = vmatpush1.bf16.msra.mxu0 %v1273
      %1328 = vmatprep.subr.bf16.mxu0 0
      %1329 = vmatpush1.bf16.msra.mxu0 %v1274
      %1330 = vmatprep.subr.bf16.mxu0 0
      %1331 = vmatpush1.bf16.msra.mxu0 %v1275
      %1332 = vmatprep.subr.bf16.mxu0 0
      %1333 = vmatpush1.bf16.msra.mxu0 %v1276
      %1334 = vmatprep.subr.bf16.mxu0 0
      %1335 = vmatpush1.bf16.msra.mxu0 %v1277
      %1336 = vmatprep.subr.bf16.mxu0 0
      %1337 = vmatpush1.bf16.msra.mxu0 %v1278
      %1338 = vmatprep.subr.bf16.mxu0 0
      %1339 = vmatpush1.bf16.msra.mxu0 %v1279
      %1340 = vmatprep.subr.bf16.mxu0 0
      %1341 = vmatpush1.bf16.msra.mxu0 %v1280
      %1342 = vmatprep.subr.bf16.mxu0 0
      %1343 = vmatpush1.bf16.msra.mxu0 %v1281
      %1344 = vmatprep.subr.bf16.mxu0 0
      %1345 = vmatpush1.bf16.msra.mxu0 %v1282
      %1346 = vmatprep.subr.bf16.mxu0 0
      %1347 = vmatpush1.bf16.msra.mxu0 %v1283
      %1348 = vmatprep.mubr.bf16.mxu0 %v1113
      %1349 = vmatmul.mubr.bf16.gmra.mrb[0].mxu0 %v1112
      %v1350 = vpop.f32.mrb[0].mxu0
      %v1351 = vadd.f32 0.0, %v1350
      %v1352 = vpop.f32.mrb[0].mxu0
      %v1353 = vpop.f32.mrb[0].mxu0
      %v1354 = vadd.f32 0.0, %v1353
      %v1355 = vpop.f32.mrb[0].mxu0
      %1356 = vdwg.mxu0
      %1357 = vmatprep.subr.bf16.mxu0 0
      %1358 = vmatpush1.bf16.msra.mxu0 %v1284
      %1359 = vmatprep.subr.bf16.mxu0 0
      %1360 = vmatpush1.bf16.msra.mxu0 %v1285
      %1361 = vmatprep.subr.bf16.mxu0 0
      %1362 = vmatpush1.bf16.msra.mxu0 %v1286
      %1363 = vmatprep.subr.bf16.mxu0 0
      %1364 = vmatpush1.bf16.msra.mxu0 %v1287
      %1365 = vmatprep.subr.bf16.mxu0 0
      %1366 = vmatpush1.bf16.msra.mxu0 %v1288
      %1367 = vmatprep.subr.bf16.mxu0 0
      %1368 = vmatpush1.bf16.msra.mxu0 %v1289
      %1369 = vmatprep.subr.bf16.mxu0 0
      %1370 = vmatpush1.bf16.msra.mxu0 %v1290
      %1371 = vmatprep.subr.bf16.mxu0 0
      %1372 = vmatpush1.bf16.msra.mxu0 %v1291
      %1373 = vmatprep.subr.bf16.mxu0 0
      %1374 = vmatpush1.bf16.msra.mxu0 0
      %1375 = vmatprep.subr.bf16.mxu0 0
      %1376 = vmatpush1.bf16.msra.mxu0 0
      %1377 = vmatprep.subr.bf16.mxu0 0
      %1378 = vmatpush1.bf16.msra.mxu0 0
      %1379 = vmatprep.subr.bf16.mxu0 0
      %1380 = vmatpush1.bf16.msra.mxu0 0
      %1381 = vmatprep.subr.bf16.mxu0 0
      %1382 = vmatpush1.bf16.msra.mxu0 0
      %1383 = vmatprep.subr.bf16.mxu0 0
      %1384 = vmatpush1.bf16.msra.mxu0 0
      %1385 = vmatprep.subr.bf16.mxu0 0
      %1386 = vmatpush1.bf16.msra.mxu0 0
      %1387 = vmatprep.subr.bf16.mxu0 0
      %1388 = vmatpush1.bf16.msra.mxu0 0
      %1389 = vmatprep.mubr.bf16.mxu0 0
      %1390 = vmatmul.mubr.bf16.gmra.mrb[0].mxu0 %v1114
      %v1391 = vpop.f32.mrb[0].mxu0
      %v1392 = vadd.f32 %v1351, %v1391
      %v1393 = vpop.f32.mrb[0].mxu0
      %v1394 = vpop.f32.mrb[0].mxu0
      %v1395 = vadd.f32 %v1354, %v1394
      %v1396 = vpop.f32.mrb[0].mxu0
      %1397 = vdwg.mxu0
      %1398 = vmatprep.subr.bf16.mxu0 0
      %1399 = vmatpush1.bf16.msra.mxu0 %v1268
      %1400 = vmatprep.subr.bf16.mxu0 0
      %1401 = vmatpush1.bf16.msra.mxu0 %v1269
      %1402 = vmatprep.subr.bf16.mxu0 0
      %1403 = vmatpush1.bf16.msra.mxu0 %v1270
      %1404 = vmatprep.subr.bf16.mxu0 0
      %1405 = vmatpush1.bf16.msra.mxu0 %v1271
      %1406 = vmatprep.subr.bf16.mxu0 0
      %1407 = vmatpush1.bf16.msra.mxu0 %v1272
      %1408 = vmatprep.subr.bf16.mxu0 0
      %1409 = vmatpush1.bf16.msra.mxu0 %v1273
      %1410 = vmatprep.subr.bf16.mxu0 0
      %1411 = vmatpush1.bf16.msra.mxu0 %v1274
      %1412 = vmatprep.subr.bf16.mxu0 0
      %1413 = vmatpush1.bf16.msra.mxu0 %v1275
      %1414 = vmatprep.subr.bf16.mxu0 0
      %1415 = vmatpush1.bf16.msra.mxu0 %v1276
      %1416 = vmatprep.subr.bf16.mxu0 0
      %1417 = vmatpush1.bf16.msra.mxu0 %v1277
      %1418 = vmatprep.subr.bf16.mxu0 0
      %1419 = vmatpush1.bf16.msra.mxu0 %v1278
      %1420 = vmatprep.subr.bf16.mxu0 0
      %1421 = vmatpush1.bf16.msra.mxu0 %v1279
      %1422 = vmatprep.subr.bf16.mxu0 0
      %1423 = vmatpush1.bf16.msra.mxu0 %v1280
      %1424 = vmatprep.subr.bf16.mxu0 0
      %1425 = vmatpush1.bf16.msra.mxu0 %v1281
      %1426 = vmatprep.subr.bf16.mxu0 0
      %1427 = vmatpush1.bf16.msra.mxu0 %v1282
      %1428 = vmatprep.subr.bf16.mxu0 0
      %1429 = vmatpush1.bf16.msra.mxu0 %v1283
      %1430 = vmatprep.mubr.bf16.mxu0 %v1116
      %1431 = vmatmul.mubr.bf16.gmra.mrb[0].mxu0 %v1115
      %v1432 = vpop.f32.mrb[0].mxu0
      %v1433 = vadd.f32 0.0, %v1432
      %v1434 = vpop.f32.mrb[0].mxu0
      %v1435 = vpop.f32.mrb[0].mxu0
      %v1436 = vadd.f32 0.0, %v1435
      %v1437 = vpop.f32.mrb[0].mxu0
      %1438 = vdwg.mxu0
      %1439 = vmatprep.subr.bf16.mxu0 0
      %1440 = vmatpush1.bf16.msra.mxu0 %v1284
      %1441 = vmatprep.subr.bf16.mxu0 0
      %1442 = vmatpush1.bf16.msra.mxu0 %v1285
      %1443 = vmatprep.subr.bf16.mxu0 0
      %1444 = vmatpush1.bf16.msra.mxu0 %v1286
      %1445 = vmatprep.subr.bf16.mxu0 0
      %1446 = vmatpush1.bf16.msra.mxu0 %v1287
      %1447 = vmatprep.subr.bf16.mxu0 0
      %1448 = vmatpush1.bf16.msra.mxu0 %v1288
      %1449 = vmatprep.subr.bf16.mxu0 0
      %1450 = vmatpush1.bf16.msra.mxu0 %v1289
      %1451 = vmatprep.subr.bf16.mxu0 0
      %1452 = vmatpush1.bf16.msra.mxu0 %v1290
      %1453 = vmatprep.subr.bf16.mxu0 0
      %1454 = vmatpush1.bf16.msra.mxu0 %v1291
      %1455 = vmatprep.subr.bf16.mxu0 0
      %1456 = vmatpush1.bf16.msra.mxu0 0
      %1457 = vmatprep.subr.bf16.mxu0 0
      %1458 = vmatpush1.bf16.msra.mxu0 0
      %1459 = vmatprep.subr.bf16.mxu0 0
      %1460 = vmatpush1.bf16.msra.mxu0 0
      %1461 = vmatprep.subr.bf16.mxu0 0
      %1462 = vmatpush1.bf16.msra.mxu0 0
      %1463 = vmatprep.subr.bf16.mxu0 0
      %1464 = vmatpush1.bf16.msra.mxu0 0
      %1465 = vmatprep.subr.bf16.mxu0 0
      %1466 = vmatpush1.bf16.msra.mxu0 0
      %1467 = vmatprep.subr.bf16.mxu0 0
      %1468 = vmatpush1.bf16.msra.mxu0 0
      %1469 = vmatprep.subr.bf16.mxu0 0
      %1470 = vmatpush1.bf16.msra.mxu0 0
      %1471 = vmatprep.mubr.bf16.mxu0 0
      %1472 = vmatmul.mubr.bf16.gmra.mrb[0].mxu0 %v1117
      %v1473 = vpop.f32.mrb[0].mxu0
      %v1474 = vadd.f32 %v1433, %v1473
      %v1475 = vpop.f32.mrb[0].mxu0
      %v1476 = vpop.f32.mrb[0].mxu0
      %v1477 = vadd.f32 %v1436, %v1476
      %v1478 = vpop.f32.mrb[0].mxu0
      %1479 = vdwg.mxu0
      %1480 = vmatprep.subr.bf16.mxu0 0
      %1481 = vmatpush1.bf16.msra.mxu0 %v1268
      %1482 = vmatprep.subr.bf16.mxu0 0
      %1483 = vmatpush1.bf16.msra.mxu0 %v1269
      %1484 = vmatprep.subr.bf16.mxu0 0
      %1485 = vmatpush1.bf16.msra.mxu0 %v1270
      %1486 = vmatprep.subr.bf16.mxu0 0
      %1487 = vmatpush1.bf16.msra.mxu0 %v1271
      %1488 = vmatprep.subr.bf16.mxu0 0
      %1489 = vmatpush1.bf16.msra.mxu0 %v1272
      %1490 = vmatprep.subr.bf16.mxu0 0
      %1491 = vmatpush1.bf16.msra.mxu0 %v1273
      %1492 = vmatprep.subr.bf16.mxu0 0
      %1493 = vmatpush1.bf16.msra.mxu0 %v1274
      %1494 = vmatprep.subr.bf16.mxu0 0
      %1495 = vmatpush1.bf16.msra.mxu0 %v1275
      %1496 = vmatprep.subr.bf16.mxu0 0
      %1497 = vmatpush1.bf16.msra.mxu0 %v1276
      %1498 = vmatprep.subr.bf16.mxu0 0
      %1499 = vmatpush1.bf16.msra.mxu0 %v1277
      %1500 = vmatprep.subr.bf16.mxu0 0
      %1501 = vmatpush1.bf16.msra.mxu0 %v1278
      %1502 = vmatprep.subr.bf16.mxu0 0
      %1503 = vmatpush1.bf16.msra.mxu0 %v1279
      %1504 = vmatprep.subr.bf16.mxu0 0
      %1505 = vmatpush1.bf16.msra.mxu0 %v1280
      %1506 = vmatprep.subr.bf16.mxu0 0
      %1507 = vmatpush1.bf16.msra.mxu0 %v1281
      %1508 = vmatprep.subr.bf16.mxu0 0
      %1509 = vmatpush1.bf16.msra.mxu0 %v1282
      %1510 = vmatprep.subr.bf16.mxu0 0
      %1511 = vmatpush1.bf16.msra.mxu0 %v1283
      %1512 = vmatprep.mubr.bf16.mxu0 %v1119
      %1513 = vmatmul.mubr.bf16.gmra.mrb[0].mxu0 %v1118
      %v1514 = vpop.f32.mrb[0].mxu0
      %v1515 = vadd.f32 0.0, %v1514
      %v1516 = vpop.f32.mrb[0].mxu0
      %v1517 = vpop.f32.mrb[0].mxu0
      %v1518 = vadd.f32 0.0, %v1517
      %v1519 = vpop.f32.mrb[0].mxu0
      %1520 = vdwg.mxu0
      %1521 = vmatprep.subr.bf16.mxu0 0
      %1522 = vmatpush1.bf16.msra.mxu0 %v1284
      %1523 = vmatprep.subr.bf16.mxu0 0
      %1524 = vmatpush1.bf16.msra.mxu0 %v1285
      %1525 = vmatprep.subr.bf16.mxu0 0
      %1526 = vmatpush1.bf16.msra.mxu0 %v1286
      %1527 = vmatprep.subr.bf16.mxu0 0
      %1528 = vmatpush1.bf16.msra.mxu0 %v1287
      %1529 = vmatprep.subr.bf16.mxu0 0
      %1530 = vmatpush1.bf16.msra.mxu0 %v1288
      %1531 = vmatprep.subr.bf16.mxu0 0
      %1532 = vmatpush1.bf16.msra.mxu0 %v1289
      %1533 = vmatprep.subr.bf16.mxu0 0
      %1534 = vmatpush1.bf16.msra.mxu0 %v1290
      %1535 = vmatprep.subr.bf16.mxu0 0
      %1536 = vmatpush1.bf16.msra.mxu0 %v1291
      %1537 = vmatprep.subr.bf16.mxu0 0
      %1538 = vmatpush1.bf16.msra.mxu0 0
      %1539 = vmatprep.subr.bf16.mxu0 0
      %1540 = vmatpush1.bf16.msra.mxu0 0
      %1541 = vmatprep.subr.bf16.mxu0 0
      %1542 = vmatpush1.bf16.msra.mxu0 0
      %1543 = vmatprep.subr.bf16.mxu0 0
      %1544 = vmatpush1.bf16.msra.mxu0 0
      %1545 = vmatprep.subr.bf16.mxu0 0
      %1546 = vmatpush1.bf16.msra.mxu0 0
      %1547 = vmatprep.subr.bf16.mxu0 0
      %1548 = vmatpush1.bf16.msra.mxu0 0
      %1549 = vmatprep.subr.bf16.mxu0 0
      %1550 = vmatpush1.bf16.msra.mxu0 0
      %1551 = vmatprep.subr.bf16.mxu0 0
      %1552 = vmatpush1.bf16.msra.mxu0 0
      %1553 = vmatprep.mubr.bf16.mxu0 0
      %1554 = vmatmul.mubr.bf16.gmra.mrb[0].mxu0 %v1120
      %v1555 = vpop.f32.mrb[0].mxu0
      %v1556 = vadd.f32 %v1515, %v1555
      %v1557 = vpop.f32.mrb[0].mxu0
      %v1558 = vpop.f32.mrb[0].mxu0
      %v1559 = vadd.f32 %v1518, %v1558
      %v1560 = vpop.f32.mrb[0].mxu0
      %1561 = vdwg.mxu0
      %1562 = vmatprep.subr.bf16.mxu0 0
      %1563 = vmatpush1.bf16.msra.mxu0 %v1268
      %1564 = vmatprep.subr.bf16.mxu0 0
      %1565 = vmatpush1.bf16.msra.mxu0 %v1269
      %1566 = vmatprep.subr.bf16.mxu0 0
      %1567 = vmatpush1.bf16.msra.mxu0 %v1270
      %1568 = vmatprep.subr.bf16.mxu0 0
      %1569 = vmatpush1.bf16.msra.mxu0 %v1271
      %1570 = vmatprep.subr.bf16.mxu0 0
      %1571 = vmatpush1.bf16.msra.mxu0 %v1272
      %1572 = vmatprep.subr.bf16.mxu0 0
      %1573 = vmatpush1.bf16.msra.mxu0 %v1273
      %1574 = vmatprep.subr.bf16.mxu0 0
      %1575 = vmatpush1.bf16.msra.mxu0 %v1274
      %1576 = vmatprep.subr.bf16.mxu0 0
      %1577 = vmatpush1.bf16.msra.mxu0 %v1275
      %1578 = vmatprep.subr.bf16.mxu0 0
      %1579 = vmatpush1.bf16.msra.mxu0 %v1276
      %1580 = vmatprep.subr.bf16.mxu0 0
      %1581 = vmatpush1.bf16.msra.mxu0 %v1277
      %1582 = vmatprep.subr.bf16.mxu0 0
      %1583 = vmatpush1.bf16.msra.mxu0 %v1278
      %1584 = vmatprep.subr.bf16.mxu0 0
      %1585 = vmatpush1.bf16.msra.mxu0 %v1279
      %1586 = vmatprep.subr.bf16.mxu0 0
      %1587 = vmatpush1.bf16.msra.mxu0 %v1280
      %1588 = vmatprep.subr.bf16.mxu0 0
      %1589 = vmatpush1.bf16.msra.mxu0 %v1281
      %1590 = vmatprep.subr.bf16.mxu0 0
      %1591 = vmatpush1.bf16.msra.mxu0 %v1282
      %1592 = vmatprep.subr.bf16.mxu0 0
      %1593 = vmatpush1.bf16.msra.mxu0 %v1283
      %1594 = vmatprep.mubr.bf16.mxu0 %v1122
      %1595 = vmatmul.mubr.bf16.gmra.mrb[0].mxu0 %v1121
      %v1596 = vpop.f32.mrb[0].mxu0
      %v1597 = vadd.f32 0.0, %v1596
      %v1598 = vpop.f32.mrb[0].mxu0
      %v1599 = vpop.f32.mrb[0].mxu0
      %v1600 = vadd.f32 0.0, %v1599
      %v1601 = vpop.f32.mrb[0].mxu0
      %1602 = vdwg.mxu0
      %1603 = vmatprep.subr.bf16.mxu0 0
      %1604 = vmatpush1.bf16.msra.mxu0 %v1284
      %1605 = vmatprep.subr.bf16.mxu0 0
      %1606 = vmatpush1.bf16.msra.mxu0 %v1285
      %1607 = vmatprep.subr.bf16.mxu0 0
      %1608 = vmatpush1.bf16.msra.mxu0 %v1286
      %1609 = vmatprep.subr.bf16.mxu0 0
      %1610 = vmatpush1.bf16.msra.mxu0 %v1287
      %1611 = vmatprep.subr.bf16.mxu0 0
      %1612 = vmatpush1.bf16.msra.mxu0 %v1288
      %1613 = vmatprep.subr.bf16.mxu0 0
      %1614 = vmatpush1.bf16.msra.mxu0 %v1289
      %1615 = vmatprep.subr.bf16.mxu0 0
      %1616 = vmatpush1.bf16.msra.mxu0 %v1290
      %1617 = vmatprep.subr.bf16.mxu0 0
      %1618 = vmatpush1.bf16.msra.mxu0 %v1291
      %1619 = vmatprep.subr.bf16.mxu0 0
      %1620 = vmatpush1.bf16.msra.mxu0 0
      %1621 = vmatprep.subr.bf16.mxu0 0
      %1622 = vmatpush1.bf16.msra.mxu0 0
      %1623 = vmatprep.subr.bf16.mxu0 0
      %1624 = vmatpush1.bf16.msra.mxu0 0
      %1625 = vmatprep.subr.bf16.mxu0 0
      %1626 = vmatpush1.bf16.msra.mxu0 0
      %1627 = vmatprep.subr.bf16.mxu0 0
      %1628 = vmatpush1.bf16.msra.mxu0 0
      %1629 = vmatprep.subr.bf16.mxu0 0
      %1630 = vmatpush1.bf16.msra.mxu0 0
      %1631 = vmatprep.subr.bf16.mxu0 0
      %1632 = vmatpush1.bf16.msra.mxu0 0
      %1633 = vmatprep.subr.bf16.mxu0 0
      %1634 = vmatpush1.bf16.msra.mxu0 0
      %1635 = vmatprep.mubr.bf16.mxu0 0
      %1636 = vmatmul.mubr.bf16.gmra.mrb[0].mxu0 %v1123
      %v1637 = vpop.f32.mrb[0].mxu0
      %v1638 = vadd.f32 %v1597, %v1637
      %v1639 = vpop.f32.mrb[0].mxu0
      %v1640 = vpop.f32.mrb[0].mxu0
      %v1641 = vadd.f32 %v1600, %v1640
      %v1642 = vpop.f32.mrb[0].mxu0
      %1643 = vdwg.mxu0
      %1644 = vrot.lane.b32.xlu0 %v1392, 11
      %v1645 = vpop.permute.xlu0 %1644
      %1646 = vrot.lane.b32.xlu0 %v1395, 11
      %v1647 = vpop.permute.xlu0 %1646
      %1648 = vrot.lane.b32.xlu0 %v1474, 11
      %v1649 = vpop.permute.xlu0 %1648
      %1650 = vrot.lane.b32.xlu0 %v1477, 11
      %v1651 = vpop.permute.xlu0 %1650
      %1652 = vrot.lane.b32.xlu0 %v1556, 11
      %v1653 = vpop.permute.xlu0 %1652
      %1654 = vrot.lane.b32.xlu0 %v1559, 11
      %v1655 = vpop.permute.xlu0 %1654
      %1656 = vrot.lane.b32.xlu0 %v1638, 11
      %v1657 = vpop.permute.xlu0 %1656
      %1658 = vrot.lane.b32.xlu0 %v1641, 11
      %v1659 = vpop.permute.xlu0 %1658
      %vm1660 = vcmp.lt.s32.totalorder %v377, 11
      %v1661 = vsel %vm1660, %v1653, %v1657
      %v1662 = vsel %vm1660, %v1655, %v1659
      %v1663 = vsel %vm1660, %v1649, %v1653
      %v1664 = vsel %vm1660, %v1651, %v1655
      %v1665 = vsel %vm1660, %v1645, %v1649
      %v1666 = vsel %vm1660, %v1647, %v1651
      %v1667 = vsel %vm1660, %v1657, %v1645
      %v1668 = vsel %vm1660, %v1659, %v1647
      %1669 = vrot.lane.b32.xlu0 %v1392, 10
      %v1670 = vpop.permute.xlu0 %1669
      %1671 = vrot.lane.b32.xlu0 %v1395, 10
      %v1672 = vpop.permute.xlu0 %1671
      %1673 = vrot.lane.b32.xlu0 %v1474, 10
      %v1674 = vpop.permute.xlu0 %1673
      %1675 = vrot.lane.b32.xlu0 %v1477, 10
      %v1676 = vpop.permute.xlu0 %1675
      %1677 = vrot.lane.b32.xlu0 %v1556, 10
      %v1678 = vpop.permute.xlu0 %1677
      %1679 = vrot.lane.b32.xlu0 %v1559, 10
      %v1680 = vpop.permute.xlu0 %1679
      %1681 = vrot.lane.b32.xlu0 %v1638, 10
      %v1682 = vpop.permute.xlu0 %1681
      %1683 = vrot.lane.b32.xlu0 %v1641, 10
      %v1684 = vpop.permute.xlu0 %1683
      %vm1685 = vcmp.lt.s32.totalorder %v377, 10
      %v1686 = vsel %vm1685, %v1678, %v1682
      %v1687 = vsel %vm1685, %v1680, %v1684
      %v1688 = vsel %vm1685, %v1674, %v1678
      %v1689 = vsel %vm1685, %v1676, %v1680
      %v1690 = vsel %vm1685, %v1670, %v1674
      %v1691 = vsel %vm1685, %v1672, %v1676
      %v1692 = vsel %vm1685, %v1682, %v1670
      %v1693 = vsel %vm1685, %v1684, %v1672
      %1694 = vrot.lane.b32.xlu0 %v1392, 9
      %v1695 = vpop.permute.xlu0 %1694
      %1696 = vrot.lane.b32.xlu0 %v1395, 9
      %v1697 = vpop.permute.xlu0 %1696
      %1698 = vrot.lane.b32.xlu0 %v1474, 9
      %v1699 = vpop.permute.xlu0 %1698
      %1700 = vrot.lane.b32.xlu0 %v1477, 9
      %v1701 = vpop.permute.xlu0 %1700
      %1702 = vrot.lane.b32.xlu0 %v1556, 9
      %v1703 = vpop.permute.xlu0 %1702
      %1704 = vrot.lane.b32.xlu0 %v1559, 9
      %v1705 = vpop.permute.xlu0 %1704
      %1706 = vrot.lane.b32.xlu0 %v1638, 9
      %v1707 = vpop.permute.xlu0 %1706
      %1708 = vrot.lane.b32.xlu0 %v1641, 9
      %v1709 = vpop.permute.xlu0 %1708
      %vm1710 = vcmp.lt.s32.totalorder %v377, 9
      %v1711 = vsel %vm1710, %v1703, %v1707
      %v1712 = vsel %vm1710, %v1705, %v1709
      %v1713 = vsel %vm1710, %v1699, %v1703
      %v1714 = vsel %vm1710, %v1701, %v1705
      %v1715 = vsel %vm1710, %v1695, %v1699
      %v1716 = vsel %vm1710, %v1697, %v1701
      %v1717 = vsel %vm1710, %v1707, %v1695
      %v1718 = vsel %vm1710, %v1709, %v1697
      %1719 = vrot.lane.b32.xlu0 %v1392, 1
      %v1720 = vpop.permute.xlu0 %1719
      %1721 = vrot.lane.b32.xlu0 %v1395, 1
      %v1722 = vpop.permute.xlu0 %1721
      %1723 = vrot.lane.b32.xlu0 %v1474, 1
      %v1724 = vpop.permute.xlu0 %1723
      %1725 = vrot.lane.b32.xlu0 %v1477, 1
      %v1726 = vpop.permute.xlu0 %1725
      %1727 = vrot.lane.b32.xlu0 %v1556, 1
      %v1728 = vpop.permute.xlu0 %1727
      %1729 = vrot.lane.b32.xlu0 %v1559, 1
      %v1730 = vpop.permute.xlu0 %1729
      %1731 = vrot.lane.b32.xlu0 %v1638, 1
      %v1732 = vpop.permute.xlu0 %1731
      %1733 = vrot.lane.b32.xlu0 %v1641, 1
      %v1734 = vpop.permute.xlu0 %1733
      %v1735 = vsel %vm489, %v1728, %v1732
      %v1736 = vsel %vm489, %v1730, %v1734
      %v1737 = vsel %vm489, %v1724, %v1728
      %v1738 = vsel %vm489, %v1726, %v1730
      %v1739 = vsel %vm489, %v1720, %v1724
      %v1740 = vsel %vm489, %v1722, %v1726
      %v1741 = vsel %vm489, %v1732, %v1720
      %v1742 = vsel %vm489, %v1734, %v1722
      %1743 = vrot.lane.b32.xlu0 %v1392, 127
      %v1744 = vpop.permute.xlu0 %1743
      %1745 = vrot.lane.b32.xlu0 %v1395, 127
      %v1746 = vpop.permute.xlu0 %1745
      %1747 = vrot.lane.b32.xlu0 %v1474, 127
      %v1748 = vpop.permute.xlu0 %1747
      %1749 = vrot.lane.b32.xlu0 %v1477, 127
      %v1750 = vpop.permute.xlu0 %1749
      %1751 = vrot.lane.b32.xlu0 %v1556, 127
      %v1752 = vpop.permute.xlu0 %1751
      %1753 = vrot.lane.b32.xlu0 %v1559, 127
      %v1754 = vpop.permute.xlu0 %1753
      %1755 = vrot.lane.b32.xlu0 %v1638, 127
      %v1756 = vpop.permute.xlu0 %1755
      %1757 = vrot.lane.b32.xlu0 %v1641, 127
      %v1758 = vpop.permute.xlu0 %1757
      %v1759 = vsel %vm526, %v1752, %v1756
      %v1760 = vsel %vm526, %v1754, %v1758
      %v1761 = vsel %vm526, %v1748, %v1752
      %v1762 = vsel %vm526, %v1750, %v1754
      %v1763 = vsel %vm526, %v1744, %v1748
      %v1764 = vsel %vm526, %v1746, %v1750
      %v1765 = vsel %vm526, %v1756, %v1744
      %v1766 = vsel %vm526, %v1758, %v1746
      %1767 = vrot.lane.b32.xlu0 %v1392, 119
      %v1768 = vpop.permute.xlu0 %1767
      %1769 = vrot.lane.b32.xlu0 %v1395, 119
      %v1770 = vpop.permute.xlu0 %1769
      %1771 = vrot.lane.b32.xlu0 %v1474, 119
      %v1772 = vpop.permute.xlu0 %1771
      %1773 = vrot.lane.b32.xlu0 %v1477, 119
      %v1774 = vpop.permute.xlu0 %1773
      %1775 = vrot.lane.b32.xlu0 %v1556, 119
      %v1776 = vpop.permute.xlu0 %1775
      %1777 = vrot.lane.b32.xlu0 %v1559, 119
      %v1778 = vpop.permute.xlu0 %1777
      %1779 = vrot.lane.b32.xlu0 %v1638, 119
      %v1780 = vpop.permute.xlu0 %1779
      %1781 = vrot.lane.b32.xlu0 %v1641, 119
      %v1782 = vpop.permute.xlu0 %1781
      %vm1783 = vcmp.lt.s32.totalorder %v377, 119
      %v1784 = vsel %vm1783, %v1776, %v1780
      %v1785 = vsel %vm1783, %v1778, %v1782
      %v1786 = vsel %vm1783, %v1772, %v1776
      %v1787 = vsel %vm1783, %v1774, %v1778
      %v1788 = vsel %vm1783, %v1768, %v1772
      %v1789 = vsel %vm1783, %v1770, %v1774
      %v1790 = vsel %vm1783, %v1780, %v1768
      %v1791 = vsel %vm1783, %v1782, %v1770
      %1792 = vrot.lane.b32.xlu0 %v1392, 118
      %v1793 = vpop.permute.xlu0 %1792
      %1794 = vrot.lane.b32.xlu0 %v1395, 118
      %v1795 = vpop.permute.xlu0 %1794
      %1796 = vrot.lane.b32.xlu0 %v1474, 118
      %v1797 = vpop.permute.xlu0 %1796
      %1798 = vrot.lane.b32.xlu0 %v1477, 118
      %v1799 = vpop.permute.xlu0 %1798
      %1800 = vrot.lane.b32.xlu0 %v1556, 118
      %v1801 = vpop.permute.xlu0 %1800
      %1802 = vrot.lane.b32.xlu0 %v1559, 118
      %v1803 = vpop.permute.xlu0 %1802
      %1804 = vrot.lane.b32.xlu0 %v1638, 118
      %v1805 = vpop.permute.xlu0 %1804
      %1806 = vrot.lane.b32.xlu0 %v1641, 118
      %v1807 = vpop.permute.xlu0 %1806
      %vm1808 = vcmp.lt.s32.totalorder %v377, 118
      %v1809 = vsel %vm1808, %v1801, %v1805
      %v1810 = vsel %vm1808, %v1803, %v1807
      %v1811 = vsel %vm1808, %v1797, %v1801
      %v1812 = vsel %vm1808, %v1799, %v1803
      %v1813 = vsel %vm1808, %v1793, %v1797
      %v1814 = vsel %vm1808, %v1795, %v1799
      %v1815 = vsel %vm1808, %v1805, %v1793
      %v1816 = vsel %vm1808, %v1807, %v1795
      %1817 = vrot.lane.b32.xlu0 %v1392, 117
      %v1818 = vpop.permute.xlu0 %1817
      %1819 = vrot.lane.b32.xlu0 %v1395, 117
      %v1820 = vpop.permute.xlu0 %1819
      %1821 = vrot.lane.b32.xlu0 %v1474, 117
      %v1822 = vpop.permute.xlu0 %1821
      %1823 = vrot.lane.b32.xlu0 %v1477, 117
      %v1824 = vpop.permute.xlu0 %1823
      %1825 = vrot.lane.b32.xlu0 %v1556, 117
      %v1826 = vpop.permute.xlu0 %1825
      %1827 = vrot.lane.b32.xlu0 %v1559, 117
      %v1828 = vpop.permute.xlu0 %1827
      %1829 = vrot.lane.b32.xlu0 %v1638, 117
      %v1830 = vpop.permute.xlu0 %1829
      %1831 = vrot.lane.b32.xlu0 %v1641, 117
      %v1832 = vpop.permute.xlu0 %1831
      %vm1833 = vcmp.lt.s32.totalorder %v377, 117
      %v1834 = vsel %vm1833, %v1826, %v1830
      %v1835 = vsel %vm1833, %v1828, %v1832
      %v1836 = vsel %vm1833, %v1822, %v1826
      %v1837 = vsel %vm1833, %v1824, %v1828
      %v1838 = vsel %vm1833, %v1818, %v1822
      %v1839 = vsel %vm1833, %v1820, %v1824
      %v1840 = vsel %vm1833, %v1830, %v1818
      %v1841 = vsel %vm1833, %v1832, %v1820
      %v1842 = vpack.c.bf16 %v1668, %v1667
      %v1843 = vpack.c.bf16 %v1666, %v1665
      %v1844 = vpack.c.bf16 %v1664, %v1663
      %v1845 = vpack.c.bf16 %v1662, %v1661
      %v1846 = vpack.c.bf16 %v1693, %v1692
      %v1847 = vpack.c.bf16 %v1691, %v1690
      %v1848 = vpack.c.bf16 %v1689, %v1688
      %v1849 = vpack.c.bf16 %v1687, %v1686
      %v1850 = vpack.c.bf16 %v1718, %v1717
      %v1851 = vpack.c.bf16 %v1716, %v1715
      %v1852 = vpack.c.bf16 %v1714, %v1713
      %v1853 = vpack.c.bf16 %v1712, %v1711
      %v1854 = vpack.c.bf16 %v1742, %v1741
      %v1855 = vpack.c.bf16 %v1740, %v1739
      %v1856 = vpack.c.bf16 %v1738, %v1737
      %v1857 = vpack.c.bf16 %v1736, %v1735
      %v1858 = vpack.c.bf16 %v1395, %v1392
      %v1859 = vpack.c.bf16 %v1477, %v1474
      %v1860 = vpack.c.bf16 %v1559, %v1556
      %v1861 = vpack.c.bf16 %v1641, %v1638
      %v1862 = vpack.c.bf16 %v1764, %v1763
      %v1863 = vpack.c.bf16 %v1762, %v1761
      %v1864 = vpack.c.bf16 %v1760, %v1759
      %v1865 = vpack.c.bf16 %v1766, %v1765
      %v1866 = vpack.c.bf16 %v1789, %v1788
      %v1867 = vpack.c.bf16 %v1787, %v1786
      %v1868 = vpack.c.bf16 %v1785, %v1784
      %v1869 = vpack.c.bf16 %v1791, %v1790
      %v1870 = vpack.c.bf16 %v1814, %v1813
      %v1871 = vpack.c.bf16 %v1812, %v1811
      %v1872 = vpack.c.bf16 %v1810, %v1809
      %v1873 = vpack.c.bf16 %v1816, %v1815
      %v1874 = vpack.c.bf16 %v1839, %v1838
      %v1875 = vpack.c.bf16 %v1837, %v1836
      %v1876 = vpack.c.bf16 %v1835, %v1834
      %v1877 = vpack.c.bf16 %v1841, %v1840
      %v1878 = vld [vmem:[%s5] sm:$0xff]
      %v1879 = vld [vmem:[%s5 + $0x8] sm:$0xff]
      %v1882 = vunpack.c.l.b16 %v1878
      %v1883 = vunpack.c.h.b16 %v1878
      %v1884 = vunpack.c.l.b16 %v1879
      %v1885 = vunpack.c.h.b16 %v1879
      %v1886 = vpack.c.b16 %v1884, %v1882
      %v1887 = vpack.c.b16 %v1885, %v1883
      %vm1889 = vcmask 130048
      %v1891 = vsel %vm1889, %v1887, 0
      %1893 = vmatprep.subr.bf16.mxu0 %v1843
      %1894 = vmatpush1.bf16.msra.mxu0 %v1842
      %1895 = vmatprep.subr.bf16.mxu0 %v1847
      %1896 = vmatpush1.bf16.msra.mxu0 %v1846
      %1897 = vmatprep.subr.bf16.mxu0 %v1851
      %1898 = vmatpush1.bf16.msra.mxu0 %v1850
      %1899 = vmatprep.subr.bf16.mxu0 %v1855
      %1900 = vmatpush1.bf16.msra.mxu0 %v1854
      %1901 = vmatprep.subr.bf16.mxu0 %v1859
      %1902 = vmatpush1.bf16.msra.mxu0 %v1858
      %1903 = vmatprep.subr.bf16.mxu0 %v1863
      %1904 = vmatpush1.bf16.msra.mxu0 %v1862
      %1905 = vmatprep.subr.bf16.mxu0 %v1867
      %1906 = vmatpush1.bf16.msra.mxu0 %v1866
      %1907 = vmatprep.subr.bf16.mxu0 %v1871
      %1908 = vmatpush1.bf16.msra.mxu0 %v1870
      %1909 = vmatprep.subr.bf16.mxu0 %v1875
      %1910 = vmatpush1.bf16.msra.mxu0 %v1874
      %1911 = vmatprep.subr.bf16.mxu0 0
      %1912 = vmatpush1.bf16.msra.mxu0 0
      %1913 = vmatprep.subr.bf16.mxu0 0
      %1914 = vmatpush1.bf16.msra.mxu0 0
      %1915 = vmatprep.subr.bf16.mxu0 0
      %1916 = vmatpush1.bf16.msra.mxu0 0
      %1917 = vmatprep.subr.bf16.mxu0 0
      %1918 = vmatpush1.bf16.msra.mxu0 0
      %1919 = vmatprep.subr.bf16.mxu0 0
      %1920 = vmatpush1.bf16.msra.mxu0 0
      %1921 = vmatprep.subr.bf16.mxu0 0
      %1922 = vmatpush1.bf16.msra.mxu0 0
      %1923 = vmatprep.subr.bf16.mxu0 0
      %1924 = vmatpush1.bf16.msra.mxu0 0
      %1925 = vmatprep.mubr.bf16.mxu0 %v1891
      %1926 = vmatmul.mubr.bf16.gmra.mrb[0].mxu0 %v1886
      %v1927 = vpop.f32.mrb[0].mxu0
      %v1928 = vadd.f32 0.0, %v1927
      %v1929 = vpop.f32.mrb[0].mxu0
      %v1930 = vadd.f32 0.0, %v1929
      %v1931 = vpop.f32.mrb[0].mxu0
      %v1932 = vadd.f32 0.0, %v1931
      %v1933 = vpop.f32.mrb[0].mxu0
      %v1934 = vadd.f32 0.0, %v1933
      %1935 = vdwg.mxu0
      %1936 = vmatprep.subr.bf16.mxu0 %v1845
      %1937 = vmatpush1.bf16.msra.mxu0 %v1844
      %1938 = vmatprep.subr.bf16.mxu0 %v1849
      %1939 = vmatpush1.bf16.msra.mxu0 %v1848
      %1940 = vmatprep.subr.bf16.mxu0 %v1853
      %1941 = vmatpush1.bf16.msra.mxu0 %v1852
      %1942 = vmatprep.subr.bf16.mxu0 %v1857
      %1943 = vmatpush1.bf16.msra.mxu0 %v1856
      %1944 = vmatprep.subr.bf16.mxu0 %v1861
      %1945 = vmatpush1.bf16.msra.mxu0 %v1860
      %1946 = vmatprep.subr.bf16.mxu0 %v1865
      %1947 = vmatpush1.bf16.msra.mxu0 %v1864
      %1948 = vmatprep.subr.bf16.mxu0 %v1869
      %1949 = vmatpush1.bf16.msra.mxu0 %v1868
      %1950 = vmatprep.subr.bf16.mxu0 %v1873
      %1951 = vmatpush1.bf16.msra.mxu0 %v1872
      %1952 = vmatprep.subr.bf16.mxu0 %v1877
      %1953 = vmatpush1.bf16.msra.mxu0 %v1876
      %1954 = vmatprep.subr.bf16.mxu0 0
      %1955 = vmatpush1.bf16.msra.mxu0 0
      %1956 = vmatprep.subr.bf16.mxu0 0
      %1957 = vmatpush1.bf16.msra.mxu0 0
      %1958 = vmatprep.subr.bf16.mxu0 0
      %1959 = vmatpush1.bf16.msra.mxu0 0
      %1960 = vmatprep.subr.bf16.mxu0 0
      %1961 = vmatpush1.bf16.msra.mxu0 0
      %1962 = vmatprep.subr.bf16.mxu0 0
      %1963 = vmatpush1.bf16.msra.mxu0 0
      %1964 = vmatprep.subr.bf16.mxu0 0
      %1965 = vmatpush1.bf16.msra.mxu0 0
      %1966 = vmatprep.subr.bf16.mxu0 0
      %1967 = vmatpush1.bf16.msra.mxu0 0
      %1968 = vmatprep.mubr.bf16.mxu0 %v1891
      %1969 = vmatmul.mubr.bf16.gmra.mrb[0].mxu0 %v1886
      %v1970 = vpop.f32.mrb[0].mxu0
      %v1971 = vadd.f32 0.0, %v1970
      %v1972 = vpop.f32.mrb[0].mxu0
      %v1973 = vadd.f32 0.0, %v1972
      %v1974 = vpop.f32.mrb[0].mxu0
      %v1975 = vadd.f32 0.0, %v1974
      %v1976 = vpop.f32.mrb[0].mxu0
      %v1977 = vadd.f32 0.0, %v1976
      %1978 = vdwg.mxu0
      %v1979 = vld [vmem:[%s6] sm:$0xff]
      %v1980 = vld [vmem:[%s6 + $0x8] sm:$0xff]
      %1982 = vset.pattern.permute.xlu0 0
      %1983 = vperm.xlu0 %1982, %v1979
      %v1984 = vpop.permute.xlu0 %1983
      %1987 = vset.pattern.permute.xlu0 0
      %1988 = vperm.xlu0 %1987, %v1980
      %v1989 = vpop.permute.xlu0 %1988
      %v1991 = vmul.f32 %v1928, %v1984
      %v1992 = vmul.f32 %v1930, %v1984
      %v1993 = vmul.f32 %v1971, %v1984
      %v1994 = vmul.f32 %v1973, %v1984
      %v1995 = vmul.f32 %v1932, %v1989
      %v1996 = vmul.f32 %v1934, %v1989
      %v1997 = vmul.f32 %v1975, %v1989
      %v1998 = vmul.f32 %v1977, %v1989
      %v1999 = vld [vmem:[%s7] sm:$0xff]
      %v2000 = vld [vmem:[%s7 + $0x8] sm:$0xff]
      %2002 = vset.pattern.permute.xlu0 0
      %2003 = vperm.xlu0 %2002, %v1999
      %v2004 = vpop.permute.xlu0 %2003
      %2007 = vset.pattern.permute.xlu0 0
      %2008 = vperm.xlu0 %2007, %v2000
      %v2009 = vpop.permute.xlu0 %2008
      %v2011 = vadd.f32 %v1991, %v2004
      %v2012 = vadd.f32 %v1992, %v2004
      %v2013 = vadd.f32 %v1993, %v2004
      %v2014 = vadd.f32 %v1994, %v2004
      %v2015 = vadd.f32 %v1995, %v2009
      %v2016 = vadd.f32 %v1996, %v2009
      %v2017 = vadd.f32 %v1997, %v2009
      %v2018 = vadd.f32 %v1998, %v2009
      %v2019 = vmax.f32 %v2011, 0.0
      %v2020 = vmax.f32 %v2012, 0.0
      %v2021 = vmax.f32 %v2013, 0.0
      %v2022 = vmax.f32 %v2014, 0.0
      %v2023 = vmax.f32 %v2015, 0.0
      %v2024 = vmax.f32 %v2016, 0.0
      %v2025 = vmax.f32 %v2017, 0.0
      %v2026 = vmax.f32 %v2018, 0.0
      %v2027 = vld [vmem:[%s8] sm:$0xf]
      %v2029 = vlaneseq
      %v2030 = vshrl.u32 %v2029, 7
      %v2031 = vsub.s32 0, %v2030
      %v2032 = vrot.slane %v2027, %v2031
      %v2033 = vlaneseq
      %v2034 = vshrl.u32 %v2033, 7
      %v2035 = vsub.s32 1, %v2034
      %v2036 = vrot.slane %v2027, %v2035
      %v2037 = vlaneseq
      %v2038 = vshrl.u32 %v2037, 7
      %v2039 = vsub.s32 2, %v2038
      %v2040 = vrot.slane %v2027, %v2039
      %v2041 = vlaneseq
      %v2042 = vshrl.u32 %v2041, 7
      %v2043 = vsub.s32 3, %v2042
      %v2044 = vrot.slane %v2027, %v2043
      %v2049 = vmul.f32 %v2019, %v2032
      %v2050 = vmul.f32 %v2020, %v2036
      %v2051 = vmul.f32 %v2021, %v2040
      %v2052 = vmul.f32 %v2022, %v2044
      %v2053 = vmul.f32 %v2023, %v2032
      %v2054 = vmul.f32 %v2024, %v2036
      %v2055 = vmul.f32 %v2025, %v2040
      %v2056 = vmul.f32 %v2026, %v2044
      %v2057 = vpack.c.bf16 %v2053, %v2049
      %v2058 = vpack.c.bf16 %v2054, %v2050
      %v2059 = vpack.c.bf16 %v2055, %v2051
      %v2060 = vpack.c.bf16 %v2056, %v2052
      %v2065 = vunpack.c.l.b16 %v2057
      %v2066 = vunpack.c.l.b16 %v2058
      %v2067 = vunpack.c.l.b16 %v2059
      %v2068 = vunpack.c.l.b16 %v2060
      %v2069 = vunpack.c.h.b16 %v2057
      %v2070 = vunpack.c.h.b16 %v2058
      %v2071 = vunpack.c.h.b16 %v2059
      %v2072 = vunpack.c.h.b16 %v2060
      %v2073 = vpack.c.b16 %v2066, %v2065
      %v2074 = vpack.c.b16 %v2068, %v2067
      %v2075 = vpack.c.b16 %v2070, %v2069
      %v2076 = vpack.c.b16 %v2072, %v2071
      %2081 = vst [vmem:[%s332] sm:$0xff] %v2073
      %2082 = vst [vmem:[%s332 + $0x8] sm:$0xff] %v2074
      %2083 = vst [vmem:[%s332 + $0x10] sm:$0xff] %v2075
      %2084 = vst [vmem:[%s332 + $0x18] sm:$0xff] %v2076
      %p2085 = scmp.lt.s32.totalorder %s20, 1
      %s2086 = scalar_select %p2085, %s20, 1
      %s2087 = smul.addr %s2086, 8
      %s2088 = smul.addr %s2087, 4
      %s2089 = scalar_lea.vmem %s9, %s2088
      // Predicated region
      $region57: #{_lambda_.5} parent=55 // pred_check
        %p2090 = pneg %p232
      $region58: #{_lambda_.5} parent=55 // pred_check_branch
        %2092 = sbr.rel (%p2090) target = $region60
      $region59: #{_lambda_.5} parent=55 // pred_region
        _
      $region60: #{_lambda_.5} parent=55 // pred_fallthru
        _
    $region56: #{_lambda_.5} parent=5 // pred_fallthru
      _
    %p2093 = scmp.le.s32.totalorder 2, %s15
    // Predicated region
    $region61: #{_lambda_.5} parent=5 // pred_check
      %p2094 = pneg %p2093
    $region62: #{_lambda_.5} parent=5 // pred_check_branch
      %2096 = sbr.rel (%p2094) target = $region64
    $region63: #{_lambda_.5} parent=5 // pred_region
      %s2097 = ssub.s32 %s15, 2
      // Predicated region
      $region65: #{_lambda_.5} parent=63 // pred_check
        %p2098 = pneg %p238
      $region66: #{_lambda_.5} parent=63 // pred_check_branch
        %2100 = sbr.rel (%p2098) target = $region68
      $region67: #{_lambda_.5} parent=63 // pred_region
        %p2101 = scmp.lt.s32.totalorder %s21, 1
        %s2102 = scalar_select %p2101, %s21, 1
        %s2103 = smul.addr %s2102, 8
        %s2104 = smul.addr %s2103, 4
        %s2105 = scalar_lea.vmem %s9, %s2104
      $region68: #{_lambda_.5} parent=63 // pred_fallthru
        _
    $region64: #{_lambda_.5} parent=5 // pred_fallthru
      _
  $region6: #{_lambda_.5} parent=0 // loop_footer
    %s19 = sadd.s32 1, %s15
  $region7: #{_lambda_.5} parent=0 // loop_footer_branch
    %14 = sbr.rel target = $region3
  $region8: #{_lambda_.5} parent=0 // loop_exit
    _

// kernel: _lambda_.4
$region0: #{_lambda_.4}
  #allocation0 [shape = 'u32[]', space=smem, size = 0x4, offset = 0x4, fixed_abs, tag = 'smem constant byte address 0x4 - core index']
  #allocation1 [shape = 'u32[144,128]{1,0:T(1,128)}', space=vmem, size = 0x12000, scoped, tag = 'internal scratch']
  %s0 = inlined_call_operand.vmem [shape: bf16[2,8,2304], index: 0, kind: input, shape index: {}]
  %s1 = inlined_call_operand.vmem [shape: bf16[8,216], index: 1, kind: input, shape index: {}]
  %s2 = inlined_call_operand.vmem [shape: f32[8,1], index: 2, kind: input, shape index: {}, may-alias: {2,5}]
  %s3 = inlined_call_operand.vmem [shape: f32[8,1], index: 3, kind: input, shape index: {}]
  %s4 = inlined_call_operand.vmem [shape: bf16[8,216], index: 4, kind: input, shape index: {}]
  %s5 = inlined_call_operand.vmem [shape: f32[8,1], index: 5, kind: input, shape index: {}, may-alias: {2,5}]
  %s6 = inlined_call_operand.vmem [shape: f32[8,1], index: 6, kind: input, shape index: {}]
  %s7 = inlined_call_operand.vmem [shape: f32[1,2304], index: 7, kind: input, shape index: {}]
  %s8 = inlined_call_operand.vmem [shape: bf16[2,8,1536], index: 8, kind: output, shape index: {}]
  %s9 = sld [smem:[#allocation0]]
  $region65: #{_lambda_.4} parent=0
    _
  %s11 = ssub.s32 1, %s9
  %s12 = scalar_select 0, %s11, %s9
  loop: start=0, step=1, limit=4
  $region2: #{_lambda_.4} parent=0 // loop_pre_header
    _
  $region3: #{_lambda_.4} parent=0 // loop_header
    %s14 = sphi 0, %s18
    %p15 = scmp.ge.s32.totalorder %s14, 4
    %s24 = sphi 0, %s26
    %s27 = sphi 0, %s24
    %s28 = sphi 0, %s27
    %s44 = sphi 0, %s28
    %s48 = sphi 0, %s48
    %s50 = sphi 0, %s48
    %s51 = sphi 0, %s50
    %s65 = sphi 0, %s51
    %s69 = sphi 0, %s69
    %s71 = sphi 0, %s69
    %s72 = sphi 0, %s71
    %s86 = sphi 0, %s72
    %s90 = sphi 0, %s90
    %s92 = sphi 0, %s90
    %s93 = sphi 0, %s92
    %s107 = sphi 0, %s93
    %s111 = sphi 0, %s111
    %s113 = sphi 0, %s111
    %s114 = sphi 0, %s113
    %s128 = sphi 0, %s114
    %s132 = sphi 0, %s132
    %s134 = sphi 0, %s132
    %s135 = sphi 0, %s134
    %s149 = sphi 0, %s135
    %s153 = sphi 0, %s153
    %s155 = sphi 0, %s153
    %s156 = sphi 0, %s155
    %s170 = sphi 0, %s156
    %s174 = sphi 0, %s174
    %s176 = sphi 0, %s174
    %s177 = sphi 0, %s176
    %s191 = sphi 0, %s177
    %s197 = sphi 0, %s199
    %s200 = sphi 0, %s197
    %s201 = sphi 0, %s200
    %s217 = sphi 0, %s201
  $region4: #{_lambda_.4} parent=0 // loop_header_branch
    %17 = sbr.rel (%p15) target = $region8
  $region5: #{_lambda_.4} parent=0 // loop_body
    %s19 = ssub.s32 %s14, 1
    %s20 = ssub.s32 %s14, 2
    %s21 = sadd.s32 %s14, 1
    %s22 = ssub.s32 %s14, %s21
    %p23 = scmp.eq.s32.totalorder %s22, 0
    %s25 = sadd.s32 %s24, 1
    %s26 = scalar_select %p23, %s24, %s25
    %p29 = pneg %p23
    %p30 = scmp.eq.s32.totalorder %s14, 1
    %p31 = por %p29, %p30
    %p32 = scmp.ne.s32.totalorder %s24, %s27
    %p33 = scmp.eq.s32.totalorder %s14, 0
    %p34 = por %p32, %p33
    %p35 = scmp.ne.s32.totalorder %s24, %s27
    %p36 = scmp.eq.s32.totalorder %s19, 1
    %p37 = por %p35, %p36
    %p38 = scmp.ne.s32.totalorder %s27, %s28
    %p39 = scmp.eq.s32.totalorder %s19, 0
    %p40 = por %p38, %p39
    %p41 = scmp.ne.s32.totalorder %s27, %s28
    %p42 = scmp.eq.s32.totalorder %s20, 1
    %p43 = por %p41, %p42
    %p45 = scmp.ne.s32.totalorder %s28, %s44
    %p46 = scmp.eq.s32.totalorder %s20, 0
    %p47 = por %p45, %p46
    %s49 = sadd.s32 %s48, 1
    %p52 = scmp.eq.s32.totalorder %s14, 1
    %p53 = scmp.ne.s32.totalorder %s48, %s50
    %p54 = scmp.eq.s32.totalorder %s14, 0
    %p55 = por %p53, %p54
    %p56 = scmp.ne.s32.totalorder %s48, %s50
    %p57 = scmp.eq.s32.totalorder %s19, 1
    %p58 = por %p56, %p57
    %p59 = scmp.ne.s32.totalorder %s50, %s51
    %p60 = scmp.eq.s32.totalorder %s19, 0
    %p61 = por %p59, %p60
    %p62 = scmp.ne.s32.totalorder %s50, %s51
    %p63 = scmp.eq.s32.totalorder %s20, 1
    %p64 = por %p62, %p63
    %p66 = scmp.ne.s32.totalorder %s51, %s65
    %p67 = scmp.eq.s32.totalorder %s20, 0
    %p68 = por %p66, %p67
    %s70 = sadd.s32 %s69, 1
    %p73 = scmp.eq.s32.totalorder %s14, 1
    %p74 = scmp.ne.s32.totalorder %s69, %s71
    %p75 = scmp.eq.s32.totalorder %s14, 0
    %p76 = por %p74, %p75
    %p77 = scmp.ne.s32.totalorder %s69, %s71
    %p78 = scmp.eq.s32.totalorder %s19, 1
    %p79 = por %p77, %p78
    %p80 = scmp.ne.s32.totalorder %s71, %s72
    %p81 = scmp.eq.s32.totalorder %s19, 0
    %p82 = por %p80, %p81
    %p83 = scmp.ne.s32.totalorder %s71, %s72
    %p84 = scmp.eq.s32.totalorder %s20, 1
    %p85 = por %p83, %p84
    %p87 = scmp.ne.s32.totalorder %s72, %s86
    %p88 = scmp.eq.s32.totalorder %s20, 0
    %p89 = por %p87, %p88
    %s91 = sadd.s32 %s90, 1
    %p94 = scmp.eq.s32.totalorder %s14, 1
    %p95 = scmp.ne.s32.totalorder %s90, %s92
    %p96 = scmp.eq.s32.totalorder %s14, 0
    %p97 = por %p95, %p96
    %p98 = scmp.ne.s32.totalorder %s90, %s92
    %p99 = scmp.eq.s32.totalorder %s19, 1
    %p100 = por %p98, %p99
    %p101 = scmp.ne.s32.totalorder %s92, %s93
    %p102 = scmp.eq.s32.totalorder %s19, 0
    %p103 = por %p101, %p102
    %p104 = scmp.ne.s32.totalorder %s92, %s93
    %p105 = scmp.eq.s32.totalorder %s20, 1
    %p106 = por %p104, %p105
    %p108 = scmp.ne.s32.totalorder %s93, %s107
    %p109 = scmp.eq.s32.totalorder %s20, 0
    %p110 = por %p108, %p109
    %s112 = sadd.s32 %s111, 1
    %p115 = scmp.eq.s32.totalorder %s14, 1
    %p116 = scmp.ne.s32.totalorder %s111, %s113
    %p117 = scmp.eq.s32.totalorder %s14, 0
    %p118 = por %p116, %p117
    %p119 = scmp.ne.s32.totalorder %s111, %s113
    %p120 = scmp.eq.s32.totalorder %s19, 1
    %p121 = por %p119, %p120
    %p122 = scmp.ne.s32.totalorder %s113, %s114
    %p123 = scmp.eq.s32.totalorder %s19, 0
    %p124 = por %p122, %p123
    %p125 = scmp.ne.s32.totalorder %s113, %s114
    %p126 = scmp.eq.s32.totalorder %s20, 1
    %p127 = por %p125, %p126
    %p129 = scmp.ne.s32.totalorder %s114, %s128
    %p130 = scmp.eq.s32.totalorder %s20, 0
    %p131 = por %p129, %p130
    %s133 = sadd.s32 %s132, 1
    %p136 = scmp.eq.s32.totalorder %s14, 1
    %p137 = scmp.ne.s32.totalorder %s132, %s134
    %p138 = scmp.eq.s32.totalorder %s14, 0
    %p139 = por %p137, %p138
    %p140 = scmp.ne.s32.totalorder %s132, %s134
    %p141 = scmp.eq.s32.totalorder %s19, 1
    %p142 = por %p140, %p141
    %p143 = scmp.ne.s32.totalorder %s134, %s135
    %p144 = scmp.eq.s32.totalorder %s19, 0
    %p145 = por %p143, %p144
    %p146 = scmp.ne.s32.totalorder %s134, %s135
    %p147 = scmp.eq.s32.totalorder %s20, 1
    %p148 = por %p146, %p147
    %p150 = scmp.ne.s32.totalorder %s135, %s149
    %p151 = scmp.eq.s32.totalorder %s20, 0
    %p152 = por %p150, %p151
    %s154 = sadd.s32 %s153, 1
    %p157 = scmp.eq.s32.totalorder %s14, 1
    %p158 = scmp.ne.s32.totalorder %s153, %s155
    %p159 = scmp.eq.s32.totalorder %s14, 0
    %p160 = por %p158, %p159
    %p161 = scmp.ne.s32.totalorder %s153, %s155
    %p162 = scmp.eq.s32.totalorder %s19, 1
    %p163 = por %p161, %p162
    %p164 = scmp.ne.s32.totalorder %s155, %s156
    %p165 = scmp.eq.s32.totalorder %s19, 0
    %p166 = por %p164, %p165
    %p167 = scmp.ne.s32.totalorder %s155, %s156
    %p168 = scmp.eq.s32.totalorder %s20, 1
    %p169 = por %p167, %p168
    %p171 = scmp.ne.s32.totalorder %s156, %s170
    %p172 = scmp.eq.s32.totalorder %s20, 0
    %p173 = por %p171, %p172
    %s175 = sadd.s32 %s174, 1
    %p178 = scmp.eq.s32.totalorder %s14, 1
    %p179 = scmp.ne.s32.totalorder %s174, %s176
    %p180 = scmp.eq.s32.totalorder %s14, 0
    %p181 = por %p179, %p180
    %p182 = scmp.ne.s32.totalorder %s174, %s176
    %p183 = scmp.eq.s32.totalorder %s19, 1
    %p184 = por %p182, %p183
    %p185 = scmp.ne.s32.totalorder %s176, %s177
    %p186 = scmp.eq.s32.totalorder %s19, 0
    %p187 = por %p185, %p186
    %p188 = scmp.ne.s32.totalorder %s176, %s177
    %p189 = scmp.eq.s32.totalorder %s20, 1
    %p190 = por %p188, %p189
    %p192 = scmp.ne.s32.totalorder %s177, %s191
    %p193 = scmp.eq.s32.totalorder %s20, 0
    %p194 = por %p192, %p193
    %s195 = ssub.s32 %s14, %s21
    %p196 = scmp.eq.s32.totalorder %s195, 0
    %s198 = sadd.s32 %s197, 1
    %s199 = scalar_select %p196, %s197, %s198
    %p202 = pneg %p196
    %p203 = scmp.eq.s32.totalorder %s14, 1
    %p204 = por %p202, %p203
    %p205 = scmp.ne.s32.totalorder %s197, %s200
    %p206 = scmp.eq.s32.totalorder %s14, 0
    %p207 = por %p205, %p206
    %p208 = scmp.ne.s32.totalorder %s197, %s200
    %p209 = scmp.eq.s32.totalorder %s19, 1
    %p210 = por %p208, %p209
    %p211 = scmp.ne.s32.totalorder %s200, %s201
    %p212 = scmp.eq.s32.totalorder %s19, 0
    %p213 = por %p211, %p212
    %p214 = scmp.ne.s32.totalorder %s200, %s201
    %p215 = scmp.eq.s32.totalorder %s20, 1
    %p216 = por %p214, %p215
    %p218 = scmp.ne.s32.totalorder %s201, %s217
    %p219 = scmp.eq.s32.totalorder %s20, 0
    %p220 = por %p218, %p219
    %p221 = scmp.le.s32.totalorder 1, %s14
    %p222 = scmp.lt.s32.totalorder %s14, 3
    %p223 = pnand %p221, %p222
    %p224 = pneg %p223
    // Predicated region
    $region9: #{_lambda_.4} parent=5 // pred_check
      _
    $region10: #{_lambda_.4} parent=5 // pred_check_branch
      %226 = sbr.rel (%p223) target = $region12
    $region11: #{_lambda_.4} parent=5 // pred_region
      %s227 = ssub.s32 %s14, 1
      // Predicated region
      $region13: #{_lambda_.4} parent=11 // pred_check
        %p228 = pneg %p61
      $region14: #{_lambda_.4} parent=11 // pred_check_branch
        %230 = sbr.rel (%p228) target = $region16
      $region15: #{_lambda_.4} parent=11 // pred_region
        _
      $region16: #{_lambda_.4} parent=11 // pred_fallthru
        _
      // Predicated region
      $region17: #{_lambda_.4} parent=11 // pred_check
        %p231 = pneg %p82
      $region18: #{_lambda_.4} parent=11 // pred_check_branch
        %233 = sbr.rel (%p231) target = $region20
      $region19: #{_lambda_.4} parent=11 // pred_region
        _
      $region20: #{_lambda_.4} parent=11 // pred_fallthru
        _
      // Predicated region
      $region21: #{_lambda_.4} parent=11 // pred_check
        %p234 = pneg %p103
      $region22: #{_lambda_.4} parent=11 // pred_check_branch
        %236 = sbr.rel (%p234) target = $region24
      $region23: #{_lambda_.4} parent=11 // pred_region
        _
      $region24: #{_lambda_.4} parent=11 // pred_fallthru
        _
      // Predicated region
      $region25: #{_lambda_.4} parent=11 // pred_check
        %p237 = pneg %p124
      $region26: #{_lambda_.4} parent=11 // pred_check_branch
        %239 = sbr.rel (%p237) target = $region28
      $region27: #{_lambda_.4} parent=11 // pred_region
        _
      $region28: #{_lambda_.4} parent=11 // pred_fallthru
        _
      // Predicated region
      $region29: #{_lambda_.4} parent=11 // pred_check
        %p240 = pneg %p145
      $region30: #{_lambda_.4} parent=11 // pred_check_branch
        %242 = sbr.rel (%p240) target = $region32
      $region31: #{_lambda_.4} parent=11 // pred_region
        _
      $region32: #{_lambda_.4} parent=11 // pred_fallthru
        _
      // Predicated region
      $region33: #{_lambda_.4} parent=11 // pred_check
        %p243 = pneg %p166
      $region34: #{_lambda_.4} parent=11 // pred_check_branch
        %245 = sbr.rel (%p243) target = $region36
      $region35: #{_lambda_.4} parent=11 // pred_region
        _
      $region36: #{_lambda_.4} parent=11 // pred_fallthru
        _
      // Predicated region
      $region37: #{_lambda_.4} parent=11 // pred_check
        %p246 = pneg %p187
      $region38: #{_lambda_.4} parent=11 // pred_check_branch
        %248 = sbr.rel (%p246) target = $region40
      $region39: #{_lambda_.4} parent=11 // pred_region
        _
      $region40: #{_lambda_.4} parent=11 // pred_fallthru
        _
    $region12: #{_lambda_.4} parent=5 // pred_fallthru
      _
    %p249 = scmp.lt.s32.totalorder %s14, 2
    // Predicated region
    $region41: #{_lambda_.4} parent=5 // pred_check
      %p250 = pneg %p249
    $region42: #{_lambda_.4} parent=5 // pred_check_branch
      %252 = sbr.rel (%p250) target = $region44
    $region43: #{_lambda_.4} parent=5 // pred_region
      // Predicated region
      $region45: #{_lambda_.4} parent=43 // pred_check
        %p253 = pneg %p34
      $region46: #{_lambda_.4} parent=43 // pred_check_branch
        %255 = sbr.rel (%p253) target = $region48
      $region47: #{_lambda_.4} parent=43 // pred_region
        %p256 = scmp.lt.s32.totalorder %s14, 1
        %s257 = scalar_select %p256, %s14, 1
        %s258 = smul.addr %s257, 18
        %s259 = smul.addr %s258, 4
        %s260 = scalar_lea.vmem %s0, %s259
      $region48: #{_lambda_.4} parent=43 // pred_fallthru
        _
    $region44: #{_lambda_.4} parent=5 // pred_fallthru
      _
    %p261 = scmp.le.s32.totalorder 1, %s14
    %p262 = scmp.lt.s32.totalorder %s14, 3
    %p263 = pnand %p261, %p262
    %p264 = pneg %p263
    // Predicated region
    $region49: #{_lambda_.4} parent=5 // pred_check
      _
    $region50: #{_lambda_.4} parent=5 // pred_check_branch
      %266 = sbr.rel (%p263) target = $region52
    $region51: #{_lambda_.4} parent=5 // pred_region
      %s267 = ssub.s32 %s14, 1
      %p268 = scmp.lt.s32.totalorder %s19, 1
      %s269 = scalar_select %p268, %s19, 1
      %s270 = smul.addr %s269, 18
      %s271 = smul.addr %s270, 4
      %s272 = scalar_lea.vmem %s0, %s271
      %p273 = pneg %p40
      %p274 = pneg %p37
      %p275 = pneg %p61
      %p276 = pneg %p58
      %p277 = pneg %p82
      %p278 = pneg %p79
      %p279 = pneg %p103
      %p280 = pneg %p100
      %p281 = pneg %p124
      %p282 = pneg %p121
      %p283 = pneg %p145
      %p284 = pneg %p142
      %p285 = pneg %p166
      %p286 = pneg %p163
      %p287 = pneg %p187
      %p288 = pneg %p184
      %p289 = pneg %p213
      %p290 = pneg %p210
      %p291 = scmp.lt.s32.totalorder %s19, 1
      %s292 = scalar_select %p291, %s19, 1
      %s293 = smul.addr %s292, 12
      %s294 = smul.addr %s293, 4
      %s295 = scalar_lea.vmem %s8, %s294
      %p296 = scmp.lt.s32.totalorder %s19, 1
      %s297 = scalar_select %p296, %s19, 1
      %s298 = smul.addr %s297, 18
      %s299 = smul.addr %s298, 4
      %s300 = scalar_lea.vmem %s0, %s299
      %p301 = scmp.lt.s32.totalorder %s19, 1
      %s302 = scalar_select %p301, %s19, 1
      %s303 = smul.addr %s302, 12
      %s304 = smul.addr %s303, 4
      %s305 = scalar_lea.vmem %s8, %s304
      %v307 = vld [vmem:[%s7] sm:$0xff]
      %v308 = vld [vmem:[%s7 + $0x8] sm:$0xff]
      %v309 = vld [vmem:[%s7 + $0x10] sm:$0x3]
      %v310 = vld [vmem:[%s300] sm:$0xff]
      %v311 = vld [vmem:[%s300 + $0x8] sm:$0xff]
      %v312 = vld [vmem:[%s300 + $0x10] sm:$0xff]
      %v313 = vld [vmem:[%s300 + $0x18] sm:$0xff]
      %v314 = vld [vmem:[%s300 + $0x20] sm:$0xff]
      %v315 = vld [vmem:[%s300 + $0x28] sm:$0xff]
      %v316 = vld [vmem:[%s300 + $0x30] sm:$0xff]
      %v317 = vld [vmem:[%s300 + $0x38] sm:$0xff]
      %v318 = vld [vmem:[%s300 + $0x40] sm:$0xff]
      %v319 = vunpack.c.l.bf16 %v310
      %v320 = vunpack.c.h.bf16 %v310
      %v321 = vunpack.c.l.bf16 %v311
      %v322 = vunpack.c.h.bf16 %v311
      %v323 = vunpack.c.l.bf16 %v312
      %v324 = vunpack.c.h.bf16 %v312
      %v325 = vunpack.c.l.bf16 %v313
      %v326 = vunpack.c.h.bf16 %v313
      %v327 = vunpack.c.l.bf16 %v314
      %v328 = vunpack.c.h.bf16 %v314
      %v329 = vunpack.c.l.bf16 %v315
      %v330 = vunpack.c.h.bf16 %v315
      %v331 = vunpack.c.l.bf16 %v316
      %v332 = vunpack.c.h.bf16 %v316
      %v333 = vunpack.c.l.bf16 %v317
      %v334 = vunpack.c.h.bf16 %v317
      %v335 = vunpack.c.l.bf16 %v318
      %v336 = vunpack.c.h.bf16 %v318
      %337 = vrot.lane.b32.xlu0 %v319, 19
      %v338 = vpop.permute.xlu0 %337
      %339 = vrot.lane.b32.xlu0 %v320, 19
      %v340 = vpop.permute.xlu0 %339
      %341 = vrot.lane.b32.xlu0 %v321, 19
      %v342 = vpop.permute.xlu0 %341
      %343 = vrot.lane.b32.xlu0 %v322, 19
      %v344 = vpop.permute.xlu0 %343
      %345 = vrot.lane.b32.xlu0 %v323, 19
      %v346 = vpop.permute.xlu0 %345
      %347 = vrot.lane.b32.xlu0 %v324, 19
      %v348 = vpop.permute.xlu0 %347
      %349 = vrot.lane.b32.xlu0 %v325, 19
      %v350 = vpop.permute.xlu0 %349
      %351 = vrot.lane.b32.xlu0 %v326, 19
      %v352 = vpop.permute.xlu0 %351
      %353 = vrot.lane.b32.xlu0 %v327, 19
      %v354 = vpop.permute.xlu0 %353
      %355 = vrot.lane.b32.xlu0 %v328, 19
      %v356 = vpop.permute.xlu0 %355
      %357 = vrot.lane.b32.xlu0 %v329, 19
      %v358 = vpop.permute.xlu0 %357
      %359 = vrot.lane.b32.xlu0 %v330, 19
      %v360 = vpop.permute.xlu0 %359
      %361 = vrot.lane.b32.xlu0 %v331, 19
      %v362 = vpop.permute.xlu0 %361
      %363 = vrot.lane.b32.xlu0 %v332, 19
      %v364 = vpop.permute.xlu0 %363
      %365 = vrot.lane.b32.xlu0 %v333, 19
      %v366 = vpop.permute.xlu0 %365
      %367 = vrot.lane.b32.xlu0 %v334, 19
      %v368 = vpop.permute.xlu0 %367
      %369 = vrot.lane.b32.xlu0 %v335, 19
      %v370 = vpop.permute.xlu0 %369
      %371 = vrot.lane.b32.xlu0 %v336, 19
      %v372 = vpop.permute.xlu0 %371
      %v373 = vlaneseq
      %v374 = vand.u32 %v373, 127
      %vm375 = vcmp.lt.s32.totalorder %v374, 19
      %v376 = vsel %vm375, %v370, %v372
      %v377 = vsel %vm375, %v368, %v370
      %v378 = vsel %vm375, %v366, %v368
      %v379 = vsel %vm375, %v364, %v366
      %v380 = vsel %vm375, %v362, %v364
      %v381 = vsel %vm375, %v360, %v362
      %v382 = vsel %vm375, %v358, %v360
      %v383 = vsel %vm375, %v356, %v358
      %v384 = vsel %vm375, %v354, %v356
      %v385 = vsel %vm375, %v352, %v354
      %v386 = vsel %vm375, %v350, %v352
      %v387 = vsel %vm375, %v348, %v350
      %v388 = vsel %vm375, %v346, %v348
      %v389 = vsel %vm375, %v344, %v346
      %v390 = vsel %vm375, %v342, %v344
      %v391 = vsel %vm375, %v340, %v342
      %v392 = vsel %vm375, %v338, %v340
      %v393 = vsel %vm375, %v372, %v338
      %394 = vrot.lane.b32.xlu0 %v319, 18
      %v395 = vpop.permute.xlu0 %394
      %396 = vrot.lane.b32.xlu0 %v320, 18
      %v397 = vpop.permute.xlu0 %396
      %398 = vrot.lane.b32.xlu0 %v321, 18
      %v399 = vpop.permute.xlu0 %398
      %400 = vrot.lane.b32.xlu0 %v322, 18
      %v401 = vpop.permute.xlu0 %400
      %402 = vrot.lane.b32.xlu0 %v323, 18
      %v403 = vpop.permute.xlu0 %402
      %404 = vrot.lane.b32.xlu0 %v324, 18
      %v405 = vpop.permute.xlu0 %404
      %406 = vrot.lane.b32.xlu0 %v325, 18
      %v407 = vpop.permute.xlu0 %406
      %408 = vrot.lane.b32.xlu0 %v326, 18
      %v409 = vpop.permute.xlu0 %408
      %410 = vrot.lane.b32.xlu0 %v327, 18
      %v411 = vpop.permute.xlu0 %410
      %412 = vrot.lane.b32.xlu0 %v328, 18
      %v413 = vpop.permute.xlu0 %412
      %414 = vrot.lane.b32.xlu0 %v329, 18
      %v415 = vpop.permute.xlu0 %414
      %416 = vrot.lane.b32.xlu0 %v330, 18
      %v417 = vpop.permute.xlu0 %416
      %418 = vrot.lane.b32.xlu0 %v331, 18
      %v419 = vpop.permute.xlu0 %418
      %420 = vrot.lane.b32.xlu0 %v332, 18
      %v421 = vpop.permute.xlu0 %420
      %422 = vrot.lane.b32.xlu0 %v333, 18
      %v423 = vpop.permute.xlu0 %422
      %424 = vrot.lane.b32.xlu0 %v334, 18
      %v425 = vpop.permute.xlu0 %424
      %426 = vrot.lane.b32.xlu0 %v335, 18
      %v427 = vpop.permute.xlu0 %426
      %428 = vrot.lane.b32.xlu0 %v336, 18
      %v429 = vpop.permute.xlu0 %428
      %vm430 = vcmp.lt.s32.totalorder %v374, 18
      %v431 = vsel %vm430, %v427, %v429
      %v432 = vsel %vm430, %v425, %v427
      %v433 = vsel %vm430, %v423, %v425
      %v434 = vsel %vm430, %v421, %v423
      %v435 = vsel %vm430, %v419, %v421
      %v436 = vsel %vm430, %v417, %v419
      %v437 = vsel %vm430, %v415, %v417
      %v438 = vsel %vm430, %v413, %v415
      %v439 = vsel %vm430, %v411, %v413
      %v440 = vsel %vm430, %v409, %v411
      %v441 = vsel %vm430, %v407, %v409
      %v442 = vsel %vm430, %v405, %v407
      %v443 = vsel %vm430, %v403, %v405
      %v444 = vsel %vm430, %v401, %v403
      %v445 = vsel %vm430, %v399, %v401
      %v446 = vsel %vm430, %v397, %v399
      %v447 = vsel %vm430, %v395, %v397
      %v448 = vsel %vm430, %v429, %v395
      %449 = vrot.lane.b32.xlu0 %v319, 17
      %v450 = vpop.permute.xlu0 %449
      %451 = vrot.lane.b32.xlu0 %v320, 17
      %v452 = vpop.permute.xlu0 %451
      %453 = vrot.lane.b32.xlu0 %v321, 17
      %v454 = vpop.permute.xlu0 %453
      %455 = vrot.lane.b32.xlu0 %v322, 17
      %v456 = vpop.permute.xlu0 %455
      %457 = vrot.lane.b32.xlu0 %v323, 17
      %v458 = vpop.permute.xlu0 %457
      %459 = vrot.lane.b32.xlu0 %v324, 17
      %v460 = vpop.permute.xlu0 %459
      %461 = vrot.lane.b32.xlu0 %v325, 17
      %v462 = vpop.permute.xlu0 %461
      %463 = vrot.lane.b32.xlu0 %v326, 17
      %v464 = vpop.permute.xlu0 %463
      %465 = vrot.lane.b32.xlu0 %v327, 17
      %v466 = vpop.permute.xlu0 %465
      %467 = vrot.lane.b32.xlu0 %v328, 17
      %v468 = vpop.permute.xlu0 %467
      %469 = vrot.lane.b32.xlu0 %v329, 17
      %v470 = vpop.permute.xlu0 %469
      %471 = vrot.lane.b32.xlu0 %v330, 17
      %v472 = vpop.permute.xlu0 %471
      %473 = vrot.lane.b32.xlu0 %v331, 17
      %v474 = vpop.permute.xlu0 %473
      %475 = vrot.lane.b32.xlu0 %v332, 17
      %v476 = vpop.permute.xlu0 %475
      %477 = vrot.lane.b32.xlu0 %v333, 17
      %v478 = vpop.permute.xlu0 %477
      %479 = vrot.lane.b32.xlu0 %v334, 17
      %v480 = vpop.permute.xlu0 %479
      %481 = vrot.lane.b32.xlu0 %v335, 17
      %v482 = vpop.permute.xlu0 %481
      %483 = vrot.lane.b32.xlu0 %v336, 17
      %v484 = vpop.permute.xlu0 %483
      %vm485 = vcmp.lt.s32.totalorder %v374, 17
      %v486 = vsel %vm485, %v482, %v484
      %v487 = vsel %vm485, %v480, %v482
      %v488 = vsel %vm485, %v478, %v480
      %v489 = vsel %vm485, %v476, %v478
      %v490 = vsel %vm485, %v474, %v476
      %v491 = vsel %vm485, %v472, %v474
      %v492 = vsel %vm485, %v470, %v472
      %v493 = vsel %vm485, %v468, %v470
      %v494 = vsel %vm485, %v466, %v468
      %v495 = vsel %vm485, %v464, %v466
      %v496 = vsel %vm485, %v462, %v464
      %v497 = vsel %vm485, %v460, %v462
      %v498 = vsel %vm485, %v458, %v460
      %v499 = vsel %vm485, %v456, %v458
      %v500 = vsel %vm485, %v454, %v456
      %v501 = vsel %vm485, %v452, %v454
      %v502 = vsel %vm485, %v450, %v452
      %v503 = vsel %vm485, %v484, %v450
      %504 = vrot.lane.b32.xlu0 %v319, 1
      %v505 = vpop.permute.xlu0 %504
      %506 = vrot.lane.b32.xlu0 %v320, 1
      %v507 = vpop.permute.xlu0 %506
      %508 = vrot.lane.b32.xlu0 %v321, 1
      %v509 = vpop.permute.xlu0 %508
      %510 = vrot.lane.b32.xlu0 %v322, 1
      %v511 = vpop.permute.xlu0 %510
      %512 = vrot.lane.b32.xlu0 %v323, 1
      %v513 = vpop.permute.xlu0 %512
      %514 = vrot.lane.b32.xlu0 %v324, 1
      %v515 = vpop.permute.xlu0 %514
      %516 = vrot.lane.b32.xlu0 %v325, 1
      %v517 = vpop.permute.xlu0 %516
      %518 = vrot.lane.b32.xlu0 %v326, 1
      %v519 = vpop.permute.xlu0 %518
      %520 = vrot.lane.b32.xlu0 %v327, 1
      %v521 = vpop.permute.xlu0 %520
      %522 = vrot.lane.b32.xlu0 %v328, 1
      %v523 = vpop.permute.xlu0 %522
      %524 = vrot.lane.b32.xlu0 %v329, 1
      %v525 = vpop.permute.xlu0 %524
      %526 = vrot.lane.b32.xlu0 %v330, 1
      %v527 = vpop.permute.xlu0 %526
      %528 = vrot.lane.b32.xlu0 %v331, 1
      %v529 = vpop.permute.xlu0 %528
      %530 = vrot.lane.b32.xlu0 %v332, 1
      %v531 = vpop.permute.xlu0 %530
      %532 = vrot.lane.b32.xlu0 %v333, 1
      %v533 = vpop.permute.xlu0 %532
      %534 = vrot.lane.b32.xlu0 %v334, 1
      %v535 = vpop.permute.xlu0 %534
      %536 = vrot.lane.b32.xlu0 %v335, 1
      %v537 = vpop.permute.xlu0 %536
      %538 = vrot.lane.b32.xlu0 %v336, 1
      %v539 = vpop.permute.xlu0 %538
      %vm540 = vcmp.lt.s32.totalorder %v374, 1
      %v541 = vsel %vm540, %v537, %v539
      %v542 = vsel %vm540, %v535, %v537
      %v543 = vsel %vm540, %v533, %v535
      %v544 = vsel %vm540, %v531, %v533
      %v545 = vsel %vm540, %v529, %v531
      %v546 = vsel %vm540, %v527, %v529
      %v547 = vsel %vm540, %v525, %v527
      %v548 = vsel %vm540, %v523, %v525
      %v549 = vsel %vm540, %v521, %v523
      %v550 = vsel %vm540, %v519, %v521
      %v551 = vsel %vm540, %v517, %v519
      %v552 = vsel %vm540, %v515, %v517
      %v553 = vsel %vm540, %v513, %v515
      %v554 = vsel %vm540, %v511, %v513
      %v555 = vsel %vm540, %v509, %v511
      %v556 = vsel %vm540, %v507, %v509
      %v557 = vsel %vm540, %v505, %v507
      %v558 = vsel %vm540, %v539, %v505
      %559 = vrot.lane.b32.xlu0 %v319, 127
      %v560 = vpop.permute.xlu0 %559
      %561 = vrot.lane.b32.xlu0 %v320, 127
      %v562 = vpop.permute.xlu0 %561
      %563 = vrot.lane.b32.xlu0 %v321, 127
      %v564 = vpop.permute.xlu0 %563
      %565 = vrot.lane.b32.xlu0 %v322, 127
      %v566 = vpop.permute.xlu0 %565
      %567 = vrot.lane.b32.xlu0 %v323, 127
      %v568 = vpop.permute.xlu0 %567
      %569 = vrot.lane.b32.xlu0 %v324, 127
      %v570 = vpop.permute.xlu0 %569
      %571 = vrot.lane.b32.xlu0 %v325, 127
      %v572 = vpop.permute.xlu0 %571
      %573 = vrot.lane.b32.xlu0 %v326, 127
      %v574 = vpop.permute.xlu0 %573
      %575 = vrot.lane.b32.xlu0 %v327, 127
      %v576 = vpop.permute.xlu0 %575
      %577 = vrot.lane.b32.xlu0 %v328, 127
      %v578 = vpop.permute.xlu0 %577
      %579 = vrot.lane.b32.xlu0 %v329, 127
      %v580 = vpop.permute.xlu0 %579
      %581 = vrot.lane.b32.xlu0 %v330, 127
      %v582 = vpop.permute.xlu0 %581
      %583 = vrot.lane.b32.xlu0 %v331, 127
      %v584 = vpop.permute.xlu0 %583
      %585 = vrot.lane.b32.xlu0 %v332, 127
      %v586 = vpop.permute.xlu0 %585
      %587 = vrot.lane.b32.xlu0 %v333, 127
      %v588 = vpop.permute.xlu0 %587
      %589 = vrot.lane.b32.xlu0 %v334, 127
      %v590 = vpop.permute.xlu0 %589
      %591 = vrot.lane.b32.xlu0 %v335, 127
      %v592 = vpop.permute.xlu0 %591
      %593 = vrot.lane.b32.xlu0 %v336, 127
      %v594 = vpop.permute.xlu0 %593
      %vm595 = vcmp.lt.s32.totalorder %v374, 127
      %v596 = vsel %vm595, %v592, %v594
      %v597 = vsel %vm595, %v590, %v592
      %v598 = vsel %vm595, %v588, %v590
      %v599 = vsel %vm595, %v586, %v588
      %v600 = vsel %vm595, %v584, %v586
      %v601 = vsel %vm595, %v582, %v584
      %v602 = vsel %vm595, %v580, %v582
      %v603 = vsel %vm595, %v578, %v580
      %v604 = vsel %vm595, %v576, %v578
      %v605 = vsel %vm595, %v574, %v576
      %v606 = vsel %vm595, %v572, %v574
      %v607 = vsel %vm595, %v570, %v572
      %v608 = vsel %vm595, %v568, %v570
      %v609 = vsel %vm595, %v566, %v568
      %v610 = vsel %vm595, %v564, %v566
      %v611 = vsel %vm595, %v562, %v564
      %v612 = vsel %vm595, %v560, %v562
      %v613 = vsel %vm595, %v594, %v560
      %614 = vrot.lane.b32.xlu0 %v319, 111
      %v615 = vpop.permute.xlu0 %614
      %616 = vrot.lane.b32.xlu0 %v320, 111
      %v617 = vpop.permute.xlu0 %616
      %618 = vrot.lane.b32.xlu0 %v321, 111
      %v619 = vpop.permute.xlu0 %618
      %620 = vrot.lane.b32.xlu0 %v322, 111
      %v621 = vpop.permute.xlu0 %620
      %622 = vrot.lane.b32.xlu0 %v323, 111
      %v623 = vpop.permute.xlu0 %622
      %624 = vrot.lane.b32.xlu0 %v324, 111
      %v625 = vpop.permute.xlu0 %624
      %626 = vrot.lane.b32.xlu0 %v325, 111
      %v627 = vpop.permute.xlu0 %626
      %628 = vrot.lane.b32.xlu0 %v326, 111
      %v629 = vpop.permute.xlu0 %628
      %630 = vrot.lane.b32.xlu0 %v327, 111
      %v631 = vpop.permute.xlu0 %630
      %632 = vrot.lane.b32.xlu0 %v328, 111
      %v633 = vpop.permute.xlu0 %632
      %634 = vrot.lane.b32.xlu0 %v329, 111
      %v635 = vpop.permute.xlu0 %634
      %636 = vrot.lane.b32.xlu0 %v330, 111
      %v637 = vpop.permute.xlu0 %636
      %638 = vrot.lane.b32.xlu0 %v331, 111
      %v639 = vpop.permute.xlu0 %638
      %640 = vrot.lane.b32.xlu0 %v332, 111
      %v641 = vpop.permute.xlu0 %640
      %642 = vrot.lane.b32.xlu0 %v333, 111
      %v643 = vpop.permute.xlu0 %642
      %644 = vrot.lane.b32.xlu0 %v334, 111
      %v645 = vpop.permute.xlu0 %644
      %646 = vrot.lane.b32.xlu0 %v335, 111
      %v647 = vpop.permute.xlu0 %646
      %648 = vrot.lane.b32.xlu0 %v336, 111
      %v649 = vpop.permute.xlu0 %648
      %vm650 = vcmp.lt.s32.totalorder %v374, 111
      %v651 = vsel %vm650, %v647, %v649
      %v652 = vsel %vm650, %v645, %v647
      %v653 = vsel %vm650, %v643, %v645
      %v654 = vsel %vm650, %v641, %v643
      %v655 = vsel %vm650, %v639, %v641
      %v656 = vsel %vm650, %v637, %v639
      %v657 = vsel %vm650, %v635, %v637
      %v658 = vsel %vm650, %v633, %v635
      %v659 = vsel %vm650, %v631, %v633
      %v660 = vsel %vm650, %v629, %v631
      %v661 = vsel %vm650, %v627, %v629
      %v662 = vsel %vm650, %v625, %v627
      %v663 = vsel %vm650, %v623, %v625
      %v664 = vsel %vm650, %v621, %v623
      %v665 = vsel %vm650, %v619, %v621
      %v666 = vsel %vm650, %v617, %v619
      %v667 = vsel %vm650, %v615, %v617
      %v668 = vsel %vm650, %v649, %v615
      %669 = vrot.lane.b32.xlu0 %v319, 110
      %v670 = vpop.permute.xlu0 %669
      %671 = vrot.lane.b32.xlu0 %v320, 110
      %v672 = vpop.permute.xlu0 %671
      %673 = vrot.lane.b32.xlu0 %v321, 110
      %v674 = vpop.permute.xlu0 %673
      %675 = vrot.lane.b32.xlu0 %v322, 110
      %v676 = vpop.permute.xlu0 %675
      %677 = vrot.lane.b32.xlu0 %v323, 110
      %v678 = vpop.permute.xlu0 %677
      %679 = vrot.lane.b32.xlu0 %v324, 110
      %v680 = vpop.permute.xlu0 %679
      %681 = vrot.lane.b32.xlu0 %v325, 110
      %v682 = vpop.permute.xlu0 %681
      %683 = vrot.lane.b32.xlu0 %v326, 110
      %v684 = vpop.permute.xlu0 %683
      %685 = vrot.lane.b32.xlu0 %v327, 110
      %v686 = vpop.permute.xlu0 %685
      %687 = vrot.lane.b32.xlu0 %v328, 110
      %v688 = vpop.permute.xlu0 %687
      %689 = vrot.lane.b32.xlu0 %v329, 110
      %v690 = vpop.permute.xlu0 %689
      %691 = vrot.lane.b32.xlu0 %v330, 110
      %v692 = vpop.permute.xlu0 %691
      %693 = vrot.lane.b32.xlu0 %v331, 110
      %v694 = vpop.permute.xlu0 %693
      %695 = vrot.lane.b32.xlu0 %v332, 110
      %v696 = vpop.permute.xlu0 %695
      %697 = vrot.lane.b32.xlu0 %v333, 110
      %v698 = vpop.permute.xlu0 %697
      %699 = vrot.lane.b32.xlu0 %v334, 110
      %v700 = vpop.permute.xlu0 %699
      %701 = vrot.lane.b32.xlu0 %v335, 110
      %v702 = vpop.permute.xlu0 %701
      %703 = vrot.lane.b32.xlu0 %v336, 110
      %v704 = vpop.permute.xlu0 %703
      %vm705 = vcmp.lt.s32.totalorder %v374, 110
      %v706 = vsel %vm705, %v702, %v704
      %v707 = vsel %vm705, %v700, %v702
      %v708 = vsel %vm705, %v698, %v700
      %v709 = vsel %vm705, %v696, %v698
      %v710 = vsel %vm705, %v694, %v696
      %v711 = vsel %vm705, %v692, %v694
      %v712 = vsel %vm705, %v690, %v692
      %v713 = vsel %vm705, %v688, %v690
      %v714 = vsel %vm705, %v686, %v688
      %v715 = vsel %vm705, %v684, %v686
      %v716 = vsel %vm705, %v682, %v684
      %v717 = vsel %vm705, %v680, %v682
      %v718 = vsel %vm705, %v678, %v680
      %v719 = vsel %vm705, %v676, %v678
      %v720 = vsel %vm705, %v674, %v676
      %v721 = vsel %vm705, %v672, %v674
      %v722 = vsel %vm705, %v670, %v672
      %v723 = vsel %vm705, %v704, %v670
      %724 = vrot.lane.b32.xlu0 %v319, 109
      %v725 = vpop.permute.xlu0 %724
      %726 = vrot.lane.b32.xlu0 %v320, 109
      %v727 = vpop.permute.xlu0 %726
      %728 = vrot.lane.b32.xlu0 %v321, 109
      %v729 = vpop.permute.xlu0 %728
      %730 = vrot.lane.b32.xlu0 %v322, 109
      %v731 = vpop.permute.xlu0 %730
      %732 = vrot.lane.b32.xlu0 %v323, 109
      %v733 = vpop.permute.xlu0 %732
      %734 = vrot.lane.b32.xlu0 %v324, 109
      %v735 = vpop.permute.xlu0 %734
      %736 = vrot.lane.b32.xlu0 %v325, 109
      %v737 = vpop.permute.xlu0 %736
      %738 = vrot.lane.b32.xlu0 %v326, 109
      %v739 = vpop.permute.xlu0 %738
      %740 = vrot.lane.b32.xlu0 %v327, 109
      %v741 = vpop.permute.xlu0 %740
      %742 = vrot.lane.b32.xlu0 %v328, 109
      %v743 = vpop.permute.xlu0 %742
      %744 = vrot.lane.b32.xlu0 %v329, 109
      %v745 = vpop.permute.xlu0 %744
      %746 = vrot.lane.b32.xlu0 %v330, 109
      %v747 = vpop.permute.xlu0 %746
      %748 = vrot.lane.b32.xlu0 %v331, 109
      %v749 = vpop.permute.xlu0 %748
      %750 = vrot.lane.b32.xlu0 %v332, 109
      %v751 = vpop.permute.xlu0 %750
      %752 = vrot.lane.b32.xlu0 %v333, 109
      %v753 = vpop.permute.xlu0 %752
      %754 = vrot.lane.b32.xlu0 %v334, 109
      %v755 = vpop.permute.xlu0 %754
      %756 = vrot.lane.b32.xlu0 %v335, 109
      %v757 = vpop.permute.xlu0 %756
      %758 = vrot.lane.b32.xlu0 %v336, 109
      %v759 = vpop.permute.xlu0 %758
      %vm760 = vcmp.lt.s32.totalorder %v374, 109
      %v761 = vsel %vm760, %v757, %v759
      %v762 = vsel %vm760, %v755, %v757
      %v763 = vsel %vm760, %v753, %v755
      %v764 = vsel %vm760, %v751, %v753
      %v765 = vsel %vm760, %v749, %v751
      %v766 = vsel %vm760, %v747, %v749
      %v767 = vsel %vm760, %v745, %v747
      %v768 = vsel %vm760, %v743, %v745
      %v769 = vsel %vm760, %v741, %v743
      %v770 = vsel %vm760, %v739, %v741
      %v771 = vsel %vm760, %v737, %v739
      %v772 = vsel %vm760, %v735, %v737
      %v773 = vsel %vm760, %v733, %v735
      %v774 = vsel %vm760, %v731, %v733
      %v775 = vsel %vm760, %v729, %v731
      %v776 = vsel %vm760, %v727, %v729
      %v777 = vsel %vm760, %v725, %v727
      %v778 = vsel %vm760, %v759, %v725
      %v779 = vpack.c.bf16 %v433, %v378
      %v780 = vpack.c.bf16 %v432, %v377
      %v781 = vpack.c.bf16 %v431, %v376
      %v782 = vpack.c.bf16 %v448, %v393
      %v783 = vpack.c.bf16 %v447, %v392
      %v784 = vpack.c.bf16 %v446, %v391
      %v785 = vpack.c.bf16 %v445, %v390
      %v786 = vpack.c.bf16 %v444, %v389
      %v787 = vpack.c.bf16 %v443, %v388
      %v788 = vpack.c.bf16 %v442, %v387
      %v789 = vpack.c.bf16 %v441, %v386
      %v790 = vpack.c.bf16 %v440, %v385
      %v791 = vpack.c.bf16 %v439, %v384
      %v792 = vpack.c.bf16 %v438, %v383
      %v793 = vpack.c.bf16 %v437, %v382
      %v794 = vpack.c.bf16 %v436, %v381
      %v795 = vpack.c.bf16 %v435, %v380
      %v796 = vpack.c.bf16 %v434, %v379
      %v797 = vpack.c.bf16 %v543, %v488
      %v798 = vpack.c.bf16 %v542, %v487
      %v799 = vpack.c.bf16 %v541, %v486
      %v800 = vpack.c.bf16 %v558, %v503
      %v801 = vpack.c.bf16 %v557, %v502
      %v802 = vpack.c.bf16 %v556, %v501
      %v803 = vpack.c.bf16 %v555, %v500
      %v804 = vpack.c.bf16 %v554, %v499
      %v805 = vpack.c.bf16 %v553, %v498
      %v806 = vpack.c.bf16 %v552, %v497
      %v807 = vpack.c.bf16 %v551, %v496
      %v808 = vpack.c.bf16 %v550, %v495
      %v809 = vpack.c.bf16 %v549, %v494
      %v810 = vpack.c.bf16 %v548, %v493
      %v811 = vpack.c.bf16 %v547, %v492
      %v812 = vpack.c.bf16 %v546, %v491
      %v813 = vpack.c.bf16 %v545, %v490
      %v814 = vpack.c.bf16 %v544, %v489
      %v815 = vpack.c.bf16 %v597, %v334
      %v816 = vpack.c.bf16 %v596, %v335
      %v817 = vpack.c.bf16 %v613, %v336
      %v818 = vpack.c.bf16 %v612, %v319
      %v819 = vpack.c.bf16 %v611, %v320
      %v820 = vpack.c.bf16 %v610, %v321
      %v821 = vpack.c.bf16 %v609, %v322
      %v822 = vpack.c.bf16 %v608, %v323
      %v823 = vpack.c.bf16 %v607, %v324
      %v824 = vpack.c.bf16 %v606, %v325
      %v825 = vpack.c.bf16 %v605, %v326
      %v826 = vpack.c.bf16 %v604, %v327
      %v827 = vpack.c.bf16 %v603, %v328
      %v828 = vpack.c.bf16 %v602, %v329
      %v829 = vpack.c.bf16 %v601, %v330
      %v830 = vpack.c.bf16 %v600, %v331
      %v831 = vpack.c.bf16 %v599, %v332
      %v832 = vpack.c.bf16 %v598, %v333
      %v833 = vpack.c.bf16 %v707, %v652
      %v834 = vpack.c.bf16 %v706, %v651
      %v835 = vpack.c.bf16 %v723, %v668
      %v836 = vpack.c.bf16 %v722, %v667
      %v837 = vpack.c.bf16 %v721, %v666
      %v838 = vpack.c.bf16 %v720, %v665
      %v839 = vpack.c.bf16 %v719, %v664
      %v840 = vpack.c.bf16 %v718, %v663
      %v841 = vpack.c.bf16 %v717, %v662
      %v842 = vpack.c.bf16 %v716, %v661
      %v843 = vpack.c.bf16 %v715, %v660
      %v844 = vpack.c.bf16 %v714, %v659
      %v845 = vpack.c.bf16 %v713, %v658
      %v846 = vpack.c.bf16 %v712, %v657
      %v847 = vpack.c.bf16 %v711, %v656
      %v848 = vpack.c.bf16 %v710, %v655
      %v849 = vpack.c.bf16 %v709, %v654
      %v850 = vpack.c.bf16 %v708, %v653
      %v851 = vpack.c.bf16 %v393, %v762
      %v852 = vpack.c.bf16 %v392, %v761
      %v853 = vpack.c.bf16 %v391, %v778
      %v854 = vpack.c.bf16 %v390, %v777
      %v855 = vpack.c.bf16 %v389, %v776
      %v856 = vpack.c.bf16 %v388, %v775
      %v857 = vpack.c.bf16 %v387, %v774
      %v858 = vpack.c.bf16 %v386, %v773
      %v859 = vpack.c.bf16 %v385, %v772
      %v860 = vpack.c.bf16 %v384, %v771
      %v861 = vpack.c.bf16 %v383, %v770
      %v862 = vpack.c.bf16 %v382, %v769
      %v863 = vpack.c.bf16 %v381, %v768
      %v864 = vpack.c.bf16 %v380, %v767
      %v865 = vpack.c.bf16 %v379, %v766
      %v866 = vpack.c.bf16 %v378, %v765
      %v867 = vpack.c.bf16 %v377, %v764
      %v868 = vpack.c.bf16 %v376, %v763
      %v869 = vpack.c.bf16 %v503, %v448
      %v870 = vpack.c.bf16 %v502, %v447
      %v871 = vpack.c.bf16 %v501, %v446
      %v872 = vpack.c.bf16 %v500, %v445
      %v873 = vpack.c.bf16 %v499, %v444
      %v874 = vpack.c.bf16 %v498, %v443
      %v875 = vpack.c.bf16 %v497, %v442
      %v876 = vpack.c.bf16 %v496, %v441
      %v877 = vpack.c.bf16 %v495, %v440
      %v878 = vpack.c.bf16 %v494, %v439
      %v879 = vpack.c.bf16 %v493, %v438
      %v880 = vpack.c.bf16 %v492, %v437
      %v881 = vpack.c.bf16 %v491, %v436
      %v882 = vpack.c.bf16 %v490, %v435
      %v883 = vpack.c.bf16 %v489, %v434
      %v884 = vpack.c.bf16 %v488, %v433
      %v885 = vpack.c.bf16 %v487, %v432
      %v886 = vpack.c.bf16 %v486, %v431
      %v887 = vpack.c.bf16 %v319, %v558
      %v888 = vpack.c.bf16 %v320, %v557
      %v889 = vpack.c.bf16 %v321, %v556
      %v890 = vpack.c.bf16 %v322, %v555
      %v891 = vpack.c.bf16 %v323, %v554
      %v892 = vpack.c.bf16 %v324, %v553
      %v893 = vpack.c.bf16 %v325, %v552
      %v894 = vpack.c.bf16 %v326, %v551
      %v895 = vpack.c.bf16 %v327, %v550
      %v896 = vpack.c.bf16 %v328, %v549
      %v897 = vpack.c.bf16 %v329, %v548
      %v898 = vpack.c.bf16 %v330, %v547
      %v899 = vpack.c.bf16 %v331, %v546
      %v900 = vpack.c.bf16 %v332, %v545
      %v901 = vpack.c.bf16 %v333, %v544
      %v902 = vpack.c.bf16 %v334, %v543
      %v903 = vpack.c.bf16 %v335, %v542
      %v904 = vpack.c.bf16 %v336, %v541
      %v905 = vpack.c.bf16 %v667, %v612
      %v906 = vpack.c.bf16 %v666, %v611
      %v907 = vpack.c.bf16 %v665, %v610
      %v908 = vpack.c.bf16 %v664, %v609
      %v909 = vpack.c.bf16 %v663, %v608
      %v910 = vpack.c.bf16 %v662, %v607
      %v911 = vpack.c.bf16 %v661, %v606
      %v912 = vpack.c.bf16 %v660, %v605
      %v913 = vpack.c.bf16 %v659, %v604
      %v914 = vpack.c.bf16 %v658, %v603
      %v915 = vpack.c.bf16 %v657, %v602
      %v916 = vpack.c.bf16 %v656, %v601
      %v917 = vpack.c.bf16 %v655, %v600
      %v918 = vpack.c.bf16 %v654, %v599
      %v919 = vpack.c.bf16 %v653, %v598
      %v920 = vpack.c.bf16 %v652, %v597
      %v921 = vpack.c.bf16 %v651, %v596
      %v922 = vpack.c.bf16 %v668, %v613
      %v923 = vpack.c.bf16 %v777, %v722
      %v924 = vpack.c.bf16 %v776, %v721
      %v925 = vpack.c.bf16 %v775, %v720
      %v926 = vpack.c.bf16 %v774, %v719
      %v927 = vpack.c.bf16 %v773, %v718
      %v928 = vpack.c.bf16 %v772, %v717
      %v929 = vpack.c.bf16 %v771, %v716
      %v930 = vpack.c.bf16 %v770, %v715
      %v931 = vpack.c.bf16 %v769, %v714
      %v932 = vpack.c.bf16 %v768, %v713
      %v933 = vpack.c.bf16 %v767, %v712
      %v934 = vpack.c.bf16 %v766, %v711
      %v935 = vpack.c.bf16 %v765, %v710
      %v936 = vpack.c.bf16 %v764, %v709
      %v937 = vpack.c.bf16 %v763, %v708
      %v938 = vpack.c.bf16 %v762, %v707
      %v939 = vpack.c.bf16 %v761, %v706
      %v940 = vpack.c.bf16 %v778, %v723
      %v941 = vpack.c.bf16 %v774, %v774
      %v942 = vpack.c.bf16 %v773, %v773
      %v943 = vpack.c.bf16 %v772, %v772
      %v944 = vpack.c.bf16 %v771, %v771
      %v945 = vpack.c.bf16 %v770, %v770
      %v946 = vpack.c.bf16 %v769, %v769
      %v947 = vpack.c.bf16 %v768, %v768
      %v948 = vpack.c.bf16 %v767, %v767
      %v949 = vpack.c.bf16 %v766, %v766
      %v950 = vpack.c.bf16 %v765, %v765
      %v951 = vpack.c.bf16 %v764, %v764
      %v952 = vpack.c.bf16 %v763, %v763
      %v953 = vpack.c.bf16 %v762, %v762
      %v954 = vpack.c.bf16 %v761, %v761
      %v955 = vpack.c.bf16 %v778, %v778
      %v956 = vpack.c.bf16 %v777, %v777
      %v957 = vpack.c.bf16 %v776, %v776
      %v958 = vpack.c.bf16 %v775, %v775
      %v959 = vld [vmem:[%s1] sm:$0xff]
      %v961 = vunpack.c.l.b16 %v959
      %v962 = vunpack.c.h.b16 %v959
      %v963 = vpack.c.b16 %v961, %v961
      %v964 = vpack.c.b16 %v962, %v962
      %vm966 = vcmask 719872
      %v968 = vsel %vm966, %v964, 0
      %vm970 = vcmask 1043456
      %v972 = vsel %vm970, %v941, 0
      %v975 = vsel %vm970, %v942, 0
      %v978 = vsel %vm970, %v943, 0
      %v981 = vsel %vm970, %v944, 0
      %v984 = vsel %vm970, %v945, 0
      %v987 = vsel %vm970, %v946, 0
      %v990 = vsel %vm970, %v947, 0
      %v993 = vsel %vm970, %v948, 0
      %v996 = vsel %vm970, %v949, 0
      %v999 = vsel %vm970, %v950, 0
      %v1002 = vsel %vm970, %v951, 0
      %v1005 = vsel %vm970, %v952, 0
      %v1008 = vsel %vm970, %v953, 0
      %v1011 = vsel %vm970, %v954, 0
      %v1014 = vsel %vm970, %v955, 0
      %v1017 = vsel %vm970, %v956, 0
      %v1020 = vsel %vm970, %v957, 0
      %v1023 = vsel %vm970, %v958, 0
      %1025 = vmatprep.subr.bf16.mxu0 %v780
      %1026 = vmatpush1.bf16.msra.mxu0 %v779
      %1027 = vmatprep.subr.bf16.mxu0 %v798
      %1028 = vmatpush1.bf16.msra.mxu0 %v797
      %1029 = vmatprep.subr.bf16.mxu0 %v816
      %1030 = vmatpush1.bf16.msra.mxu0 %v815
      %1031 = vmatprep.subr.bf16.mxu0 %v834
      %1032 = vmatpush1.bf16.msra.mxu0 %v833
      %1033 = vmatprep.subr.bf16.mxu0 %v852
      %1034 = vmatpush1.bf16.msra.mxu0 %v851
      %1035 = vmatprep.subr.bf16.mxu0 %v870
      %1036 = vmatpush1.bf16.msra.mxu0 %v869
      %1037 = vmatprep.subr.bf16.mxu0 %v888
      %1038 = vmatpush1.bf16.msra.mxu0 %v887
      %1039 = vmatprep.subr.bf16.mxu0 %v906
      %1040 = vmatpush1.bf16.msra.mxu0 %v905
      %1041 = vmatprep.subr.bf16.mxu0 %v924
      %1042 = vmatpush1.bf16.msra.mxu0 %v923
      %1043 = vmatprep.subr.bf16.mxu0 %v786
      %1044 = vmatpush1.bf16.msra.mxu0 %v785
      %1045 = vmatprep.subr.bf16.mxu0 %v804
      %1046 = vmatpush1.bf16.msra.mxu0 %v803
      %1047 = vmatprep.subr.bf16.mxu0 %v822
      %1048 = vmatpush1.bf16.msra.mxu0 %v821
      %1049 = vmatprep.subr.bf16.mxu0 %v840
      %1050 = vmatpush1.bf16.msra.mxu0 %v839
      %1051 = vmatprep.subr.bf16.mxu0 %v975
      %1052 = vmatpush1.bf16.msra.mxu0 %v972
      %1053 = vmatprep.subr.bf16.mxu0 0
      %1054 = vmatpush1.bf16.msra.mxu0 0
      %1055 = vmatprep.subr.bf16.mxu0 0
      %1056 = vmatpush1.bf16.msra.mxu0 0
      %1057 = vmatprep.mubr.bf16.mxu0 %v968
      %1058 = vmatmul.mubr.bf16.gmra.mrb[0].mxu0 %v963
      %v1059 = vpop.f32.mrb[0].mxu0
      %v1060 = vadd.f32 0.0, %v1059
      %v1061 = vpop.f32.mrb[0].mxu0
      %v1062 = vadd.f32 0.0, %v1061
      %v1063 = vpop.f32.mrb[0].mxu0
      %v1064 = vpop.f32.mrb[0].mxu0
      %1065 = vdwg.mxu0
      %1066 = vmatprep.subr.bf16.mxu0 %v782
      %1067 = vmatpush1.bf16.msra.mxu0 %v781
      %1068 = vmatprep.subr.bf16.mxu0 %v800
      %1069 = vmatpush1.bf16.msra.mxu0 %v799
      %1070 = vmatprep.subr.bf16.mxu0 %v818
      %1071 = vmatpush1.bf16.msra.mxu0 %v817
      %1072 = vmatprep.subr.bf16.mxu0 %v836
      %1073 = vmatpush1.bf16.msra.mxu0 %v835
      %1074 = vmatprep.subr.bf16.mxu0 %v854
      %1075 = vmatpush1.bf16.msra.mxu0 %v853
      %1076 = vmatprep.subr.bf16.mxu0 %v872
      %1077 = vmatpush1.bf16.msra.mxu0 %v871
      %1078 = vmatprep.subr.bf16.mxu0 %v890
      %1079 = vmatpush1.bf16.msra.mxu0 %v889
      %1080 = vmatprep.subr.bf16.mxu0 %v908
      %1081 = vmatpush1.bf16.msra.mxu0 %v907
      %1082 = vmatprep.subr.bf16.mxu0 %v926
      %1083 = vmatpush1.bf16.msra.mxu0 %v925
      %1084 = vmatprep.subr.bf16.mxu0 %v788
      %1085 = vmatpush1.bf16.msra.mxu0 %v787
      %1086 = vmatprep.subr.bf16.mxu0 %v806
      %1087 = vmatpush1.bf16.msra.mxu0 %v805
      %1088 = vmatprep.subr.bf16.mxu0 %v824
      %1089 = vmatpush1.bf16.msra.mxu0 %v823
      %1090 = vmatprep.subr.bf16.mxu0 %v842
      %1091 = vmatpush1.bf16.msra.mxu0 %v841
      %1092 = vmatprep.subr.bf16.mxu0 %v981
      %1093 = vmatpush1.bf16.msra.mxu0 %v978
      %1094 = vmatprep.subr.bf16.mxu0 0
      %1095 = vmatpush1.bf16.msra.mxu0 0
      %1096 = vmatprep.subr.bf16.mxu0 0
      %1097 = vmatpush1.bf16.msra.mxu0 0
      %1098 = vmatprep.mubr.bf16.mxu0 %v968
      %1099 = vmatmul.mubr.bf16.gmra.mrb[0].mxu0 %v963
      %v1100 = vpop.f32.mrb[0].mxu0
      %v1101 = vadd.f32 0.0, %v1100
      %v1102 = vpop.f32.mrb[0].mxu0
      %v1103 = vadd.f32 0.0, %v1102
      %v1104 = vpop.f32.mrb[0].mxu0
      %v1105 = vpop.f32.mrb[0].mxu0
      %1106 = vdwg.mxu0
      %1107 = vmatprep.subr.bf16.mxu0 %v784
      %1108 = vmatpush1.bf16.msra.mxu0 %v783
      %1109 = vmatprep.subr.bf16.mxu0 %v802
      %1110 = vmatpush1.bf16.msra.mxu0 %v801
      %1111 = vmatprep.subr.bf16.mxu0 %v820
      %1112 = vmatpush1.bf16.msra.mxu0 %v819
      %1113 = vmatprep.subr.bf16.mxu0 %v838
      %1114 = vmatpush1.bf16.msra.mxu0 %v837
      %1115 = vmatprep.subr.bf16.mxu0 %v856
      %1116 = vmatpush1.bf16.msra.mxu0 %v855
      %1117 = vmatprep.subr.bf16.mxu0 %v874
      %1118 = vmatpush1.bf16.msra.mxu0 %v873
      %1119 = vmatprep.subr.bf16.mxu0 %v892
      %1120 = vmatpush1.bf16.msra.mxu0 %v891
      %1121 = vmatprep.subr.bf16.mxu0 %v910
      %1122 = vmatpush1.bf16.msra.mxu0 %v909
      %1123 = vmatprep.subr.bf16.mxu0 %v928
      %1124 = vmatpush1.bf16.msra.mxu0 %v927
      %1125 = vmatprep.subr.bf16.mxu0 %v790
      %1126 = vmatpush1.bf16.msra.mxu0 %v789
      %1127 = vmatprep.subr.bf16.mxu0 %v808
      %1128 = vmatpush1.bf16.msra.mxu0 %v807
      %1129 = vmatprep.subr.bf16.mxu0 %v826
      %1130 = vmatpush1.bf16.msra.mxu0 %v825
      %1131 = vmatprep.subr.bf16.mxu0 %v844
      %1132 = vmatpush1.bf16.msra.mxu0 %v843
      %1133 = vmatprep.subr.bf16.mxu0 %v987
      %1134 = vmatpush1.bf16.msra.mxu0 %v984
      %1135 = vmatprep.subr.bf16.mxu0 0
      %1136 = vmatpush1.bf16.msra.mxu0 0
      %1137 = vmatprep.subr.bf16.mxu0 0
      %1138 = vmatpush1.bf16.msra.mxu0 0
      %1139 = vmatprep.mubr.bf16.mxu0 %v968
      %1140 = vmatmul.mubr.bf16.gmra.mrb[0].mxu0 %v963
      %v1141 = vpop.f32.mrb[0].mxu0
      %v1142 = vadd.f32 0.0, %v1141
      %v1143 = vpop.f32.mrb[0].mxu0
      %v1144 = vadd.f32 0.0, %v1143
      %v1145 = vpop.f32.mrb[0].mxu0
      %v1146 = vpop.f32.mrb[0].mxu0
      %1147 = vdwg.mxu0
      %1148 = vmatprep.subr.bf16.mxu0 %v786
      %1149 = vmatpush1.bf16.msra.mxu0 %v785
      %1150 = vmatprep.subr.bf16.mxu0 %v804
      %1151 = vmatpush1.bf16.msra.mxu0 %v803
      %1152 = vmatprep.subr.bf16.mxu0 %v822
      %1153 = vmatpush1.bf16.msra.mxu0 %v821
      %1154 = vmatprep.subr.bf16.mxu0 %v840
      %1155 = vmatpush1.bf16.msra.mxu0 %v839
      %1156 = vmatprep.subr.bf16.mxu0 %v858
      %1157 = vmatpush1.bf16.msra.mxu0 %v857
      %1158 = vmatprep.subr.bf16.mxu0 %v876
      %1159 = vmatpush1.bf16.msra.mxu0 %v875
      %1160 = vmatprep.subr.bf16.mxu0 %v894
      %1161 = vmatpush1.bf16.msra.mxu0 %v893
      %1162 = vmatprep.subr.bf16.mxu0 %v912
      %1163 = vmatpush1.bf16.msra.mxu0 %v911
      %1164 = vmatprep.subr.bf16.mxu0 %v930
      %1165 = vmatpush1.bf16.msra.mxu0 %v929
      %1166 = vmatprep.subr.bf16.mxu0 %v792
      %1167 = vmatpush1.bf16.msra.mxu0 %v791
      %1168 = vmatprep.subr.bf16.mxu0 %v810
      %1169 = vmatpush1.bf16.msra.mxu0 %v809
      %1170 = vmatprep.subr.bf16.mxu0 %v828
      %1171 = vmatpush1.bf16.msra.mxu0 %v827
      %1172 = vmatprep.subr.bf16.mxu0 %v846
      %1173 = vmatpush1.bf16.msra.mxu0 %v845
      %1174 = vmatprep.subr.bf16.mxu0 %v993
      %1175 = vmatpush1.bf16.msra.mxu0 %v990
      %1176 = vmatprep.subr.bf16.mxu0 0
      %1177 = vmatpush1.bf16.msra.mxu0 0
      %1178 = vmatprep.subr.bf16.mxu0 0
      %1179 = vmatpush1.bf16.msra.mxu0 0
      %1180 = vmatprep.mubr.bf16.mxu0 %v968
      %1181 = vmatmul.mubr.bf16.gmra.mrb[0].mxu0 %v963
      %v1182 = vpop.f32.mrb[0].mxu0
      %v1183 = vadd.f32 0.0, %v1182
      %v1184 = vpop.f32.mrb[0].mxu0
      %v1185 = vadd.f32 0.0, %v1184
      %v1186 = vpop.f32.mrb[0].mxu0
      %v1187 = vpop.f32.mrb[0].mxu0
      %1188 = vdwg.mxu0
      %1189 = vmatprep.subr.bf16.mxu0 %v788
      %1190 = vmatpush1.bf16.msra.mxu0 %v787
      %1191 = vmatprep.subr.bf16.mxu0 %v806
      %1192 = vmatpush1.bf16.msra.mxu0 %v805
      %1193 = vmatprep.subr.bf16.mxu0 %v824
      %1194 = vmatpush1.bf16.msra.mxu0 %v823
      %1195 = vmatprep.subr.bf16.mxu0 %v842
      %1196 = vmatpush1.bf16.msra.mxu0 %v841
      %1197 = vmatprep.subr.bf16.mxu0 %v860
      %1198 = vmatpush1.bf16.msra.mxu0 %v859
      %1199 = vmatprep.subr.bf16.mxu0 %v878
      %1200 = vmatpush1.bf16.msra.mxu0 %v877
      %1201 = vmatprep.subr.bf16.mxu0 %v896
      %1202 = vmatpush1.bf16.msra.mxu0 %v895
      %1203 = vmatprep.subr.bf16.mxu0 %v914
      %1204 = vmatpush1.bf16.msra.mxu0 %v913
      %1205 = vmatprep.subr.bf16.mxu0 %v932
      %1206 = vmatpush1.bf16.msra.mxu0 %v931
      %1207 = vmatprep.subr.bf16.mxu0 %v794
      %1208 = vmatpush1.bf16.msra.mxu0 %v793
      %1209 = vmatprep.subr.bf16.mxu0 %v812
      %1210 = vmatpush1.bf16.msra.mxu0 %v811
      %1211 = vmatprep.subr.bf16.mxu0 %v830
      %1212 = vmatpush1.bf16.msra.mxu0 %v829
      %1213 = vmatprep.subr.bf16.mxu0 %v848
      %1214 = vmatpush1.bf16.msra.mxu0 %v847
      %1215 = vmatprep.subr.bf16.mxu0 %v999
      %1216 = vmatpush1.bf16.msra.mxu0 %v996
      %1217 = vmatprep.subr.bf16.mxu0 0
      %1218 = vmatpush1.bf16.msra.mxu0 0
      %1219 = vmatprep.subr.bf16.mxu0 0
      %1220 = vmatpush1.bf16.msra.mxu0 0
      %1221 = vmatprep.mubr.bf16.mxu0 %v968
      %1222 = vmatmul.mubr.bf16.gmra.mrb[0].mxu0 %v963
      %v1223 = vpop.f32.mrb[0].mxu0
      %v1224 = vadd.f32 0.0, %v1223
      %v1225 = vpop.f32.mrb[0].mxu0
      %v1226 = vadd.f32 0.0, %v1225
      %v1227 = vpop.f32.mrb[0].mxu0
      %v1228 = vpop.f32.mrb[0].mxu0
      %1229 = vdwg.mxu0
      %1230 = vmatprep.subr.bf16.mxu0 %v790
      %1231 = vmatpush1.bf16.msra.mxu0 %v789
      %1232 = vmatprep.subr.bf16.mxu0 %v808
      %1233 = vmatpush1.bf16.msra.mxu0 %v807
      %1234 = vmatprep.subr.bf16.mxu0 %v826
      %1235 = vmatpush1.bf16.msra.mxu0 %v825
      %1236 = vmatprep.subr.bf16.mxu0 %v844
      %1237 = vmatpush1.bf16.msra.mxu0 %v843
      %1238 = vmatprep.subr.bf16.mxu0 %v862
      %1239 = vmatpush1.bf16.msra.mxu0 %v861
      %1240 = vmatprep.subr.bf16.mxu0 %v880
      %1241 = vmatpush1.bf16.msra.mxu0 %v879
      %1242 = vmatprep.subr.bf16.mxu0 %v898
      %1243 = vmatpush1.bf16.msra.mxu0 %v897
      %1244 = vmatprep.subr.bf16.mxu0 %v916
      %1245 = vmatpush1.bf16.msra.mxu0 %v915
      %1246 = vmatprep.subr.bf16.mxu0 %v934
      %1247 = vmatpush1.bf16.msra.mxu0 %v933
      %1248 = vmatprep.subr.bf16.mxu0 %v796
      %1249 = vmatpush1.bf16.msra.mxu0 %v795
      %1250 = vmatprep.subr.bf16.mxu0 %v814
      %1251 = vmatpush1.bf16.msra.mxu0 %v813
      %1252 = vmatprep.subr.bf16.mxu0 %v832
      %1253 = vmatpush1.bf16.msra.mxu0 %v831
      %1254 = vmatprep.subr.bf16.mxu0 %v850
      %1255 = vmatpush1.bf16.msra.mxu0 %v849
      %1256 = vmatprep.subr.bf16.mxu0 %v1005
      %1257 = vmatpush1.bf16.msra.mxu0 %v1002
      %1258 = vmatprep.subr.bf16.mxu0 0
      %1259 = vmatpush1.bf16.msra.mxu0 0
      %1260 = vmatprep.subr.bf16.mxu0 0
      %1261 = vmatpush1.bf16.msra.mxu0 0
      %1262 = vmatprep.mubr.bf16.mxu0 %v968
      %1263 = vmatmul.mubr.bf16.gmra.mrb[0].mxu0 %v963
      %v1264 = vpop.f32.mrb[0].mxu0
      %v1265 = vadd.f32 0.0, %v1264
      %v1266 = vpop.f32.mrb[0].mxu0
      %v1267 = vadd.f32 0.0, %v1266
      %v1268 = vpop.f32.mrb[0].mxu0
      %v1269 = vpop.f32.mrb[0].mxu0
      %1270 = vdwg.mxu0
      %1271 = vmatprep.subr.bf16.mxu0 %v792
      %1272 = vmatpush1.bf16.msra.mxu0 %v791
      %1273 = vmatprep.subr.bf16.mxu0 %v810
      %1274 = vmatpush1.bf16.msra.mxu0 %v809
      %1275 = vmatprep.subr.bf16.mxu0 %v828
      %1276 = vmatpush1.bf16.msra.mxu0 %v827
      %1277 = vmatprep.subr.bf16.mxu0 %v846
      %1278 = vmatpush1.bf16.msra.mxu0 %v845
      %1279 = vmatprep.subr.bf16.mxu0 %v864
      %1280 = vmatpush1.bf16.msra.mxu0 %v863
      %1281 = vmatprep.subr.bf16.mxu0 %v882
      %1282 = vmatpush1.bf16.msra.mxu0 %v881
      %1283 = vmatprep.subr.bf16.mxu0 %v900
      %1284 = vmatpush1.bf16.msra.mxu0 %v899
      %1285 = vmatprep.subr.bf16.mxu0 %v918
      %1286 = vmatpush1.bf16.msra.mxu0 %v917
      %1287 = vmatprep.subr.bf16.mxu0 %v936
      %1288 = vmatpush1.bf16.msra.mxu0 %v935
      %1289 = vmatprep.subr.bf16.mxu0 %v780
      %1290 = vmatpush1.bf16.msra.mxu0 %v779
      %1291 = vmatprep.subr.bf16.mxu0 %v798
      %1292 = vmatpush1.bf16.msra.mxu0 %v797
      %1293 = vmatprep.subr.bf16.mxu0 %v816
      %1294 = vmatpush1.bf16.msra.mxu0 %v815
      %1295 = vmatprep.subr.bf16.mxu0 %v834
      %1296 = vmatpush1.bf16.msra.mxu0 %v833
      %1297 = vmatprep.subr.bf16.mxu0 %v1011
      %1298 = vmatpush1.bf16.msra.mxu0 %v1008
      %1299 = vmatprep.subr.bf16.mxu0 0
      %1300 = vmatpush1.bf16.msra.mxu0 0
      %1301 = vmatprep.subr.bf16.mxu0 0
      %1302 = vmatpush1.bf16.msra.mxu0 0
      %1303 = vmatprep.mubr.bf16.mxu0 %v968
      %1304 = vmatmul.mubr.bf16.gmra.mrb[0].mxu0 %v963
      %v1305 = vpop.f32.mrb[0].mxu0
      %v1306 = vadd.f32 0.0, %v1305
      %v1307 = vpop.f32.mrb[0].mxu0
      %v1308 = vadd.f32 0.0, %v1307
      %v1309 = vpop.f32.mrb[0].mxu0
      %v1310 = vpop.f32.mrb[0].mxu0
      %1311 = vdwg.mxu0
      %1312 = vmatprep.subr.bf16.mxu0 %v794
      %1313 = vmatpush1.bf16.msra.mxu0 %v793
      %1314 = vmatprep.subr.bf16.mxu0 %v812
      %1315 = vmatpush1.bf16.msra.mxu0 %v811
      %1316 = vmatprep.subr.bf16.mxu0 %v830
      %1317 = vmatpush1.bf16.msra.mxu0 %v829
      %1318 = vmatprep.subr.bf16.mxu0 %v848
      %1319 = vmatpush1.bf16.msra.mxu0 %v847
      %1320 = vmatprep.subr.bf16.mxu0 %v866
      %1321 = vmatpush1.bf16.msra.mxu0 %v865
      %1322 = vmatprep.subr.bf16.mxu0 %v884
      %1323 = vmatpush1.bf16.msra.mxu0 %v883
      %1324 = vmatprep.subr.bf16.mxu0 %v902
      %1325 = vmatpush1.bf16.msra.mxu0 %v901
      %1326 = vmatprep.subr.bf16.mxu0 %v920
      %1327 = vmatpush1.bf16.msra.mxu0 %v919
      %1328 = vmatprep.subr.bf16.mxu0 %v938
      %1329 = vmatpush1.bf16.msra.mxu0 %v937
      %1330 = vmatprep.subr.bf16.mxu0 %v782
      %1331 = vmatpush1.bf16.msra.mxu0 %v781
      %1332 = vmatprep.subr.bf16.mxu0 %v800
      %1333 = vmatpush1.bf16.msra.mxu0 %v799
      %1334 = vmatprep.subr.bf16.mxu0 %v818
      %1335 = vmatpush1.bf16.msra.mxu0 %v817
      %1336 = vmatprep.subr.bf16.mxu0 %v836
      %1337 = vmatpush1.bf16.msra.mxu0 %v835
      %1338 = vmatprep.subr.bf16.mxu0 %v1017
      %1339 = vmatpush1.bf16.msra.mxu0 %v1014
      %1340 = vmatprep.subr.bf16.mxu0 0
      %1341 = vmatpush1.bf16.msra.mxu0 0
      %1342 = vmatprep.subr.bf16.mxu0 0
      %1343 = vmatpush1.bf16.msra.mxu0 0
      %1344 = vmatprep.mubr.bf16.mxu0 %v968
      %1345 = vmatmul.mubr.bf16.gmra.mrb[0].mxu0 %v963
      %v1346 = vpop.f32.mrb[0].mxu0
      %v1347 = vadd.f32 0.0, %v1346
      %v1348 = vpop.f32.mrb[0].mxu0
      %v1349 = vadd.f32 0.0, %v1348
      %v1350 = vpop.f32.mrb[0].mxu0
      %v1351 = vpop.f32.mrb[0].mxu0
      %1352 = vdwg.mxu0
      %1353 = vmatprep.subr.bf16.mxu0 %v796
      %1354 = vmatpush1.bf16.msra.mxu0 %v795
      %1355 = vmatprep.subr.bf16.mxu0 %v814
      %1356 = vmatpush1.bf16.msra.mxu0 %v813
      %1357 = vmatprep.subr.bf16.mxu0 %v832
      %1358 = vmatpush1.bf16.msra.mxu0 %v831
      %1359 = vmatprep.subr.bf16.mxu0 %v850
      %1360 = vmatpush1.bf16.msra.mxu0 %v849
      %1361 = vmatprep.subr.bf16.mxu0 %v868
      %1362 = vmatpush1.bf16.msra.mxu0 %v867
      %1363 = vmatprep.subr.bf16.mxu0 %v886
      %1364 = vmatpush1.bf16.msra.mxu0 %v885
      %1365 = vmatprep.subr.bf16.mxu0 %v904
      %1366 = vmatpush1.bf16.msra.mxu0 %v903
      %1367 = vmatprep.subr.bf16.mxu0 %v922
      %1368 = vmatpush1.bf16.msra.mxu0 %v921
      %1369 = vmatprep.subr.bf16.mxu0 %v940
      %1370 = vmatpush1.bf16.msra.mxu0 %v939
      %1371 = vmatprep.subr.bf16.mxu0 %v784
      %1372 = vmatpush1.bf16.msra.mxu0 %v783
      %1373 = vmatprep.subr.bf16.mxu0 %v802
      %1374 = vmatpush1.bf16.msra.mxu0 %v801
      %1375 = vmatprep.subr.bf16.mxu0 %v820
      %1376 = vmatpush1.bf16.msra.mxu0 %v819
      %1377 = vmatprep.subr.bf16.mxu0 %v838
      %1378 = vmatpush1.bf16.msra.mxu0 %v837
      %1379 = vmatprep.subr.bf16.mxu0 %v1023
      %1380 = vmatpush1.bf16.msra.mxu0 %v1020
      %1381 = vmatprep.subr.bf16.mxu0 0
      %1382 = vmatpush1.bf16.msra.mxu0 0
      %1383 = vmatprep.subr.bf16.mxu0 0
      %1384 = vmatpush1.bf16.msra.mxu0 0
      %1385 = vmatprep.mubr.bf16.mxu0 %v968
      %1386 = vmatmul.mubr.bf16.gmra.mrb[0].mxu0 %v963
      %v1387 = vpop.f32.mrb[0].mxu0
      %v1388 = vadd.f32 0.0, %v1387
      %v1389 = vpop.f32.mrb[0].mxu0
      %v1390 = vadd.f32 0.0, %v1389
      %v1391 = vpop.f32.mrb[0].mxu0
      %v1392 = vpop.f32.mrb[0].mxu0
      %1393 = vdwg.mxu0
      %v1394 = vld [vmem:[%s2] sm:$0xff]
      %1396 = vset.pattern.permute.xlu0 0
      %1397 = vperm.xlu0 %1396, %v1394
      %v1398 = vpop.permute.xlu0 %1397
      %v1400 = vmul.f32 %v1060, %v1398
      %v1401 = vmul.f32 %v1062, %v1398
      %v1402 = vmul.f32 %v1101, %v1398
      %v1403 = vmul.f32 %v1103, %v1398
      %v1404 = vmul.f32 %v1142, %v1398
      %v1405 = vmul.f32 %v1144, %v1398
      %v1406 = vmul.f32 %v1183, %v1398
      %v1407 = vmul.f32 %v1185, %v1398
      %v1408 = vmul.f32 %v1224, %v1398
      %v1409 = vmul.f32 %v1226, %v1398
      %v1410 = vmul.f32 %v1265, %v1398
      %v1411 = vmul.f32 %v1267, %v1398
      %v1412 = vmul.f32 %v1306, %v1398
      %v1413 = vmul.f32 %v1308, %v1398
      %v1414 = vmul.f32 %v1347, %v1398
      %v1415 = vmul.f32 %v1349, %v1398
      %v1416 = vmul.f32 %v1388, %v1398
      %v1417 = vmul.f32 %v1390, %v1398
      %v1418 = vld [vmem:[%s3] sm:$0xff]
      %1420 = vset.pattern.permute.xlu0 0
      %1421 = vperm.xlu0 %1420, %v1418
      %v1422 = vpop.permute.xlu0 %1421
      %v1424 = vadd.f32 %v1400, %v1422
      %v1425 = vadd.f32 %v1401, %v1422
      %v1426 = vadd.f32 %v1402, %v1422
      %v1427 = vadd.f32 %v1403, %v1422
      %v1428 = vadd.f32 %v1404, %v1422
      %v1429 = vadd.f32 %v1405, %v1422
      %v1430 = vadd.f32 %v1406, %v1422
      %v1431 = vadd.f32 %v1407, %v1422
      %v1432 = vadd.f32 %v1408, %v1422
      %v1433 = vadd.f32 %v1409, %v1422
      %v1434 = vadd.f32 %v1410, %v1422
      %v1435 = vadd.f32 %v1411, %v1422
      %v1436 = vadd.f32 %v1412, %v1422
      %v1437 = vadd.f32 %v1413, %v1422
      %v1438 = vadd.f32 %v1414, %v1422
      %v1439 = vadd.f32 %v1415, %v1422
      %v1440 = vadd.f32 %v1416, %v1422
      %v1441 = vadd.f32 %v1417, %v1422
      %v1442 = vmax.f32 %v1424, 0.0
      %v1443 = vmax.f32 %v1425, 0.0
      %v1444 = vmax.f32 %v1426, 0.0
      %v1445 = vmax.f32 %v1427, 0.0
      %v1446 = vmax.f32 %v1428, 0.0
      %v1447 = vmax.f32 %v1429, 0.0
      %v1448 = vmax.f32 %v1430, 0.0
      %v1449 = vmax.f32 %v1431, 0.0
      %v1450 = vmax.f32 %v1432, 0.0
      %v1451 = vmax.f32 %v1433, 0.0
      %v1452 = vmax.f32 %v1434, 0.0
      %v1453 = vmax.f32 %v1435, 0.0
      %v1454 = vmax.f32 %v1436, 0.0
      %v1455 = vmax.f32 %v1437, 0.0
      %v1456 = vmax.f32 %v1438, 0.0
      %v1457 = vmax.f32 %v1439, 0.0
      %v1458 = vmax.f32 %v1440, 0.0
      %v1459 = vmax.f32 %v1441, 0.0
      %v1463 = vlaneseq
      %v1464 = vshrl.u32 %v1463, 7
      %v1465 = vsub.s32 0, %v1464
      %v1466 = vrot.slane %v307, %v1465
      %v1467 = vlaneseq
      %v1468 = vshrl.u32 %v1467, 7
      %v1469 = vsub.s32 1, %v1468
      %v1470 = vrot.slane %v307, %v1469
      %v1471 = vlaneseq
      %v1472 = vshrl.u32 %v1471, 7
      %v1473 = vsub.s32 2, %v1472
      %v1474 = vrot.slane %v307, %v1473
      %v1475 = vlaneseq
      %v1476 = vshrl.u32 %v1475, 7
      %v1477 = vsub.s32 3, %v1476
      %v1478 = vrot.slane %v307, %v1477
      %v1479 = vlaneseq
      %v1480 = vshrl.u32 %v1479, 7
      %v1481 = vsub.s32 4, %v1480
      %v1482 = vrot.slane %v307, %v1481
      %v1483 = vlaneseq
      %v1484 = vshrl.u32 %v1483, 7
      %v1485 = vsub.s32 5, %v1484
      %v1486 = vrot.slane %v307, %v1485
      %v1487 = vlaneseq
      %v1488 = vshrl.u32 %v1487, 7
      %v1489 = vsub.s32 6, %v1488
      %v1490 = vrot.slane %v307, %v1489
      %v1491 = vlaneseq
      %v1492 = vshrl.u32 %v1491, 7
      %v1493 = vsub.s32 7, %v1492
      %v1494 = vrot.slane %v307, %v1493
      %v1495 = vlaneseq
      %v1496 = vshrl.u32 %v1495, 7
      %v1497 = vsub.s32 0, %v1496
      %v1498 = vrot.slane %v308, %v1497
      %v1499 = vlaneseq
      %v1500 = vshrl.u32 %v1499, 7
      %v1501 = vsub.s32 1, %v1500
      %v1502 = vrot.slane %v308, %v1501
      %v1503 = vlaneseq
      %v1504 = vshrl.u32 %v1503, 7
      %v1505 = vsub.s32 2, %v1504
      %v1506 = vrot.slane %v308, %v1505
      %v1507 = vlaneseq
      %v1508 = vshrl.u32 %v1507, 7
      %v1509 = vsub.s32 3, %v1508
      %v1510 = vrot.slane %v308, %v1509
      %v1511 = vlaneseq
      %v1512 = vshrl.u32 %v1511, 7
      %v1513 = vsub.s32 4, %v1512
      %v1514 = vrot.slane %v308, %v1513
      %v1515 = vlaneseq
      %v1516 = vshrl.u32 %v1515, 7
      %v1517 = vsub.s32 5, %v1516
      %v1518 = vrot.slane %v308, %v1517
      %v1519 = vlaneseq
      %v1520 = vshrl.u32 %v1519, 7
      %v1521 = vsub.s32 6, %v1520
      %v1522 = vrot.slane %v308, %v1521
      %v1523 = vlaneseq
      %v1524 = vshrl.u32 %v1523, 7
      %v1525 = vsub.s32 7, %v1524
      %v1526 = vrot.slane %v308, %v1525
      %v1527 = vlaneseq
      %v1528 = vshrl.u32 %v1527, 7
      %v1529 = vsub.s32 0, %v1528
      %v1530 = vrot.slane %v309, %v1529
      %v1531 = vlaneseq
      %v1532 = vshrl.u32 %v1531, 7
      %v1533 = vsub.s32 1, %v1532
      %v1534 = vrot.slane %v309, %v1533
      %v1553 = vmul.f32 %v1442, %v1466
      %v1554 = vmul.f32 %v1443, %v1470
      %v1555 = vmul.f32 %v1444, %v1474
      %v1556 = vmul.f32 %v1445, %v1478
      %v1557 = vmul.f32 %v1446, %v1482
      %v1558 = vmul.f32 %v1447, %v1486
      %v1559 = vmul.f32 %v1448, %v1490
      %v1560 = vmul.f32 %v1449, %v1494
      %v1561 = vmul.f32 %v1450, %v1498
      %v1562 = vmul.f32 %v1451, %v1502
      %v1563 = vmul.f32 %v1452, %v1506
      %v1564 = vmul.f32 %v1453, %v1510
      %v1565 = vmul.f32 %v1454, %v1514
      %v1566 = vmul.f32 %v1455, %v1518
      %v1567 = vmul.f32 %v1456, %v1522
      %v1568 = vmul.f32 %v1457, %v1526
      %v1569 = vmul.f32 %v1458, %v1530
      %v1570 = vmul.f32 %v1459, %v1534
      %1571 = vrot.lane.b32.xlu0 %v1553, 19
      %v1572 = vpop.permute.xlu0 %1571
      %1573 = vrot.lane.b32.xlu0 %v1554, 19
      %v1574 = vpop.permute.xlu0 %1573
      %1575 = vrot.lane.b32.xlu0 %v1555, 19
      %v1576 = vpop.permute.xlu0 %1575
      %1577 = vrot.lane.b32.xlu0 %v1556, 19
      %v1578 = vpop.permute.xlu0 %1577
      %1579 = vrot.lane.b32.xlu0 %v1557, 19
      %v1580 = vpop.permute.xlu0 %1579
      %1581 = vrot.lane.b32.xlu0 %v1558, 19
      %v1582 = vpop.permute.xlu0 %1581
      %1583 = vrot.lane.b32.xlu0 %v1559, 19
      %v1584 = vpop.permute.xlu0 %1583
      %1585 = vrot.lane.b32.xlu0 %v1560, 19
      %v1586 = vpop.permute.xlu0 %1585
      %1587 = vrot.lane.b32.xlu0 %v1561, 19
      %v1588 = vpop.permute.xlu0 %1587
      %1589 = vrot.lane.b32.xlu0 %v1562, 19
      %v1590 = vpop.permute.xlu0 %1589
      %1591 = vrot.lane.b32.xlu0 %v1563, 19
      %v1592 = vpop.permute.xlu0 %1591
      %1593 = vrot.lane.b32.xlu0 %v1564, 19
      %v1594 = vpop.permute.xlu0 %1593
      %1595 = vrot.lane.b32.xlu0 %v1565, 19
      %v1596 = vpop.permute.xlu0 %1595
      %1597 = vrot.lane.b32.xlu0 %v1569, 19
      %v1598 = vpop.permute.xlu0 %1597
      %1599 = vrot.lane.b32.xlu0 %v1570, 19
      %v1600 = vpop.permute.xlu0 %1599
      %v1601 = vsel %vm375, %v1598, %v1600
      %v1602 = vsel %vm375, %v1594, %v1596
      %v1603 = vsel %vm375, %v1592, %v1594
      %v1604 = vsel %vm375, %v1590, %v1592
      %v1605 = vsel %vm375, %v1588, %v1590
      %v1606 = vsel %vm375, %v1586, %v1588
      %v1607 = vsel %vm375, %v1584, %v1586
      %v1608 = vsel %vm375, %v1582, %v1584
      %v1609 = vsel %vm375, %v1580, %v1582
      %v1610 = vsel %vm375, %v1578, %v1580
      %v1611 = vsel %vm375, %v1576, %v1578
      %v1612 = vsel %vm375, %v1574, %v1576
      %v1613 = vsel %vm375, %v1572, %v1574
      %v1614 = vsel %vm375, %v1600, %v1572
      %1615 = vrot.lane.b32.xlu0 %v1553, 18
      %v1616 = vpop.permute.xlu0 %1615
      %1617 = vrot.lane.b32.xlu0 %v1554, 18
      %v1618 = vpop.permute.xlu0 %1617
      %1619 = vrot.lane.b32.xlu0 %v1555, 18
      %v1620 = vpop.permute.xlu0 %1619
      %1621 = vrot.lane.b32.xlu0 %v1556, 18
      %v1622 = vpop.permute.xlu0 %1621
      %1623 = vrot.lane.b32.xlu0 %v1557, 18
      %v1624 = vpop.permute.xlu0 %1623
      %1625 = vrot.lane.b32.xlu0 %v1558, 18
      %v1626 = vpop.permute.xlu0 %1625
      %1627 = vrot.lane.b32.xlu0 %v1559, 18
      %v1628 = vpop.permute.xlu0 %1627
      %1629 = vrot.lane.b32.xlu0 %v1560, 18
      %v1630 = vpop.permute.xlu0 %1629
      %1631 = vrot.lane.b32.xlu0 %v1561, 18
      %v1632 = vpop.permute.xlu0 %1631
      %1633 = vrot.lane.b32.xlu0 %v1562, 18
      %v1634 = vpop.permute.xlu0 %1633
      %1635 = vrot.lane.b32.xlu0 %v1563, 18
      %v1636 = vpop.permute.xlu0 %1635
      %1637 = vrot.lane.b32.xlu0 %v1564, 18
      %v1638 = vpop.permute.xlu0 %1637
      %1639 = vrot.lane.b32.xlu0 %v1565, 18
      %v1640 = vpop.permute.xlu0 %1639
      %1641 = vrot.lane.b32.xlu0 %v1569, 18
      %v1642 = vpop.permute.xlu0 %1641
      %1643 = vrot.lane.b32.xlu0 %v1570, 18
      %v1644 = vpop.permute.xlu0 %1643
      %v1645 = vsel %vm430, %v1642, %v1644
      %v1646 = vsel %vm430, %v1638, %v1640
      %v1647 = vsel %vm430, %v1636, %v1638
      %v1648 = vsel %vm430, %v1634, %v1636
      %v1649 = vsel %vm430, %v1632, %v1634
      %v1650 = vsel %vm430, %v1630, %v1632
      %v1651 = vsel %vm430, %v1628, %v1630
      %v1652 = vsel %vm430, %v1626, %v1628
      %v1653 = vsel %vm430, %v1624, %v1626
      %v1654 = vsel %vm430, %v1622, %v1624
      %v1655 = vsel %vm430, %v1620, %v1622
      %v1656 = vsel %vm430, %v1618, %v1620
      %v1657 = vsel %vm430, %v1616, %v1618
      %v1658 = vsel %vm430, %v1644, %v1616
      %1659 = vrot.lane.b32.xlu0 %v1553, 17
      %v1660 = vpop.permute.xlu0 %1659
      %1661 = vrot.lane.b32.xlu0 %v1554, 17
      %v1662 = vpop.permute.xlu0 %1661
      %1663 = vrot.lane.b32.xlu0 %v1555, 17
      %v1664 = vpop.permute.xlu0 %1663
      %1665 = vrot.lane.b32.xlu0 %v1556, 17
      %v1666 = vpop.permute.xlu0 %1665
      %1667 = vrot.lane.b32.xlu0 %v1557, 17
      %v1668 = vpop.permute.xlu0 %1667
      %1669 = vrot.lane.b32.xlu0 %v1558, 17
      %v1670 = vpop.permute.xlu0 %1669
      %1671 = vrot.lane.b32.xlu0 %v1559, 17
      %v1672 = vpop.permute.xlu0 %1671
      %1673 = vrot.lane.b32.xlu0 %v1560, 17
      %v1674 = vpop.permute.xlu0 %1673
      %1675 = vrot.lane.b32.xlu0 %v1561, 17
      %v1676 = vpop.permute.xlu0 %1675
      %1677 = vrot.lane.b32.xlu0 %v1562, 17
      %v1678 = vpop.permute.xlu0 %1677
      %1679 = vrot.lane.b32.xlu0 %v1563, 17
      %v1680 = vpop.permute.xlu0 %1679
      %1681 = vrot.lane.b32.xlu0 %v1564, 17
      %v1682 = vpop.permute.xlu0 %1681
      %1683 = vrot.lane.b32.xlu0 %v1565, 17
      %v1684 = vpop.permute.xlu0 %1683
      %1685 = vrot.lane.b32.xlu0 %v1569, 17
      %v1686 = vpop.permute.xlu0 %1685
      %1687 = vrot.lane.b32.xlu0 %v1570, 17
      %v1688 = vpop.permute.xlu0 %1687
      %v1689 = vsel %vm485, %v1686, %v1688
      %v1690 = vsel %vm485, %v1682, %v1684
      %v1691 = vsel %vm485, %v1680, %v1682
      %v1692 = vsel %vm485, %v1678, %v1680
      %v1693 = vsel %vm485, %v1676, %v1678
      %v1694 = vsel %vm485, %v1674, %v1676
      %v1695 = vsel %vm485, %v1672, %v1674
      %v1696 = vsel %vm485, %v1670, %v1672
      %v1697 = vsel %vm485, %v1668, %v1670
      %v1698 = vsel %vm485, %v1666, %v1668
      %v1699 = vsel %vm485, %v1664, %v1666
      %v1700 = vsel %vm485, %v1662, %v1664
      %v1701 = vsel %vm485, %v1660, %v1662
      %v1702 = vsel %vm485, %v1688, %v1660
      %1703 = vrot.lane.b32.xlu0 %v1553, 1
      %v1704 = vpop.permute.xlu0 %1703
      %1705 = vrot.lane.b32.xlu0 %v1554, 1
      %v1706 = vpop.permute.xlu0 %1705
      %1707 = vrot.lane.b32.xlu0 %v1555, 1
      %v1708 = vpop.permute.xlu0 %1707
      %1709 = vrot.lane.b32.xlu0 %v1556, 1
      %v1710 = vpop.permute.xlu0 %1709
      %1711 = vrot.lane.b32.xlu0 %v1557, 1
      %v1712 = vpop.permute.xlu0 %1711
      %1713 = vrot.lane.b32.xlu0 %v1558, 1
      %v1714 = vpop.permute.xlu0 %1713
      %1715 = vrot.lane.b32.xlu0 %v1559, 1
      %v1716 = vpop.permute.xlu0 %1715
      %1717 = vrot.lane.b32.xlu0 %v1560, 1
      %v1718 = vpop.permute.xlu0 %1717
      %1719 = vrot.lane.b32.xlu0 %v1561, 1
      %v1720 = vpop.permute.xlu0 %1719
      %1721 = vrot.lane.b32.xlu0 %v1562, 1
      %v1722 = vpop.permute.xlu0 %1721
      %1723 = vrot.lane.b32.xlu0 %v1563, 1
      %v1724 = vpop.permute.xlu0 %1723
      %1725 = vrot.lane.b32.xlu0 %v1564, 1
      %v1726 = vpop.permute.xlu0 %1725
      %1727 = vrot.lane.b32.xlu0 %v1565, 1
      %v1728 = vpop.permute.xlu0 %1727
      %1729 = vrot.lane.b32.xlu0 %v1569, 1
      %v1730 = vpop.permute.xlu0 %1729
      %1731 = vrot.lane.b32.xlu0 %v1570, 1
      %v1732 = vpop.permute.xlu0 %1731
      %v1733 = vsel %vm540, %v1730, %v1732
      %v1734 = vsel %vm540, %v1726, %v1728
      %v1735 = vsel %vm540, %v1724, %v1726
      %v1736 = vsel %vm540, %v1722, %v1724
      %v1737 = vsel %vm540, %v1720, %v1722
      %v1738 = vsel %vm540, %v1718, %v1720
      %v1739 = vsel %vm540, %v1716, %v1718
      %v1740 = vsel %vm540, %v1714, %v1716
      %v1741 = vsel %vm540, %v1712, %v1714
      %v1742 = vsel %vm540, %v1710, %v1712
      %v1743 = vsel %vm540, %v1708, %v1710
      %v1744 = vsel %vm540, %v1706, %v1708
      %v1745 = vsel %vm540, %v1704, %v1706
      %v1746 = vsel %vm540, %v1732, %v1704
      %1747 = vrot.lane.b32.xlu0 %v1553, 127
      %v1748 = vpop.permute.xlu0 %1747
      %1749 = vrot.lane.b32.xlu0 %v1554, 127
      %v1750 = vpop.permute.xlu0 %1749
      %1751 = vrot.lane.b32.xlu0 %v1555, 127
      %v1752 = vpop.permute.xlu0 %1751
      %1753 = vrot.lane.b32.xlu0 %v1556, 127
      %v1754 = vpop.permute.xlu0 %1753
      %1755 = vrot.lane.b32.xlu0 %v1557, 127
      %v1756 = vpop.permute.xlu0 %1755
      %1757 = vrot.lane.b32.xlu0 %v1558, 127
      %v1758 = vpop.permute.xlu0 %1757
      %1759 = vrot.lane.b32.xlu0 %v1559, 127
      %v1760 = vpop.permute.xlu0 %1759
      %1761 = vrot.lane.b32.xlu0 %v1560, 127
      %v1762 = vpop.permute.xlu0 %1761
      %1763 = vrot.lane.b32.xlu0 %v1561, 127
      %v1764 = vpop.permute.xlu0 %1763
      %1765 = vrot.lane.b32.xlu0 %v1562, 127
      %v1766 = vpop.permute.xlu0 %1765
      %1767 = vrot.lane.b32.xlu0 %v1563, 127
      %v1768 = vpop.permute.xlu0 %1767
      %1769 = vrot.lane.b32.xlu0 %v1564, 127
      %v1770 = vpop.permute.xlu0 %1769
      %1771 = vrot.lane.b32.xlu0 %v1565, 127
      %v1772 = vpop.permute.xlu0 %1771
      %1773 = vrot.lane.b32.xlu0 %v1566, 127
      %v1774 = vpop.permute.xlu0 %1773
      %1775 = vrot.lane.b32.xlu0 %v1570, 127
      %v1776 = vpop.permute.xlu0 %1775
      %v1777 = vsel %vm595, %v1772, %v1774
      %v1778 = vsel %vm595, %v1770, %v1772
      %v1779 = vsel %vm595, %v1768, %v1770
      %v1780 = vsel %vm595, %v1766, %v1768
      %v1781 = vsel %vm595, %v1764, %v1766
      %v1782 = vsel %vm595, %v1762, %v1764
      %v1783 = vsel %vm595, %v1760, %v1762
      %v1784 = vsel %vm595, %v1758, %v1760
      %v1785 = vsel %vm595, %v1756, %v1758
      %v1786 = vsel %vm595, %v1754, %v1756
      %v1787 = vsel %vm595, %v1752, %v1754
      %v1788 = vsel %vm595, %v1750, %v1752
      %v1789 = vsel %vm595, %v1748, %v1750
      %v1790 = vsel %vm595, %v1776, %v1748
      %1791 = vrot.lane.b32.xlu0 %v1553, 111
      %v1792 = vpop.permute.xlu0 %1791
      %1793 = vrot.lane.b32.xlu0 %v1554, 111
      %v1794 = vpop.permute.xlu0 %1793
      %1795 = vrot.lane.b32.xlu0 %v1555, 111
      %v1796 = vpop.permute.xlu0 %1795
      %1797 = vrot.lane.b32.xlu0 %v1556, 111
      %v1798 = vpop.permute.xlu0 %1797
      %1799 = vrot.lane.b32.xlu0 %v1557, 111
      %v1800 = vpop.permute.xlu0 %1799
      %1801 = vrot.lane.b32.xlu0 %v1558, 111
      %v1802 = vpop.permute.xlu0 %1801
      %1803 = vrot.lane.b32.xlu0 %v1559, 111
      %v1804 = vpop.permute.xlu0 %1803
      %1805 = vrot.lane.b32.xlu0 %v1560, 111
      %v1806 = vpop.permute.xlu0 %1805
      %1807 = vrot.lane.b32.xlu0 %v1561, 111
      %v1808 = vpop.permute.xlu0 %1807
      %1809 = vrot.lane.b32.xlu0 %v1562, 111
      %v1810 = vpop.permute.xlu0 %1809
      %1811 = vrot.lane.b32.xlu0 %v1563, 111
      %v1812 = vpop.permute.xlu0 %1811
      %1813 = vrot.lane.b32.xlu0 %v1564, 111
      %v1814 = vpop.permute.xlu0 %1813
      %1815 = vrot.lane.b32.xlu0 %v1565, 111
      %v1816 = vpop.permute.xlu0 %1815
      %1817 = vrot.lane.b32.xlu0 %v1566, 111
      %v1818 = vpop.permute.xlu0 %1817
      %1819 = vrot.lane.b32.xlu0 %v1570, 111
      %v1820 = vpop.permute.xlu0 %1819
      %v1821 = vsel %vm650, %v1816, %v1818
      %v1822 = vsel %vm650, %v1814, %v1816
      %v1823 = vsel %vm650, %v1812, %v1814
      %v1824 = vsel %vm650, %v1810, %v1812
      %v1825 = vsel %vm650, %v1808, %v1810
      %v1826 = vsel %vm650, %v1806, %v1808
      %v1827 = vsel %vm650, %v1804, %v1806
      %v1828 = vsel %vm650, %v1802, %v1804
      %v1829 = vsel %vm650, %v1800, %v1802
      %v1830 = vsel %vm650, %v1798, %v1800
      %v1831 = vsel %vm650, %v1796, %v1798
      %v1832 = vsel %vm650, %v1794, %v1796
      %v1833 = vsel %vm650, %v1792, %v1794
      %v1834 = vsel %vm650, %v1820, %v1792
      %1835 = vrot.lane.b32.xlu0 %v1553, 110
      %v1836 = vpop.permute.xlu0 %1835
      %1837 = vrot.lane.b32.xlu0 %v1554, 110
      %v1838 = vpop.permute.xlu0 %1837
      %1839 = vrot.lane.b32.xlu0 %v1555, 110
      %v1840 = vpop.permute.xlu0 %1839
      %1841 = vrot.lane.b32.xlu0 %v1556, 110
      %v1842 = vpop.permute.xlu0 %1841
      %1843 = vrot.lane.b32.xlu0 %v1557, 110
      %v1844 = vpop.permute.xlu0 %1843
      %1845 = vrot.lane.b32.xlu0 %v1558, 110
      %v1846 = vpop.permute.xlu0 %1845
      %1847 = vrot.lane.b32.xlu0 %v1559, 110
      %v1848 = vpop.permute.xlu0 %1847
      %1849 = vrot.lane.b32.xlu0 %v1560, 110
      %v1850 = vpop.permute.xlu0 %1849
      %1851 = vrot.lane.b32.xlu0 %v1561, 110
      %v1852 = vpop.permute.xlu0 %1851
      %1853 = vrot.lane.b32.xlu0 %v1562, 110
      %v1854 = vpop.permute.xlu0 %1853
      %1855 = vrot.lane.b32.xlu0 %v1563, 110
      %v1856 = vpop.permute.xlu0 %1855
      %1857 = vrot.lane.b32.xlu0 %v1564, 110
      %v1858 = vpop.permute.xlu0 %1857
      %1859 = vrot.lane.b32.xlu0 %v1565, 110
      %v1860 = vpop.permute.xlu0 %1859
      %1861 = vrot.lane.b32.xlu0 %v1566, 110
      %v1862 = vpop.permute.xlu0 %1861
      %1863 = vrot.lane.b32.xlu0 %v1570, 110
      %v1864 = vpop.permute.xlu0 %1863
      %v1865 = vsel %vm705, %v1860, %v1862
      %v1866 = vsel %vm705, %v1858, %v1860
      %v1867 = vsel %vm705, %v1856, %v1858
      %v1868 = vsel %vm705, %v1854, %v1856
      %v1869 = vsel %vm705, %v1852, %v1854
      %v1870 = vsel %vm705, %v1850, %v1852
      %v1871 = vsel %vm705, %v1848, %v1850
      %v1872 = vsel %vm705, %v1846, %v1848
      %v1873 = vsel %vm705, %v1844, %v1846
      %v1874 = vsel %vm705, %v1842, %v1844
      %v1875 = vsel %vm705, %v1840, %v1842
      %v1876 = vsel %vm705, %v1838, %v1840
      %v1877 = vsel %vm705, %v1836, %v1838
      %v1878 = vsel %vm705, %v1864, %v1836
      %1879 = vrot.lane.b32.xlu0 %v1553, 109
      %v1880 = vpop.permute.xlu0 %1879
      %1881 = vrot.lane.b32.xlu0 %v1554, 109
      %v1882 = vpop.permute.xlu0 %1881
      %1883 = vrot.lane.b32.xlu0 %v1555, 109
      %v1884 = vpop.permute.xlu0 %1883
      %1885 = vrot.lane.b32.xlu0 %v1556, 109
      %v1886 = vpop.permute.xlu0 %1885
      %1887 = vrot.lane.b32.xlu0 %v1557, 109
      %v1888 = vpop.permute.xlu0 %1887
      %1889 = vrot.lane.b32.xlu0 %v1558, 109
      %v1890 = vpop.permute.xlu0 %1889
      %1891 = vrot.lane.b32.xlu0 %v1559, 109
      %v1892 = vpop.permute.xlu0 %1891
      %1893 = vrot.lane.b32.xlu0 %v1560, 109
      %v1894 = vpop.permute.xlu0 %1893
      %1895 = vrot.lane.b32.xlu0 %v1561, 109
      %v1896 = vpop.permute.xlu0 %1895
      %1897 = vrot.lane.b32.xlu0 %v1562, 109
      %v1898 = vpop.permute.xlu0 %1897
      %1899 = vrot.lane.b32.xlu0 %v1563, 109
      %v1900 = vpop.permute.xlu0 %1899
      %1901 = vrot.lane.b32.xlu0 %v1564, 109
      %v1902 = vpop.permute.xlu0 %1901
      %1903 = vrot.lane.b32.xlu0 %v1565, 109
      %v1904 = vpop.permute.xlu0 %1903
      %1905 = vrot.lane.b32.xlu0 %v1566, 109
      %v1906 = vpop.permute.xlu0 %1905
      %1907 = vrot.lane.b32.xlu0 %v1570, 109
      %v1908 = vpop.permute.xlu0 %1907
      %v1909 = vsel %vm760, %v1904, %v1906
      %v1910 = vsel %vm760, %v1902, %v1904
      %v1911 = vsel %vm760, %v1900, %v1902
      %v1912 = vsel %vm760, %v1898, %v1900
      %v1913 = vsel %vm760, %v1896, %v1898
      %v1914 = vsel %vm760, %v1894, %v1896
      %v1915 = vsel %vm760, %v1892, %v1894
      %v1916 = vsel %vm760, %v1890, %v1892
      %v1917 = vsel %vm760, %v1888, %v1890
      %v1918 = vsel %vm760, %v1886, %v1888
      %v1919 = vsel %vm760, %v1884, %v1886
      %v1920 = vsel %vm760, %v1882, %v1884
      %v1921 = vsel %vm760, %v1880, %v1882
      %v1922 = vsel %vm760, %v1908, %v1880
      %1923 = vrot.lane.b32.xlu0 %v1566, 19
      %v1924 = vpop.permute.xlu0 %1923
      %1925 = vrot.lane.b32.xlu0 %v1567, 19
      %v1926 = vpop.permute.xlu0 %1925
      %1927 = vrot.lane.b32.xlu0 %v1568, 19
      %v1928 = vpop.permute.xlu0 %1927
      %v1929 = vsel %vm375, %v1926, %v1928
      %v1930 = vsel %vm375, %v1924, %v1926
      %v1931 = vsel %vm375, %v1596, %v1924
      %1932 = vrot.lane.b32.xlu0 %v1566, 18
      %v1933 = vpop.permute.xlu0 %1932
      %1934 = vrot.lane.b32.xlu0 %v1567, 18
      %v1935 = vpop.permute.xlu0 %1934
      %1936 = vrot.lane.b32.xlu0 %v1568, 18
      %v1937 = vpop.permute.xlu0 %1936
      %v1938 = vsel %vm430, %v1935, %v1937
      %v1939 = vsel %vm430, %v1933, %v1935
      %v1940 = vsel %vm430, %v1640, %v1933
      %1941 = vrot.lane.b32.xlu0 %v1566, 17
      %v1942 = vpop.permute.xlu0 %1941
      %1943 = vrot.lane.b32.xlu0 %v1567, 17
      %v1944 = vpop.permute.xlu0 %1943
      %1945 = vrot.lane.b32.xlu0 %v1568, 17
      %v1946 = vpop.permute.xlu0 %1945
      %v1947 = vsel %vm485, %v1944, %v1946
      %v1948 = vsel %vm485, %v1942, %v1944
      %v1949 = vsel %vm485, %v1684, %v1942
      %1950 = vrot.lane.b32.xlu0 %v1566, 1
      %v1951 = vpop.permute.xlu0 %1950
      %1952 = vrot.lane.b32.xlu0 %v1567, 1
      %v1953 = vpop.permute.xlu0 %1952
      %1954 = vrot.lane.b32.xlu0 %v1568, 1
      %v1955 = vpop.permute.xlu0 %1954
      %v1956 = vsel %vm540, %v1953, %v1955
      %v1957 = vsel %vm540, %v1951, %v1953
      %v1958 = vsel %vm540, %v1728, %v1951
      %1959 = vrot.lane.b32.xlu0 %v1567, 127
      %v1960 = vpop.permute.xlu0 %1959
      %1961 = vrot.lane.b32.xlu0 %v1568, 127
      %v1962 = vpop.permute.xlu0 %1961
      %1963 = vrot.lane.b32.xlu0 %v1569, 127
      %v1964 = vpop.permute.xlu0 %1963
      %v1965 = vsel %vm595, %v1962, %v1964
      %v1966 = vsel %vm595, %v1960, %v1962
      %v1967 = vsel %vm595, %v1774, %v1960
      %1968 = vrot.lane.b32.xlu0 %v1567, 111
      %v1969 = vpop.permute.xlu0 %1968
      %1970 = vrot.lane.b32.xlu0 %v1568, 111
      %v1971 = vpop.permute.xlu0 %1970
      %1972 = vrot.lane.b32.xlu0 %v1569, 111
      %v1973 = vpop.permute.xlu0 %1972
      %v1974 = vsel %vm650, %v1971, %v1973
      %v1975 = vsel %vm650, %v1969, %v1971
      %v1976 = vsel %vm650, %v1818, %v1969
      %1977 = vrot.lane.b32.xlu0 %v1567, 110
      %v1978 = vpop.permute.xlu0 %1977
      %1979 = vrot.lane.b32.xlu0 %v1568, 110
      %v1980 = vpop.permute.xlu0 %1979
      %1981 = vrot.lane.b32.xlu0 %v1569, 110
      %v1982 = vpop.permute.xlu0 %1981
      %v1983 = vsel %vm705, %v1980, %v1982
      %v1984 = vsel %vm705, %v1978, %v1980
      %v1985 = vsel %vm705, %v1862, %v1978
      %1986 = vrot.lane.b32.xlu0 %v1567, 109
      %v1987 = vpop.permute.xlu0 %1986
      %1988 = vrot.lane.b32.xlu0 %v1568, 109
      %v1989 = vpop.permute.xlu0 %1988
      %1990 = vrot.lane.b32.xlu0 %v1569, 109
      %v1991 = vpop.permute.xlu0 %1990
      %v1992 = vsel %vm760, %v1989, %v1991
      %v1993 = vsel %vm760, %v1987, %v1989
      %v1994 = vsel %vm760, %v1906, %v1987
      %v1995 = vsel %vm375, %v1928, %v1598
      %v1996 = vsel %vm430, %v1937, %v1642
      %v1997 = vsel %vm485, %v1946, %v1686
      %v1998 = vsel %vm540, %v1955, %v1730
      %v1999 = vsel %vm595, %v1964, %v1776
      %v2000 = vsel %vm650, %v1973, %v1820
      %v2001 = vsel %vm705, %v1982, %v1864
      %v2002 = vsel %vm760, %v1991, %v1908
      %v2003 = vpack.c.bf16 %v1645, %v1601
      %v2004 = vpack.c.bf16 %v1658, %v1614
      %v2005 = vpack.c.bf16 %v1657, %v1613
      %v2006 = vpack.c.bf16 %v1656, %v1612
      %v2007 = vpack.c.bf16 %v1655, %v1611
      %v2008 = vpack.c.bf16 %v1654, %v1610
      %v2009 = vpack.c.bf16 %v1653, %v1609
      %v2010 = vpack.c.bf16 %v1652, %v1608
      %v2011 = vpack.c.bf16 %v1651, %v1607
      %v2012 = vpack.c.bf16 %v1650, %v1606
      %v2013 = vpack.c.bf16 %v1649, %v1605
      %v2014 = vpack.c.bf16 %v1648, %v1604
      %v2015 = vpack.c.bf16 %v1647, %v1603
      %v2016 = vpack.c.bf16 %v1646, %v1602
      %v2017 = vpack.c.bf16 %v1733, %v1689
      %v2018 = vpack.c.bf16 %v1746, %v1702
      %v2019 = vpack.c.bf16 %v1745, %v1701
      %v2020 = vpack.c.bf16 %v1744, %v1700
      %v2021 = vpack.c.bf16 %v1743, %v1699
      %v2022 = vpack.c.bf16 %v1742, %v1698
      %v2023 = vpack.c.bf16 %v1741, %v1697
      %v2024 = vpack.c.bf16 %v1740, %v1696
      %v2025 = vpack.c.bf16 %v1739, %v1695
      %v2026 = vpack.c.bf16 %v1738, %v1694
      %v2027 = vpack.c.bf16 %v1737, %v1693
      %v2028 = vpack.c.bf16 %v1736, %v1692
      %v2029 = vpack.c.bf16 %v1735, %v1691
      %v2030 = vpack.c.bf16 %v1734, %v1690
      %v2031 = vpack.c.bf16 %v1790, %v1570
      %v2032 = vpack.c.bf16 %v1789, %v1553
      %v2033 = vpack.c.bf16 %v1788, %v1554
      %v2034 = vpack.c.bf16 %v1787, %v1555
      %v2035 = vpack.c.bf16 %v1786, %v1556
      %v2036 = vpack.c.bf16 %v1785, %v1557
      %v2037 = vpack.c.bf16 %v1784, %v1558
      %v2038 = vpack.c.bf16 %v1783, %v1559
      %v2039 = vpack.c.bf16 %v1782, %v1560
      %v2040 = vpack.c.bf16 %v1781, %v1561
      %v2041 = vpack.c.bf16 %v1780, %v1562
      %v2042 = vpack.c.bf16 %v1779, %v1563
      %v2043 = vpack.c.bf16 %v1778, %v1564
      %v2044 = vpack.c.bf16 %v1777, %v1565
      %v2045 = vpack.c.bf16 %v1878, %v1834
      %v2046 = vpack.c.bf16 %v1877, %v1833
      %v2047 = vpack.c.bf16 %v1876, %v1832
      %v2048 = vpack.c.bf16 %v1875, %v1831
      %v2049 = vpack.c.bf16 %v1874, %v1830
      %v2050 = vpack.c.bf16 %v1873, %v1829
      %v2051 = vpack.c.bf16 %v1872, %v1828
      %v2052 = vpack.c.bf16 %v1871, %v1827
      %v2053 = vpack.c.bf16 %v1870, %v1826
      %v2054 = vpack.c.bf16 %v1869, %v1825
      %v2055 = vpack.c.bf16 %v1868, %v1824
      %v2056 = vpack.c.bf16 %v1867, %v1823
      %v2057 = vpack.c.bf16 %v1866, %v1822
      %v2058 = vpack.c.bf16 %v1865, %v1821
      %v2059 = vpack.c.bf16 %v1612, %v1922
      %v2060 = vpack.c.bf16 %v1611, %v1921
      %v2061 = vpack.c.bf16 %v1610, %v1920
      %v2062 = vpack.c.bf16 %v1609, %v1919
      %v2063 = vpack.c.bf16 %v1608, %v1918
      %v2064 = vpack.c.bf16 %v1607, %v1917
      %v2065 = vpack.c.bf16 %v1606, %v1916
      %v2066 = vpack.c.bf16 %v1605, %v1915
      %v2067 = vpack.c.bf16 %v1604, %v1914
      %v2068 = vpack.c.bf16 %v1603, %v1913
      %v2069 = vpack.c.bf16 %v1602, %v1912
      %v2070 = vpack.c.bf16 %v1931, %v1911
      %v2071 = vpack.c.bf16 %v1930, %v1910
      %v2072 = vpack.c.bf16 %v1929, %v1909
      %v2073 = vpack.c.bf16 %v1700, %v1656
      %v2074 = vpack.c.bf16 %v1699, %v1655
      %v2075 = vpack.c.bf16 %v1698, %v1654
      %v2076 = vpack.c.bf16 %v1697, %v1653
      %v2077 = vpack.c.bf16 %v1696, %v1652
      %v2078 = vpack.c.bf16 %v1695, %v1651
      %v2079 = vpack.c.bf16 %v1694, %v1650
      %v2080 = vpack.c.bf16 %v1693, %v1649
      %v2081 = vpack.c.bf16 %v1692, %v1648
      %v2082 = vpack.c.bf16 %v1691, %v1647
      %v2083 = vpack.c.bf16 %v1690, %v1646
      %v2084 = vpack.c.bf16 %v1949, %v1940
      %v2085 = vpack.c.bf16 %v1948, %v1939
      %v2086 = vpack.c.bf16 %v1947, %v1938
      %v2087 = vpack.c.bf16 %v1555, %v1744
      %v2088 = vpack.c.bf16 %v1556, %v1743
      %v2089 = vpack.c.bf16 %v1557, %v1742
      %v2090 = vpack.c.bf16 %v1558, %v1741
      %v2091 = vpack.c.bf16 %v1559, %v1740
      %v2092 = vpack.c.bf16 %v1560, %v1739
      %v2093 = vpack.c.bf16 %v1561, %v1738
      %v2094 = vpack.c.bf16 %v1562, %v1737
      %v2095 = vpack.c.bf16 %v1563, %v1736
      %v2096 = vpack.c.bf16 %v1564, %v1735
      %v2097 = vpack.c.bf16 %v1565, %v1734
      %v2098 = vpack.c.bf16 %v1566, %v1958
      %v2099 = vpack.c.bf16 %v1567, %v1957
      %v2100 = vpack.c.bf16 %v1568, %v1956
      %v2101 = vpack.c.bf16 %v1831, %v1787
      %v2102 = vpack.c.bf16 %v1830, %v1786
      %v2103 = vpack.c.bf16 %v1829, %v1785
      %v2104 = vpack.c.bf16 %v1828, %v1784
      %v2105 = vpack.c.bf16 %v1827, %v1783
      %v2106 = vpack.c.bf16 %v1826, %v1782
      %v2107 = vpack.c.bf16 %v1825, %v1781
      %v2108 = vpack.c.bf16 %v1824, %v1780
      %v2109 = vpack.c.bf16 %v1823, %v1779
      %v2110 = vpack.c.bf16 %v1822, %v1778
      %v2111 = vpack.c.bf16 %v1821, %v1777
      %v2112 = vpack.c.bf16 %v1976, %v1967
      %v2113 = vpack.c.bf16 %v1975, %v1966
      %v2114 = vpack.c.bf16 %v1974, %v1965
      %v2115 = vpack.c.bf16 %v1919, %v1875
      %v2116 = vpack.c.bf16 %v1918, %v1874
      %v2117 = vpack.c.bf16 %v1917, %v1873
      %v2118 = vpack.c.bf16 %v1916, %v1872
      %v2119 = vpack.c.bf16 %v1915, %v1871
      %v2120 = vpack.c.bf16 %v1914, %v1870
      %v2121 = vpack.c.bf16 %v1913, %v1869
      %v2122 = vpack.c.bf16 %v1912, %v1868
      %v2123 = vpack.c.bf16 %v1911, %v1867
      %v2124 = vpack.c.bf16 %v1910, %v1866
      %v2125 = vpack.c.bf16 %v1909, %v1865
      %v2126 = vpack.c.bf16 %v1994, %v1985
      %v2127 = vpack.c.bf16 %v1993, %v1984
      %v2128 = vpack.c.bf16 %v1992, %v1983
      %v2129 = vpack.c.bf16 %v1940, %v1931
      %v2130 = vpack.c.bf16 %v1939, %v1930
      %v2131 = vpack.c.bf16 %v1938, %v1929
      %v2132 = vpack.c.bf16 %v1996, %v1995
      %v2133 = vpack.c.bf16 %v1958, %v1949
      %v2134 = vpack.c.bf16 %v1957, %v1948
      %v2135 = vpack.c.bf16 %v1956, %v1947
      %v2136 = vpack.c.bf16 %v1998, %v1997
      %v2137 = vpack.c.bf16 %v1967, %v1566
      %v2138 = vpack.c.bf16 %v1966, %v1567
      %v2139 = vpack.c.bf16 %v1965, %v1568
      %v2140 = vpack.c.bf16 %v1999, %v1569
      %v2141 = vpack.c.bf16 %v1985, %v1976
      %v2142 = vpack.c.bf16 %v1984, %v1975
      %v2143 = vpack.c.bf16 %v1983, %v1974
      %v2144 = vpack.c.bf16 %v2001, %v2000
      %v2145 = vpack.c.bf16 %v1916, %v1916
      %v2146 = vpack.c.bf16 %v1915, %v1915
      %v2147 = vpack.c.bf16 %v1914, %v1914
      %v2148 = vpack.c.bf16 %v1913, %v1913
      %v2149 = vpack.c.bf16 %v1912, %v1912
      %v2150 = vpack.c.bf16 %v1911, %v1911
      %v2151 = vpack.c.bf16 %v1910, %v1910
      %v2152 = vpack.c.bf16 %v1909, %v1909
      %v2153 = vpack.c.bf16 %v1994, %v1994
      %v2154 = vpack.c.bf16 %v1993, %v1993
      %v2155 = vpack.c.bf16 %v1992, %v1992
      %v2156 = vpack.c.bf16 %v2002, %v2002
      %v2157 = vpack.c.bf16 %v1922, %v1922
      %v2158 = vpack.c.bf16 %v1921, %v1921
      %v2159 = vld [vmem:[%s4] sm:$0xff]
      %v2161 = vunpack.c.l.b16 %v2159
      %v2162 = vunpack.c.h.b16 %v2159
      %v2163 = vpack.c.b16 %v2161, %v2161
      %v2164 = vpack.c.b16 %v2162, %v2162
      %v2167 = vsel %vm966, %v2164, 0
      %v2170 = vsel %vm970, %v2145, 0
      %v2173 = vsel %vm970, %v2146, 0
      %v2176 = vsel %vm970, %v2147, 0
      %v2179 = vsel %vm970, %v2148, 0
      %v2182 = vsel %vm970, %v2149, 0
      %v2185 = vsel %vm970, %v2150, 0
      %v2188 = vsel %vm970, %v2151, 0
      %v2191 = vsel %vm970, %v2152, 0
      %v2194 = vsel %vm970, %v2153, 0
      %v2197 = vsel %vm970, %v2154, 0
      %v2200 = vsel %vm970, %v2155, 0
      %v2203 = vsel %vm970, %v2156, 0
      %v2206 = vsel %vm970, %v2157, 0
      %v2209 = vsel %vm970, %v2158, 0
      %2211 = vmatprep.subr.bf16.mxu0 %v2004
      %2212 = vmatpush1.bf16.msra.mxu0 %v2003
      %2213 = vmatprep.subr.bf16.mxu0 %v2018
      %2214 = vmatpush1.bf16.msra.mxu0 %v2017
      %2215 = vmatprep.subr.bf16.mxu0 %v2032
      %2216 = vmatpush1.bf16.msra.mxu0 %v2031
      %2217 = vmatprep.subr.bf16.mxu0 %v2046
      %2218 = vmatpush1.bf16.msra.mxu0 %v2045
      %2219 = vmatprep.subr.bf16.mxu0 %v2060
      %2220 = vmatpush1.bf16.msra.mxu0 %v2059
      %2221 = vmatprep.subr.bf16.mxu0 %v2074
      %2222 = vmatpush1.bf16.msra.mxu0 %v2073
      %2223 = vmatprep.subr.bf16.mxu0 %v2088
      %2224 = vmatpush1.bf16.msra.mxu0 %v2087
      %2225 = vmatprep.subr.bf16.mxu0 %v2102
      %2226 = vmatpush1.bf16.msra.mxu0 %v2101
      %2227 = vmatprep.subr.bf16.mxu0 %v2116
      %2228 = vmatpush1.bf16.msra.mxu0 %v2115
      %2229 = vmatprep.subr.bf16.mxu0 %v2010
      %2230 = vmatpush1.bf16.msra.mxu0 %v2009
      %2231 = vmatprep.subr.bf16.mxu0 %v2024
      %2232 = vmatpush1.bf16.msra.mxu0 %v2023
      %2233 = vmatprep.subr.bf16.mxu0 %v2038
      %2234 = vmatpush1.bf16.msra.mxu0 %v2037
      %2235 = vmatprep.subr.bf16.mxu0 %v2052
      %2236 = vmatpush1.bf16.msra.mxu0 %v2051
      %2237 = vmatprep.subr.bf16.mxu0 %v2173
      %2238 = vmatpush1.bf16.msra.mxu0 %v2170
      %2239 = vmatprep.subr.bf16.mxu0 0
      %2240 = vmatpush1.bf16.msra.mxu0 0
      %2241 = vmatprep.subr.bf16.mxu0 0
      %2242 = vmatpush1.bf16.msra.mxu0 0
      %2243 = vmatprep.mubr.bf16.mxu0 %v2167
      %2244 = vmatmul.mubr.bf16.gmra.mrb[0].mxu0 %v2163
      %v2245 = vpop.f32.mrb[0].mxu0
      %v2246 = vpop.f32.mrb[0].mxu0
      %v2247 = vadd.f32 0.0, %v2246
      %v2248 = vpop.f32.mrb[0].mxu0
      %v2249 = vpop.f32.mrb[0].mxu0
      %2250 = vdwg.mxu0
      %2251 = vmatprep.subr.bf16.mxu0 %v2006
      %2252 = vmatpush1.bf16.msra.mxu0 %v2005
      %2253 = vmatprep.subr.bf16.mxu0 %v2020
      %2254 = vmatpush1.bf16.msra.mxu0 %v2019
      %2255 = vmatprep.subr.bf16.mxu0 %v2034
      %2256 = vmatpush1.bf16.msra.mxu0 %v2033
      %2257 = vmatprep.subr.bf16.mxu0 %v2048
      %2258 = vmatpush1.bf16.msra.mxu0 %v2047
      %2259 = vmatprep.subr.bf16.mxu0 %v2062
      %2260 = vmatpush1.bf16.msra.mxu0 %v2061
      %2261 = vmatprep.subr.bf16.mxu0 %v2076
      %2262 = vmatpush1.bf16.msra.mxu0 %v2075
      %2263 = vmatprep.subr.bf16.mxu0 %v2090
      %2264 = vmatpush1.bf16.msra.mxu0 %v2089
      %2265 = vmatprep.subr.bf16.mxu0 %v2104
      %2266 = vmatpush1.bf16.msra.mxu0 %v2103
      %2267 = vmatprep.subr.bf16.mxu0 %v2118
      %2268 = vmatpush1.bf16.msra.mxu0 %v2117
      %2269 = vmatprep.subr.bf16.mxu0 %v2012
      %2270 = vmatpush1.bf16.msra.mxu0 %v2011
      %2271 = vmatprep.subr.bf16.mxu0 %v2026
      %2272 = vmatpush1.bf16.msra.mxu0 %v2025
      %2273 = vmatprep.subr.bf16.mxu0 %v2040
      %2274 = vmatpush1.bf16.msra.mxu0 %v2039
      %2275 = vmatprep.subr.bf16.mxu0 %v2054
      %2276 = vmatpush1.bf16.msra.mxu0 %v2053
      %2277 = vmatprep.subr.bf16.mxu0 %v2179
      %2278 = vmatpush1.bf16.msra.mxu0 %v2176
      %2279 = vmatprep.subr.bf16.mxu0 0
      %2280 = vmatpush1.bf16.msra.mxu0 0
      %2281 = vmatprep.subr.bf16.mxu0 0
      %2282 = vmatpush1.bf16.msra.mxu0 0
      %2283 = vmatprep.mubr.bf16.mxu0 %v2167
      %2284 = vmatmul.mubr.bf16.gmra.mrb[0].mxu0 %v2163
      %v2285 = vpop.f32.mrb[0].mxu0
      %v2286 = vadd.f32 0.0, %v2285
      %v2287 = vpop.f32.mrb[0].mxu0
      %v2288 = vadd.f32 0.0, %v2287
      %v2289 = vpop.f32.mrb[0].mxu0
      %v2290 = vpop.f32.mrb[0].mxu0
      %2291 = vdwg.mxu0
      %2292 = vmatprep.subr.bf16.mxu0 %v2008
      %2293 = vmatpush1.bf16.msra.mxu0 %v2007
      %2294 = vmatprep.subr.bf16.mxu0 %v2022
      %2295 = vmatpush1.bf16.msra.mxu0 %v2021
      %2296 = vmatprep.subr.bf16.mxu0 %v2036
      %2297 = vmatpush1.bf16.msra.mxu0 %v2035
      %2298 = vmatprep.subr.bf16.mxu0 %v2050
      %2299 = vmatpush1.bf16.msra.mxu0 %v2049
      %2300 = vmatprep.subr.bf16.mxu0 %v2064
      %2301 = vmatpush1.bf16.msra.mxu0 %v2063
      %2302 = vmatprep.subr.bf16.mxu0 %v2078
      %2303 = vmatpush1.bf16.msra.mxu0 %v2077
      %2304 = vmatprep.subr.bf16.mxu0 %v2092
      %2305 = vmatpush1.bf16.msra.mxu0 %v2091
      %2306 = vmatprep.subr.bf16.mxu0 %v2106
      %2307 = vmatpush1.bf16.msra.mxu0 %v2105
      %2308 = vmatprep.subr.bf16.mxu0 %v2120
      %2309 = vmatpush1.bf16.msra.mxu0 %v2119
      %2310 = vmatprep.subr.bf16.mxu0 %v2014
      %2311 = vmatpush1.bf16.msra.mxu0 %v2013
      %2312 = vmatprep.subr.bf16.mxu0 %v2028
      %2313 = vmatpush1.bf16.msra.mxu0 %v2027
      %2314 = vmatprep.subr.bf16.mxu0 %v2042
      %2315 = vmatpush1.bf16.msra.mxu0 %v2041
      %2316 = vmatprep.subr.bf16.mxu0 %v2056
      %2317 = vmatpush1.bf16.msra.mxu0 %v2055
      %2318 = vmatprep.subr.bf16.mxu0 %v2185
      %2319 = vmatpush1.bf16.msra.mxu0 %v2182
      %2320 = vmatprep.subr.bf16.mxu0 0
      %2321 = vmatpush1.bf16.msra.mxu0 0
      %2322 = vmatprep.subr.bf16.mxu0 0
      %2323 = vmatpush1.bf16.msra.mxu0 0
      %2324 = vmatprep.mubr.bf16.mxu0 %v2167
      %2325 = vmatmul.mubr.bf16.gmra.mrb[0].mxu0 %v2163
      %v2326 = vpop.f32.mrb[0].mxu0
      %v2327 = vadd.f32 0.0, %v2326
      %v2328 = vpop.f32.mrb[0].mxu0
      %v2329 = vadd.f32 0.0, %v2328
      %v2330 = vpop.f32.mrb[0].mxu0
      %v2331 = vpop.f32.mrb[0].mxu0
      %2332 = vdwg.mxu0
      %2333 = vmatprep.subr.bf16.mxu0 %v2010
      %2334 = vmatpush1.bf16.msra.mxu0 %v2009
      %2335 = vmatprep.subr.bf16.mxu0 %v2024
      %2336 = vmatpush1.bf16.msra.mxu0 %v2023
      %2337 = vmatprep.subr.bf16.mxu0 %v2038
      %2338 = vmatpush1.bf16.msra.mxu0 %v2037
      %2339 = vmatprep.subr.bf16.mxu0 %v2052
      %2340 = vmatpush1.bf16.msra.mxu0 %v2051
      %2341 = vmatprep.subr.bf16.mxu0 %v2066
      %2342 = vmatpush1.bf16.msra.mxu0 %v2065
      %2343 = vmatprep.subr.bf16.mxu0 %v2080
      %2344 = vmatpush1.bf16.msra.mxu0 %v2079
      %2345 = vmatprep.subr.bf16.mxu0 %v2094
      %2346 = vmatpush1.bf16.msra.mxu0 %v2093
      %2347 = vmatprep.subr.bf16.mxu0 %v2108
      %2348 = vmatpush1.bf16.msra.mxu0 %v2107
      %2349 = vmatprep.subr.bf16.mxu0 %v2122
      %2350 = vmatpush1.bf16.msra.mxu0 %v2121
      %2351 = vmatprep.subr.bf16.mxu0 %v2016
      %2352 = vmatpush1.bf16.msra.mxu0 %v2015
      %2353 = vmatprep.subr.bf16.mxu0 %v2030
      %2354 = vmatpush1.bf16.msra.mxu0 %v2029
      %2355 = vmatprep.subr.bf16.mxu0 %v2044
      %2356 = vmatpush1.bf16.msra.mxu0 %v2043
      %2357 = vmatprep.subr.bf16.mxu0 %v2058
      %2358 = vmatpush1.bf16.msra.mxu0 %v2057
      %2359 = vmatprep.subr.bf16.mxu0 %v2191
      %2360 = vmatpush1.bf16.msra.mxu0 %v2188
      %2361 = vmatprep.subr.bf16.mxu0 0
      %2362 = vmatpush1.bf16.msra.mxu0 0
      %2363 = vmatprep.subr.bf16.mxu0 0
      %2364 = vmatpush1.bf16.msra.mxu0 0
      %2365 = vmatprep.mubr.bf16.mxu0 %v2167
      %2366 = vmatmul.mubr.bf16.gmra.mrb[0].mxu0 %v2163
      %v2367 = vpop.f32.mrb[0].mxu0
      %v2368 = vadd.f32 0.0, %v2367
      %v2369 = vpop.f32.mrb[0].mxu0
      %v2370 = vadd.f32 0.0, %v2369
      %v2371 = vpop.f32.mrb[0].mxu0
      %v2372 = vpop.f32.mrb[0].mxu0
      %2373 = vdwg.mxu0
      %2374 = vmatprep.subr.bf16.mxu0 %v2012
      %2375 = vmatpush1.bf16.msra.mxu0 %v2011
      %2376 = vmatprep.subr.bf16.mxu0 %v2026
      %2377 = vmatpush1.bf16.msra.mxu0 %v2025
      %2378 = vmatprep.subr.bf16.mxu0 %v2040
      %2379 = vmatpush1.bf16.msra.mxu0 %v2039
      %2380 = vmatprep.subr.bf16.mxu0 %v2054
      %2381 = vmatpush1.bf16.msra.mxu0 %v2053
      %2382 = vmatprep.subr.bf16.mxu0 %v2068
      %2383 = vmatpush1.bf16.msra.mxu0 %v2067
      %2384 = vmatprep.subr.bf16.mxu0 %v2082
      %2385 = vmatpush1.bf16.msra.mxu0 %v2081
      %2386 = vmatprep.subr.bf16.mxu0 %v2096
      %2387 = vmatpush1.bf16.msra.mxu0 %v2095
      %2388 = vmatprep.subr.bf16.mxu0 %v2110
      %2389 = vmatpush1.bf16.msra.mxu0 %v2109
      %2390 = vmatprep.subr.bf16.mxu0 %v2124
      %2391 = vmatpush1.bf16.msra.mxu0 %v2123
      %2392 = vmatprep.subr.bf16.mxu0 %v2130
      %2393 = vmatpush1.bf16.msra.mxu0 %v2129
      %2394 = vmatprep.subr.bf16.mxu0 %v2134
      %2395 = vmatpush1.bf16.msra.mxu0 %v2133
      %2396 = vmatprep.subr.bf16.mxu0 %v2138
      %2397 = vmatpush1.bf16.msra.mxu0 %v2137
      %2398 = vmatprep.subr.bf16.mxu0 %v2142
      %2399 = vmatpush1.bf16.msra.mxu0 %v2141
      %2400 = vmatprep.subr.bf16.mxu0 %v2197
      %2401 = vmatpush1.bf16.msra.mxu0 %v2194
      %2402 = vmatprep.subr.bf16.mxu0 0
      %2403 = vmatpush1.bf16.msra.mxu0 0
      %2404 = vmatprep.subr.bf16.mxu0 0
      %2405 = vmatpush1.bf16.msra.mxu0 0
      %2406 = vmatprep.mubr.bf16.mxu0 %v2167
      %2407 = vmatmul.mubr.bf16.gmra.mrb[0].mxu0 %v2163
      %v2408 = vpop.f32.mrb[0].mxu0
      %v2409 = vadd.f32 0.0, %v2408
      %v2410 = vpop.f32.mrb[0].mxu0
      %v2411 = vadd.f32 0.0, %v2410
      %v2412 = vpop.f32.mrb[0].mxu0
      %v2413 = vpop.f32.mrb[0].mxu0
      %2414 = vdwg.mxu0
      %2415 = vmatprep.subr.bf16.mxu0 %v2014
      %2416 = vmatpush1.bf16.msra.mxu0 %v2013
      %2417 = vmatprep.subr.bf16.mxu0 %v2028
      %2418 = vmatpush1.bf16.msra.mxu0 %v2027
      %2419 = vmatprep.subr.bf16.mxu0 %v2042
      %2420 = vmatpush1.bf16.msra.mxu0 %v2041
      %2421 = vmatprep.subr.bf16.mxu0 %v2056
      %2422 = vmatpush1.bf16.msra.mxu0 %v2055
      %2423 = vmatprep.subr.bf16.mxu0 %v2070
      %2424 = vmatpush1.bf16.msra.mxu0 %v2069
      %2425 = vmatprep.subr.bf16.mxu0 %v2084
      %2426 = vmatpush1.bf16.msra.mxu0 %v2083
      %2427 = vmatprep.subr.bf16.mxu0 %v2098
      %2428 = vmatpush1.bf16.msra.mxu0 %v2097
      %2429 = vmatprep.subr.bf16.mxu0 %v2112
      %2430 = vmatpush1.bf16.msra.mxu0 %v2111
      %2431 = vmatprep.subr.bf16.mxu0 %v2126
      %2432 = vmatpush1.bf16.msra.mxu0 %v2125
      %2433 = vmatprep.subr.bf16.mxu0 %v2132
      %2434 = vmatpush1.bf16.msra.mxu0 %v2131
      %2435 = vmatprep.subr.bf16.mxu0 %v2136
      %2436 = vmatpush1.bf16.msra.mxu0 %v2135
      %2437 = vmatprep.subr.bf16.mxu0 %v2140
      %2438 = vmatpush1.bf16.msra.mxu0 %v2139
      %2439 = vmatprep.subr.bf16.mxu0 %v2144
      %2440 = vmatpush1.bf16.msra.mxu0 %v2143
      %2441 = vmatprep.subr.bf16.mxu0 %v2203
      %2442 = vmatpush1.bf16.msra.mxu0 %v2200
      %2443 = vmatprep.subr.bf16.mxu0 0
      %2444 = vmatpush1.bf16.msra.mxu0 0
      %2445 = vmatprep.subr.bf16.mxu0 0
      %2446 = vmatpush1.bf16.msra.mxu0 0
      %2447 = vmatprep.mubr.bf16.mxu0 %v2167
      %2448 = vmatmul.mubr.bf16.gmra.mrb[0].mxu0 %v2163
      %v2449 = vpop.f32.mrb[0].mxu0
      %v2450 = vadd.f32 0.0, %v2449
      %v2451 = vpop.f32.mrb[0].mxu0
      %v2452 = vadd.f32 0.0, %v2451
      %v2453 = vpop.f32.mrb[0].mxu0
      %v2454 = vpop.f32.mrb[0].mxu0
      %2455 = vdwg.mxu0
      %2456 = vmatprep.subr.bf16.mxu0 %v2016
      %2457 = vmatpush1.bf16.msra.mxu0 %v2015
      %2458 = vmatprep.subr.bf16.mxu0 %v2030
      %2459 = vmatpush1.bf16.msra.mxu0 %v2029
      %2460 = vmatprep.subr.bf16.mxu0 %v2044
      %2461 = vmatpush1.bf16.msra.mxu0 %v2043
      %2462 = vmatprep.subr.bf16.mxu0 %v2058
      %2463 = vmatpush1.bf16.msra.mxu0 %v2057
      %2464 = vmatprep.subr.bf16.mxu0 %v2072
      %2465 = vmatpush1.bf16.msra.mxu0 %v2071
      %2466 = vmatprep.subr.bf16.mxu0 %v2086
      %2467 = vmatpush1.bf16.msra.mxu0 %v2085
      %2468 = vmatprep.subr.bf16.mxu0 %v2100
      %2469 = vmatpush1.bf16.msra.mxu0 %v2099
      %2470 = vmatprep.subr.bf16.mxu0 %v2114
      %2471 = vmatpush1.bf16.msra.mxu0 %v2113
      %2472 = vmatprep.subr.bf16.mxu0 %v2128
      %2473 = vmatpush1.bf16.msra.mxu0 %v2127
      %2474 = vmatprep.subr.bf16.mxu0 %v2004
      %2475 = vmatpush1.bf16.msra.mxu0 %v2003
      %2476 = vmatprep.subr.bf16.mxu0 %v2018
      %2477 = vmatpush1.bf16.msra.mxu0 %v2017
      %2478 = vmatprep.subr.bf16.mxu0 %v2032
      %2479 = vmatpush1.bf16.msra.mxu0 %v2031
      %2480 = vmatprep.subr.bf16.mxu0 %v2046
      %2481 = vmatpush1.bf16.msra.mxu0 %v2045
      %2482 = vmatprep.subr.bf16.mxu0 %v2209
      %2483 = vmatpush1.bf16.msra.mxu0 %v2206
      %2484 = vmatprep.subr.bf16.mxu0 0
      %2485 = vmatpush1.bf16.msra.mxu0 0
      %2486 = vmatprep.subr.bf16.mxu0 0
      %2487 = vmatpush1.bf16.msra.mxu0 0
      %2488 = vmatprep.mubr.bf16.mxu0 %v2167
      %2489 = vmatmul.mubr.bf16.gmra.mrb[0].mxu0 %v2163
      %v2490 = vpop.f32.mrb[0].mxu0
      %v2491 = vadd.f32 0.0, %v2490
      %v2492 = vpop.f32.mrb[0].mxu0
      %v2493 = vpop.f32.mrb[0].mxu0
      %v2494 = vpop.f32.mrb[0].mxu0
      %2495 = vdwg.mxu0
      %v2496 = vld [vmem:[%s5] sm:$0xff]
      %2498 = vset.pattern.permute.xlu0 0
      %2499 = vperm.xlu0 %2498, %v2496
      %v2500 = vpop.permute.xlu0 %2499
      %v2502 = vmul.f32 %v2247, %v2500
      %v2503 = vmul.f32 %v2286, %v2500
      %v2504 = vmul.f32 %v2288, %v2500
      %v2505 = vmul.f32 %v2327, %v2500
      %v2506 = vmul.f32 %v2329, %v2500
      %v2507 = vmul.f32 %v2368, %v2500
      %v2508 = vmul.f32 %v2370, %v2500
      %v2509 = vmul.f32 %v2409, %v2500
      %v2510 = vmul.f32 %v2411, %v2500
      %v2511 = vmul.f32 %v2450, %v2500
      %v2512 = vmul.f32 %v2452, %v2500
      %v2513 = vmul.f32 %v2491, %v2500
      %v2514 = vld [vmem:[%s6] sm:$0xff]
      %2516 = vset.pattern.permute.xlu0 0
      %2517 = vperm.xlu0 %2516, %v2514
      %v2518 = vpop.permute.xlu0 %2517
      %v2520 = vadd.f32 %v2502, %v2518
      %v2521 = vadd.f32 %v2503, %v2518
      %v2522 = vadd.f32 %v2504, %v2518
      %v2523 = vadd.f32 %v2505, %v2518
      %v2524 = vadd.f32 %v2506, %v2518
      %v2525 = vadd.f32 %v2507, %v2518
      %v2526 = vadd.f32 %v2508, %v2518
      %v2527 = vadd.f32 %v2509, %v2518
      %v2528 = vadd.f32 %v2510, %v2518
      %v2529 = vadd.f32 %v2511, %v2518
      %v2530 = vadd.f32 %v2512, %v2518
      %v2531 = vadd.f32 %v2513, %v2518
      %v2532 = vmax.f32 %v2520, 0.0
      %v2533 = vmax.f32 %v2521, 0.0
      %v2534 = vmax.f32 %v2522, 0.0
      %v2535 = vmax.f32 %v2523, 0.0
      %v2536 = vmax.f32 %v2524, 0.0
      %v2537 = vmax.f32 %v2525, 0.0
      %v2538 = vmax.f32 %v2526, 0.0
      %v2539 = vmax.f32 %v2527, 0.0
      %v2540 = vmax.f32 %v2528, 0.0
      %v2541 = vmax.f32 %v2529, 0.0
      %v2542 = vmax.f32 %v2530, 0.0
      %v2543 = vmax.f32 %v2531, 0.0
      %v2544 = vmul.f32 %v2532, %v1478
      %v2545 = vmul.f32 %v2533, %v1482
      %v2546 = vmul.f32 %v2534, %v1486
      %v2547 = vmul.f32 %v2535, %v1490
      %v2548 = vmul.f32 %v2536, %v1494
      %v2549 = vmul.f32 %v2537, %v1498
      %v2550 = vmul.f32 %v2538, %v1502
      %v2551 = vmul.f32 %v2539, %v1506
      %v2552 = vmul.f32 %v2540, %v1510
      %v2553 = vmul.f32 %v2541, %v1514
      %v2554 = vmul.f32 %v2542, %v1518
      %v2555 = vmul.f32 %v2543, %v1522
      %v2556 = vpack.c.bf16 %v2544, %v2544
      %v2557 = vpack.c.bf16 %v2545, %v2545
      %v2558 = vpack.c.bf16 %v2546, %v2546
      %v2559 = vpack.c.bf16 %v2547, %v2547
      %v2560 = vpack.c.bf16 %v2548, %v2548
      %v2561 = vpack.c.bf16 %v2549, %v2549
      %v2562 = vpack.c.bf16 %v2550, %v2550
      %v2563 = vpack.c.bf16 %v2551, %v2551
      %v2564 = vpack.c.bf16 %v2552, %v2552
      %v2565 = vpack.c.bf16 %v2553, %v2553
      %v2566 = vpack.c.bf16 %v2554, %v2554
      %v2567 = vpack.c.bf16 %v2555, %v2555
      %v2580 = vunpack.c.l.b16 %v2556
      %v2581 = vunpack.c.l.b16 %v2557
      %v2582 = vunpack.c.l.b16 %v2558
      %v2583 = vunpack.c.l.b16 %v2559
      %v2584 = vunpack.c.l.b16 %v2560
      %v2585 = vunpack.c.l.b16 %v2561
      %v2586 = vunpack.c.l.b16 %v2562
      %v2587 = vunpack.c.l.b16 %v2563
      %v2588 = vunpack.c.l.b16 %v2564
      %v2589 = vunpack.c.l.b16 %v2565
      %v2590 = vunpack.c.l.b16 %v2566
      %v2591 = vunpack.c.l.b16 %v2567
      %v2592 = vpack.c.b16 %v2581, %v2580
      %v2593 = vpack.c.b16 %v2583, %v2582
      %v2594 = vpack.c.b16 %v2585, %v2584
      %v2595 = vpack.c.b16 %v2587, %v2586
      %v2596 = vpack.c.b16 %v2589, %v2588
      %v2597 = vpack.c.b16 %v2591, %v2590
      %2604 = vst [vmem:[%s305] sm:$0xff] %v2592
      %2605 = vst [vmem:[%s305 + $0x8] sm:$0xff] %v2593
      %2606 = vst [vmem:[%s305 + $0x10] sm:$0xff] %v2594
      %2607 = vst [vmem:[%s305 + $0x18] sm:$0xff] %v2595
      %2608 = vst [vmem:[%s305 + $0x20] sm:$0xff] %v2596
      %2609 = vst [vmem:[%s305 + $0x28] sm:$0xff] %v2597
      %p2610 = scmp.lt.s32.totalorder %s19, 1
      %s2611 = scalar_select %p2610, %s19, 1
      %s2612 = smul.addr %s2611, 12
      %s2613 = smul.addr %s2612, 4
      %s2614 = scalar_lea.vmem %s8, %s2613
      // Predicated region
      $region53: #{_lambda_.4} parent=51 // pred_check
        %p2615 = pneg %p210
      $region54: #{_lambda_.4} parent=51 // pred_check_branch
        %2617 = sbr.rel (%p2615) target = $region56
      $region55: #{_lambda_.4} parent=51 // pred_region
        _
      $region56: #{_lambda_.4} parent=51 // pred_fallthru
        _
    $region52: #{_lambda_.4} parent=5 // pred_fallthru
      _
    %p2618 = scmp.le.s32.totalorder 2, %s14
    // Predicated region
    $region57: #{_lambda_.4} parent=5 // pred_check
      %p2619 = pneg %p2618
    $region58: #{_lambda_.4} parent=5 // pred_check_branch
      %2621 = sbr.rel (%p2619) target = $region60
    $region59: #{_lambda_.4} parent=5 // pred_region
      %s2622 = ssub.s32 %s14, 2
      // Predicated region
      $region61: #{_lambda_.4} parent=59 // pred_check
        %p2623 = pneg %p216
      $region62: #{_lambda_.4} parent=59 // pred_check_branch
        %2625 = sbr.rel (%p2623) target = $region64
      $region63: #{_lambda_.4} parent=59 // pred_region
        %p2626 = scmp.lt.s32.totalorder %s20, 1
        %s2627 = scalar_select %p2626, %s20, 1
        %s2628 = smul.addr %s2627, 12
        %s2629 = smul.addr %s2628, 4
        %s2630 = scalar_lea.vmem %s8, %s2629
      $region64: #{_lambda_.4} parent=59 // pred_fallthru
        _
    $region60: #{_lambda_.4} parent=5 // pred_fallthru
      _
  $region6: #{_lambda_.4} parent=0 // loop_footer
    %s18 = sadd.s32 1, %s14
  $region7: #{_lambda_.4} parent=0 // loop_footer_branch
    %13 = sbr.rel target = $region3
  $region8: #{_lambda_.4} parent=0 // loop_exit
    _

</llo_original>
